<compile_context>
chip_gen: v7x
topology: tpu7x:2x2x1
jax: 0.10.0
libtpu: 0.0.40
codegen_flags: <defaults>
</compile_context>

<pallas_src>
import math

import jax
import jax.numpy as jnp
from jax.experimental import pallas as pl
from jax.experimental.pallas import tpu as pltpu

NUM_HEADS = 4
BN_EPS = 1e-5


# ----------------------------------------------------------------------------
# Kernel 1: batched pooled-query multi-head cross-attention -> sigmoid gate
# ----------------------------------------------------------------------------
def attn_gate_kernel(q_ref, enc_ref, mask_ref, wq_ref, bq_ref, wk_ref, bk_ref,
                     wv_ref, bv_ref, wo_ref, bo_ref, gate_ref):
    # q_ref:   (B, Cin)    pooled query features, all batch elements stacked
    # enc_ref: (B*S, Ce)   encoder tokens, all batch elements stacked
    # mask_ref:(D, NH)     head-selector mask (1 where lane d belongs to head h)
    # gate_ref:(B, Ce)     sigmoid(attention output) = per-batch channel gate
    B = q_ref.shape[0]
    S = enc_ref.shape[0] // B
    D = wq_ref.shape[1]
    dh = D // NUM_HEADS
    scale = 1.0 / math.sqrt(dh)

    # Single batched projections (M = B and M = B*S) instead of per-batch 1-row matmuls.
    q = jnp.dot(q_ref[...], wq_ref[...], preferred_element_type=jnp.float32) + bq_ref[...]
    k = jnp.dot(enc_ref[...], wk_ref[...], preferred_element_type=jnp.float32) + bk_ref[...]
    v = jnp.dot(enc_ref[...], wv_ref[...], preferred_element_type=jnp.float32) + bv_ref[...]
    mask = mask_ref[...]                                        # (D, NH)

    outs = []
    for b in range(B):                                          # tiny static loop
        kb = k[b * S:(b + 1) * S, :]                            # (S, D)
        vb = v[b * S:(b + 1) * S, :]                            # (S, D)
        qb = q[b:b + 1, :]                                      # (1, D)
        # per-head scores with ONE (S, D) @ (D, NH) matmul (no per-head 1-row matmuls)
        sc = jnp.dot(kb * qb, mask, preferred_element_type=jnp.float32) * scale   # (S, NH)
        m = jnp.max(sc, axis=0, keepdims=True)
        e = jnp.exp(sc - m)
        p = e * pl.reciprocal(jnp.sum(e, axis=0, keepdims=True), approx=True)      # (S, NH)
        # broadcast head probabilities back onto their dh lanes: (S, NH) x (D, NH)^T
        pe = jax.lax.dot_general(p, mask, (((1,), (1,)), ((), ())),
                                 preferred_element_type=jnp.float32)               # (S, D)
        outs.append(jnp.sum(pe * vb, axis=0, keepdims=True))                       # (1, D)
    o = jnp.concatenate(outs, axis=0)                                              # (B, D)
    y = jnp.dot(o, wo_ref[...], preferred_element_type=jnp.float32) + bo_ref[...]  # (B, Ce)
    gate_ref[...] = jax.nn.sigmoid(y)


def cross_attention_gate(x_nchw, enc_nchw, p):
    """sigmoid(CrossAttention(x, enc_feat)) as a (B, Ce) channel gate (one invocation)."""
    B, Cin, H, W = x_nchw.shape
    Ce = enc_nchw.shape[1]
    S = enc_nchw.shape[2] * enc_nchw.shape[3]
    D = p['wq'].shape[1]
    dh = D // NUM_HEADS

    qpool = jnp.mean(x_nchw, axis=(2, 3))                                       # (B, Cin)
    enc_tok = jnp.transpose(enc_nchw.reshape(B, Ce, S), (0, 2, 1)).reshape(B * S, Ce)
    head_mask = (jnp.arange(D)[:, None] // dh
                 == jnp.arange(NUM_HEADS)[None, :]).astype(jnp.float32)         # (D, NH)

    # Whole problem fits in VMEM -> single no-grid invocation (avoids per-batch
    # latency-bound grid steps of the previous version).
    return pl.pallas_call(
        attn_gate_kernel,
        out_shape=jax.ShapeDtypeStruct((B, Ce), jnp.float32),
    )(qpool, enc_tok, head_mask, p['wq'], p['bq'], p['wk'], p['bk'],
      p['wv'], p['bv'], p['wo'], p['bo'])


# ----------------------------------------------------------------------------
# Kernel 2: fused Conv3x3(+folded BN)+ReLU -> (gate folded into) Conv1x1 (conv8)
# ----------------------------------------------------------------------------
def conv_gate_kernel(x_ref, wc_ref, bnb_ref, w8_ref, b8_ref, o_ref, acc_ref):
    # x_ref : (1, H+2, W+2, Cin) bf16  halo-padded NHWC image of one batch element,
    #                                  resident in VMEM across the row-tile axis
    # wc_ref: (9, Cin, Cm)       bf16  3x3 taps, BN scale pre-folded into columns
    # bnb_ref:(1, Cm)            f32   folded BN bias (added before ReLU)
    # w8_ref: (1, Cm, Cm)        bf16  conv8 weight with the per-batch sigmoid gate
    #                                  folded into its rows
    # b8_ref: (1, Cm)            f32
    # o_ref : (1, Cm, TH*W)      f32   channels-first output tile (lane-dense)
    # acc_ref:(TH*W, Cm)         f32   VMEM accumulator scratch
    Cin = x_ref.shape[3]
    W = x_ref.shape[2] - 2
    THW = o_ref.shape[2]
    TH = THW // W

    r0 = pl.multiple_of(pl.program_id(1) * TH, TH)

    # 3x3 taps formed in-kernel from the halo block (no HBM im2col); each tap is one
    # MXU matmul (K = Cin) accumulated into the f32 VMEM scratch.
    for k in range(9):
        dh, dw = divmod(k, 3)
        lhs = x_ref[0, pl.ds(r0 + dh, TH), pl.ds(dw, W), :].reshape(THW, Cin)
        contrib = jnp.dot(lhs, wc_ref[k], preferred_element_type=jnp.float32)
        if k == 0:
            acc_ref[...] = contrib
        else:
            acc_ref[...] += contrib

    y = jnp.maximum(acc_ref[...] + bnb_ref[...], 0.0)            # folded BN bias + ReLU
    # TODO(synk): Dropout2d(0.1) inside conv8 is identity at inference and is omitted.
    o = jnp.dot(y.astype(jnp.bfloat16), w8_ref[0],
                preferred_element_type=jnp.float32) + b8_ref[...]  # 1x1 conv8 (gate folded)
    o_ref[0] = o.T                                                # emit (Cm, TH*W) layout


def _vmem_cap_bytes():
    cap = 32 << 20                       # safe for v7x (64 MiB/TC); v5e/v6e have 128 MiB
    try:                                  # widen when the part has more VMEM headroom
        cap = max(cap, min(int(pltpu.get_tpu_info().vmem_capacity_bytes) // 2, 64 << 20))
    except Exception:
        pass
    return cap


def _pick_row_tile(H, W, target_px=512, min_tiles=1):
    """Rows per tile: divides H, keeps the output tile lane-dense (TH*W % 128 == 0 or
    the full image), prefers the largest tile <= target_px pixels, and keeps at least
    `min_tiles` tiles (so v7x's two TensorCores both get work when B == 1)."""
    cands = [t for t in range(1, H + 1)
             if H % t == 0 and ((t * W) % 128 == 0 or t == H)]
    good = [t for t in cands if t * W <= target_px and H // t >= min_tiles]
    if good:
        return max(good)
    ok = [t for t in cands if H // t >= min_tiles]
    return max(ok) if ok else H


def danet_head_forward(x_nchw, enc_nchw, params):
    B, Cin, H, W = x_nchw.shape
    Ce = enc_nchw.shape[1]
    Cm = params['w8'].shape[0]
    HW = H * W
    # The channel-gate broadcast and conv8 require encoder channels == inter_channels.
    assert Ce == Cm, f"enc_feat channels ({Ce}) must equal inter_channels ({Cm})"
    assert W % 8 == 0, "W must be a multiple of 8 (sublane-aligned in-kernel reshape)"

    # ---- attention gate: one batched Pallas invocation ----
    gate = cross_attention_gate(x_nchw, enc_nchw, params)             # (B, Cm) f32

    # ---- weight prep: all folding + bf16 casts done once, outside the kernel ----
    wc = (params['wc'] * params['bn_scale'].reshape(1, 1, 1, Cm)
          ).reshape(9, Cin, Cm).astype(jnp.bfloat16)                  # BN scale folded
    # Sigmoid gate folded into conv8 rows (exact: (y*g) @ W8 == y @ (g[:,None]*W8);
    # the per-channel gate is applied after ReLU in both forms).
    w8_b = (gate[:, :, None] * params['w8'][None, :, :]).astype(jnp.bfloat16)   # (B,Cm,Cm)
    bnb = params['bn_bias']                                            # (1, Cm) f32
    b8 = params['b8']                                                  # (1, Cm) f32

    # ---- input prep: NHWC, 1-px halo pad, bf16 once (~1x HBM traffic, no 9x im2col) ----
    x_pad = jnp.pad(jnp.transpose(x_nchw, (0, 2, 3, 1)).astype(jnp.bfloat16),
                    ((0, 0), (1, 1), (1, 1), (0, 0)))                  # (B, H+2, W+2, Cin)

    cap = _vmem_cap_bytes()
    TH = _pick_row_tile(H, W,
                        target_px=(1024 if cap >= (48 << 20) else 512),
                        min_tiles=(2 if B == 1 else 1))
    n_tiles = H // TH
    THW = TH * W

    needed = (2 * (H + 2) * (W + 2) * Cin * 2      # x block (double-buffered, bf16)
              + 2 * 9 * Cin * Cm * 2               # 3x3 weight
              + 2 * Cm * Cm * 2                    # gated conv8 weight
              + 4 * Cm * 4                         # biases
              + 2 * THW * Cm * 4                   # output block
              + THW * Cm * 4)                      # f32 accumulator scratch
    vmem_bytes = int(min(cap, max(needed + (4 << 20), 16 << 20)))

    out = pl.pallas_call(
        conv_gate_kernel,
        out_shape=jax.ShapeDtypeStruct((B, Cm, HW), jnp.float32),
        grid=(B, n_tiles),
        in_specs=[
            pl.BlockSpec((1, H + 2, W + 2, Cin), lambda b, t: (b, 0, 0, 0)),
            pl.BlockSpec((9, Cin, Cm), lambda b, t: (0, 0, 0)),
            pl.BlockSpec((1, Cm), lambda b, t: (0, 0)),
            pl.BlockSpec((1, Cm, Cm), lambda b, t: (b, 0, 0)),
            pl.BlockSpec((1, Cm), lambda b, t: (0, 0)),
        ],
        out_specs=pl.BlockSpec((1, Cm, THW), lambda b, t: (b, 0, t)),
        scratch_shapes=[pltpu.VMEM((THW, Cm), jnp.float32)],
        compiler_params=pltpu.CompilerParams(
            dimension_semantics=("parallel", "parallel"),
            vmem_limit_bytes=vmem_bytes),
    )(x_pad, wc, bnb, w8_b, b8)

    # Output is already channels-first: reshape only, no extra HBM transpose pass.
    return out.reshape(B, Cm, H, W)


# ----------------------------------------------------------------------------
# Deterministic parameter init (inference-mode BatchNorm folded to scale/bias)
# ----------------------------------------------------------------------------
def init_params(key, in_channels, inter_channels):
    assert in_channels % NUM_HEADS == 0
    D = in_channels                  # CrossAttention embed dim (constructor arg)
    Cm = inter_channels

    def nk():
        nonlocal key
        key, sub = jax.random.split(key)
        return sub

    def wn(shape, std=0.02):
        return std * jax.random.normal(nk(), shape, jnp.float32)

    gamma = 1.0 + 0.1 * jax.random.normal(nk(), (Cm,), jnp.float32)
    beta = 0.1 * jax.random.normal(nk(), (Cm,), jnp.float32)
    r_mean = 0.1 * jax.random.normal(nk(), (Cm,), jnp.float32)
    r_var = 1.0 + 0.2 * jnp.abs(jax.random.normal(nk(), (Cm,), jnp.float32))
    bn_scale = gamma / jnp.sqrt(r_var + BN_EPS)
    bn_bias = beta - r_mean * bn_scale

    return {
        # CrossAttention (stand-in): pooled query from x, keys/values from enc_feat
        'wq': wn((in_channels, D), 0.05), 'bq': wn((1, D), 0.02),
        'wk': wn((Cm, D), 0.05),          'bk': wn((1, D), 0.02),
        'wv': wn((Cm, D), 0.05),          'bv': wn((1, D), 0.02),
        'wo': wn((D, Cm), 0.05),          'bo': wn((1, Cm), 0.02),
        # FMS_block (stand-in): Conv2d(in, inter, 3, padding=1, bias=False)+BN+ReLU
        'wc': wn((3, 3, in_channels, Cm)),          # HWIO
        'bn_scale': bn_scale.reshape(1, Cm),
        'bn_bias': bn_bias.reshape(1, Cm),
        # conv8: 1x1 Conv(inter, inter) with bias
        'w8': wn((Cm, Cm)), 'b8': wn((1, Cm), 0.02),
    }


# ----------------------------------------------------------------------------
# Pure-JAX reference (f32, HIGHEST precision) for the correctness check
# ----------------------------------------------------------------------------
def ref_forward(x_nchw, enc_nchw, p):
    HP = jax.lax.Precision.HIGHEST
    B, Cin, H, W = x_nchw.shape
    Ce = enc_nchw.shape[1]
    S = enc_nchw.shape[2] * enc_nchw.shape[3]

    qv = jnp.mean(x_nchw, axis=(2, 3))                              # (B, Cin)
    tok = jnp.transpose(enc_nchw.reshape(B, Ce, S), (0, 2, 1))      # (B, S, Ce)
    q = jnp.dot(qv, p['wq'], precision=HP) + p['bq']
    k = jnp.einsum('bsc,cd->bsd', tok, p['wk'], precision=HP) + p['bk']
    v = jnp.einsum('bsc,cd->bsd', tok, p['wv'], precision=HP) + p['bv']
    D = q.shape[-1]
    dh = D // NUM_HEADS
    qh = q.reshape(B, NUM_HEADS, dh)
    kh = k.reshape(B, S, NUM_HEADS, dh)
    vh = v.reshape(B, S, NUM_HEADS, dh)
    sc = jnp.einsum('bhd,bshd->bhs', qh, kh, precision=HP) / math.sqrt(dh)
    pr = jax.nn.softmax(sc, axis=-1)
    oh = jnp.einsum('bhs,bshd->bhd', pr, vh, precision=HP).reshape(B, D)
    gate = jax.nn.sigmoid(jnp.dot(oh, p['wo'], precision=HP) + p['bo'])   # (B, Ce)

    x_nhwc = jnp.transpose(x_nchw, (0, 2, 3, 1))
    y = jax.lax.conv_general_dilated(
        x_nhwc, p['wc'], window_strides=(1, 1), padding='SAME',
        dimension_numbers=('NHWC', 'HWIO', 'NHWC'), precision=HP)
    y = jnp.maximum(y * p['bn_scale'].reshape(1, 1, 1, -1)
                    + p['bn_bias'].reshape(1, 1, 1, -1), 0.0)
    y = y * gate[:, None, None, :]
    out = jnp.einsum('bhwc,cd->bhwd', y, p['w8'], precision=HP) \
        + p['b8'].reshape(1, 1, 1, -1)
    return jnp.transpose(out, (0, 3, 1, 2))


# ----------------------------------------------------------------------------
if __name__ == "__main__":
    B = 2
    in_channels = 64
    inter_channels = 128      # == enc_feat channels (required by the gate broadcast);
                              # multiple of 128 -> lane-dense stores
    H = W = 16
    He = We = 8

    key = jax.random.PRNGKey(0)
    kp, kx, ke = jax.random.split(key, 3)
    params = init_params(kp, in_channels, inter_channels)
    x = jax.random.normal(kx, (B, in_channels, H, W), jnp.float32)
    enc_feat = jax.random.normal(ke, (B, inter_channels, He, We), jnp.float32)

    fwd = jax.jit(danet_head_forward)
    out = fwd(x, enc_feat, params)
    out = jax.block_until_ready(out)
    assert out.shape == (B, inter_channels, H, W), f"bad shape: {out.shape}"

    ref = ref_forward(x, enc_feat, params)
    err = float(jnp.max(jnp.abs(out - ref)))
    scale = float(jnp.max(jnp.abs(ref))) + 1e-6
    # bf16 MXU operands (f32 accumulation) + approx softmax reciprocal vs the f32
    # HIGHEST-precision reference bound the achievable agreement; 2e-2 relative covers it.
    assert err / scale < 2e-2, f"mismatch: max abs err {err}, scale {scale}"

    print("KERNEL_OK")
</pallas_src>

<mosaic_0001>
module attributes {stable_mosaic.version = 11 : i64} {
  func.func @attn_gate_kernel(%arg0: memref<2x64xf32, #tpu.memory_space<vmem>>, %arg1: memref<128x128xf32, #tpu.memory_space<vmem>>, %arg2: memref<64x4xf32, #tpu.memory_space<vmem>>, %arg3: memref<64x64xf32, #tpu.memory_space<vmem>>, %arg4: memref<1x64xf32, #tpu.memory_space<vmem>>, %arg5: memref<128x64xf32, #tpu.memory_space<vmem>>, %arg6: memref<1x64xf32, #tpu.memory_space<vmem>>, %arg7: memref<128x64xf32, #tpu.memory_space<vmem>>, %arg8: memref<1x64xf32, #tpu.memory_space<vmem>>, %arg9: memref<64x128xf32, #tpu.memory_space<vmem>>, %arg10: memref<1x128xf32, #tpu.memory_space<vmem>>, %arg11: memref<2x128xf32, #tpu.memory_space<vmem>>) attributes {dimension_semantics = [], scalar_prefetch = 0 : i64, scratch_operands = 0 : i64, tpu.core_type = #tpu.core_type<tc>} {
    %c0 = arith.constant 0 : index
    %c0_0 = arith.constant 0 : index
    %0 = vector.load %arg0[%c0, %c0_0] : memref<2x64xf32, #tpu.memory_space<vmem>>, vector<2x64xf32>
    %c0_1 = arith.constant 0 : index
    %c0_2 = arith.constant 0 : index
    %1 = vector.load %arg3[%c0_1, %c0_2] : memref<64x64xf32, #tpu.memory_space<vmem>>, vector<64x64xf32>
    %cst = arith.constant dense<0.000000e+00> : vector<2x64xf32>
    %2 = tpu.matmul %0, %1, %cst {dimension_numbers = #tpu.dot_dimension_numbers<[1], [0], [0], [1], [0, 0, 1, 1], [], []>} : vector<2x64xf32>, vector<64x64xf32>, vector<2x64xf32> -> vector<2x64xf32>
    %c0_3 = arith.constant 0 : index
    %c0_4 = arith.constant 0 : index
    %3 = vector.load %arg4[%c0_3, %c0_4] : memref<1x64xf32, #tpu.memory_space<vmem>>, vector<1x64xf32>
    %4 = vector.broadcast %3 : vector<1x64xf32> to vector<2x64xf32>
    %5 = arith.addf %2, %4 : vector<2x64xf32>
    %c0_5 = arith.constant 0 : index
    %c0_6 = arith.constant 0 : index
    %6 = vector.load %arg1[%c0_5, %c0_6] : memref<128x128xf32, #tpu.memory_space<vmem>>, vector<128x128xf32>
    %c0_7 = arith.constant 0 : index
    %c0_8 = arith.constant 0 : index
    %7 = vector.load %arg5[%c0_7, %c0_8] : memref<128x64xf32, #tpu.memory_space<vmem>>, vector<128x64xf32>
    %cst_9 = arith.constant dense<0.000000e+00> : vector<128x64xf32>
    %8 = tpu.matmul %6, %7, %cst_9 {dimension_numbers = #tpu.dot_dimension_numbers<[1], [0], [0], [1], [0, 0, 1, 1], [], []>} : vector<128x128xf32>, vector<128x64xf32>, vector<128x64xf32> -> vector<128x64xf32>
    %c0_10 = arith.constant 0 : index
    %c0_11 = arith.constant 0 : index
    %9 = vector.load %arg6[%c0_10, %c0_11] : memref<1x64xf32, #tpu.memory_space<vmem>>, vector<1x64xf32>
    %10 = vector.broadcast %9 : vector<1x64xf32> to vector<128x64xf32>
    %11 = arith.addf %8, %10 : vector<128x64xf32>
    %c0_12 = arith.constant 0 : index
    %c0_13 = arith.constant 0 : index
    %12 = vector.load %arg1[%c0_12, %c0_13] : memref<128x128xf32, #tpu.memory_space<vmem>>, vector<128x128xf32>
    %c0_14 = arith.constant 0 : index
    %c0_15 = arith.constant 0 : index
    %13 = vector.load %arg7[%c0_14, %c0_15] : memref<128x64xf32, #tpu.memory_space<vmem>>, vector<128x64xf32>
    %cst_16 = arith.constant dense<0.000000e+00> : vector<128x64xf32>
    %14 = tpu.matmul %12, %13, %cst_16 {dimension_numbers = #tpu.dot_dimension_numbers<[1], [0], [0], [1], [0, 0, 1, 1], [], []>} : vector<128x128xf32>, vector<128x64xf32>, vector<128x64xf32> -> vector<128x64xf32>
    %c0_17 = arith.constant 0 : index
    %c0_18 = arith.constant 0 : index
    %15 = vector.load %arg8[%c0_17, %c0_18] : memref<1x64xf32, #tpu.memory_space<vmem>>, vector<1x64xf32>
    %16 = vector.broadcast %15 : vector<1x64xf32> to vector<128x64xf32>
    %17 = arith.addf %14, %16 : vector<128x64xf32>
    %c0_19 = arith.constant 0 : index
    %c0_20 = arith.constant 0 : index
    %18 = vector.load %arg2[%c0_19, %c0_20] : memref<64x4xf32, #tpu.memory_space<vmem>>, vector<64x4xf32>
    %19 = vector.extract_strided_slice %11 {offsets = [0, 0], sizes = [64, 64], strides = [1, 1]} : vector<128x64xf32> to vector<64x64xf32>
    %20 = vector.extract_strided_slice %17 {offsets = [0, 0], sizes = [64, 64], strides = [1, 1]} : vector<128x64xf32> to vector<64x64xf32>
    %21 = vector.extract_strided_slice %5 {offsets = [0, 0], sizes = [1, 64], strides = [1, 1]} : vector<2x64xf32> to vector<1x64xf32>
    %22 = vector.broadcast %21 : vector<1x64xf32> to vector<64x64xf32>
    %23 = arith.mulf %19, %22 : vector<64x64xf32>
    %cst_21 = arith.constant dense<0.000000e+00> : vector<64x4xf32>
    %24 = tpu.matmul %23, %18, %cst_21 {dimension_numbers = #tpu.dot_dimension_numbers<[1], [0], [0], [1], [0, 0, 1, 1], [], []>} : vector<64x64xf32>, vector<64x4xf32>, vector<64x4xf32> -> vector<64x4xf32>
    %cst_22 = arith.constant 2.500000e-01 : f32
    %25 = vector.broadcast %cst_22 : f32 to vector<64x4xf32>
    %26 = arith.mulf %24, %25 : vector<64x4xf32>
    %cst_23 = arith.constant dense<0xFF800000> : vector<4xf32>
    %27 = vector.multi_reduction <maximumf>, %26, %cst_23 [0] : vector<64x4xf32> to vector<4xf32>
    %28 = vector.shape_cast %27 : vector<4xf32> to vector<1x4xf32>
    %29 = vector.broadcast %28 : vector<1x4xf32> to vector<64x4xf32>
    %30 = arith.subf %26, %29 : vector<64x4xf32>
    %31 = math.exp %30 : vector<64x4xf32>
    %cst_24 = arith.constant dense<0.000000e+00> : vector<4xf32>
    %32 = vector.multi_reduction <add>, %31, %cst_24 [0] : vector<64x4xf32> to vector<4xf32>
    %33 = vector.shape_cast %32 : vector<4xf32> to vector<1x4xf32>
    %34 = tpu.reciprocal %33 {approx = true} : vector<1x4xf32> -> vector<1x4xf32>
    %35 = vector.broadcast %34 : vector<1x4xf32> to vector<64x4xf32>
    %36 = arith.mulf %31, %35 : vector<64x4xf32>
    %cst_25 = arith.constant dense<0.000000e+00> : vector<64x64xf32>
    %37 = tpu.matmul %36, %18, %cst_25 {dimension_numbers = #tpu.dot_dimension_numbers<[1], [1], [0], [0], [0, 0, 1, 0], [], []>} : vector<64x4xf32>, vector<64x4xf32>, vector<64x64xf32> -> vector<64x64xf32>
    %38 = arith.mulf %37, %20 : vector<64x64xf32>
    %cst_26 = arith.constant dense<0.000000e+00> : vector<64xf32>
    %39 = vector.multi_reduction <add>, %38, %cst_26 [0] : vector<64x64xf32> to vector<64xf32>
    %40 = vector.shape_cast %39 : vector<64xf32> to vector<1x64xf32>
    %41 = vector.extract_strided_slice %11 {offsets = [64, 0], sizes = [64, 64], strides = [1, 1]} : vector<128x64xf32> to vector<64x64xf32>
    %42 = vector.extract_strided_slice %17 {offsets = [64, 0], sizes = [64, 64], strides = [1, 1]} : vector<128x64xf32> to vector<64x64xf32>
    %43 = vector.extract_strided_slice %5 {offsets = [1, 0], sizes = [1, 64], strides = [1, 1]} : vector<2x64xf32> to vector<1x64xf32>
    %44 = vector.broadcast %43 : vector<1x64xf32> to vector<64x64xf32>
    %45 = arith.mulf %41, %44 : vector<64x64xf32>
    %cst_27 = arith.constant dense<0.000000e+00> : vector<64x4xf32>
    %46 = tpu.matmul %45, %18, %cst_27 {dimension_numbers = #tpu.dot_dimension_numbers<[1], [0], [0], [1], [0, 0, 1, 1], [], []>} : vector<64x64xf32>, vector<64x4xf32>, vector<64x4xf32> -> vector<64x4xf32>
    %cst_28 = arith.constant 2.500000e-01 : f32
    %47 = vector.broadcast %cst_28 : f32 to vector<64x4xf32>
    %48 = arith.mulf %46, %47 : vector<64x4xf32>
    %cst_29 = arith.constant dense<0xFF800000> : vector<4xf32>
    %49 = vector.multi_reduction <maximumf>, %48, %cst_29 [0] : vector<64x4xf32> to vector<4xf32>
    %50 = vector.shape_cast %49 : vector<4xf32> to vector<1x4xf32>
    %51 = vector.broadcast %50 : vector<1x4xf32> to vector<64x4xf32>
    %52 = arith.subf %48, %51 : vector<64x4xf32>
    %53 = math.exp %52 : vector<64x4xf32>
    %cst_30 = arith.constant dense<0.000000e+00> : vector<4xf32>
    %54 = vector.multi_reduction <add>, %53, %cst_30 [0] : vector<64x4xf32> to vector<4xf32>
    %55 = vector.shape_cast %54 : vector<4xf32> to vector<1x4xf32>
    %56 = tpu.reciprocal %55 {approx = true} : vector<1x4xf32> -> vector<1x4xf32>
    %57 = vector.broadcast %56 : vector<1x4xf32> to vector<64x4xf32>
    %58 = arith.mulf %53, %57 : vector<64x4xf32>
    %cst_31 = arith.constant dense<0.000000e+00> : vector<64x64xf32>
    %59 = tpu.matmul %58, %18, %cst_31 {dimension_numbers = #tpu.dot_dimension_numbers<[1], [1], [0], [0], [0, 0, 1, 0], [], []>} : vector<64x4xf32>, vector<64x4xf32>, vector<64x64xf32> -> vector<64x64xf32>
    %60 = arith.mulf %59, %42 : vector<64x64xf32>
    %cst_32 = arith.constant dense<0.000000e+00> : vector<64xf32>
    %61 = vector.multi_reduction <add>, %60, %cst_32 [0] : vector<64x64xf32> to vector<64xf32>
    %62 = vector.shape_cast %61 : vector<64xf32> to vector<1x64xf32>
    %63 = tpu.concatenate %40, %62 in 0 : vector<1x64xf32>, vector<1x64xf32> -> vector<2x64xf32>
    %c0_33 = arith.constant 0 : index
    %c0_34 = arith.constant 0 : index
    %64 = vector.load %arg9[%c0_33, %c0_34] : memref<64x128xf32, #tpu.memory_space<vmem>>, vector<64x128xf32>
    %cst_35 = arith.constant dense<0.000000e+00> : vector<2x128xf32>
    %65 = tpu.matmul %63, %64, %cst_35 {dimension_numbers = #tpu.dot_dimension_numbers<[1], [0], [0], [1], [0, 0, 1, 1], [], []>} : vector<2x64xf32>, vector<64x128xf32>, vector<2x128xf32> -> vector<2x128xf32>
    %c0_36 = arith.constant 0 : index
    %c0_37 = arith.constant 0 : index
    %66 = vector.load %arg10[%c0_36, %c0_37] : memref<1x128xf32, #tpu.memory_space<vmem>>, vector<1x128xf32>
    %67 = vector.broadcast %66 : vector<1x128xf32> to vector<2x128xf32>
    %68 = arith.addf %65, %67 : vector<2x128xf32>
    %69 = arith.negf %68 : vector<2x128xf32>
    %70 = math.exp %69 : vector<2x128xf32>
    %cst_38 = arith.constant 1.000000e+00 : f32
    %71 = vector.broadcast %cst_38 : f32 to vector<2x128xf32>
    %72 = arith.addf %71, %70 : vector<2x128xf32>
    %73 = arith.divf %71, %72 : vector<2x128xf32>
    %c0_39 = arith.constant 0 : index
    %c0_40 = arith.constant 0 : index
    %74 = vector.load %arg11[%c0_39, %c0_40] : memref<2x128xf32, #tpu.memory_space<vmem>>, vector<2x128xf32>
    tpu.vector_store %arg11[%c0_39, %c0_40], %73 {strides = array<i32>} : memref<2x128xf32, #tpu.memory_space<vmem>>, vector<2x128xf32>,
    return
  }
}

module attributes {stable_mosaic.version = 11 : i64} {
  func.func @conv_gate_kernel(%arg0: i32, %arg1: i32, %arg2: memref<1x18x18x64xbf16, #tpu.memory_space<vmem>>, %arg3: memref<9x64x128xbf16, #tpu.memory_space<vmem>>, %arg4: memref<1x128xf32, #tpu.memory_space<vmem>>, %arg5: memref<1x128x128xbf16, #tpu.memory_space<vmem>>, %arg6: memref<1x128xf32, #tpu.memory_space<vmem>>, %arg7: memref<1x128x256xf32, #tpu.memory_space<vmem>>, %arg8: memref<256x128xf32, #tpu.memory_space<vmem>>) attributes {dimension_semantics = [#tpu.dimension_semantics<parallel>, #tpu.dimension_semantics<parallel>], iteration_bounds = array<i64: 2, 1>, scalar_prefetch = 0 : i64, scratch_operands = 1 : i64, tpu.core_type = #tpu.core_type<tc>, window_params = [{transform_indices = @transform_0, window_bounds = array<i64: 1, 18, 18, 64>}, {pipeline_mode = #tpu.pipeline_mode<synchronous>, transform_indices = @transform_1, window_bounds = array<i64: 9, 64, 128>}, {pipeline_mode = #tpu.pipeline_mode<synchronous>, transform_indices = @transform_2, window_bounds = array<i64: 1, 128>}, {transform_indices = @transform_3, window_bounds = array<i64: 1, 128, 128>}, {pipeline_mode = #tpu.pipeline_mode<synchronous>, transform_indices = @transform_4, window_bounds = array<i64: 1, 128>}, {transform_indices = @transform_5, window_bounds = array<i64: 1, 128, 256>}]} {
    %c16_i32 = arith.constant 16 : i32
    %0 = arith.muli %arg1, %c16_i32 : i32
    %1 = tpu.assume_multiple %0, 16 : i32
    %c0_i32 = arith.constant 0 : i32
    %2 = arith.addi %1, %c0_i32 : i32
    %c0 = arith.constant 0 : index
    %3 = arith.index_cast %2 : i32 to index
    %c0_0 = arith.constant 0 : index
    %c0_1 = arith.constant 0 : index
    %4 = vector.load %arg2[%c0, %3, %c0_0, %c0_1] : memref<1x18x18x64xbf16, #tpu.memory_space<vmem>>, vector<1x16x16x64xbf16>
    %5 = vector.shape_cast %4 : vector<1x16x16x64xbf16> to vector<16x16x64xbf16>
    %6 = vector.shape_cast %5 : vector<16x16x64xbf16> to vector<256x64xbf16>
    %c0_2 = arith.constant 0 : index
    %c0_3 = arith.constant 0 : index
    %c0_4 = arith.constant 0 : index
    %7 = vector.load %arg3[%c0_2, %c0_3, %c0_4] : memref<9x64x128xbf16, #tpu.memory_space<vmem>>, vector<1x64x128xbf16>
    %8 = vector.shape_cast %7 : vector<1x64x128xbf16> to vector<64x128xbf16>
    %cst = arith.constant dense<0.000000e+00> : vector<256x128xf32>
    %9 = tpu.matmul %6, %8, %cst {dimension_numbers = #tpu.dot_dimension_numbers<[1], [0], [0], [1], [0, 0, 1, 1], [], []>} : vector<256x64xbf16>, vector<64x128xbf16>, vector<256x128xf32> -> vector<256x128xf32>
    %c0_5 = arith.constant 0 : index
    %c0_6 = arith.constant 0 : index
    %10 = vector.load %arg8[%c0_5, %c0_6] : memref<256x128xf32, #tpu.memory_space<vmem>>, vector<256x128xf32>
    tpu.vector_store %arg8[%c0_5, %c0_6], %9 {strides = array<i32>} : memref<256x128xf32, #tpu.memory_space<vmem>>, vector<256x128xf32>,
    %c0_i32_7 = arith.constant 0 : i32
    %11 = arith.addi %1, %c0_i32_7 : i32
    %c0_8 = arith.constant 0 : index
    %12 = arith.index_cast %11 : i32 to index
    %c1 = arith.constant 1 : index
    %c0_9 = arith.constant 0 : index
    %13 = vector.load %arg2[%c0_8, %12, %c1, %c0_9] : memref<1x18x18x64xbf16, #tpu.memory_space<vmem>>, vector<1x16x16x64xbf16>
    %14 = vector.shape_cast %13 : vector<1x16x16x64xbf16> to vector<16x16x64xbf16>
    %15 = vector.shape_cast %14 : vector<16x16x64xbf16> to vector<256x64xbf16>
    %c1_10 = arith.constant 1 : index
    %c0_11 = arith.constant 0 : index
    %c0_12 = arith.constant 0 : index
    %16 = vector.load %arg3[%c1_10, %c0_11, %c0_12] : memref<9x64x128xbf16, #tpu.memory_space<vmem>>, vector<1x64x128xbf16>
    %17 = vector.shape_cast %16 : vector<1x64x128xbf16> to vector<64x128xbf16>
    %cst_13 = arith.constant dense<0.000000e+00> : vector<256x128xf32>
    %18 = tpu.matmul %15, %17, %cst_13 {dimension_numbers = #tpu.dot_dimension_numbers<[1], [0], [0], [1], [0, 0, 1, 1], [], []>} : vector<256x64xbf16>, vector<64x128xbf16>, vector<256x128xf32> -> vector<256x128xf32>
    %c0_14 = arith.constant 0 : index
    %c0_15 = arith.constant 0 : index
    %19 = vector.load %arg8[%c0_14, %c0_15] : memref<256x128xf32, #tpu.memory_space<vmem>>, vector<256x128xf32>
    %20 = arith.addf %19, %18 : vector<256x128xf32>
    %c0_16 = arith.constant 0 : index
    %c0_17 = arith.constant 0 : index
    %21 = vector.load %arg8[%c0_16, %c0_17] : memref<256x128xf32, #tpu.memory_space<vmem>>, vector<256x128xf32>
    tpu.vector_store %arg8[%c0_16, %c0_17], %20 {strides = array<i32>} : memref<256x128xf32, #tpu.memory_space<vmem>>, vector<256x128xf32>,
    %c0_i32_18 = arith.constant 0 : i32
    %22 = arith.addi %1, %c0_i32_18 : i32
    %c0_19 = arith.constant 0 : index
    %23 = arith.index_cast %22 : i32 to index
    %c2 = arith.constant 2 : index
    %c0_20 = arith.constant 0 : index
    %24 = vector.load %arg2[%c0_19, %23, %c2, %c0_20] : memref<1x18x18x64xbf16, #tpu.memory_space<vmem>>, vector<1x16x16x64xbf16>
    %25 = vector.shape_cast %24 : vector<1x16x16x64xbf16> to vector<16x16x64xbf16>
    %26 = vector.shape_cast %25 : vector<16x16x64xbf16> to vector<256x64xbf16>
    %c2_21 = arith.constant 2 : index
    %c0_22 = arith.constant 0 : index
    %c0_23 = arith.constant 0 : index
    %27 = vector.load %arg3[%c2_21, %c0_22, %c0_23] : memref<9x64x128xbf16, #tpu.memory_space<vmem>>, vector<1x64x128xbf16>
    %28 = vector.shape_cast %27 : vector<1x64x128xbf16> to vector<64x128xbf16>
    %cst_24 = arith.constant dense<0.000000e+00> : vector<256x128xf32>
    %29 = tpu.matmul %26, %28, %cst_24 {dimension_numbers = #tpu.dot_dimension_numbers<[1], [0], [0], [1], [0, 0, 1, 1], [], []>} : vector<256x64xbf16>, vector<64x128xbf16>, vector<256x128xf32> -> vector<256x128xf32>
    %c0_25 = arith.constant 0 : index
    %c0_26 = arith.constant 0 : index
    %30 = vector.load %arg8[%c0_25, %c0_26] : memref<256x128xf32, #tpu.memory_space<vmem>>, vector<256x128xf32>
    %31 = arith.addf %30, %29 : vector<256x128xf32>
    %c0_27 = arith.constant 0 : index
    %c0_28 = arith.constant 0 : index
    %32 = vector.load %arg8[%c0_27, %c0_28] : memref<256x128xf32, #tpu.memory_space<vmem>>, vector<256x128xf32>
    tpu.vector_store %arg8[%c0_27, %c0_28], %31 {strides = array<i32>} : memref<256x128xf32, #tpu.memory_space<vmem>>, vector<256x128xf32>,
    %c1_i32 = arith.constant 1 : i32
    %33 = arith.addi %1, %c1_i32 : i32
    %c0_29 = arith.constant 0 : index
    %34 = arith.index_cast %33 : i32 to index
    %c0_30 = arith.constant 0 : index
    %c0_31 = arith.constant 0 : index
    %35 = vector.load %arg2[%c0_29, %34, %c0_30, %c0_31] : memref<1x18x18x64xbf16, #tpu.memory_space<vmem>>, vector<1x16x16x64xbf16>
    %36 = vector.shape_cast %35 : vector<1x16x16x64xbf16> to vector<16x16x64xbf16>
    %37 = vector.shape_cast %36 : vector<16x16x64xbf16> to vector<256x64xbf16>
    %c3 = arith.constant 3 : index
    %c0_32 = arith.constant 0 : index
    %c0_33 = arith.constant 0 : index
    %38 = vector.load %arg3[%c3, %c0_32, %c0_33] : memref<9x64x128xbf16, #tpu.memory_space<vmem>>, vector<1x64x128xbf16>
    %39 = vector.shape_cast %38 : vector<1x64x128xbf16> to vector<64x128xbf16>
    %cst_34 = arith.constant dense<0.000000e+00> : vector<256x128xf32>
    %40 = tpu.matmul %37, %39, %cst_34 {dimension_numbers = #tpu.dot_dimension_numbers<[1], [0], [0], [1], [0, 0, 1, 1], [], []>} : vector<256x64xbf16>, vector<64x128xbf16>, vector<256x128xf32> -> vector<256x128xf32>
    %c0_35 = arith.constant 0 : index
    %c0_36 = arith.constant 0 : index
    %41 = vector.load %arg8[%c0_35, %c0_36] : memref<256x128xf32, #tpu.memory_space<vmem>>, vector<256x128xf32>
    %42 = arith.addf %41, %40 : vector<256x128xf32>
    %c0_37 = arith.constant 0 : index
    %c0_38 = arith.constant 0 : index
    %43 = vector.load %arg8[%c0_37, %c0_38] : memref<256x128xf32, #tpu.memory_space<vmem>>, vector<256x128xf32>
    tpu.vector_store %arg8[%c0_37, %c0_38], %42 {strides = array<i32>} : memref<256x128xf32, #tpu.memory_space<vmem>>, vector<256x128xf32>,
    %c1_i32_39 = arith.constant 1 : i32
    %44 = arith.addi %1, %c1_i32_39 : i32
    %c0_40 = arith.constant 0 : index
    %45 = arith.index_cast %44 : i32 to index
    %c1_41 = arith.constant 1 : index
    %c0_42 = arith.constant 0 : index
    %46 = vector.load %arg2[%c0_40, %45, %c1_41, %c0_42] : memref<1x18x18x64xbf16, #tpu.memory_space<vmem>>, vector<1x16x16x64xbf16>
    %47 = vector.shape_cast %46 : vector<1x16x16x64xbf16> to vector<16x16x64xbf16>
    %48 = vector.shape_cast %47 : vector<16x16x64xbf16> to vector<256x64xbf16>
    %c4 = arith.constant 4 : index
    %c0_43 = arith.constant 0 : index
    %c0_44 = arith.constant 0 : index
    %49 = vector.load %arg3[%c4, %c0_43, %c0_44] : memref<9x64x128xbf16, #tpu.memory_space<vmem>>, vector<1x64x128xbf16>
    %50 = vector.shape_cast %49 : vector<1x64x128xbf16> to vector<64x128xbf16>
    %cst_45 = arith.constant dense<0.000000e+00> : vector<256x128xf32>
    %51 = tpu.matmul %48, %50, %cst_45 {dimension_numbers = #tpu.dot_dimension_numbers<[1], [0], [0], [1], [0, 0, 1, 1], [], []>} : vector<256x64xbf16>, vector<64x128xbf16>, vector<256x128xf32> -> vector<256x128xf32>
    %c0_46 = arith.constant 0 : index
    %c0_47 = arith.constant 0 : index
    %52 = vector.load %arg8[%c0_46, %c0_47] : memref<256x128xf32, #tpu.memory_space<vmem>>, vector<256x128xf32>
    %53 = arith.addf %52, %51 : vector<256x128xf32>
    %c0_48 = arith.constant 0 : index
    %c0_49 = arith.constant 0 : index
    %54 = vector.load %arg8[%c0_48, %c0_49] : memref<256x128xf32, #tpu.memory_space<vmem>>, vector<256x128xf32>
    tpu.vector_store %arg8[%c0_48, %c0_49], %53 {strides = array<i32>} : memref<256x128xf32, #tpu.memory_space<vmem>>, vector<256x128xf32>,
    %c1_i32_50 = arith.constant 1 : i32
    %55 = arith.addi %1, %c1_i32_50 : i32
    %c0_51 = arith.constant 0 : index
    %56 = arith.index_cast %55 : i32 to index
    %c2_52 = arith.constant 2 : index
    %c0_53 = arith.constant 0 : index
    %57 = vector.load %arg2[%c0_51, %56, %c2_52, %c0_53] : memref<1x18x18x64xbf16, #tpu.memory_space<vmem>>, vector<1x16x16x64xbf16>
    %58 = vector.shape_cast %57 : vector<1x16x16x64xbf16> to vector<16x16x64xbf16>
    %59 = vector.shape_cast %58 : vector<16x16x64xbf16> to vector<256x64xbf16>
    %c5 = arith.constant 5 : index
    %c0_54 = arith.constant 0 : index
    %c0_55 = arith.constant 0 : index
    %60 = vector.load %arg3[%c5, %c0_54, %c0_55] : memref<9x64x128xbf16, #tpu.memory_space<vmem>>, vector<1x64x128xbf16>
    %61 = vector.shape_cast %60 : vector<1x64x128xbf16> to vector<64x128xbf16>
    %cst_56 = arith.constant dense<0.000000e+00> : vector<256x128xf32>
    %62 = tpu.matmul %59, %61, %cst_56 {dimension_numbers = #tpu.dot_dimension_numbers<[1], [0], [0], [1], [0, 0, 1, 1], [], []>} : vector<256x64xbf16>, vector<64x128xbf16>, vector<256x128xf32> -> vector<256x128xf32>
    %c0_57 = arith.constant 0 : index
    %c0_58 = arith.constant 0 : index
    %63 = vector.load %arg8[%c0_57, %c0_58] : memref<256x128xf32, #tpu.memory_space<vmem>>, vector<256x128xf32>
    %64 = arith.addf %63, %62 : vector<256x128xf32>
    %c0_59 = arith.constant 0 : index
    %c0_60 = arith.constant 0 : index
    %65 = vector.load %arg8[%c0_59, %c0_60] : memref<256x128xf32, #tpu.memory_space<vmem>>, vector<256x128xf32>
    tpu.vector_store %arg8[%c0_59, %c0_60], %64 {strides = array<i32>} : memref<256x128xf32, #tpu.memory_space<vmem>>, vector<256x128xf32>,
    %c2_i32 = arith.constant 2 : i32
    %66 = arith.addi %1, %c2_i32 : i32
    %c0_61 = arith.constant 0 : index
    %67 = arith.index_cast %66 : i32 to index
    %c0_62 = arith.constant 0 : index
    %c0_63 = arith.constant 0 : index
    %68 = vector.load %arg2[%c0_61, %67, %c0_62, %c0_63] : memref<1x18x18x64xbf16, #tpu.memory_space<vmem>>, vector<1x16x16x64xbf16>
    %69 = vector.shape_cast %68 : vector<1x16x16x64xbf16> to vector<16x16x64xbf16>
    %70 = vector.shape_cast %69 : vector<16x16x64xbf16> to vector<256x64xbf16>
    %c6 = arith.constant 6 : index
    %c0_64 = arith.constant 0 : index
    %c0_65 = arith.constant 0 : index
    %71 = vector.load %arg3[%c6, %c0_64, %c0_65] : memref<9x64x128xbf16, #tpu.memory_space<vmem>>, vector<1x64x128xbf16>
    %72 = vector.shape_cast %71 : vector<1x64x128xbf16> to vector<64x128xbf16>
    %cst_66 = arith.constant dense<0.000000e+00> : vector<256x128xf32>
    %73 = tpu.matmul %70, %72, %cst_66 {dimension_numbers = #tpu.dot_dimension_numbers<[1], [0], [0], [1], [0, 0, 1, 1], [], []>} : vector<256x64xbf16>, vector<64x128xbf16>, vector<256x128xf32> -> vector<256x128xf32>
    %c0_67 = arith.constant 0 : index
    %c0_68 = arith.constant 0 : index
    %74 = vector.load %arg8[%c0_67, %c0_68] : memref<256x128xf32, #tpu.memory_space<vmem>>, vector<256x128xf32>
    %75 = arith.addf %74, %73 : vector<256x128xf32>
    %c0_69 = arith.constant 0 : index
    %c0_70 = arith.constant 0 : index
    %76 = vector.load %arg8[%c0_69, %c0_70] : memref<256x128xf32, #tpu.memory_space<vmem>>, vector<256x128xf32>
    tpu.vector_store %arg8[%c0_69, %c0_70], %75 {strides = array<i32>} : memref<256x128xf32, #tpu.memory_space<vmem>>, vector<256x128xf32>,
    %c2_i32_71 = arith.constant 2 : i32
    %77 = arith.addi %1, %c2_i32_71 : i32
    %c0_72 = arith.constant 0 : index
    %78 = arith.index_cast %77 : i32 to index
    %c1_73 = arith.constant 1 : index
    %c0_74 = arith.constant 0 : index
    %79 = vector.load %arg2[%c0_72, %78, %c1_73, %c0_74] : memref<1x18x18x64xbf16, #tpu.memory_space<vmem>>, vector<1x16x16x64xbf16>
    %80 = vector.shape_cast %79 : vector<1x16x16x64xbf16> to vector<16x16x64xbf16>
    %81 = vector.shape_cast %80 : vector<16x16x64xbf16> to vector<256x64xbf16>
    %c7 = arith.constant 7 : index
    %c0_75 = arith.constant 0 : index
    %c0_76 = arith.constant 0 : index
    %82 = vector.load %arg3[%c7, %c0_75, %c0_76] : memref<9x64x128xbf16, #tpu.memory_space<vmem>>, vector<1x64x128xbf16>
    %83 = vector.shape_cast %82 : vector<1x64x128xbf16> to vector<64x128xbf16>
    %cst_77 = arith.constant dense<0.000000e+00> : vector<256x128xf32>
    %84 = tpu.matmul %81, %83, %cst_77 {dimension_numbers = #tpu.dot_dimension_numbers<[1], [0], [0], [1], [0, 0, 1, 1], [], []>} : vector<256x64xbf16>, vector<64x128xbf16>, vector<256x128xf32> -> vector<256x128xf32>
    %c0_78 = arith.constant 0 : index
    %c0_79 = arith.constant 0 : index
    %85 = vector.load %arg8[%c0_78, %c0_79] : memref<256x128xf32, #tpu.memory_space<vmem>>, vector<256x128xf32>
    %86 = arith.addf %85, %84 : vector<256x128xf32>
    %c0_80 = arith.constant 0 : index
    %c0_81 = arith.constant 0 : index
    %87 = vector.load %arg8[%c0_80, %c0_81] : memref<256x128xf32, #tpu.memory_space<vmem>>, vector<256x128xf32>
    tpu.vector_store %arg8[%c0_80, %c0_81], %86 {strides = array<i32>} : memref<256x128xf32, #tpu.memory_space<vmem>>, vector<256x128xf32>,
    %c2_i32_82 = arith.constant 2 : i32
    %88 = arith.addi %1, %c2_i32_82 : i32
    %c0_83 = arith.constant 0 : index
    %89 = arith.index_cast %88 : i32 to index
    %c2_84 = arith.constant 2 : index
    %c0_85 = arith.constant 0 : index
    %90 = vector.load %arg2[%c0_83, %89, %c2_84, %c0_85] : memref<1x18x18x64xbf16, #tpu.memory_space<vmem>>, vector<1x16x16x64xbf16>
    %91 = vector.shape_cast %90 : vector<1x16x16x64xbf16> to vector<16x16x64xbf16>
    %92 = vector.shape_cast %91 : vector<16x16x64xbf16> to vector<256x64xbf16>
    %c8 = arith.constant 8 : index
    %c0_86 = arith.constant 0 : index
    %c0_87 = arith.constant 0 : index
    %93 = vector.load %arg3[%c8, %c0_86, %c0_87] : memref<9x64x128xbf16, #tpu.memory_space<vmem>>, vector<1x64x128xbf16>
    %94 = vector.shape_cast %93 : vector<1x64x128xbf16> to vector<64x128xbf16>
    %cst_88 = arith.constant dense<0.000000e+00> : vector<256x128xf32>
    %95 = tpu.matmul %92, %94, %cst_88 {dimension_numbers = #tpu.dot_dimension_numbers<[1], [0], [0], [1], [0, 0, 1, 1], [], []>} : vector<256x64xbf16>, vector<64x128xbf16>, vector<256x128xf32> -> vector<256x128xf32>
    %c0_89 = arith.constant 0 : index
    %c0_90 = arith.constant 0 : index
    %96 = vector.load %arg8[%c0_89, %c0_90] : memref<256x128xf32, #tpu.memory_space<vmem>>, vector<256x128xf32>
    %97 = arith.addf %96, %95 : vector<256x128xf32>
    %c0_91 = arith.constant 0 : index
    %c0_92 = arith.constant 0 : index
    %98 = vector.load %arg8[%c0_91, %c0_92] : memref<256x128xf32, #tpu.memory_space<vmem>>, vector<256x128xf32>
    tpu.vector_store %arg8[%c0_91, %c0_92], %97 {strides = array<i32>} : memref<256x128xf32, #tpu.memory_space<vmem>>, vector<256x128xf32>,
    %c0_93 = arith.constant 0 : index
    %c0_94 = arith.constant 0 : index
    %99 = vector.load %arg8[%c0_93, %c0_94] : memref<256x128xf32, #tpu.memory_space<vmem>>, vector<256x128xf32>
    %c0_95 = arith.constant 0 : index
    %c0_96 = arith.constant 0 : index
    %100 = vector.load %arg4[%c0_95, %c0_96] : memref<1x128xf32, #tpu.memory_space<vmem>>, vector<1x128xf32>
    %101 = vector.broadcast %100 : vector<1x128xf32> to vector<256x128xf32>
    %102 = arith.addf %99, %101 : vector<256x128xf32>
    %cst_97 = arith.constant 0.000000e+00 : f32
    %103 = vector.broadcast %cst_97 : f32 to vector<256x128xf32>
    %104 = arith.maximumf %102, %103 : vector<256x128xf32>
    %105 = arith.truncf %104 : vector<256x128xf32> to vector<256x128xbf16>
    %c0_98 = arith.constant 0 : index
    %c0_99 = arith.constant 0 : index
    %c0_100 = arith.constant 0 : index
    %106 = vector.load %arg5[%c0_98, %c0_99, %c0_100] : memref<1x128x128xbf16, #tpu.memory_space<vmem>>, vector<1x128x128xbf16>
    %107 = vector.shape_cast %106 : vector<1x128x128xbf16> to vector<128x128xbf16>
    %cst_101 = arith.constant dense<0.000000e+00> : vector<256x128xf32>
    %108 = tpu.matmul %105, %107, %cst_101 {dimension_numbers = #tpu.dot_dimension_numbers<[1], [0], [0], [1], [0, 0, 1, 1], [], []>} : vector<256x128xbf16>, vector<128x128xbf16>, vector<256x128xf32> -> vector<256x128xf32>
    %c0_102 = arith.constant 0 : index
    %c0_103 = arith.constant 0 : index
    %109 = vector.load %arg6[%c0_102, %c0_103] : memref<1x128xf32, #tpu.memory_space<vmem>>, vector<1x128xf32>
    %110 = vector.broadcast %109 : vector<1x128xf32> to vector<256x128xf32>
    %111 = arith.addf %108, %110 : vector<256x128xf32>
    %112 = tpu.transpose %111, [1, 0] : vector<256x128xf32> -> vector<128x256xf32>
    %c0_104 = arith.constant 0 : index
    %c0_105 = arith.constant 0 : index
    %c0_106 = arith.constant 0 : index
    %113 = vector.load %arg7[%c0_104, %c0_105, %c0_106] : memref<1x128x256xf32, #tpu.memory_space<vmem>>, vector<1x128x256xf32>
    %114 = vector.shape_cast %113 : vector<1x128x256xf32> to vector<128x256xf32>
    %115 = vector.shape_cast %112 : vector<128x256xf32> to vector<1x128x256xf32>
    tpu.vector_store %arg7[%c0_104, %c0_105, %c0_106], %115 {strides = array<i32>} : memref<1x128x256xf32, #tpu.memory_space<vmem>>, vector<1x128x256xf32>,
    return
  }
  func.func @transform_0(%arg0: i32, %arg1: i32) -> (i32, i32, i32, i32) {
    %c0_i32 = arith.constant 0 : i32
    %c0_i32_0 = arith.constant 0 : i32
    %c0_i32_1 = arith.constant 0 : i32
    %c0_i32_2 = arith.constant 0 : i32
    return %arg0, %c0_i32, %c0_i32_0, %c0_i32_1 : i32, i32, i32, i32
  }
  func.func @transform_1(%arg0: i32, %arg1: i32) -> (i32, i32, i32) {
    %c0_i32 = arith.constant 0 : i32
    %c0_i32_0 = arith.constant 0 : i32
    %c0_i32_1 = arith.constant 0 : i32
    %c0_i32_2 = arith.constant 0 : i32
    return %c0_i32, %c0_i32_0, %c0_i32_1 : i32, i32, i32
  }
  func.func @transform_2(%arg0: i32, %arg1: i32) -> (i32, i32) {
    %c0_i32 = arith.constant 0 : i32
    %c0_i32_0 = arith.constant 0 : i32
    %c0_i32_1 = arith.constant 0 : i32
    return %c0_i32, %c0_i32_0 : i32, i32
  }
  func.func @transform_3(%arg0: i32, %arg1: i32) -> (i32, i32, i32) {
    %c0_i32 = arith.constant 0 : i32
    %c0_i32_0 = arith.constant 0 : i32
    %c0_i32_1 = arith.constant 0 : i32
    return %arg0, %c0_i32, %c0_i32_0 : i32, i32, i32
  }
  func.func @transform_4(%arg0: i32, %arg1: i32) -> (i32, i32) {
    %c0_i32 = arith.constant 0 : i32
    %c0_i32_0 = arith.constant 0 : i32
    %c0_i32_1 = arith.constant 0 : i32
    return %c0_i32, %c0_i32_0 : i32, i32
  }
  func.func @transform_5(%arg0: i32, %arg1: i32) -> (i32, i32, i32) {
    %c0_i32 = arith.constant 0 : i32
    %c0_i32_0 = arith.constant 0 : i32
    return %arg0, %c0_i32, %arg1 : i32, i32, i32
  }
}

</mosaic_0001>

<llo_original>
// kernel: danet_head_forward.2
$region0: #{danet_head_forward.2}
  #allocation0 [shape = 'u32[]', space=smem, size = 0x4, offset = 0x4, fixed_abs, tag = 'smem constant byte address 0x4 - core index']
  #allocation1 [shape = 'u32[144,128]{1,0:T(1,128)}', space=vmem, size = 0x12000, scoped, tag = 'internal scratch']
  %s0 = inlined_call_operand.vmem [shape: f32[2,64], index: 0, kind: input, shape index: {}]
  %s1 = inlined_call_operand.vmem [shape: f32[128,128], index: 1, kind: input, shape index: {}]
  %s2 = inlined_call_operand.vmem [shape: f32[64,4], index: 2, kind: input, shape index: {}]
  %s3 = inlined_call_operand.vmem [shape: f32[64,64], index: 3, kind: input, shape index: {}]
  %s4 = inlined_call_operand.vmem [shape: f32[1,64], index: 4, kind: input, shape index: {}]
  %s5 = inlined_call_operand.vmem [shape: f32[128,64], index: 5, kind: input, shape index: {}]
  %s6 = inlined_call_operand.vmem [shape: f32[1,64], index: 6, kind: input, shape index: {}]
  %s7 = inlined_call_operand.vmem [shape: f32[128,64], index: 7, kind: input, shape index: {}]
  %s8 = inlined_call_operand.vmem [shape: f32[1,64], index: 8, kind: input, shape index: {}]
  %s9 = inlined_call_operand.vmem [shape: f32[64,128], index: 9, kind: input, shape index: {}]
  %s10 = inlined_call_operand.vmem [shape: f32[1,128], index: 10, kind: input, shape index: {}]
  %s11 = inlined_call_operand.vmem [shape: f32[2,128], index: 11, kind: output, shape index: {}]
  %s12 = sld [smem:[#allocation0]]
  $region54: #{danet_head_forward.2} parent=0
    _
  %s14 = ssub.s32 1, %s12
  %s15 = scalar_select 0, %s14, %s12
  // Predicated region
  $region2: #{danet_head_forward.2} parent=0 // pred_check
    _
  $region3: #{danet_head_forward.2} parent=0 // pred_check_branch
    %17 = sbr.rel (0) target = $region5
  $region4: #{danet_head_forward.2} parent=0 // pred_region
    _
  $region5: #{danet_head_forward.2} parent=0 // pred_fallthru
    _
  // Predicated region
  $region6: #{danet_head_forward.2} parent=0 // pred_check
    _
  $region7: #{danet_head_forward.2} parent=0 // pred_check_branch
    %19 = sbr.rel (0) target = $region9
  $region8: #{danet_head_forward.2} parent=0 // pred_region
    _
  $region9: #{danet_head_forward.2} parent=0 // pred_fallthru
    _
  // Predicated region
  $region10: #{danet_head_forward.2} parent=0 // pred_check
    _
  $region11: #{danet_head_forward.2} parent=0 // pred_check_branch
    %21 = sbr.rel (0) target = $region13
  $region12: #{danet_head_forward.2} parent=0 // pred_region
    _
  $region13: #{danet_head_forward.2} parent=0 // pred_fallthru
    _
  // Predicated region
  $region14: #{danet_head_forward.2} parent=0 // pred_check
    _
  $region15: #{danet_head_forward.2} parent=0 // pred_check_branch
    %23 = sbr.rel (0) target = $region17
  $region16: #{danet_head_forward.2} parent=0 // pred_region
    _
  $region17: #{danet_head_forward.2} parent=0 // pred_fallthru
    _
  // Predicated region
  $region18: #{danet_head_forward.2} parent=0 // pred_check
    _
  $region19: #{danet_head_forward.2} parent=0 // pred_check_branch
    %25 = sbr.rel (0) target = $region21
  $region20: #{danet_head_forward.2} parent=0 // pred_region
    _
  $region21: #{danet_head_forward.2} parent=0 // pred_fallthru
    _
  // Predicated region
  $region22: #{danet_head_forward.2} parent=0 // pred_check
    _
  $region23: #{danet_head_forward.2} parent=0 // pred_check_branch
    %27 = sbr.rel (0) target = $region25
  $region24: #{danet_head_forward.2} parent=0 // pred_region
    _
  $region25: #{danet_head_forward.2} parent=0 // pred_fallthru
    _
  // Predicated region
  $region26: #{danet_head_forward.2} parent=0 // pred_check
    _
  $region27: #{danet_head_forward.2} parent=0 // pred_check_branch
    %29 = sbr.rel (0) target = $region29
  $region28: #{danet_head_forward.2} parent=0 // pred_region
    _
  $region29: #{danet_head_forward.2} parent=0 // pred_fallthru
    _
  // Predicated region
  $region30: #{danet_head_forward.2} parent=0 // pred_check
    _
  $region31: #{danet_head_forward.2} parent=0 // pred_check_branch
    %31 = sbr.rel (0) target = $region33
  $region32: #{danet_head_forward.2} parent=0 // pred_region
    _
  $region33: #{danet_head_forward.2} parent=0 // pred_fallthru
    _
  // Predicated region
  $region34: #{danet_head_forward.2} parent=0 // pred_check
    _
  $region35: #{danet_head_forward.2} parent=0 // pred_check_branch
    %33 = sbr.rel (0) target = $region37
  $region36: #{danet_head_forward.2} parent=0 // pred_region
    _
  $region37: #{danet_head_forward.2} parent=0 // pred_fallthru
    _
  // Predicated region
  $region38: #{danet_head_forward.2} parent=0 // pred_check
    _
  $region39: #{danet_head_forward.2} parent=0 // pred_check_branch
    %35 = sbr.rel (0) target = $region41
  $region40: #{danet_head_forward.2} parent=0 // pred_region
    _
  $region41: #{danet_head_forward.2} parent=0 // pred_fallthru
    _
  // Predicated region
  $region42: #{danet_head_forward.2} parent=0 // pred_check
    _
  $region43: #{danet_head_forward.2} parent=0 // pred_check_branch
    %37 = sbr.rel (0) target = $region45
  $region44: #{danet_head_forward.2} parent=0 // pred_region
    _
  $region45: #{danet_head_forward.2} parent=0 // pred_fallthru
    _
  %v38 = vld [vmem:[%s0] sm:$0x3]
  %v39 = vld [vmem:[%s3] sm:$0xff]
  %v40 = vld [vmem:[%s3 + $0x8] sm:$0xff]
  %v41 = vld [vmem:[%s3 + $0x10] sm:$0xff]
  %v42 = vld [vmem:[%s3 + $0x18] sm:$0xff]
  %v43 = vld [vmem:[%s3 + $0x20] sm:$0xff]
  %v44 = vld [vmem:[%s3 + $0x28] sm:$0xff]
  %v45 = vld [vmem:[%s3 + $0x30] sm:$0xff]
  %v46 = vld [vmem:[%s3 + $0x38] sm:$0xff]
  %v47 = vld [vmem:[%s4] sm:$0x1]
  %v49 = vlaneseq
  %v50 = vshrl.u32 %v49, 7
  %v51 = vsub.s32 0, %v50
  %v52 = vrot.slane %v47, %v51
  %vm54 = vcmask 523264
  %v56 = vsel %vm54, %v38, 0
  %58 = vmatprep.subr.mxu0 0.0
  %59 = vmatpush1.msra.mxu0 %v39
  %60 = vmatprep.subr.mxu0 0.0
  %61 = vmatpush1.msra.mxu0 %v40
  %62 = vmatprep.subr.mxu0 0.0
  %63 = vmatpush1.msra.mxu0 %v41
  %64 = vmatprep.subr.mxu0 0.0
  %65 = vmatpush1.msra.mxu0 %v42
  %66 = vmatprep.subr.mxu0 0.0
  %67 = vmatpush1.msra.mxu0 %v43
  %68 = vmatprep.subr.mxu0 0.0
  %69 = vmatpush1.msra.mxu0 %v44
  %70 = vmatprep.subr.mxu0 0.0
  %71 = vmatpush1.msra.mxu0 %v45
  %72 = vmatprep.subr.mxu0 0.0
  %73 = vmatpush1.msra.mxu0 %v46
  %74 = vmatprep.subr.mxu0 0.0
  %75 = vmatpush1.msra.mxu0 0.0
  %76 = vmatprep.subr.mxu0 0.0
  %77 = vmatpush1.msra.mxu0 0.0
  %78 = vmatprep.subr.mxu0 0.0
  %79 = vmatpush1.msra.mxu0 0.0
  %80 = vmatprep.subr.mxu0 0.0
  %81 = vmatpush1.msra.mxu0 0.0
  %82 = vmatprep.subr.mxu0 0.0
  %83 = vmatpush1.msra.mxu0 0.0
  %84 = vmatprep.subr.mxu0 0.0
  %85 = vmatpush1.msra.mxu0 0.0
  %86 = vmatprep.subr.mxu0 0.0
  %87 = vmatpush1.msra.mxu0 0.0
  %88 = vmatprep.subr.mxu0 0.0
  %89 = vmatpush1.msra.mxu0 0.0
  %90 = vmatprep.subr.mxu0 0.0
  %91 = vmatpush1.msra.mxu0 0.0
  %92 = vmatprep.subr.mxu0 0.0
  %93 = vmatpush1.msra.mxu0 0.0
  %94 = vmatprep.subr.mxu0 0.0
  %95 = vmatpush1.msra.mxu0 0.0
  %96 = vmatprep.subr.mxu0 0.0
  %97 = vmatpush1.msra.mxu0 0.0
  %98 = vmatprep.subr.mxu0 0.0
  %99 = vmatpush1.msra.mxu0 0.0
  %100 = vmatprep.subr.mxu0 0.0
  %101 = vmatpush1.msra.mxu0 0.0
  %102 = vmatprep.subr.mxu0 0.0
  %103 = vmatpush1.msra.mxu0 0.0
  %104 = vmatprep.subr.mxu0 0.0
  %105 = vmatpush1.msra.mxu0 0.0
  %106 = vmatprep.subr.mxu0 0.0
  %107 = vmatpush1.msra.mxu0 0.0
  %108 = vmatprep.subr.mxu0 0.0
  %109 = vmatpush1.msra.mxu0 0.0
  %110 = vmatprep.subr.mxu0 0.0
  %111 = vmatpush1.msra.mxu0 0.0
  %112 = vmatprep.subr.mxu0 0.0
  %113 = vmatpush1.msra.mxu0 0.0
  %114 = vmatprep.subr.mxu0 0.0
  %115 = vmatpush1.msra.mxu0 0.0
  %116 = vmatprep.subr.mxu0 0.0
  %117 = vmatpush1.msra.mxu0 0.0
  %118 = vmatprep.subr.mxu0 0.0
  %119 = vmatpush1.msra.mxu0 0.0
  %120 = vmatprep.subr.mxu0 0.0
  %121 = vmatpush1.msra.mxu0 0.0
  %122 = vmatprep.mubr.f32.mxu0 0.0
  %123 = vmatmul.mubr.f32.gmra.mrb[0].mxu0 %v56
  %v124 = vpop.f32.mrb[0].mxu0
  %v125 = vadd.f32 %v52, %v124
  %v126 = vpop.f32.mrb[0].mxu0
  %127 = vdwg.mxu0
  %v128 = vld [vmem:[%s1] sm:$0xff]
  %v129 = vld [vmem:[%s1 + $0x8] sm:$0xff]
  %v130 = vld [vmem:[%s1 + $0x10] sm:$0xff]
  %v131 = vld [vmem:[%s1 + $0x18] sm:$0xff]
  %v132 = vld [vmem:[%s1 + $0x20] sm:$0xff]
  %v133 = vld [vmem:[%s1 + $0x28] sm:$0xff]
  %v134 = vld [vmem:[%s1 + $0x30] sm:$0xff]
  %v135 = vld [vmem:[%s1 + $0x38] sm:$0xff]
  %v136 = vld [vmem:[%s1 + $0x40] sm:$0xff]
  %v137 = vld [vmem:[%s1 + $0x48] sm:$0xff]
  %v138 = vld [vmem:[%s1 + $0x50] sm:$0xff]
  %v139 = vld [vmem:[%s1 + $0x58] sm:$0xff]
  %v140 = vld [vmem:[%s1 + $0x60] sm:$0xff]
  %v141 = vld [vmem:[%s1 + $0x68] sm:$0xff]
  %v142 = vld [vmem:[%s1 + $0x70] sm:$0xff]
  %v143 = vld [vmem:[%s1 + $0x78] sm:$0xff]
  %v144 = vld [vmem:[%s5] sm:$0xff]
  %v145 = vld [vmem:[%s5 + $0x8] sm:$0xff]
  %v146 = vld [vmem:[%s5 + $0x10] sm:$0xff]
  %v147 = vld [vmem:[%s5 + $0x18] sm:$0xff]
  %v148 = vld [vmem:[%s5 + $0x20] sm:$0xff]
  %v149 = vld [vmem:[%s5 + $0x28] sm:$0xff]
  %v150 = vld [vmem:[%s5 + $0x30] sm:$0xff]
  %v151 = vld [vmem:[%s5 + $0x38] sm:$0xff]
  %v152 = vld [vmem:[%s5 + $0x40] sm:$0xff]
  %v153 = vld [vmem:[%s5 + $0x48] sm:$0xff]
  %v154 = vld [vmem:[%s5 + $0x50] sm:$0xff]
  %v155 = vld [vmem:[%s5 + $0x58] sm:$0xff]
  %v156 = vld [vmem:[%s5 + $0x60] sm:$0xff]
  %v157 = vld [vmem:[%s5 + $0x68] sm:$0xff]
  %v158 = vld [vmem:[%s5 + $0x70] sm:$0xff]
  %v159 = vld [vmem:[%s5 + $0x78] sm:$0xff]
  %v160 = vld [vmem:[%s6] sm:$0x1]
  %v162 = vlaneseq
  %v163 = vshrl.u32 %v162, 7
  %v164 = vsub.s32 0, %v163
  %v165 = vrot.slane %v160, %v164
  %167 = vmatprep.subr.mxu0 0.0
  %168 = vmatpush1.msra.mxu0 %v144
  %169 = vmatprep.subr.mxu0 0.0
  %170 = vmatpush1.msra.mxu0 %v145
  %171 = vmatprep.subr.mxu0 0.0
  %172 = vmatpush1.msra.mxu0 %v146
  %173 = vmatprep.subr.mxu0 0.0
  %174 = vmatpush1.msra.mxu0 %v147
  %175 = vmatprep.subr.mxu0 0.0
  %176 = vmatpush1.msra.mxu0 %v148
  %177 = vmatprep.subr.mxu0 0.0
  %178 = vmatpush1.msra.mxu0 %v149
  %179 = vmatprep.subr.mxu0 0.0
  %180 = vmatpush1.msra.mxu0 %v150
  %181 = vmatprep.subr.mxu0 0.0
  %182 = vmatpush1.msra.mxu0 %v151
  %183 = vmatprep.subr.mxu0 0.0
  %184 = vmatpush1.msra.mxu0 %v152
  %185 = vmatprep.subr.mxu0 0.0
  %186 = vmatpush1.msra.mxu0 %v153
  %187 = vmatprep.subr.mxu0 0.0
  %188 = vmatpush1.msra.mxu0 %v154
  %189 = vmatprep.subr.mxu0 0.0
  %190 = vmatpush1.msra.mxu0 %v155
  %191 = vmatprep.subr.mxu0 0.0
  %192 = vmatpush1.msra.mxu0 %v156
  %193 = vmatprep.subr.mxu0 0.0
  %194 = vmatpush1.msra.mxu0 %v157
  %195 = vmatprep.subr.mxu0 0.0
  %196 = vmatpush1.msra.mxu0 %v158
  %197 = vmatprep.subr.mxu0 0.0
  %198 = vmatpush1.msra.mxu0 %v159
  %199 = vmatprep.subr.mxu0 0.0
  %200 = vmatpush1.msra.mxu0 0.0
  %201 = vmatprep.subr.mxu0 0.0
  %202 = vmatpush1.msra.mxu0 0.0
  %203 = vmatprep.subr.mxu0 0.0
  %204 = vmatpush1.msra.mxu0 0.0
  %205 = vmatprep.subr.mxu0 0.0
  %206 = vmatpush1.msra.mxu0 0.0
  %207 = vmatprep.subr.mxu0 0.0
  %208 = vmatpush1.msra.mxu0 0.0
  %209 = vmatprep.subr.mxu0 0.0
  %210 = vmatpush1.msra.mxu0 0.0
  %211 = vmatprep.subr.mxu0 0.0
  %212 = vmatpush1.msra.mxu0 0.0
  %213 = vmatprep.subr.mxu0 0.0
  %214 = vmatpush1.msra.mxu0 0.0
  %215 = vmatprep.subr.mxu0 0.0
  %216 = vmatpush1.msra.mxu0 0.0
  %217 = vmatprep.subr.mxu0 0.0
  %218 = vmatpush1.msra.mxu0 0.0
  %219 = vmatprep.subr.mxu0 0.0
  %220 = vmatpush1.msra.mxu0 0.0
  %221 = vmatprep.subr.mxu0 0.0
  %222 = vmatpush1.msra.mxu0 0.0
  %223 = vmatprep.subr.mxu0 0.0
  %224 = vmatpush1.msra.mxu0 0.0
  %225 = vmatprep.subr.mxu0 0.0
  %226 = vmatpush1.msra.mxu0 0.0
  %227 = vmatprep.subr.mxu0 0.0
  %228 = vmatpush1.msra.mxu0 0.0
  %229 = vmatprep.subr.mxu0 0.0
  %230 = vmatpush1.msra.mxu0 0.0
  %231 = vmatprep.mubr.f32.mxu0 0.0
  %232 = vmatmul.mubr.f32.gmra.mrb[0].mxu0 %v128
  %v233 = vpop.f32.mrb[0].mxu0
  %v234 = vadd.f32 %v165, %v233
  %v235 = vpop.f32.mrb[0].mxu0
  %236 = vmatprep.mubr.f32.mxu0 0.0
  %237 = vmatmul.mubr.f32.gmra.mrb[0].mxu0 %v129
  %v238 = vpop.f32.mrb[0].mxu0
  %v239 = vadd.f32 %v165, %v238
  %v240 = vpop.f32.mrb[0].mxu0
  %241 = vmatprep.mubr.f32.mxu0 0.0
  %242 = vmatmul.mubr.f32.gmra.mrb[0].mxu0 %v130
  %v243 = vpop.f32.mrb[0].mxu0
  %v244 = vadd.f32 %v165, %v243
  %v245 = vpop.f32.mrb[0].mxu0
  %246 = vmatprep.mubr.f32.mxu0 0.0
  %247 = vmatmul.mubr.f32.gmra.mrb[0].mxu0 %v131
  %v248 = vpop.f32.mrb[0].mxu0
  %v249 = vadd.f32 %v165, %v248
  %v250 = vpop.f32.mrb[0].mxu0
  %251 = vmatprep.mubr.f32.mxu0 0.0
  %252 = vmatmul.mubr.f32.gmra.mrb[0].mxu0 %v132
  %v253 = vpop.f32.mrb[0].mxu0
  %v254 = vadd.f32 %v165, %v253
  %v255 = vpop.f32.mrb[0].mxu0
  %256 = vmatprep.mubr.f32.mxu0 0.0
  %257 = vmatmul.mubr.f32.gmra.mrb[0].mxu0 %v133
  %v258 = vpop.f32.mrb[0].mxu0
  %v259 = vadd.f32 %v165, %v258
  %v260 = vpop.f32.mrb[0].mxu0
  %261 = vmatprep.mubr.f32.mxu0 0.0
  %262 = vmatmul.mubr.f32.gmra.mrb[0].mxu0 %v134
  %v263 = vpop.f32.mrb[0].mxu0
  %v264 = vadd.f32 %v165, %v263
  %v265 = vpop.f32.mrb[0].mxu0
  %266 = vmatprep.mubr.f32.mxu0 0.0
  %267 = vmatmul.mubr.f32.gmra.mrb[0].mxu0 %v135
  %v268 = vpop.f32.mrb[0].mxu0
  %v269 = vadd.f32 %v165, %v268
  %v270 = vpop.f32.mrb[0].mxu0
  %271 = vmatprep.mubr.f32.mxu0 0.0
  %272 = vmatmul.mubr.f32.gmra.mrb[0].mxu0 %v136
  %v273 = vpop.f32.mrb[0].mxu0
  %v274 = vadd.f32 %v165, %v273
  %v275 = vpop.f32.mrb[0].mxu0
  %276 = vmatprep.mubr.f32.mxu0 0.0
  %277 = vmatmul.mubr.f32.gmra.mrb[0].mxu0 %v137
  %v278 = vpop.f32.mrb[0].mxu0
  %v279 = vadd.f32 %v165, %v278
  %v280 = vpop.f32.mrb[0].mxu0
  %281 = vmatprep.mubr.f32.mxu0 0.0
  %282 = vmatmul.mubr.f32.gmra.mrb[0].mxu0 %v138
  %v283 = vpop.f32.mrb[0].mxu0
  %v284 = vadd.f32 %v165, %v283
  %v285 = vpop.f32.mrb[0].mxu0
  %286 = vmatprep.mubr.f32.mxu0 0.0
  %287 = vmatmul.mubr.f32.gmra.mrb[0].mxu0 %v139
  %v288 = vpop.f32.mrb[0].mxu0
  %v289 = vadd.f32 %v165, %v288
  %v290 = vpop.f32.mrb[0].mxu0
  %291 = vmatprep.mubr.f32.mxu0 0.0
  %292 = vmatmul.mubr.f32.gmra.mrb[0].mxu0 %v140
  %v293 = vpop.f32.mrb[0].mxu0
  %v294 = vadd.f32 %v165, %v293
  %v295 = vpop.f32.mrb[0].mxu0
  %296 = vmatprep.mubr.f32.mxu0 0.0
  %297 = vmatmul.mubr.f32.gmra.mrb[0].mxu0 %v141
  %v298 = vpop.f32.mrb[0].mxu0
  %v299 = vadd.f32 %v165, %v298
  %v300 = vpop.f32.mrb[0].mxu0
  %301 = vmatprep.mubr.f32.mxu0 0.0
  %302 = vmatmul.mubr.f32.gmra.mrb[0].mxu0 %v142
  %v303 = vpop.f32.mrb[0].mxu0
  %v304 = vadd.f32 %v165, %v303
  %v305 = vpop.f32.mrb[0].mxu0
  %306 = vmatprep.mubr.f32.mxu0 0.0
  %307 = vmatmul.mubr.f32.gmra.mrb[0].mxu0 %v143
  %v308 = vpop.f32.mrb[0].mxu0
  %v309 = vadd.f32 %v165, %v308
  %v310 = vpop.f32.mrb[0].mxu0
  %311 = vdwg.mxu0
  %v312 = vld [vmem:[%s7] sm:$0xff]
  %v313 = vld [vmem:[%s7 + $0x8] sm:$0xff]
  %v314 = vld [vmem:[%s7 + $0x10] sm:$0xff]
  %v315 = vld [vmem:[%s7 + $0x18] sm:$0xff]
  %v316 = vld [vmem:[%s7 + $0x20] sm:$0xff]
  %v317 = vld [vmem:[%s7 + $0x28] sm:$0xff]
  %v318 = vld [vmem:[%s7 + $0x30] sm:$0xff]
  %v319 = vld [vmem:[%s7 + $0x38] sm:$0xff]
  %v320 = vld [vmem:[%s7 + $0x40] sm:$0xff]
  %v321 = vld [vmem:[%s7 + $0x48] sm:$0xff]
  %v322 = vld [vmem:[%s7 + $0x50] sm:$0xff]
  %v323 = vld [vmem:[%s7 + $0x58] sm:$0xff]
  %v324 = vld [vmem:[%s7 + $0x60] sm:$0xff]
  %v325 = vld [vmem:[%s7 + $0x68] sm:$0xff]
  %v326 = vld [vmem:[%s7 + $0x70] sm:$0xff]
  %v327 = vld [vmem:[%s7 + $0x78] sm:$0xff]
  %v328 = vld [vmem:[%s8] sm:$0x1]
  %v330 = vlaneseq
  %v331 = vshrl.u32 %v330, 7
  %v332 = vsub.s32 0, %v331
  %v333 = vrot.slane %v328, %v332
  %335 = vmatprep.subr.mxu0 0.0
  %336 = vmatpush1.msra.mxu0 %v312
  %337 = vmatprep.subr.mxu0 0.0
  %338 = vmatpush1.msra.mxu0 %v313
  %339 = vmatprep.subr.mxu0 0.0
  %340 = vmatpush1.msra.mxu0 %v314
  %341 = vmatprep.subr.mxu0 0.0
  %342 = vmatpush1.msra.mxu0 %v315
  %343 = vmatprep.subr.mxu0 0.0
  %344 = vmatpush1.msra.mxu0 %v316
  %345 = vmatprep.subr.mxu0 0.0
  %346 = vmatpush1.msra.mxu0 %v317
  %347 = vmatprep.subr.mxu0 0.0
  %348 = vmatpush1.msra.mxu0 %v318
  %349 = vmatprep.subr.mxu0 0.0
  %350 = vmatpush1.msra.mxu0 %v319
  %351 = vmatprep.subr.mxu0 0.0
  %352 = vmatpush1.msra.mxu0 %v320
  %353 = vmatprep.subr.mxu0 0.0
  %354 = vmatpush1.msra.mxu0 %v321
  %355 = vmatprep.subr.mxu0 0.0
  %356 = vmatpush1.msra.mxu0 %v322
  %357 = vmatprep.subr.mxu0 0.0
  %358 = vmatpush1.msra.mxu0 %v323
  %359 = vmatprep.subr.mxu0 0.0
  %360 = vmatpush1.msra.mxu0 %v324
  %361 = vmatprep.subr.mxu0 0.0
  %362 = vmatpush1.msra.mxu0 %v325
  %363 = vmatprep.subr.mxu0 0.0
  %364 = vmatpush1.msra.mxu0 %v326
  %365 = vmatprep.subr.mxu0 0.0
  %366 = vmatpush1.msra.mxu0 %v327
  %367 = vmatprep.subr.mxu0 0.0
  %368 = vmatpush1.msra.mxu0 0.0
  %369 = vmatprep.subr.mxu0 0.0
  %370 = vmatpush1.msra.mxu0 0.0
  %371 = vmatprep.subr.mxu0 0.0
  %372 = vmatpush1.msra.mxu0 0.0
  %373 = vmatprep.subr.mxu0 0.0
  %374 = vmatpush1.msra.mxu0 0.0
  %375 = vmatprep.subr.mxu0 0.0
  %376 = vmatpush1.msra.mxu0 0.0
  %377 = vmatprep.subr.mxu0 0.0
  %378 = vmatpush1.msra.mxu0 0.0
  %379 = vmatprep.subr.mxu0 0.0
  %380 = vmatpush1.msra.mxu0 0.0
  %381 = vmatprep.subr.mxu0 0.0
  %382 = vmatpush1.msra.mxu0 0.0
  %383 = vmatprep.subr.mxu0 0.0
  %384 = vmatpush1.msra.mxu0 0.0
  %385 = vmatprep.subr.mxu0 0.0
  %386 = vmatpush1.msra.mxu0 0.0
  %387 = vmatprep.subr.mxu0 0.0
  %388 = vmatpush1.msra.mxu0 0.0
  %389 = vmatprep.subr.mxu0 0.0
  %390 = vmatpush1.msra.mxu0 0.0
  %391 = vmatprep.subr.mxu0 0.0
  %392 = vmatpush1.msra.mxu0 0.0
  %393 = vmatprep.subr.mxu0 0.0
  %394 = vmatpush1.msra.mxu0 0.0
  %395 = vmatprep.subr.mxu0 0.0
  %396 = vmatpush1.msra.mxu0 0.0
  %397 = vmatprep.subr.mxu0 0.0
  %398 = vmatpush1.msra.mxu0 0.0
  %399 = vmatprep.mubr.f32.mxu0 0.0
  %400 = vmatmul.mubr.f32.gmra.mrb[0].mxu0 %v128
  %v401 = vpop.f32.mrb[0].mxu0
  %v402 = vadd.f32 %v333, %v401
  %v403 = vpop.f32.mrb[0].mxu0
  %404 = vmatprep.mubr.f32.mxu0 0.0
  %405 = vmatmul.mubr.f32.gmra.mrb[0].mxu0 %v129
  %v406 = vpop.f32.mrb[0].mxu0
  %v407 = vadd.f32 %v333, %v406
  %v408 = vpop.f32.mrb[0].mxu0
  %409 = vmatprep.mubr.f32.mxu0 0.0
  %410 = vmatmul.mubr.f32.gmra.mrb[0].mxu0 %v130
  %v411 = vpop.f32.mrb[0].mxu0
  %v412 = vadd.f32 %v333, %v411
  %v413 = vpop.f32.mrb[0].mxu0
  %414 = vmatprep.mubr.f32.mxu0 0.0
  %415 = vmatmul.mubr.f32.gmra.mrb[0].mxu0 %v131
  %v416 = vpop.f32.mrb[0].mxu0
  %v417 = vadd.f32 %v333, %v416
  %v418 = vpop.f32.mrb[0].mxu0
  %419 = vmatprep.mubr.f32.mxu0 0.0
  %420 = vmatmul.mubr.f32.gmra.mrb[0].mxu0 %v132
  %v421 = vpop.f32.mrb[0].mxu0
  %v422 = vadd.f32 %v333, %v421
  %v423 = vpop.f32.mrb[0].mxu0
  %424 = vmatprep.mubr.f32.mxu0 0.0
  %425 = vmatmul.mubr.f32.gmra.mrb[0].mxu0 %v133
  %v426 = vpop.f32.mrb[0].mxu0
  %v427 = vadd.f32 %v333, %v426
  %v428 = vpop.f32.mrb[0].mxu0
  %429 = vmatprep.mubr.f32.mxu0 0.0
  %430 = vmatmul.mubr.f32.gmra.mrb[0].mxu0 %v134
  %v431 = vpop.f32.mrb[0].mxu0
  %v432 = vadd.f32 %v333, %v431
  %v433 = vpop.f32.mrb[0].mxu0
  %434 = vmatprep.mubr.f32.mxu0 0.0
  %435 = vmatmul.mubr.f32.gmra.mrb[0].mxu0 %v135
  %v436 = vpop.f32.mrb[0].mxu0
  %v437 = vadd.f32 %v333, %v436
  %v438 = vpop.f32.mrb[0].mxu0
  %439 = vmatprep.mubr.f32.mxu0 0.0
  %440 = vmatmul.mubr.f32.gmra.mrb[0].mxu0 %v136
  %v441 = vpop.f32.mrb[0].mxu0
  %v442 = vadd.f32 %v333, %v441
  %v443 = vpop.f32.mrb[0].mxu0
  %444 = vmatprep.mubr.f32.mxu0 0.0
  %445 = vmatmul.mubr.f32.gmra.mrb[0].mxu0 %v137
  %v446 = vpop.f32.mrb[0].mxu0
  %v447 = vadd.f32 %v333, %v446
  %v448 = vpop.f32.mrb[0].mxu0
  %449 = vmatprep.mubr.f32.mxu0 0.0
  %450 = vmatmul.mubr.f32.gmra.mrb[0].mxu0 %v138
  %v451 = vpop.f32.mrb[0].mxu0
  %v452 = vadd.f32 %v333, %v451
  %v453 = vpop.f32.mrb[0].mxu0
  %454 = vmatprep.mubr.f32.mxu0 0.0
  %455 = vmatmul.mubr.f32.gmra.mrb[0].mxu0 %v139
  %v456 = vpop.f32.mrb[0].mxu0
  %v457 = vadd.f32 %v333, %v456
  %v458 = vpop.f32.mrb[0].mxu0
  %459 = vmatprep.mubr.f32.mxu0 0.0
  %460 = vmatmul.mubr.f32.gmra.mrb[0].mxu0 %v140
  %v461 = vpop.f32.mrb[0].mxu0
  %v462 = vadd.f32 %v333, %v461
  %v463 = vpop.f32.mrb[0].mxu0
  %464 = vmatprep.mubr.f32.mxu0 0.0
  %465 = vmatmul.mubr.f32.gmra.mrb[0].mxu0 %v141
  %v466 = vpop.f32.mrb[0].mxu0
  %v467 = vadd.f32 %v333, %v466
  %v468 = vpop.f32.mrb[0].mxu0
  %469 = vmatprep.mubr.f32.mxu0 0.0
  %470 = vmatmul.mubr.f32.gmra.mrb[0].mxu0 %v142
  %v471 = vpop.f32.mrb[0].mxu0
  %v472 = vadd.f32 %v333, %v471
  %v473 = vpop.f32.mrb[0].mxu0
  %474 = vmatprep.mubr.f32.mxu0 0.0
  %475 = vmatmul.mubr.f32.gmra.mrb[0].mxu0 %v143
  %v476 = vpop.f32.mrb[0].mxu0
  %v477 = vadd.f32 %v333, %v476
  %v478 = vpop.f32.mrb[0].mxu0
  %479 = vdwg.mxu0
  %v480 = vld [vmem:[%s2] sm:$0xff]
  %v481 = vld [vmem:[%s2 + $0x8] sm:$0xff]
  %v482 = vld [vmem:[%s2 + $0x10] sm:$0xff]
  %v483 = vld [vmem:[%s2 + $0x18] sm:$0xff]
  %v484 = vld [vmem:[%s2 + $0x20] sm:$0xff]
  %v485 = vld [vmem:[%s2 + $0x28] sm:$0xff]
  %v486 = vld [vmem:[%s2 + $0x30] sm:$0xff]
  %v487 = vld [vmem:[%s2 + $0x38] sm:$0xff]
  %v488 = vlaneseq
  %v489 = vshrl.u32 %v488, 7
  %v490 = vsub.s32 0, %v489
  %v491 = vrot.slane %v125, %v490
  %v492 = vmul.f32 %v234, %v491
  %v493 = vmul.f32 %v239, %v491
  %v494 = vmul.f32 %v244, %v491
  %v495 = vmul.f32 %v249, %v491
  %v496 = vmul.f32 %v254, %v491
  %v497 = vmul.f32 %v259, %v491
  %v498 = vmul.f32 %v264, %v491
  %v499 = vmul.f32 %v269, %v491
  %v501 = vsel %vm54, %v492, 0
  %v504 = vsel %vm54, %v493, 0
  %v507 = vsel %vm54, %v494, 0
  %v510 = vsel %vm54, %v495, 0
  %v513 = vsel %vm54, %v496, 0
  %v516 = vsel %vm54, %v497, 0
  %v519 = vsel %vm54, %v498, 0
  %v522 = vsel %vm54, %v499, 0
  %524 = vmatprep.subr.mxu0 0.0
  %525 = vmatpush1.msra.mxu0 %v480
  %526 = vmatprep.subr.mxu0 0.0
  %527 = vmatpush1.msra.mxu0 %v481
  %528 = vmatprep.subr.mxu0 0.0
  %529 = vmatpush1.msra.mxu0 %v482
  %530 = vmatprep.subr.mxu0 0.0
  %531 = vmatpush1.msra.mxu0 %v483
  %532 = vmatprep.subr.mxu0 0.0
  %533 = vmatpush1.msra.mxu0 %v484
  %534 = vmatprep.subr.mxu0 0.0
  %535 = vmatpush1.msra.mxu0 %v485
  %536 = vmatprep.subr.mxu0 0.0
  %537 = vmatpush1.msra.mxu0 %v486
  %538 = vmatprep.subr.mxu0 0.0
  %539 = vmatpush1.msra.mxu0 %v487
  %540 = vmatprep.subr.mxu0 0.0
  %541 = vmatpush1.msra.mxu0 0.0
  %542 = vmatprep.subr.mxu0 0.0
  %543 = vmatpush1.msra.mxu0 0.0
  %544 = vmatprep.subr.mxu0 0.0
  %545 = vmatpush1.msra.mxu0 0.0
  %546 = vmatprep.subr.mxu0 0.0
  %547 = vmatpush1.msra.mxu0 0.0
  %548 = vmatprep.subr.mxu0 0.0
  %549 = vmatpush1.msra.mxu0 0.0
  %550 = vmatprep.subr.mxu0 0.0
  %551 = vmatpush1.msra.mxu0 0.0
  %552 = vmatprep.subr.mxu0 0.0
  %553 = vmatpush1.msra.mxu0 0.0
  %554 = vmatprep.subr.mxu0 0.0
  %555 = vmatpush1.msra.mxu0 0.0
  %556 = vmatprep.subr.mxu0 0.0
  %557 = vmatpush1.msra.mxu0 0.0
  %558 = vmatprep.subr.mxu0 0.0
  %559 = vmatpush1.msra.mxu0 0.0
  %560 = vmatprep.subr.mxu0 0.0
  %561 = vmatpush1.msra.mxu0 0.0
  %562 = vmatprep.subr.mxu0 0.0
  %563 = vmatpush1.msra.mxu0 0.0
  %564 = vmatprep.subr.mxu0 0.0
  %565 = vmatpush1.msra.mxu0 0.0
  %566 = vmatprep.subr.mxu0 0.0
  %567 = vmatpush1.msra.mxu0 0.0
  %568 = vmatprep.subr.mxu0 0.0
  %569 = vmatpush1.msra.mxu0 0.0
  %570 = vmatprep.subr.mxu0 0.0
  %571 = vmatpush1.msra.mxu0 0.0
  %572 = vmatprep.subr.mxu0 0.0
  %573 = vmatpush1.msra.mxu0 0.0
  %574 = vmatprep.subr.mxu0 0.0
  %575 = vmatpush1.msra.mxu0 0.0
  %576 = vmatprep.subr.mxu0 0.0
  %577 = vmatpush1.msra.mxu0 0.0
  %578 = vmatprep.subr.mxu0 0.0
  %579 = vmatpush1.msra.mxu0 0.0
  %580 = vmatprep.subr.mxu0 0.0
  %581 = vmatpush1.msra.mxu0 0.0
  %582 = vmatprep.subr.mxu0 0.0
  %583 = vmatpush1.msra.mxu0 0.0
  %584 = vmatprep.subr.mxu0 0.0
  %585 = vmatpush1.msra.mxu0 0.0
  %586 = vmatprep.subr.mxu0 0.0
  %587 = vmatpush1.msra.mxu0 0.0
  %588 = vmatprep.mubr.f32.mxu0 0.0
  %589 = vmatmul.mubr.f32.gmra.mrb[0].mxu0 %v501
  %v590 = vpop.f32.mrb[0].mxu0
  %v591 = vadd.f32 0.0, %v590
  %v592 = vpop.f32.mrb[0].mxu0
  %593 = vmatprep.mubr.f32.mxu0 0.0
  %594 = vmatmul.mubr.f32.gmra.mrb[0].mxu0 %v504
  %v595 = vpop.f32.mrb[0].mxu0
  %v596 = vadd.f32 0.0, %v595
  %v597 = vpop.f32.mrb[0].mxu0
  %598 = vmatprep.mubr.f32.mxu0 0.0
  %599 = vmatmul.mubr.f32.gmra.mrb[0].mxu0 %v507
  %v600 = vpop.f32.mrb[0].mxu0
  %v601 = vadd.f32 0.0, %v600
  %v602 = vpop.f32.mrb[0].mxu0
  %603 = vmatprep.mubr.f32.mxu0 0.0
  %604 = vmatmul.mubr.f32.gmra.mrb[0].mxu0 %v510
  %v605 = vpop.f32.mrb[0].mxu0
  %v606 = vadd.f32 0.0, %v605
  %v607 = vpop.f32.mrb[0].mxu0
  %608 = vmatprep.mubr.f32.mxu0 0.0
  %609 = vmatmul.mubr.f32.gmra.mrb[0].mxu0 %v513
  %v610 = vpop.f32.mrb[0].mxu0
  %v611 = vadd.f32 0.0, %v610
  %v612 = vpop.f32.mrb[0].mxu0
  %613 = vmatprep.mubr.f32.mxu0 0.0
  %614 = vmatmul.mubr.f32.gmra.mrb[0].mxu0 %v516
  %v615 = vpop.f32.mrb[0].mxu0
  %v616 = vadd.f32 0.0, %v615
  %v617 = vpop.f32.mrb[0].mxu0
  %618 = vmatprep.mubr.f32.mxu0 0.0
  %619 = vmatmul.mubr.f32.gmra.mrb[0].mxu0 %v519
  %v620 = vpop.f32.mrb[0].mxu0
  %v621 = vadd.f32 0.0, %v620
  %v622 = vpop.f32.mrb[0].mxu0
  %623 = vmatprep.mubr.f32.mxu0 0.0
  %624 = vmatmul.mubr.f32.gmra.mrb[0].mxu0 %v522
  %v625 = vpop.f32.mrb[0].mxu0
  %v626 = vadd.f32 0.0, %v625
  %v627 = vpop.f32.mrb[0].mxu0
  %628 = vdwg.mxu0
  %v629 = vmul.f32 %v591, 0.25
  %v630 = vmul.f32 %v596, 0.25
  %v631 = vmul.f32 %v601, 0.25
  %v632 = vmul.f32 %v606, 0.25
  %v633 = vmul.f32 %v611, 0.25
  %v634 = vmul.f32 %v616, 0.25
  %v635 = vmul.f32 %v621, 0.25
  %v636 = vmul.f32 %v626, 0.25
  %vm637 = vcmask 31744
  %v638 = vsel %vm637, %v629, -inf
  %v639 = vsel %vm637, %v630, -inf
  %v640 = vsel %vm637, %v631, -inf
  %v641 = vsel %vm637, %v632, -inf
  %v642 = vsel %vm637, %v633, -inf
  %v643 = vmax.f32 %v638, %v642
  %v644 = vsel %vm637, %v634, -inf
  %v645 = vmax.f32 %v639, %v644
  %v646 = vsel %vm637, %v635, -inf
  %v647 = vmax.f32 %v640, %v646
  %v648 = vsel %vm637, %v636, -inf
  %v649 = vmax.f32 %v641, %v648
  %v650 = vmax.f32 %v643, %v645
  %v651 = vmax.f32 %v647, %v649
  %v652 = vmax.f32 %v650, %v651
  %v653 = vrot.slane %v652, 4
  %v654 = vmax.f32 %v652, %v653
  %v655 = vrot.slane %v654, 2
  %v656 = vmax.f32 %v654, %v655
  %v657 = vrot.slane %v656, 1
  %v658 = vmax.f32 %v656, %v657
  %v659 = vsub.f32 %v629, %v658
  %v660 = vsub.f32 %v630, %v658
  %v661 = vsub.f32 %v631, %v658
  %v662 = vsub.f32 %v632, %v658
  %v663 = vsub.f32 %v633, %v658
  %v664 = vsub.f32 %v634, %v658
  %v665 = vsub.f32 %v635, %v658
  %v666 = vsub.f32 %v636, %v658
  %v667 = vmul.f32 %v659, 1.442695
  %v668 = vpow.pop %v667
  %v669 = vmul.f32 %v660, 1.442695
  %v670 = vpow.pop %v669
  %v671 = vmul.f32 %v661, 1.442695
  %v672 = vpow.pop %v671
  %v673 = vmul.f32 %v662, 1.442695
  %v674 = vpow.pop %v673
  %v675 = vmul.f32 %v663, 1.442695
  %v676 = vpow.pop %v675
  %v677 = vmul.f32 %v664, 1.442695
  %v678 = vpow.pop %v677
  %v679 = vmul.f32 %v665, 1.442695
  %v680 = vpow.pop %v679
  %v681 = vmul.f32 %v666, 1.442695
  %v682 = vpow.pop %v681
  %v683 = vsel %vm637, %v668, 0.0
  %v684 = vsel %vm637, %v670, 0.0
  %v685 = vadd.f32 %v683, %v684
  %v686 = vsel %vm637, %v672, 0.0
  %v687 = vadd.f32 %v685, %v686
  %v688 = vsel %vm637, %v674, 0.0
  %v689 = vadd.f32 %v687, %v688
  %v690 = vsel %vm637, %v676, 0.0
  %v691 = vadd.f32 %v689, %v690
  %v692 = vsel %vm637, %v678, 0.0
  %v693 = vadd.f32 %v691, %v692
  %v694 = vsel %vm637, %v680, 0.0
  %v695 = vadd.f32 %v693, %v694
  %v696 = vsel %vm637, %v682, 0.0
  %v697 = vadd.f32 %v695, %v696
  %v698 = vrot.slane %v697, 4
  %v699 = vadd.f32 %v697, %v698
  %v700 = vrot.slane %v699, 2
  %v701 = vadd.f32 %v699, %v700
  %v702 = vrot.slane %v701, 1
  %v703 = vadd.f32 %v701, %v702
  %v704 = vrcp.pop %v703
  %v705 = vmul.f32 %v668, %v704
  %v706 = vmul.f32 %v670, %v704
  %v707 = vmul.f32 %v672, %v704
  %v708 = vmul.f32 %v674, %v704
  %v709 = vmul.f32 %v676, %v704
  %v710 = vmul.f32 %v678, %v704
  %v711 = vmul.f32 %v680, %v704
  %v712 = vmul.f32 %v682, %v704
  %v714 = vsel %vm637, %v705, 0
  %v717 = vsel %vm637, %v706, 0
  %v720 = vsel %vm637, %v707, 0
  %v723 = vsel %vm637, %v708, 0
  %v726 = vsel %vm637, %v709, 0
  %v729 = vsel %vm637, %v710, 0
  %v732 = vsel %vm637, %v711, 0
  %v735 = vsel %vm637, %v712, 0
  %v738 = vsel %vm637, %v480, 0
  %v741 = vsel %vm637, %v481, 0
  %v744 = vsel %vm637, %v482, 0
  %v747 = vsel %vm637, %v483, 0
  %v750 = vsel %vm637, %v484, 0
  %v753 = vsel %vm637, %v485, 0
  %v756 = vsel %vm637, %v486, 0
  %v759 = vsel %vm637, %v487, 0
  %761 = vmatprep.subr.mxu0 0.0
  %762 = vmatpush1.xpose.msra.mxu0 %v738
  %763 = vmatprep.subr.mxu0 0.0
  %764 = vmatpush1.xpose.msra.mxu0 %v741
  %765 = vmatprep.subr.mxu0 0.0
  %766 = vmatpush1.xpose.msra.mxu0 %v744
  %767 = vmatprep.subr.mxu0 0.0
  %768 = vmatpush1.xpose.msra.mxu0 %v747
  %769 = vmatprep.subr.mxu0 0.0
  %770 = vmatpush1.xpose.msra.mxu0 %v750
  %771 = vmatprep.subr.mxu0 0.0
  %772 = vmatpush1.xpose.msra.mxu0 %v753
  %773 = vmatprep.subr.mxu0 0.0
  %774 = vmatpush1.xpose.msra.mxu0 %v756
  %775 = vmatprep.subr.mxu0 0.0
  %776 = vmatpush1.xpose.msra.mxu0 %v759
  %777 = vmatprep.subr.mxu0 0.0
  %778 = vmatpush1.xpose.msra.mxu0 0.0
  %779 = vmatprep.subr.mxu0 0.0
  %780 = vmatpush1.xpose.msra.mxu0 0.0
  %781 = vmatprep.subr.mxu0 0.0
  %782 = vmatpush1.xpose.msra.mxu0 0.0
  %783 = vmatprep.subr.mxu0 0.0
  %784 = vmatpush1.xpose.msra.mxu0 0.0
  %785 = vmatprep.subr.mxu0 0.0
  %786 = vmatpush1.xpose.msra.mxu0 0.0
  %787 = vmatprep.subr.mxu0 0.0
  %788 = vmatpush1.xpose.msra.mxu0 0.0
  %789 = vmatprep.subr.mxu0 0.0
  %790 = vmatpush1.xpose.msra.mxu0 0.0
  %791 = vmatprep.subr.mxu0 0.0
  %792 = vmatpush1.xpose.msra.mxu0 0.0
  %793 = vmatprep.subr.mxu0 0.0
  %794 = vmatpush1.xpose.msra.mxu0 0.0
  %795 = vmatprep.subr.mxu0 0.0
  %796 = vmatpush1.xpose.msra.mxu0 0.0
  %797 = vmatprep.subr.mxu0 0.0
  %798 = vmatpush1.xpose.msra.mxu0 0.0
  %799 = vmatprep.subr.mxu0 0.0
  %800 = vmatpush1.xpose.msra.mxu0 0.0
  %801 = vmatprep.subr.mxu0 0.0
  %802 = vmatpush1.xpose.msra.mxu0 0.0
  %803 = vmatprep.subr.mxu0 0.0
  %804 = vmatpush1.xpose.msra.mxu0 0.0
  %805 = vmatprep.subr.mxu0 0.0
  %806 = vmatpush1.xpose.msra.mxu0 0.0
  %807 = vmatprep.subr.mxu0 0.0
  %808 = vmatpush1.xpose.msra.mxu0 0.0
  %809 = vmatprep.subr.mxu0 0.0
  %810 = vmatpush1.xpose.msra.mxu0 0.0
  %811 = vmatprep.subr.mxu0 0.0
  %812 = vmatpush1.xpose.msra.mxu0 0.0
  %813 = vmatprep.subr.mxu0 0.0
  %814 = vmatpush1.xpose.msra.mxu0 0.0
  %815 = vmatprep.subr.mxu0 0.0
  %816 = vmatpush1.xpose.msra.mxu0 0.0
  %817 = vmatprep.subr.mxu0 0.0
  %818 = vmatpush1.xpose.msra.mxu0 0.0
  %819 = vmatprep.subr.mxu0 0.0
  %820 = vmatpush1.xpose.msra.mxu0 0.0
  %821 = vmatprep.subr.mxu0 0.0
  %822 = vmatpush1.xpose.msra.mxu0 0.0
  %823 = vmatprep.subr.mxu0 0.0
  %824 = vmatpush1.xpose.msra.mxu0 0.0
  %825 = vmatprep.mubr.f32.mxu0 0.0
  %826 = vmatmul.mubr.f32.gmra.mrb[0].mxu0 %v714
  %v827 = vpop.f32.mrb[0].mxu0
  %v828 = vadd.f32 0.0, %v827
  %v829 = vpop.f32.mrb[0].mxu0
  %830 = vmatprep.mubr.f32.mxu0 0.0
  %831 = vmatmul.mubr.f32.gmra.mrb[0].mxu0 %v717
  %v832 = vpop.f32.mrb[0].mxu0
  %v833 = vadd.f32 0.0, %v832
  %v834 = vpop.f32.mrb[0].mxu0
  %835 = vmatprep.mubr.f32.mxu0 0.0
  %836 = vmatmul.mubr.f32.gmra.mrb[0].mxu0 %v720
  %v837 = vpop.f32.mrb[0].mxu0
  %v838 = vadd.f32 0.0, %v837
  %v839 = vpop.f32.mrb[0].mxu0
  %840 = vmatprep.mubr.f32.mxu0 0.0
  %841 = vmatmul.mubr.f32.gmra.mrb[0].mxu0 %v723
  %v842 = vpop.f32.mrb[0].mxu0
  %v843 = vadd.f32 0.0, %v842
  %v844 = vpop.f32.mrb[0].mxu0
  %845 = vmatprep.mubr.f32.mxu0 0.0
  %846 = vmatmul.mubr.f32.gmra.mrb[0].mxu0 %v726
  %v847 = vpop.f32.mrb[0].mxu0
  %v848 = vadd.f32 0.0, %v847
  %v849 = vpop.f32.mrb[0].mxu0
  %850 = vmatprep.mubr.f32.mxu0 0.0
  %851 = vmatmul.mubr.f32.gmra.mrb[0].mxu0 %v729
  %v852 = vpop.f32.mrb[0].mxu0
  %v853 = vadd.f32 0.0, %v852
  %v854 = vpop.f32.mrb[0].mxu0
  %855 = vmatprep.mubr.f32.mxu0 0.0
  %856 = vmatmul.mubr.f32.gmra.mrb[0].mxu0 %v732
  %v857 = vpop.f32.mrb[0].mxu0
  %v858 = vadd.f32 0.0, %v857
  %v859 = vpop.f32.mrb[0].mxu0
  %860 = vmatprep.mubr.f32.mxu0 0.0
  %861 = vmatmul.mubr.f32.gmra.mrb[0].mxu0 %v735
  %v862 = vpop.f32.mrb[0].mxu0
  %v863 = vadd.f32 0.0, %v862
  %v864 = vpop.f32.mrb[0].mxu0
  %865 = vdwg.mxu0
  %v866 = vmul.f32 %v828, %v402
  %v867 = vmul.f32 %v833, %v407
  %v868 = vmul.f32 %v838, %v412
  %v869 = vmul.f32 %v843, %v417
  %v870 = vmul.f32 %v848, %v422
  %v871 = vmul.f32 %v853, %v427
  %v872 = vmul.f32 %v858, %v432
  %v873 = vmul.f32 %v863, %v437
  %v874 = vsel %vm54, %v866, 0.0
  %v875 = vsel %vm54, %v867, 0.0
  %v876 = vadd.f32 %v874, %v875
  %v877 = vsel %vm54, %v868, 0.0
  %v878 = vadd.f32 %v876, %v877
  %v879 = vsel %vm54, %v869, 0.0
  %v880 = vadd.f32 %v878, %v879
  %v881 = vsel %vm54, %v870, 0.0
  %v882 = vadd.f32 %v880, %v881
  %v883 = vsel %vm54, %v871, 0.0
  %v884 = vadd.f32 %v882, %v883
  %v885 = vsel %vm54, %v872, 0.0
  %v886 = vadd.f32 %v884, %v885
  %v887 = vsel %vm54, %v873, 0.0
  %v888 = vadd.f32 %v886, %v887
  %v889 = vrot.slane %v888, 4
  %v890 = vadd.f32 %v888, %v889
  %v891 = vrot.slane %v890, 2
  %v892 = vadd.f32 %v890, %v891
  %v893 = vrot.slane %v892, 1
  %v894 = vadd.f32 %v892, %v893
  %v895 = vlaneseq
  %v896 = vshrl.u32 %v895, 7
  %v897 = vsub.s32 1, %v896
  %v898 = vrot.slane %v125, %v897
  %v899 = vmul.f32 %v274, %v898
  %v900 = vmul.f32 %v279, %v898
  %v901 = vmul.f32 %v284, %v898
  %v902 = vmul.f32 %v289, %v898
  %v903 = vmul.f32 %v294, %v898
  %v904 = vmul.f32 %v299, %v898
  %v905 = vmul.f32 %v304, %v898
  %v906 = vmul.f32 %v309, %v898
  %v908 = vsel %vm54, %v899, 0
  %v911 = vsel %vm54, %v900, 0
  %v914 = vsel %vm54, %v901, 0
  %v917 = vsel %vm54, %v902, 0
  %v920 = vsel %vm54, %v903, 0
  %v923 = vsel %vm54, %v904, 0
  %v926 = vsel %vm54, %v905, 0
  %v929 = vsel %vm54, %v906, 0
  %931 = vmatprep.subr.mxu0 0.0
  %932 = vmatpush1.msra.mxu0 %v480
  %933 = vmatprep.subr.mxu0 0.0
  %934 = vmatpush1.msra.mxu0 %v481
  %935 = vmatprep.subr.mxu0 0.0
  %936 = vmatpush1.msra.mxu0 %v482
  %937 = vmatprep.subr.mxu0 0.0
  %938 = vmatpush1.msra.mxu0 %v483
  %939 = vmatprep.subr.mxu0 0.0
  %940 = vmatpush1.msra.mxu0 %v484
  %941 = vmatprep.subr.mxu0 0.0
  %942 = vmatpush1.msra.mxu0 %v485
  %943 = vmatprep.subr.mxu0 0.0
  %944 = vmatpush1.msra.mxu0 %v486
  %945 = vmatprep.subr.mxu0 0.0
  %946 = vmatpush1.msra.mxu0 %v487
  %947 = vmatprep.subr.mxu0 0.0
  %948 = vmatpush1.msra.mxu0 0.0
  %949 = vmatprep.subr.mxu0 0.0
  %950 = vmatpush1.msra.mxu0 0.0
  %951 = vmatprep.subr.mxu0 0.0
  %952 = vmatpush1.msra.mxu0 0.0
  %953 = vmatprep.subr.mxu0 0.0
  %954 = vmatpush1.msra.mxu0 0.0
  %955 = vmatprep.subr.mxu0 0.0
  %956 = vmatpush1.msra.mxu0 0.0
  %957 = vmatprep.subr.mxu0 0.0
  %958 = vmatpush1.msra.mxu0 0.0
  %959 = vmatprep.subr.mxu0 0.0
  %960 = vmatpush1.msra.mxu0 0.0
  %961 = vmatprep.subr.mxu0 0.0
  %962 = vmatpush1.msra.mxu0 0.0
  %963 = vmatprep.subr.mxu0 0.0
  %964 = vmatpush1.msra.mxu0 0.0
  %965 = vmatprep.subr.mxu0 0.0
  %966 = vmatpush1.msra.mxu0 0.0
  %967 = vmatprep.subr.mxu0 0.0
  %968 = vmatpush1.msra.mxu0 0.0
  %969 = vmatprep.subr.mxu0 0.0
  %970 = vmatpush1.msra.mxu0 0.0
  %971 = vmatprep.subr.mxu0 0.0
  %972 = vmatpush1.msra.mxu0 0.0
  %973 = vmatprep.subr.mxu0 0.0
  %974 = vmatpush1.msra.mxu0 0.0
  %975 = vmatprep.subr.mxu0 0.0
  %976 = vmatpush1.msra.mxu0 0.0
  %977 = vmatprep.subr.mxu0 0.0
  %978 = vmatpush1.msra.mxu0 0.0
  %979 = vmatprep.subr.mxu0 0.0
  %980 = vmatpush1.msra.mxu0 0.0
  %981 = vmatprep.subr.mxu0 0.0
  %982 = vmatpush1.msra.mxu0 0.0
  %983 = vmatprep.subr.mxu0 0.0
  %984 = vmatpush1.msra.mxu0 0.0
  %985 = vmatprep.subr.mxu0 0.0
  %986 = vmatpush1.msra.mxu0 0.0
  %987 = vmatprep.subr.mxu0 0.0
  %988 = vmatpush1.msra.mxu0 0.0
  %989 = vmatprep.subr.mxu0 0.0
  %990 = vmatpush1.msra.mxu0 0.0
  %991 = vmatprep.subr.mxu0 0.0
  %992 = vmatpush1.msra.mxu0 0.0
  %993 = vmatprep.subr.mxu0 0.0
  %994 = vmatpush1.msra.mxu0 0.0
  %995 = vmatprep.mubr.f32.mxu0 0.0
  %996 = vmatmul.mubr.f32.gmra.mrb[0].mxu0 %v908
  %v997 = vpop.f32.mrb[0].mxu0
  %v998 = vadd.f32 0.0, %v997
  %v999 = vpop.f32.mrb[0].mxu0
  %1000 = vmatprep.mubr.f32.mxu0 0.0
  %1001 = vmatmul.mubr.f32.gmra.mrb[0].mxu0 %v911
  %v1002 = vpop.f32.mrb[0].mxu0
  %v1003 = vadd.f32 0.0, %v1002
  %v1004 = vpop.f32.mrb[0].mxu0
  %1005 = vmatprep.mubr.f32.mxu0 0.0
  %1006 = vmatmul.mubr.f32.gmra.mrb[0].mxu0 %v914
  %v1007 = vpop.f32.mrb[0].mxu0
  %v1008 = vadd.f32 0.0, %v1007
  %v1009 = vpop.f32.mrb[0].mxu0
  %1010 = vmatprep.mubr.f32.mxu0 0.0
  %1011 = vmatmul.mubr.f32.gmra.mrb[0].mxu0 %v917
  %v1012 = vpop.f32.mrb[0].mxu0
  %v1013 = vadd.f32 0.0, %v1012
  %v1014 = vpop.f32.mrb[0].mxu0
  %1015 = vmatprep.mubr.f32.mxu0 0.0
  %1016 = vmatmul.mubr.f32.gmra.mrb[0].mxu0 %v920
  %v1017 = vpop.f32.mrb[0].mxu0
  %v1018 = vadd.f32 0.0, %v1017
  %v1019 = vpop.f32.mrb[0].mxu0
  %1020 = vmatprep.mubr.f32.mxu0 0.0
  %1021 = vmatmul.mubr.f32.gmra.mrb[0].mxu0 %v923
  %v1022 = vpop.f32.mrb[0].mxu0
  %v1023 = vadd.f32 0.0, %v1022
  %v1024 = vpop.f32.mrb[0].mxu0
  %1025 = vmatprep.mubr.f32.mxu0 0.0
  %1026 = vmatmul.mubr.f32.gmra.mrb[0].mxu0 %v926
  %v1027 = vpop.f32.mrb[0].mxu0
  %v1028 = vadd.f32 0.0, %v1027
  %v1029 = vpop.f32.mrb[0].mxu0
  %1030 = vmatprep.mubr.f32.mxu0 0.0
  %1031 = vmatmul.mubr.f32.gmra.mrb[0].mxu0 %v929
  %v1032 = vpop.f32.mrb[0].mxu0
  %v1033 = vadd.f32 0.0, %v1032
  %v1034 = vpop.f32.mrb[0].mxu0
  %1035 = vdwg.mxu0
  %v1036 = vmul.f32 %v998, 0.25
  %v1037 = vmul.f32 %v1003, 0.25
  %v1038 = vmul.f32 %v1008, 0.25
  %v1039 = vmul.f32 %v1013, 0.25
  %v1040 = vmul.f32 %v1018, 0.25
  %v1041 = vmul.f32 %v1023, 0.25
  %v1042 = vmul.f32 %v1028, 0.25
  %v1043 = vmul.f32 %v1033, 0.25
  %v1044 = vsel %vm637, %v1036, -inf
  %v1045 = vsel %vm637, %v1037, -inf
  %v1046 = vsel %vm637, %v1038, -inf
  %v1047 = vsel %vm637, %v1039, -inf
  %v1048 = vsel %vm637, %v1040, -inf
  %v1049 = vmax.f32 %v1044, %v1048
  %v1050 = vsel %vm637, %v1041, -inf
  %v1051 = vmax.f32 %v1045, %v1050
  %v1052 = vsel %vm637, %v1042, -inf
  %v1053 = vmax.f32 %v1046, %v1052
  %v1054 = vsel %vm637, %v1043, -inf
  %v1055 = vmax.f32 %v1047, %v1054
  %v1056 = vmax.f32 %v1049, %v1051
  %v1057 = vmax.f32 %v1053, %v1055
  %v1058 = vmax.f32 %v1056, %v1057
  %v1059 = vrot.slane %v1058, 4
  %v1060 = vmax.f32 %v1058, %v1059
  %v1061 = vrot.slane %v1060, 2
  %v1062 = vmax.f32 %v1060, %v1061
  %v1063 = vrot.slane %v1062, 1
  %v1064 = vmax.f32 %v1062, %v1063
  %v1065 = vsub.f32 %v1036, %v1064
  %v1066 = vsub.f32 %v1037, %v1064
  %v1067 = vsub.f32 %v1038, %v1064
  %v1068 = vsub.f32 %v1039, %v1064
  %v1069 = vsub.f32 %v1040, %v1064
  %v1070 = vsub.f32 %v1041, %v1064
  %v1071 = vsub.f32 %v1042, %v1064
  %v1072 = vsub.f32 %v1043, %v1064
  %v1073 = vmul.f32 %v1065, 1.442695
  %v1074 = vpow.pop %v1073
  %v1075 = vmul.f32 %v1066, 1.442695
  %v1076 = vpow.pop %v1075
  %v1077 = vmul.f32 %v1067, 1.442695
  %v1078 = vpow.pop %v1077
  %v1079 = vmul.f32 %v1068, 1.442695
  %v1080 = vpow.pop %v1079
  %v1081 = vmul.f32 %v1069, 1.442695
  %v1082 = vpow.pop %v1081
  %v1083 = vmul.f32 %v1070, 1.442695
  %v1084 = vpow.pop %v1083
  %v1085 = vmul.f32 %v1071, 1.442695
  %v1086 = vpow.pop %v1085
  %v1087 = vmul.f32 %v1072, 1.442695
  %v1088 = vpow.pop %v1087
  %v1089 = vsel %vm637, %v1074, 0.0
  %v1090 = vsel %vm637, %v1076, 0.0
  %v1091 = vadd.f32 %v1089, %v1090
  %v1092 = vsel %vm637, %v1078, 0.0
  %v1093 = vadd.f32 %v1091, %v1092
  %v1094 = vsel %vm637, %v1080, 0.0
  %v1095 = vadd.f32 %v1093, %v1094
  %v1096 = vsel %vm637, %v1082, 0.0
  %v1097 = vadd.f32 %v1095, %v1096
  %v1098 = vsel %vm637, %v1084, 0.0
  %v1099 = vadd.f32 %v1097, %v1098
  %v1100 = vsel %vm637, %v1086, 0.0
  %v1101 = vadd.f32 %v1099, %v1100
  %v1102 = vsel %vm637, %v1088, 0.0
  %v1103 = vadd.f32 %v1101, %v1102
  %v1104 = vrot.slane %v1103, 4
  %v1105 = vadd.f32 %v1103, %v1104
  %v1106 = vrot.slane %v1105, 2
  %v1107 = vadd.f32 %v1105, %v1106
  %v1108 = vrot.slane %v1107, 1
  %v1109 = vadd.f32 %v1107, %v1108
  %v1110 = vrcp.pop %v1109
  %v1111 = vmul.f32 %v1074, %v1110
  %v1112 = vmul.f32 %v1076, %v1110
  %v1113 = vmul.f32 %v1078, %v1110
  %v1114 = vmul.f32 %v1080, %v1110
  %v1115 = vmul.f32 %v1082, %v1110
  %v1116 = vmul.f32 %v1084, %v1110
  %v1117 = vmul.f32 %v1086, %v1110
  %v1118 = vmul.f32 %v1088, %v1110
  %v1120 = vsel %vm637, %v1111, 0
  %v1123 = vsel %vm637, %v1112, 0
  %v1126 = vsel %vm637, %v1113, 0
  %v1129 = vsel %vm637, %v1114, 0
  %v1132 = vsel %vm637, %v1115, 0
  %v1135 = vsel %vm637, %v1116, 0
  %v1138 = vsel %vm637, %v1117, 0
  %v1141 = vsel %vm637, %v1118, 0
  %1143 = vmatprep.subr.mxu0 0.0
  %1144 = vmatpush1.xpose.msra.mxu0 %v738
  %1145 = vmatprep.subr.mxu0 0.0
  %1146 = vmatpush1.xpose.msra.mxu0 %v741
  %1147 = vmatprep.subr.mxu0 0.0
  %1148 = vmatpush1.xpose.msra.mxu0 %v744
  %1149 = vmatprep.subr.mxu0 0.0
  %1150 = vmatpush1.xpose.msra.mxu0 %v747
  %1151 = vmatprep.subr.mxu0 0.0
  %1152 = vmatpush1.xpose.msra.mxu0 %v750
  %1153 = vmatprep.subr.mxu0 0.0
  %1154 = vmatpush1.xpose.msra.mxu0 %v753
  %1155 = vmatprep.subr.mxu0 0.0
  %1156 = vmatpush1.xpose.msra.mxu0 %v756
  %1157 = vmatprep.subr.mxu0 0.0
  %1158 = vmatpush1.xpose.msra.mxu0 %v759
  %1159 = vmatprep.subr.mxu0 0.0
  %1160 = vmatpush1.xpose.msra.mxu0 0.0
  %1161 = vmatprep.subr.mxu0 0.0
  %1162 = vmatpush1.xpose.msra.mxu0 0.0
  %1163 = vmatprep.subr.mxu0 0.0
  %1164 = vmatpush1.xpose.msra.mxu0 0.0
  %1165 = vmatprep.subr.mxu0 0.0
  %1166 = vmatpush1.xpose.msra.mxu0 0.0
  %1167 = vmatprep.subr.mxu0 0.0
  %1168 = vmatpush1.xpose.msra.mxu0 0.0
  %1169 = vmatprep.subr.mxu0 0.0
  %1170 = vmatpush1.xpose.msra.mxu0 0.0
  %1171 = vmatprep.subr.mxu0 0.0
  %1172 = vmatpush1.xpose.msra.mxu0 0.0
  %1173 = vmatprep.subr.mxu0 0.0
  %1174 = vmatpush1.xpose.msra.mxu0 0.0
  %1175 = vmatprep.subr.mxu0 0.0
  %1176 = vmatpush1.xpose.msra.mxu0 0.0
  %1177 = vmatprep.subr.mxu0 0.0
  %1178 = vmatpush1.xpose.msra.mxu0 0.0
  %1179 = vmatprep.subr.mxu0 0.0
  %1180 = vmatpush1.xpose.msra.mxu0 0.0
  %1181 = vmatprep.subr.mxu0 0.0
  %1182 = vmatpush1.xpose.msra.mxu0 0.0
  %1183 = vmatprep.subr.mxu0 0.0
  %1184 = vmatpush1.xpose.msra.mxu0 0.0
  %1185 = vmatprep.subr.mxu0 0.0
  %1186 = vmatpush1.xpose.msra.mxu0 0.0
  %1187 = vmatprep.subr.mxu0 0.0
  %1188 = vmatpush1.xpose.msra.mxu0 0.0
  %1189 = vmatprep.subr.mxu0 0.0
  %1190 = vmatpush1.xpose.msra.mxu0 0.0
  %1191 = vmatprep.subr.mxu0 0.0
  %1192 = vmatpush1.xpose.msra.mxu0 0.0
  %1193 = vmatprep.subr.mxu0 0.0
  %1194 = vmatpush1.xpose.msra.mxu0 0.0
  %1195 = vmatprep.subr.mxu0 0.0
  %1196 = vmatpush1.xpose.msra.mxu0 0.0
  %1197 = vmatprep.subr.mxu0 0.0
  %1198 = vmatpush1.xpose.msra.mxu0 0.0
  %1199 = vmatprep.subr.mxu0 0.0
  %1200 = vmatpush1.xpose.msra.mxu0 0.0
  %1201 = vmatprep.subr.mxu0 0.0
  %1202 = vmatpush1.xpose.msra.mxu0 0.0
  %1203 = vmatprep.subr.mxu0 0.0
  %1204 = vmatpush1.xpose.msra.mxu0 0.0
  %1205 = vmatprep.subr.mxu0 0.0
  %1206 = vmatpush1.xpose.msra.mxu0 0.0
  %1207 = vmatprep.mubr.f32.mxu0 0.0
  %1208 = vmatmul.mubr.f32.gmra.mrb[0].mxu0 %v1120
  %v1209 = vpop.f32.mrb[0].mxu0
  %v1210 = vadd.f32 0.0, %v1209
  %v1211 = vpop.f32.mrb[0].mxu0
  %1212 = vmatprep.mubr.f32.mxu0 0.0
  %1213 = vmatmul.mubr.f32.gmra.mrb[0].mxu0 %v1123
  %v1214 = vpop.f32.mrb[0].mxu0
  %v1215 = vadd.f32 0.0, %v1214
  %v1216 = vpop.f32.mrb[0].mxu0
  %1217 = vmatprep.mubr.f32.mxu0 0.0
  %1218 = vmatmul.mubr.f32.gmra.mrb[0].mxu0 %v1126
  %v1219 = vpop.f32.mrb[0].mxu0
  %v1220 = vadd.f32 0.0, %v1219
  %v1221 = vpop.f32.mrb[0].mxu0
  %1222 = vmatprep.mubr.f32.mxu0 0.0
  %1223 = vmatmul.mubr.f32.gmra.mrb[0].mxu0 %v1129
  %v1224 = vpop.f32.mrb[0].mxu0
  %v1225 = vadd.f32 0.0, %v1224
  %v1226 = vpop.f32.mrb[0].mxu0
  %1227 = vmatprep.mubr.f32.mxu0 0.0
  %1228 = vmatmul.mubr.f32.gmra.mrb[0].mxu0 %v1132
  %v1229 = vpop.f32.mrb[0].mxu0
  %v1230 = vadd.f32 0.0, %v1229
  %v1231 = vpop.f32.mrb[0].mxu0
  %1232 = vmatprep.mubr.f32.mxu0 0.0
  %1233 = vmatmul.mubr.f32.gmra.mrb[0].mxu0 %v1135
  %v1234 = vpop.f32.mrb[0].mxu0
  %v1235 = vadd.f32 0.0, %v1234
  %v1236 = vpop.f32.mrb[0].mxu0
  %1237 = vmatprep.mubr.f32.mxu0 0.0
  %1238 = vmatmul.mubr.f32.gmra.mrb[0].mxu0 %v1138
  %v1239 = vpop.f32.mrb[0].mxu0
  %v1240 = vadd.f32 0.0, %v1239
  %v1241 = vpop.f32.mrb[0].mxu0
  %1242 = vmatprep.mubr.f32.mxu0 0.0
  %1243 = vmatmul.mubr.f32.gmra.mrb[0].mxu0 %v1141
  %v1244 = vpop.f32.mrb[0].mxu0
  %v1245 = vadd.f32 0.0, %v1244
  %v1246 = vpop.f32.mrb[0].mxu0
  %1247 = vdwg.mxu0
  %v1248 = vmul.f32 %v1210, %v442
  %v1249 = vmul.f32 %v1215, %v447
  %v1250 = vmul.f32 %v1220, %v452
  %v1251 = vmul.f32 %v1225, %v457
  %v1252 = vmul.f32 %v1230, %v462
  %v1253 = vmul.f32 %v1235, %v467
  %v1254 = vmul.f32 %v1240, %v472
  %v1255 = vmul.f32 %v1245, %v477
  %v1256 = vsel %vm54, %v1248, 0.0
  %v1257 = vsel %vm54, %v1249, 0.0
  %v1258 = vadd.f32 %v1256, %v1257
  %v1259 = vsel %vm54, %v1250, 0.0
  %v1260 = vadd.f32 %v1258, %v1259
  %v1261 = vsel %vm54, %v1251, 0.0
  %v1262 = vadd.f32 %v1260, %v1261
  %v1263 = vsel %vm54, %v1252, 0.0
  %v1264 = vadd.f32 %v1262, %v1263
  %v1265 = vsel %vm54, %v1253, 0.0
  %v1266 = vadd.f32 %v1264, %v1265
  %v1267 = vsel %vm54, %v1254, 0.0
  %v1268 = vadd.f32 %v1266, %v1267
  %v1269 = vsel %vm54, %v1255, 0.0
  %v1270 = vadd.f32 %v1268, %v1269
  %v1271 = vrot.slane %v1270, 4
  %v1272 = vadd.f32 %v1270, %v1271
  %v1273 = vrot.slane %v1272, 2
  %v1274 = vadd.f32 %v1272, %v1273
  %v1275 = vrot.slane %v1274, 1
  %v1276 = vadd.f32 %v1274, %v1275
  %vm1277 = vcmask 1040384
  %v1278 = vsel %vm1277, %v894, %v1276
  %v1279 = vld [vmem:[%s9] sm:$0xff]
  %v1280 = vld [vmem:[%s9 + $0x8] sm:$0xff]
  %v1281 = vld [vmem:[%s9 + $0x10] sm:$0xff]
  %v1282 = vld [vmem:[%s9 + $0x18] sm:$0xff]
  %v1283 = vld [vmem:[%s9 + $0x20] sm:$0xff]
  %v1284 = vld [vmem:[%s9 + $0x28] sm:$0xff]
  %v1285 = vld [vmem:[%s9 + $0x30] sm:$0xff]
  %v1286 = vld [vmem:[%s9 + $0x38] sm:$0xff]
  %v1287 = vld [vmem:[%s10] sm:$0x1]
  %v1289 = vlaneseq
  %v1290 = vshrl.u32 %v1289, 7
  %v1291 = vsub.s32 0, %v1290
  %v1292 = vrot.slane %v1287, %v1291
  %v1295 = vsel %vm54, %v1278, 0
  %1297 = vmatprep.subr.mxu0 0.0
  %1298 = vmatpush1.msra.mxu0 %v1279
  %1299 = vmatprep.subr.mxu0 0.0
  %1300 = vmatpush1.msra.mxu0 %v1280
  %1301 = vmatprep.subr.mxu0 0.0
  %1302 = vmatpush1.msra.mxu0 %v1281
  %1303 = vmatprep.subr.mxu0 0.0
  %1304 = vmatpush1.msra.mxu0 %v1282
  %1305 = vmatprep.subr.mxu0 0.0
  %1306 = vmatpush1.msra.mxu0 %v1283
  %1307 = vmatprep.subr.mxu0 0.0
  %1308 = vmatpush1.msra.mxu0 %v1284
  %1309 = vmatprep.subr.mxu0 0.0
  %1310 = vmatpush1.msra.mxu0 %v1285
  %1311 = vmatprep.subr.mxu0 0.0
  %1312 = vmatpush1.msra.mxu0 %v1286
  %1313 = vmatprep.subr.mxu0 0.0
  %1314 = vmatpush1.msra.mxu0 0.0
  %1315 = vmatprep.subr.mxu0 0.0
  %1316 = vmatpush1.msra.mxu0 0.0
  %1317 = vmatprep.subr.mxu0 0.0
  %1318 = vmatpush1.msra.mxu0 0.0
  %1319 = vmatprep.subr.mxu0 0.0
  %1320 = vmatpush1.msra.mxu0 0.0
  %1321 = vmatprep.subr.mxu0 0.0
  %1322 = vmatpush1.msra.mxu0 0.0
  %1323 = vmatprep.subr.mxu0 0.0
  %1324 = vmatpush1.msra.mxu0 0.0
  %1325 = vmatprep.subr.mxu0 0.0
  %1326 = vmatpush1.msra.mxu0 0.0
  %1327 = vmatprep.subr.mxu0 0.0
  %1328 = vmatpush1.msra.mxu0 0.0
  %1329 = vmatprep.subr.mxu0 0.0
  %1330 = vmatpush1.msra.mxu0 0.0
  %1331 = vmatprep.subr.mxu0 0.0
  %1332 = vmatpush1.msra.mxu0 0.0
  %1333 = vmatprep.subr.mxu0 0.0
  %1334 = vmatpush1.msra.mxu0 0.0
  %1335 = vmatprep.subr.mxu0 0.0
  %1336 = vmatpush1.msra.mxu0 0.0
  %1337 = vmatprep.subr.mxu0 0.0
  %1338 = vmatpush1.msra.mxu0 0.0
  %1339 = vmatprep.subr.mxu0 0.0
  %1340 = vmatpush1.msra.mxu0 0.0
  %1341 = vmatprep.subr.mxu0 0.0
  %1342 = vmatpush1.msra.mxu0 0.0
  %1343 = vmatprep.subr.mxu0 0.0
  %1344 = vmatpush1.msra.mxu0 0.0
  %1345 = vmatprep.subr.mxu0 0.0
  %1346 = vmatpush1.msra.mxu0 0.0
  %1347 = vmatprep.subr.mxu0 0.0
  %1348 = vmatpush1.msra.mxu0 0.0
  %1349 = vmatprep.subr.mxu0 0.0
  %1350 = vmatpush1.msra.mxu0 0.0
  %1351 = vmatprep.subr.mxu0 0.0
  %1352 = vmatpush1.msra.mxu0 0.0
  %1353 = vmatprep.subr.mxu0 0.0
  %1354 = vmatpush1.msra.mxu0 0.0
  %1355 = vmatprep.subr.mxu0 0.0
  %1356 = vmatpush1.msra.mxu0 0.0
  %1357 = vmatprep.subr.mxu0 0.0
  %1358 = vmatpush1.msra.mxu0 0.0
  %1359 = vmatprep.subr.mxu0 0.0
  %1360 = vmatpush1.msra.mxu0 0.0
  %1361 = vmatprep.mubr.f32.mxu0 0.0
  %1362 = vmatmul.mubr.f32.gmra.mrb[0].mxu0 %v1295
  %v1363 = vpop.f32.mrb[0].mxu0
  %v1364 = vadd.f32 %v1292, %v1363
  %v1365 = vpop.f32.mrb[0].mxu0
  %1366 = vdwg.mxu0
  %v1367 = vxor.u32 %v1364, 2147483648
  %v1368 = vmul.f32 %v1367, 1.442695
  %v1369 = vpow.pop %v1368
  %v1370 = vadd.f32 %v1369, 1.0
  %v1371 = vrcp.pop %v1370
  %v1372 = vmul.f32 1.0, %v1371
  %1373 = vst [vmem:[%s11] sm:$0x3] %v1372
  // Predicated region
  $region46: #{danet_head_forward.2} parent=0 // pred_check
    _
  $region47: #{danet_head_forward.2} parent=0 // pred_check_branch
    %1375 = sbr.rel (0) target = $region49
  $region48: #{danet_head_forward.2} parent=0 // pred_region
    _
  $region49: #{danet_head_forward.2} parent=0 // pred_fallthru
    _
  // Predicated region
  $region50: #{danet_head_forward.2} parent=0 // pred_check
    _
  $region51: #{danet_head_forward.2} parent=0 // pred_check_branch
    %1377 = sbr.rel (0) target = $region53
  $region52: #{danet_head_forward.2} parent=0 // pred_region
    _
  $region53: #{danet_head_forward.2} parent=0 // pred_fallthru
    _

// kernel: danet_head_forward.3
$region0: #{danet_head_forward.3}
  #allocation0 [shape = 'u32[]', space=smem, size = 0x4, offset = 0x4, fixed_abs, tag = 'smem constant byte address 0x4 - core index']
  #allocation1 [shape = 'u32[144,128]{1,0:T(1,128)}', space=vmem, size = 0x12000, scoped, tag = 'internal scratch']
  #allocation2 [shape = 'f32[256,128]{1,0:T(8,128)}', space=vmem, size = 0x20000, scoped, tag = 'scratch operand']
  %s0 = inlined_call_operand.vmem [shape: bf16[2,18,18,64], index: 0, kind: input, shape index: {}]
  %s1 = inlined_call_operand.vmem [shape: bf16[9,64,128], index: 1, kind: input, shape index: {}]
  %s2 = inlined_call_operand.vmem [shape: f32[1,128], index: 2, kind: input, shape index: {}]
  %s3 = inlined_call_operand.vmem [shape: bf16[2,128,128], index: 3, kind: input, shape index: {}]
  %s4 = inlined_call_operand.vmem [shape: f32[1,128], index: 4, kind: input, shape index: {}]
  %s5 = inlined_call_operand.vmem [shape: f32[2,128,256], index: 5, kind: output, shape index: {}]
  %s6 = sld [smem:[#allocation0]]
  $region53: #{danet_head_forward.3} parent=0
    _
  %s8 = ssub.s32 1, %s6
  %s9 = scalar_select 0, %s8, %s6
  loop: start=0, step=1, limit=4
  $region2: #{danet_head_forward.3} parent=0 // loop_pre_header
    _
  $region3: #{danet_head_forward.3} parent=0 // loop_header
    %s11 = sphi 0, %s15
    %p12 = scmp.ge.s32.totalorder %s11, 4
    %s18 = sphi 0, %s30
    %s19 = sphi 0, %s26
    %s20 = sphi 0, %s18
    %s21 = sphi 0, %s19
    %s22 = sphi 0, %s20
    %s23 = sphi 0, %s21
    %s33 = sphi 0, %s35
    %s36 = sphi 0, %s33
    %s37 = sphi 0, %s36
    %s53 = sphi 0, %s37
    %s57 = sphi 0, %s57
    %s59 = sphi 0, %s57
    %s60 = sphi 0, %s59
    %s74 = sphi 0, %s60
    %s78 = sphi 0, %s78
    %s80 = sphi 0, %s78
    %s81 = sphi 0, %s80
    %s95 = sphi 0, %s81
    %s101 = sphi 0, %s103
    %s104 = sphi 0, %s101
    %s105 = sphi 0, %s104
    %s121 = sphi 0, %s105
    %s125 = sphi 0, %s125
    %s127 = sphi 0, %s125
    %s128 = sphi 0, %s127
    %s142 = sphi 0, %s128
    %s150 = sphi 0, %s152
    %s153 = sphi 0, %s150
    %s154 = sphi 0, %s153
    %s170 = sphi 0, %s154
  $region4: #{danet_head_forward.3} parent=0 // loop_header_branch
    %14 = sbr.rel (%p12) target = $region8
  $region5: #{danet_head_forward.3} parent=0 // loop_body
    %s16 = ssub.s32 %s11, 1
    %s17 = ssub.s32 %s11, 2
    %s24 = sadd.s32 1, %s19
    %p25 = scmp.ge.s32.totalorder %s24, 1
    %s26 = scalar_select %p25, 0, %s24
    %s27 = sadd.s32 1, %s18
    %s28 = scalar_select %p25, %s27, %s18
    %p29 = scmp.ge.s32.totalorder %s28, 2
    %s30 = scalar_select %p29, 0, %s28
    %s31 = ssub.s32 %s18, %s30
    %p32 = scmp.eq.s32.totalorder %s31, 0
    %s34 = sadd.s32 %s33, 1
    %s35 = scalar_select %p32, %s33, %s34
    %p38 = pneg %p32
    %p39 = scmp.eq.s32.totalorder %s11, 1
    %p40 = por %p38, %p39
    %p41 = scmp.ne.s32.totalorder %s33, %s36
    %p42 = scmp.eq.s32.totalorder %s11, 0
    %p43 = por %p41, %p42
    %p44 = scmp.ne.s32.totalorder %s33, %s36
    %p45 = scmp.eq.s32.totalorder %s16, 1
    %p46 = por %p44, %p45
    %p47 = scmp.ne.s32.totalorder %s36, %s37
    %p48 = scmp.eq.s32.totalorder %s16, 0
    %p49 = por %p47, %p48
    %p50 = scmp.ne.s32.totalorder %s36, %s37
    %p51 = scmp.eq.s32.totalorder %s17, 1
    %p52 = por %p50, %p51
    %p54 = scmp.ne.s32.totalorder %s37, %s53
    %p55 = scmp.eq.s32.totalorder %s17, 0
    %p56 = por %p54, %p55
    %s58 = sadd.s32 %s57, 1
    %p61 = scmp.eq.s32.totalorder %s11, 1
    %p62 = scmp.ne.s32.totalorder %s57, %s59
    %p63 = scmp.eq.s32.totalorder %s11, 0
    %p64 = por %p62, %p63
    %p65 = scmp.ne.s32.totalorder %s57, %s59
    %p66 = scmp.eq.s32.totalorder %s16, 1
    %p67 = por %p65, %p66
    %p68 = scmp.ne.s32.totalorder %s59, %s60
    %p69 = scmp.eq.s32.totalorder %s16, 0
    %p70 = por %p68, %p69
    %p71 = scmp.ne.s32.totalorder %s59, %s60
    %p72 = scmp.eq.s32.totalorder %s17, 1
    %p73 = por %p71, %p72
    %p75 = scmp.ne.s32.totalorder %s60, %s74
    %p76 = scmp.eq.s32.totalorder %s17, 0
    %p77 = por %p75, %p76
    %s79 = sadd.s32 %s78, 1
    %p82 = scmp.eq.s32.totalorder %s11, 1
    %p83 = scmp.ne.s32.totalorder %s78, %s80
    %p84 = scmp.eq.s32.totalorder %s11, 0
    %p85 = por %p83, %p84
    %p86 = scmp.ne.s32.totalorder %s78, %s80
    %p87 = scmp.eq.s32.totalorder %s16, 1
    %p88 = por %p86, %p87
    %p89 = scmp.ne.s32.totalorder %s80, %s81
    %p90 = scmp.eq.s32.totalorder %s16, 0
    %p91 = por %p89, %p90
    %p92 = scmp.ne.s32.totalorder %s80, %s81
    %p93 = scmp.eq.s32.totalorder %s17, 1
    %p94 = por %p92, %p93
    %p96 = scmp.ne.s32.totalorder %s81, %s95
    %p97 = scmp.eq.s32.totalorder %s17, 0
    %p98 = por %p96, %p97
    %s99 = ssub.s32 %s18, %s30
    %p100 = scmp.eq.s32.totalorder %s99, 0
    %s102 = sadd.s32 %s101, 1
    %s103 = scalar_select %p100, %s101, %s102
    %p106 = pneg %p100
    %p107 = scmp.eq.s32.totalorder %s11, 1
    %p108 = por %p106, %p107
    %p109 = scmp.ne.s32.totalorder %s101, %s104
    %p110 = scmp.eq.s32.totalorder %s11, 0
    %p111 = por %p109, %p110
    %p112 = scmp.ne.s32.totalorder %s101, %s104
    %p113 = scmp.eq.s32.totalorder %s16, 1
    %p114 = por %p112, %p113
    %p115 = scmp.ne.s32.totalorder %s104, %s105
    %p116 = scmp.eq.s32.totalorder %s16, 0
    %p117 = por %p115, %p116
    %p118 = scmp.ne.s32.totalorder %s104, %s105
    %p119 = scmp.eq.s32.totalorder %s17, 1
    %p120 = por %p118, %p119
    %p122 = scmp.ne.s32.totalorder %s105, %s121
    %p123 = scmp.eq.s32.totalorder %s17, 0
    %p124 = por %p122, %p123
    %s126 = sadd.s32 %s125, 1
    %p129 = scmp.eq.s32.totalorder %s11, 1
    %p130 = scmp.ne.s32.totalorder %s125, %s127
    %p131 = scmp.eq.s32.totalorder %s11, 0
    %p132 = por %p130, %p131
    %p133 = scmp.ne.s32.totalorder %s125, %s127
    %p134 = scmp.eq.s32.totalorder %s16, 1
    %p135 = por %p133, %p134
    %p136 = scmp.ne.s32.totalorder %s127, %s128
    %p137 = scmp.eq.s32.totalorder %s16, 0
    %p138 = por %p136, %p137
    %p139 = scmp.ne.s32.totalorder %s127, %s128
    %p140 = scmp.eq.s32.totalorder %s17, 1
    %p141 = por %p139, %p140
    %p143 = scmp.ne.s32.totalorder %s128, %s142
    %p144 = scmp.eq.s32.totalorder %s17, 0
    %p145 = por %p143, %p144
    %s146 = ssub.s32 %s18, %s30
    %s147 = ssub.s32 %s19, %s26
    %s148 = sor.u32 %s146, %s147
    %p149 = scmp.eq.s32.totalorder %s148, 0
    %s151 = sadd.s32 %s150, 1
    %s152 = scalar_select %p149, %s150, %s151
    %p155 = pneg %p149
    %p156 = scmp.eq.s32.totalorder %s11, 1
    %p157 = por %p155, %p156
    %p158 = scmp.ne.s32.totalorder %s150, %s153
    %p159 = scmp.eq.s32.totalorder %s11, 0
    %p160 = por %p158, %p159
    %p161 = scmp.ne.s32.totalorder %s150, %s153
    %p162 = scmp.eq.s32.totalorder %s16, 1
    %p163 = por %p161, %p162
    %p164 = scmp.ne.s32.totalorder %s153, %s154
    %p165 = scmp.eq.s32.totalorder %s16, 0
    %p166 = por %p164, %p165
    %p167 = scmp.ne.s32.totalorder %s153, %s154
    %p168 = scmp.eq.s32.totalorder %s17, 1
    %p169 = por %p167, %p168
    %p171 = scmp.ne.s32.totalorder %s154, %s170
    %p172 = scmp.eq.s32.totalorder %s17, 0
    %p173 = por %p171, %p172
    %p174 = scmp.le.s32.totalorder 1, %s11
    %p175 = scmp.lt.s32.totalorder %s11, 3
    %p176 = pnand %p174, %p175
    %p177 = pneg %p176
    // Predicated region
    $region9: #{danet_head_forward.3} parent=5 // pred_check
      _
    $region10: #{danet_head_forward.3} parent=5 // pred_check_branch
      %179 = sbr.rel (%p176) target = $region12
    $region11: #{danet_head_forward.3} parent=5 // pred_region
      %s180 = ssub.s32 %s11, 1
      // Predicated region
      $region13: #{danet_head_forward.3} parent=11 // pred_check
        %p181 = pneg %p70
      $region14: #{danet_head_forward.3} parent=11 // pred_check_branch
        %183 = sbr.rel (%p181) target = $region16
      $region15: #{danet_head_forward.3} parent=11 // pred_region
        _
      $region16: #{danet_head_forward.3} parent=11 // pred_fallthru
        _
      // Predicated region
      $region17: #{danet_head_forward.3} parent=11 // pred_check
        %p184 = pneg %p91
      $region18: #{danet_head_forward.3} parent=11 // pred_check_branch
        %186 = sbr.rel (%p184) target = $region20
      $region19: #{danet_head_forward.3} parent=11 // pred_region
        _
      $region20: #{danet_head_forward.3} parent=11 // pred_fallthru
        _
      // Predicated region
      $region21: #{danet_head_forward.3} parent=11 // pred_check
        %p187 = pneg %p138
      $region22: #{danet_head_forward.3} parent=11 // pred_check_branch
        %189 = sbr.rel (%p187) target = $region24
      $region23: #{danet_head_forward.3} parent=11 // pred_region
        _
      $region24: #{danet_head_forward.3} parent=11 // pred_fallthru
        _
    $region12: #{danet_head_forward.3} parent=5 // pred_fallthru
      _
    %p190 = scmp.lt.s32.totalorder %s11, 2
    // Predicated region
    $region25: #{danet_head_forward.3} parent=5 // pred_check
      %p191 = pneg %p190
    $region26: #{danet_head_forward.3} parent=5 // pred_check_branch
      %193 = sbr.rel (%p191) target = $region28
    $region27: #{danet_head_forward.3} parent=5 // pred_region
      // Predicated region
      $region29: #{danet_head_forward.3} parent=27 // pred_check
        %p194 = pneg %p43
      $region30: #{danet_head_forward.3} parent=27 // pred_check_branch
        %196 = sbr.rel (%p194) target = $region32
      $region31: #{danet_head_forward.3} parent=27 // pred_region
        %p197 = scmp.lt.s32.totalorder %s18, 1
        %s198 = scalar_select %p197, %s18, 1
        %s199 = smul.addr %s198, 54
        %s200 = smul.addr %s199, 4
        %s201 = scalar_lea.vmem %s0, %s200
      $region32: #{danet_head_forward.3} parent=27 // pred_fallthru
        _
      // Predicated region
      $region33: #{danet_head_forward.3} parent=27 // pred_check
        %p202 = pneg %p111
      $region34: #{danet_head_forward.3} parent=27 // pred_check_branch
        %204 = sbr.rel (%p202) target = $region36
      $region35: #{danet_head_forward.3} parent=27 // pred_region
        %p205 = scmp.lt.s32.totalorder %s18, 1
        %s206 = scalar_select %p205, %s18, 1
        %s207 = smul.addr %s206, 16
        %s208 = smul.addr %s207, 4
        %s209 = scalar_lea.vmem %s3, %s208
      $region36: #{danet_head_forward.3} parent=27 // pred_fallthru
        _
    $region28: #{danet_head_forward.3} parent=5 // pred_fallthru
      _
    %p210 = scmp.le.s32.totalorder 1, %s11
    %p211 = scmp.lt.s32.totalorder %s11, 3
    %p212 = pnand %p210, %p211
    %p213 = pneg %p212
    // Predicated region
    $region37: #{danet_head_forward.3} parent=5 // pred_check
      _
    $region38: #{danet_head_forward.3} parent=5 // pred_check_branch
      %215 = sbr.rel (%p212) target = $region40
    $region39: #{danet_head_forward.3} parent=5 // pred_region
      %s216 = ssub.s32 %s11, 1
      %p217 = scmp.lt.s32.totalorder %s20, 1
      %s218 = scalar_select %p217, %s20, 1
      %s219 = smul.addr %s218, 54
      %s220 = smul.addr %s219, 4
      %s221 = scalar_lea.vmem %s0, %s220
      %p222 = pneg %p49
      %p223 = pneg %p46
      %p224 = pneg %p70
      %p225 = pneg %p67
      %p226 = pneg %p91
      %p227 = pneg %p88
      %p228 = scmp.lt.s32.totalorder %s20, 1
      %s229 = scalar_select %p228, %s20, 1
      %s230 = smul.addr %s229, 16
      %s231 = smul.addr %s230, 4
      %s232 = scalar_lea.vmem %s3, %s231
      %p233 = pneg %p117
      %p234 = pneg %p114
      %p235 = pneg %p138
      %p236 = pneg %p135
      %p237 = pneg %p166
      %p238 = pneg %p163
      %s239 = smul.u32 2, %s21
      %p240 = scmp.lt.s32.totalorder %s20, 1
      %s241 = scalar_select %p240, %s20, 1
      %p242 = scmp.lt.s32.totalorder %s239, 1
      %s243 = scalar_select %p242, %s239, 1
      %s244 = smul.addr %s241, 32
      %s245 = sadd.s32 %s243, %s244
      %s246 = smul.addr %s245, 8
      %s247 = scalar_lea.vmem %s5, %s246
      %p248 = scmp.lt.s32.totalorder %s20, 1
      %s249 = scalar_select %p248, %s20, 1
      %s250 = smul.addr %s249, 54
      %s251 = smul.addr %s250, 4
      %s252 = scalar_lea.vmem %s0, %s251
      %p253 = scmp.lt.s32.totalorder %s20, 1
      %s254 = scalar_select %p253, %s20, 1
      %s255 = smul.addr %s254, 16
      %s256 = smul.addr %s255, 4
      %s257 = scalar_lea.vmem %s3, %s256
      %s258 = smul.u32 2, %s21
      %p259 = scmp.lt.s32.totalorder %s20, 1
      %s260 = scalar_select %p259, %s20, 1
      %p261 = scmp.lt.s32.totalorder %s258, 1
      %s262 = scalar_select %p261, %s258, 1
      %s263 = smul.addr %s260, 32
      %s264 = sadd.s32 %s262, %s263
      %s265 = smul.addr %s264, 8
      %s266 = scalar_lea.vmem %s5, %s265
      %s267 = smul.u32 2, %s21
      %s269 = smul.u32 %s21, 16
      %s270 = smul.u32 %s269, 3
      %s271 = smul.addr %s270, 4
      %s272 = scalar_lea.vmem %s252, %s271
      %v273 = vld [vmem:[%s272] sm:$0xf]
      %v274 = vld [vmem:[%s272 + $0x4] sm:$0xf]
      %v275 = vld [vmem:[%s272 + $0xc] sm:$0xf]
      %v276 = vld [vmem:[%s272 + $0x10] sm:$0xf]
      %v277 = vld [vmem:[%s272 + $0x18] sm:$0xf]
      %v278 = vld [vmem:[%s272 + $0x1c] sm:$0xf]
      %v279 = vld [vmem:[%s272 + $0x24] sm:$0xf]
      %v280 = vld [vmem:[%s272 + $0x28] sm:$0xf]
      %v281 = vld [vmem:[%s272 + $0x30] sm:$0xf]
      %v282 = vld [vmem:[%s272 + $0x34] sm:$0xf]
      %v283 = vld [vmem:[%s272 + $0x3c] sm:$0xf]
      %v284 = vld [vmem:[%s272 + $0x40] sm:$0xf]
      %v285 = vld [vmem:[%s272 + $0x48] sm:$0xf]
      %v286 = vld [vmem:[%s272 + $0x4c] sm:$0xf]
      %v287 = vld [vmem:[%s272 + $0x54] sm:$0xf]
      %v288 = vld [vmem:[%s272 + $0x58] sm:$0xf]
      %v289 = vld [vmem:[%s272 + $0x60] sm:$0xf]
      %v290 = vld [vmem:[%s272 + $0x64] sm:$0xf]
      %v291 = vld [vmem:[%s272 + $0x6c] sm:$0xf]
      %v292 = vld [vmem:[%s272 + $0x70] sm:$0xf]
      %v293 = vld [vmem:[%s272 + $0x78] sm:$0xf]
      %v294 = vld [vmem:[%s272 + $0x7c] sm:$0xf]
      %v295 = vld [vmem:[%s272 + $0x84] sm:$0xf]
      %v296 = vld [vmem:[%s272 + $0x88] sm:$0xf]
      %v297 = vld [vmem:[%s272 + $0x90] sm:$0xf]
      %v298 = vld [vmem:[%s272 + $0x94] sm:$0xf]
      %v299 = vld [vmem:[%s272 + $0x9c] sm:$0xf]
      %v300 = vld [vmem:[%s272 + $0xa0] sm:$0xf]
      %v301 = vld [vmem:[%s272 + $0xa8] sm:$0xf]
      %v302 = vld [vmem:[%s272 + $0xac] sm:$0xf]
      %v303 = vld [vmem:[%s272 + $0xb4] sm:$0xf]
      %v304 = vld [vmem:[%s272 + $0xb8] sm:$0xf]
      %v305 = vld [vmem:[%s1] sm:$0xf]
      %v306 = vld [vmem:[%s1 + $0x4] sm:$0xf]
      %v307 = vld [vmem:[%s1 + $0x8] sm:$0xf]
      %v308 = vld [vmem:[%s1 + $0xc] sm:$0xf]
      %v309 = vld [vmem:[%s1 + $0x10] sm:$0xf]
      %v310 = vld [vmem:[%s1 + $0x14] sm:$0xf]
      %v311 = vld [vmem:[%s1 + $0x18] sm:$0xf]
      %v312 = vld [vmem:[%s1 + $0x1c] sm:$0xf]
      %v345 = vunpack.c.l.b16 %v273
      %v346 = vunpack.c.l.b16 %v274
      %v347 = vunpack.c.l.b16 %v275
      %v348 = vunpack.c.l.b16 %v276
      %v349 = vunpack.c.l.b16 %v277
      %v350 = vunpack.c.l.b16 %v278
      %v351 = vunpack.c.l.b16 %v279
      %v352 = vunpack.c.l.b16 %v280
      %v353 = vunpack.c.l.b16 %v281
      %v354 = vunpack.c.l.b16 %v282
      %v355 = vunpack.c.l.b16 %v283
      %v356 = vunpack.c.l.b16 %v284
      %v357 = vunpack.c.l.b16 %v285
      %v358 = vunpack.c.l.b16 %v286
      %v359 = vunpack.c.l.b16 %v287
      %v360 = vunpack.c.l.b16 %v288
      %v361 = vunpack.c.l.b16 %v289
      %v362 = vunpack.c.l.b16 %v290
      %v363 = vunpack.c.l.b16 %v291
      %v364 = vunpack.c.l.b16 %v292
      %v365 = vunpack.c.l.b16 %v293
      %v366 = vunpack.c.l.b16 %v294
      %v367 = vunpack.c.l.b16 %v295
      %v368 = vunpack.c.l.b16 %v296
      %v369 = vunpack.c.l.b16 %v297
      %v370 = vunpack.c.l.b16 %v298
      %v371 = vunpack.c.l.b16 %v299
      %v372 = vunpack.c.l.b16 %v300
      %v373 = vunpack.c.l.b16 %v301
      %v374 = vunpack.c.l.b16 %v302
      %v375 = vunpack.c.l.b16 %v303
      %v376 = vunpack.c.l.b16 %v304
      %v377 = vpack.c.b16 %v346, %v345
      %v378 = vpack.c.b16 %v348, %v347
      %v379 = vpack.c.b16 %v350, %v349
      %v380 = vpack.c.b16 %v352, %v351
      %v381 = vpack.c.b16 %v354, %v353
      %v382 = vpack.c.b16 %v356, %v355
      %v383 = vpack.c.b16 %v358, %v357
      %v384 = vpack.c.b16 %v360, %v359
      %v385 = vpack.c.b16 %v362, %v361
      %v386 = vpack.c.b16 %v364, %v363
      %v387 = vpack.c.b16 %v366, %v365
      %v388 = vpack.c.b16 %v368, %v367
      %v389 = vpack.c.b16 %v370, %v369
      %v390 = vpack.c.b16 %v372, %v371
      %v391 = vpack.c.b16 %v374, %v373
      %v392 = vpack.c.b16 %v376, %v375
      %v401 = vunpack.c.l.b16 %v305
      %v402 = vunpack.c.l.b16 %v306
      %v403 = vunpack.c.l.b16 %v307
      %v404 = vunpack.c.l.b16 %v308
      %v405 = vunpack.c.l.b16 %v309
      %v406 = vunpack.c.l.b16 %v310
      %v407 = vunpack.c.l.b16 %v311
      %v408 = vunpack.c.l.b16 %v312
      %v409 = vpack.c.b16 %v402, %v401
      %v410 = vpack.c.b16 %v404, %v403
      %v411 = vpack.c.b16 %v406, %v405
      %v412 = vpack.c.b16 %v408, %v407
      %vm417 = vcmask 523264
      %v419 = vsel %vm417, %v377, 0
      %v422 = vsel %vm417, %v378, 0
      %v425 = vsel %vm417, %v379, 0
      %v428 = vsel %vm417, %v380, 0
      %v431 = vsel %vm417, %v381, 0
      %v434 = vsel %vm417, %v382, 0
      %v437 = vsel %vm417, %v383, 0
      %v440 = vsel %vm417, %v384, 0
      %v443 = vsel %vm417, %v385, 0
      %v446 = vsel %vm417, %v386, 0
      %v449 = vsel %vm417, %v387, 0
      %v452 = vsel %vm417, %v388, 0
      %v455 = vsel %vm417, %v389, 0
      %v458 = vsel %vm417, %v390, 0
      %v461 = vsel %vm417, %v391, 0
      %v464 = vsel %vm417, %v392, 0
      %466 = vmatprep.subr.bf16.mxu0 0
      %467 = vmatpush1.bf16.msra.mxu0 %v409
      %468 = vmatprep.subr.bf16.mxu0 0
      %469 = vmatpush1.bf16.msra.mxu0 %v410
      %470 = vmatprep.subr.bf16.mxu0 0
      %471 = vmatpush1.bf16.msra.mxu0 %v411
      %472 = vmatprep.subr.bf16.mxu0 0
      %473 = vmatpush1.bf16.msra.mxu0 %v412
      %474 = vmatprep.subr.bf16.mxu0 0
      %475 = vmatpush1.bf16.msra.mxu0 0
      %476 = vmatprep.subr.bf16.mxu0 0
      %477 = vmatpush1.bf16.msra.mxu0 0
      %478 = vmatprep.subr.bf16.mxu0 0
      %479 = vmatpush1.bf16.msra.mxu0 0
      %480 = vmatprep.subr.bf16.mxu0 0
      %481 = vmatpush1.bf16.msra.mxu0 0
      %482 = vmatprep.subr.bf16.mxu0 0
      %483 = vmatpush1.bf16.msra.mxu0 0
      %484 = vmatprep.subr.bf16.mxu0 0
      %485 = vmatpush1.bf16.msra.mxu0 0
      %486 = vmatprep.subr.bf16.mxu0 0
      %487 = vmatpush1.bf16.msra.mxu0 0
      %488 = vmatprep.subr.bf16.mxu0 0
      %489 = vmatpush1.bf16.msra.mxu0 0
      %490 = vmatprep.subr.bf16.mxu0 0
      %491 = vmatpush1.bf16.msra.mxu0 0
      %492 = vmatprep.subr.bf16.mxu0 0
      %493 = vmatpush1.bf16.msra.mxu0 0
      %494 = vmatprep.subr.bf16.mxu0 0
      %495 = vmatpush1.bf16.msra.mxu0 0
      %496 = vmatprep.subr.bf16.mxu0 0
      %497 = vmatpush1.bf16.msra.mxu0 0
      %498 = vmatprep.mubr.bf16.mxu0 0
      %499 = vmatmul.mubr.bf16.gmra.mrb[0].mxu0 %v419
      %v500 = vpop.f32.mrb[0].mxu0
      %v501 = vadd.f32 0.0, %v500
      %v502 = vpop.f32.mrb[0].mxu0
      %v503 = vpop.f32.mrb[0].mxu0
      %v504 = vadd.f32 0.0, %v503
      %v505 = vpop.f32.mrb[0].mxu0
      %506 = vmatprep.mubr.bf16.mxu0 0
      %507 = vmatmul.mubr.bf16.gmra.mrb[0].mxu0 %v422
      %v508 = vpop.f32.mrb[0].mxu0
      %v509 = vadd.f32 0.0, %v508
      %v510 = vpop.f32.mrb[0].mxu0
      %v511 = vpop.f32.mrb[0].mxu0
      %v512 = vadd.f32 0.0, %v511
      %v513 = vpop.f32.mrb[0].mxu0
      %514 = vmatprep.mubr.bf16.mxu0 0
      %515 = vmatmul.mubr.bf16.gmra.mrb[0].mxu0 %v425
      %v516 = vpop.f32.mrb[0].mxu0
      %v517 = vadd.f32 0.0, %v516
      %v518 = vpop.f32.mrb[0].mxu0
      %v519 = vpop.f32.mrb[0].mxu0
      %v520 = vadd.f32 0.0, %v519
      %v521 = vpop.f32.mrb[0].mxu0
      %522 = vmatprep.mubr.bf16.mxu0 0
      %523 = vmatmul.mubr.bf16.gmra.mrb[0].mxu0 %v428
      %v524 = vpop.f32.mrb[0].mxu0
      %v525 = vadd.f32 0.0, %v524
      %v526 = vpop.f32.mrb[0].mxu0
      %v527 = vpop.f32.mrb[0].mxu0
      %v528 = vadd.f32 0.0, %v527
      %v529 = vpop.f32.mrb[0].mxu0
      %530 = vmatprep.mubr.bf16.mxu0 0
      %531 = vmatmul.mubr.bf16.gmra.mrb[0].mxu0 %v431
      %v532 = vpop.f32.mrb[0].mxu0
      %v533 = vadd.f32 0.0, %v532
      %v534 = vpop.f32.mrb[0].mxu0
      %v535 = vpop.f32.mrb[0].mxu0
      %v536 = vadd.f32 0.0, %v535
      %v537 = vpop.f32.mrb[0].mxu0
      %538 = vmatprep.mubr.bf16.mxu0 0
      %539 = vmatmul.mubr.bf16.gmra.mrb[0].mxu0 %v434
      %v540 = vpop.f32.mrb[0].mxu0
      %v541 = vadd.f32 0.0, %v540
      %v542 = vpop.f32.mrb[0].mxu0
      %v543 = vpop.f32.mrb[0].mxu0
      %v544 = vadd.f32 0.0, %v543
      %v545 = vpop.f32.mrb[0].mxu0
      %546 = vmatprep.mubr.bf16.mxu0 0
      %547 = vmatmul.mubr.bf16.gmra.mrb[0].mxu0 %v437
      %v548 = vpop.f32.mrb[0].mxu0
      %v549 = vadd.f32 0.0, %v548
      %v550 = vpop.f32.mrb[0].mxu0
      %v551 = vpop.f32.mrb[0].mxu0
      %v552 = vadd.f32 0.0, %v551
      %v553 = vpop.f32.mrb[0].mxu0
      %554 = vmatprep.mubr.bf16.mxu0 0
      %555 = vmatmul.mubr.bf16.gmra.mrb[0].mxu0 %v440
      %v556 = vpop.f32.mrb[0].mxu0
      %v557 = vadd.f32 0.0, %v556
      %v558 = vpop.f32.mrb[0].mxu0
      %v559 = vpop.f32.mrb[0].mxu0
      %v560 = vadd.f32 0.0, %v559
      %v561 = vpop.f32.mrb[0].mxu0
      %562 = vmatprep.mubr.bf16.mxu0 0
      %563 = vmatmul.mubr.bf16.gmra.mrb[0].mxu0 %v443
      %v564 = vpop.f32.mrb[0].mxu0
      %v565 = vadd.f32 0.0, %v564
      %v566 = vpop.f32.mrb[0].mxu0
      %v567 = vpop.f32.mrb[0].mxu0
      %v568 = vadd.f32 0.0, %v567
      %v569 = vpop.f32.mrb[0].mxu0
      %570 = vmatprep.mubr.bf16.mxu0 0
      %571 = vmatmul.mubr.bf16.gmra.mrb[0].mxu0 %v446
      %v572 = vpop.f32.mrb[0].mxu0
      %v573 = vadd.f32 0.0, %v572
      %v574 = vpop.f32.mrb[0].mxu0
      %v575 = vpop.f32.mrb[0].mxu0
      %v576 = vadd.f32 0.0, %v575
      %v577 = vpop.f32.mrb[0].mxu0
      %578 = vmatprep.mubr.bf16.mxu0 0
      %579 = vmatmul.mubr.bf16.gmra.mrb[0].mxu0 %v449
      %v580 = vpop.f32.mrb[0].mxu0
      %v581 = vadd.f32 0.0, %v580
      %v582 = vpop.f32.mrb[0].mxu0
      %v583 = vpop.f32.mrb[0].mxu0
      %v584 = vadd.f32 0.0, %v583
      %v585 = vpop.f32.mrb[0].mxu0
      %586 = vmatprep.mubr.bf16.mxu0 0
      %587 = vmatmul.mubr.bf16.gmra.mrb[0].mxu0 %v452
      %v588 = vpop.f32.mrb[0].mxu0
      %v589 = vadd.f32 0.0, %v588
      %v590 = vpop.f32.mrb[0].mxu0
      %v591 = vpop.f32.mrb[0].mxu0
      %v592 = vadd.f32 0.0, %v591
      %v593 = vpop.f32.mrb[0].mxu0
      %594 = vmatprep.mubr.bf16.mxu0 0
      %595 = vmatmul.mubr.bf16.gmra.mrb[0].mxu0 %v455
      %v596 = vpop.f32.mrb[0].mxu0
      %v597 = vadd.f32 0.0, %v596
      %v598 = vpop.f32.mrb[0].mxu0
      %v599 = vpop.f32.mrb[0].mxu0
      %v600 = vadd.f32 0.0, %v599
      %v601 = vpop.f32.mrb[0].mxu0
      %602 = vmatprep.mubr.bf16.mxu0 0
      %603 = vmatmul.mubr.bf16.gmra.mrb[0].mxu0 %v458
      %v604 = vpop.f32.mrb[0].mxu0
      %v605 = vadd.f32 0.0, %v604
      %v606 = vpop.f32.mrb[0].mxu0
      %v607 = vpop.f32.mrb[0].mxu0
      %v608 = vadd.f32 0.0, %v607
      %v609 = vpop.f32.mrb[0].mxu0
      %610 = vmatprep.mubr.bf16.mxu0 0
      %611 = vmatmul.mubr.bf16.gmra.mrb[0].mxu0 %v461
      %v612 = vpop.f32.mrb[0].mxu0
      %v613 = vadd.f32 0.0, %v612
      %v614 = vpop.f32.mrb[0].mxu0
      %v615 = vpop.f32.mrb[0].mxu0
      %v616 = vadd.f32 0.0, %v615
      %v617 = vpop.f32.mrb[0].mxu0
      %618 = vmatprep.mubr.bf16.mxu0 0
      %619 = vmatmul.mubr.bf16.gmra.mrb[0].mxu0 %v464
      %v620 = vpop.f32.mrb[0].mxu0
      %v621 = vadd.f32 0.0, %v620
      %v622 = vpop.f32.mrb[0].mxu0
      %v623 = vpop.f32.mrb[0].mxu0
      %v624 = vadd.f32 0.0, %v623
      %v625 = vpop.f32.mrb[0].mxu0
      %626 = vdwg.mxu0
      %627 = vst [vmem:[#allocation2] sm:$0xff] %v501
      %628 = vst [vmem:[#allocation2 + $0x8] sm:$0xff] %v504
      %629 = vst [vmem:[#allocation2 + $0x10] sm:$0xff] %v509
      %630 = vst [vmem:[#allocation2 + $0x18] sm:$0xff] %v512
      %631 = vst [vmem:[#allocation2 + $0x20] sm:$0xff] %v517
      %632 = vst [vmem:[#allocation2 + $0x28] sm:$0xff] %v520
      %633 = vst [vmem:[#allocation2 + $0x30] sm:$0xff] %v525
      %634 = vst [vmem:[#allocation2 + $0x38] sm:$0xff] %v528
      %635 = vst [vmem:[#allocation2 + $0x40] sm:$0xff] %v533
      %636 = vst [vmem:[#allocation2 + $0x48] sm:$0xff] %v536
      %637 = vst [vmem:[#allocation2 + $0x50] sm:$0xff] %v541
      %638 = vst [vmem:[#allocation2 + $0x58] sm:$0xff] %v544
      %639 = vst [vmem:[#allocation2 + $0x60] sm:$0xff] %v549
      %640 = vst [vmem:[#allocation2 + $0x68] sm:$0xff] %v552
      %641 = vst [vmem:[#allocation2 + $0x70] sm:$0xff] %v557
      %642 = vst [vmem:[#allocation2 + $0x78] sm:$0xff] %v560
      %643 = vst [vmem:[#allocation2 + $0x80] sm:$0xff] %v565
      %644 = vst [vmem:[#allocation2 + $0x88] sm:$0xff] %v568
      %645 = vst [vmem:[#allocation2 + $0x90] sm:$0xff] %v573
      %646 = vst [vmem:[#allocation2 + $0x98] sm:$0xff] %v576
      %647 = vst [vmem:[#allocation2 + $0xa0] sm:$0xff] %v581
      %648 = vst [vmem:[#allocation2 + $0xa8] sm:$0xff] %v584
      %649 = vst [vmem:[#allocation2 + $0xb0] sm:$0xff] %v589
      %650 = vst [vmem:[#allocation2 + $0xb8] sm:$0xff] %v592
      %651 = vst [vmem:[#allocation2 + $0xc0] sm:$0xff] %v597
      %652 = vst [vmem:[#allocation2 + $0xc8] sm:$0xff] %v600
      %653 = vst [vmem:[#allocation2 + $0xd0] sm:$0xff] %v605
      %654 = vst [vmem:[#allocation2 + $0xd8] sm:$0xff] %v608
      %655 = vst [vmem:[#allocation2 + $0xe0] sm:$0xff] %v613
      %656 = vst [vmem:[#allocation2 + $0xe8] sm:$0xff] %v616
      %657 = vst [vmem:[#allocation2 + $0xf0] sm:$0xff] %v621
      %658 = vst [vmem:[#allocation2 + $0xf8] sm:$0xff] %v624
      %v659 = vld [vmem:[%s272] sm:$0xf]
      %v660 = vld [vmem:[%s272 + $0x4] sm:$0xf]
      %v661 = vld [vmem:[%s272 + $0x8] sm:$0x1]
      %v662 = vld [vmem:[%s272 + $0xc] sm:$0xf]
      %v663 = vld [vmem:[%s272 + $0x10] sm:$0xf]
      %v664 = vld [vmem:[%s272 + $0x14] sm:$0x1]
      %v665 = vld [vmem:[%s272 + $0x18] sm:$0xf]
      %v666 = vld [vmem:[%s272 + $0x1c] sm:$0xf]
      %v667 = vld [vmem:[%s272 + $0x20] sm:$0x1]
      %v668 = vld [vmem:[%s272 + $0x24] sm:$0xf]
      %v669 = vld [vmem:[%s272 + $0x28] sm:$0xf]
      %v670 = vld [vmem:[%s272 + $0x2c] sm:$0x1]
      %v671 = vld [vmem:[%s272 + $0x30] sm:$0xf]
      %v672 = vld [vmem:[%s272 + $0x34] sm:$0xf]
      %v673 = vld [vmem:[%s272 + $0x38] sm:$0x1]
      %v674 = vld [vmem:[%s272 + $0x3c] sm:$0xf]
      %v675 = vld [vmem:[%s272 + $0x40] sm:$0xf]
      %v676 = vld [vmem:[%s272 + $0x44] sm:$0x1]
      %v677 = vld [vmem:[%s272 + $0x48] sm:$0xf]
      %v678 = vld [vmem:[%s272 + $0x4c] sm:$0xf]
      %v679 = vld [vmem:[%s272 + $0x50] sm:$0x1]
      %v680 = vld [vmem:[%s272 + $0x54] sm:$0xf]
      %v681 = vld [vmem:[%s272 + $0x58] sm:$0xf]
      %v682 = vld [vmem:[%s272 + $0x5c] sm:$0x1]
      %v683 = vld [vmem:[%s272 + $0x60] sm:$0xf]
      %v684 = vld [vmem:[%s272 + $0x64] sm:$0xf]
      %v685 = vld [vmem:[%s272 + $0x68] sm:$0x1]
      %v686 = vld [vmem:[%s272 + $0x6c] sm:$0xf]
      %v687 = vld [vmem:[%s272 + $0x70] sm:$0xf]
      %v688 = vld [vmem:[%s272 + $0x74] sm:$0x1]
      %v689 = vld [vmem:[%s272 + $0x78] sm:$0xf]
      %v690 = vld [vmem:[%s272 + $0x7c] sm:$0xf]
      %v691 = vld [vmem:[%s272 + $0x80] sm:$0x1]
      %v692 = vld [vmem:[%s272 + $0x84] sm:$0xf]
      %v693 = vld [vmem:[%s272 + $0x88] sm:$0xf]
      %v694 = vld [vmem:[%s272 + $0x8c] sm:$0x1]
      %v695 = vld [vmem:[%s272 + $0x90] sm:$0xf]
      %v696 = vld [vmem:[%s272 + $0x94] sm:$0xf]
      %v697 = vld [vmem:[%s272 + $0x98] sm:$0x1]
      %v698 = vld [vmem:[%s272 + $0x9c] sm:$0xf]
      %v699 = vld [vmem:[%s272 + $0xa0] sm:$0xf]
      %v700 = vld [vmem:[%s272 + $0xa4] sm:$0x1]
      %v701 = vld [vmem:[%s272 + $0xa8] sm:$0xf]
      %v702 = vld [vmem:[%s272 + $0xac] sm:$0xf]
      %v703 = vld [vmem:[%s272 + $0xb0] sm:$0x1]
      %v704 = vld [vmem:[%s272 + $0xb4] sm:$0xf]
      %v705 = vld [vmem:[%s272 + $0xb8] sm:$0xf]
      %v706 = vld [vmem:[%s272 + $0xbc] sm:$0x1]
      %vm707 = vsmask.f32 3328
      %vm708 = vsmask.f32 7440
      %vm709 = vmor %vm707, %vm708
      %v711 = vshrl.u32 %v659, 16
      %v713 = vrot.slane %v711, 4
      %v714 = vshll.u32 %v659, 16
      %v716 = vrot.slane %v714, 5
      %v717 = vor.u32 %v713, %v716
      %v718 = vrot.slane %v717, 4
      %v720 = vshll.u32 %v660, 16
      %v722 = vrot.slane %v720, 5
      %v723 = vsel %vm709, %v718, %v722
      %v724 = vshrl.u32 %v660, 16
      %v726 = vrot.slane %v724, 4
      %v727 = vor.u32 %v726, %v722
      %v728 = vrot.slane %v727, 4
      %v730 = vshll.u32 %v661, 16
      %v732 = vrot.slane %v730, 5
      %v733 = vsel %vm709, %v728, %v732
      %v735 = vshrl.u32 %v662, 16
      %v737 = vrot.slane %v735, 4
      %v738 = vshll.u32 %v662, 16
      %v740 = vrot.slane %v738, 5
      %v741 = vor.u32 %v737, %v740
      %v742 = vrot.slane %v741, 4
      %v744 = vshll.u32 %v663, 16
      %v746 = vrot.slane %v744, 5
      %v747 = vsel %vm709, %v742, %v746
      %v748 = vshrl.u32 %v663, 16
      %v750 = vrot.slane %v748, 4
      %v751 = vor.u32 %v750, %v746
      %v752 = vrot.slane %v751, 4
      %v754 = vshll.u32 %v664, 16
      %v756 = vrot.slane %v754, 5
      %v757 = vsel %vm709, %v752, %v756
      %v759 = vshrl.u32 %v665, 16
      %v761 = vrot.slane %v759, 4
      %v762 = vshll.u32 %v665, 16
      %v764 = vrot.slane %v762, 5
      %v765 = vor.u32 %v761, %v764
      %v766 = vrot.slane %v765, 4
      %v768 = vshll.u32 %v666, 16
      %v770 = vrot.slane %v768, 5
      %v771 = vsel %vm709, %v766, %v770
      %v772 = vshrl.u32 %v666, 16
      %v774 = vrot.slane %v772, 4
      %v775 = vor.u32 %v774, %v770
      %v776 = vrot.slane %v775, 4
      %v778 = vshll.u32 %v667, 16
      %v780 = vrot.slane %v778, 5
      %v781 = vsel %vm709, %v776, %v780
      %v783 = vshrl.u32 %v668, 16
      %v785 = vrot.slane %v783, 4
      %v786 = vshll.u32 %v668, 16
      %v788 = vrot.slane %v786, 5
      %v789 = vor.u32 %v785, %v788
      %v790 = vrot.slane %v789, 4
      %v792 = vshll.u32 %v669, 16
      %v794 = vrot.slane %v792, 5
      %v795 = vsel %vm709, %v790, %v794
      %v796 = vshrl.u32 %v669, 16
      %v798 = vrot.slane %v796, 4
      %v799 = vor.u32 %v798, %v794
      %v800 = vrot.slane %v799, 4
      %v802 = vshll.u32 %v670, 16
      %v804 = vrot.slane %v802, 5
      %v805 = vsel %vm709, %v800, %v804
      %v807 = vshrl.u32 %v671, 16
      %v809 = vrot.slane %v807, 4
      %v810 = vshll.u32 %v671, 16
      %v812 = vrot.slane %v810, 5
      %v813 = vor.u32 %v809, %v812
      %v814 = vrot.slane %v813, 4
      %v816 = vshll.u32 %v672, 16
      %v818 = vrot.slane %v816, 5
      %v819 = vsel %vm709, %v814, %v818
      %v820 = vshrl.u32 %v672, 16
      %v822 = vrot.slane %v820, 4
      %v823 = vor.u32 %v822, %v818
      %v824 = vrot.slane %v823, 4
      %v826 = vshll.u32 %v673, 16
      %v828 = vrot.slane %v826, 5
      %v829 = vsel %vm709, %v824, %v828
      %v831 = vshrl.u32 %v674, 16
      %v833 = vrot.slane %v831, 4
      %v834 = vshll.u32 %v674, 16
      %v836 = vrot.slane %v834, 5
      %v837 = vor.u32 %v833, %v836
      %v838 = vrot.slane %v837, 4
      %v840 = vshll.u32 %v675, 16
      %v842 = vrot.slane %v840, 5
      %v843 = vsel %vm709, %v838, %v842
      %v844 = vshrl.u32 %v675, 16
      %v846 = vrot.slane %v844, 4
      %v847 = vor.u32 %v846, %v842
      %v848 = vrot.slane %v847, 4
      %v850 = vshll.u32 %v676, 16
      %v852 = vrot.slane %v850, 5
      %v853 = vsel %vm709, %v848, %v852
      %v855 = vshrl.u32 %v677, 16
      %v857 = vrot.slane %v855, 4
      %v858 = vshll.u32 %v677, 16
      %v860 = vrot.slane %v858, 5
      %v861 = vor.u32 %v857, %v860
      %v862 = vrot.slane %v861, 4
      %v864 = vshll.u32 %v678, 16
      %v866 = vrot.slane %v864, 5
      %v867 = vsel %vm709, %v862, %v866
      %v868 = vshrl.u32 %v678, 16
      %v870 = vrot.slane %v868, 4
      %v871 = vor.u32 %v870, %v866
      %v872 = vrot.slane %v871, 4
      %v874 = vshll.u32 %v679, 16
      %v876 = vrot.slane %v874, 5
      %v877 = vsel %vm709, %v872, %v876
      %v879 = vshrl.u32 %v680, 16
      %v881 = vrot.slane %v879, 4
      %v882 = vshll.u32 %v680, 16
      %v884 = vrot.slane %v882, 5
      %v885 = vor.u32 %v881, %v884
      %v886 = vrot.slane %v885, 4
      %v888 = vshll.u32 %v681, 16
      %v890 = vrot.slane %v888, 5
      %v891 = vsel %vm709, %v886, %v890
      %v892 = vshrl.u32 %v681, 16
      %v894 = vrot.slane %v892, 4
      %v895 = vor.u32 %v894, %v890
      %v896 = vrot.slane %v895, 4
      %v898 = vshll.u32 %v682, 16
      %v900 = vrot.slane %v898, 5
      %v901 = vsel %vm709, %v896, %v900
      %v903 = vshrl.u32 %v683, 16
      %v905 = vrot.slane %v903, 4
      %v906 = vshll.u32 %v683, 16
      %v908 = vrot.slane %v906, 5
      %v909 = vor.u32 %v905, %v908
      %v910 = vrot.slane %v909, 4
      %v912 = vshll.u32 %v684, 16
      %v914 = vrot.slane %v912, 5
      %v915 = vsel %vm709, %v910, %v914
      %v916 = vshrl.u32 %v684, 16
      %v918 = vrot.slane %v916, 4
      %v919 = vor.u32 %v918, %v914
      %v920 = vrot.slane %v919, 4
      %v922 = vshll.u32 %v685, 16
      %v924 = vrot.slane %v922, 5
      %v925 = vsel %vm709, %v920, %v924
      %v927 = vshrl.u32 %v686, 16
      %v929 = vrot.slane %v927, 4
      %v930 = vshll.u32 %v686, 16
      %v932 = vrot.slane %v930, 5
      %v933 = vor.u32 %v929, %v932
      %v934 = vrot.slane %v933, 4
      %v936 = vshll.u32 %v687, 16
      %v938 = vrot.slane %v936, 5
      %v939 = vsel %vm709, %v934, %v938
      %v940 = vshrl.u32 %v687, 16
      %v942 = vrot.slane %v940, 4
      %v943 = vor.u32 %v942, %v938
      %v944 = vrot.slane %v943, 4
      %v946 = vshll.u32 %v688, 16
      %v948 = vrot.slane %v946, 5
      %v949 = vsel %vm709, %v944, %v948
      %v951 = vshrl.u32 %v689, 16
      %v953 = vrot.slane %v951, 4
      %v954 = vshll.u32 %v689, 16
      %v956 = vrot.slane %v954, 5
      %v957 = vor.u32 %v953, %v956
      %v958 = vrot.slane %v957, 4
      %v960 = vshll.u32 %v690, 16
      %v962 = vrot.slane %v960, 5
      %v963 = vsel %vm709, %v958, %v962
      %v964 = vshrl.u32 %v690, 16
      %v966 = vrot.slane %v964, 4
      %v967 = vor.u32 %v966, %v962
      %v968 = vrot.slane %v967, 4
      %v970 = vshll.u32 %v691, 16
      %v972 = vrot.slane %v970, 5
      %v973 = vsel %vm709, %v968, %v972
      %v975 = vshrl.u32 %v692, 16
      %v977 = vrot.slane %v975, 4
      %v978 = vshll.u32 %v692, 16
      %v980 = vrot.slane %v978, 5
      %v981 = vor.u32 %v977, %v980
      %v982 = vrot.slane %v981, 4
      %v984 = vshll.u32 %v693, 16
      %v986 = vrot.slane %v984, 5
      %v987 = vsel %vm709, %v982, %v986
      %v988 = vshrl.u32 %v693, 16
      %v990 = vrot.slane %v988, 4
      %v991 = vor.u32 %v990, %v986
      %v992 = vrot.slane %v991, 4
      %v994 = vshll.u32 %v694, 16
      %v996 = vrot.slane %v994, 5
      %v997 = vsel %vm709, %v992, %v996
      %v999 = vshrl.u32 %v695, 16
      %v1001 = vrot.slane %v999, 4
      %v1002 = vshll.u32 %v695, 16
      %v1004 = vrot.slane %v1002, 5
      %v1005 = vor.u32 %v1001, %v1004
      %v1006 = vrot.slane %v1005, 4
      %v1008 = vshll.u32 %v696, 16
      %v1010 = vrot.slane %v1008, 5
      %v1011 = vsel %vm709, %v1006, %v1010
      %v1012 = vshrl.u32 %v696, 16
      %v1014 = vrot.slane %v1012, 4
      %v1015 = vor.u32 %v1014, %v1010
      %v1016 = vrot.slane %v1015, 4
      %v1018 = vshll.u32 %v697, 16
      %v1020 = vrot.slane %v1018, 5
      %v1021 = vsel %vm709, %v1016, %v1020
      %v1023 = vshrl.u32 %v698, 16
      %v1025 = vrot.slane %v1023, 4
      %v1026 = vshll.u32 %v698, 16
      %v1028 = vrot.slane %v1026, 5
      %v1029 = vor.u32 %v1025, %v1028
      %v1030 = vrot.slane %v1029, 4
      %v1032 = vshll.u32 %v699, 16
      %v1034 = vrot.slane %v1032, 5
      %v1035 = vsel %vm709, %v1030, %v1034
      %v1036 = vshrl.u32 %v699, 16
      %v1038 = vrot.slane %v1036, 4
      %v1039 = vor.u32 %v1038, %v1034
      %v1040 = vrot.slane %v1039, 4
      %v1042 = vshll.u32 %v700, 16
      %v1044 = vrot.slane %v1042, 5
      %v1045 = vsel %vm709, %v1040, %v1044
      %v1047 = vshrl.u32 %v701, 16
      %v1049 = vrot.slane %v1047, 4
      %v1050 = vshll.u32 %v701, 16
      %v1052 = vrot.slane %v1050, 5
      %v1053 = vor.u32 %v1049, %v1052
      %v1054 = vrot.slane %v1053, 4
      %v1056 = vshll.u32 %v702, 16
      %v1058 = vrot.slane %v1056, 5
      %v1059 = vsel %vm709, %v1054, %v1058
      %v1060 = vshrl.u32 %v702, 16
      %v1062 = vrot.slane %v1060, 4
      %v1063 = vor.u32 %v1062, %v1058
      %v1064 = vrot.slane %v1063, 4
      %v1066 = vshll.u32 %v703, 16
      %v1068 = vrot.slane %v1066, 5
      %v1069 = vsel %vm709, %v1064, %v1068
      %v1071 = vshrl.u32 %v704, 16
      %v1073 = vrot.slane %v1071, 4
      %v1074 = vshll.u32 %v704, 16
      %v1076 = vrot.slane %v1074, 5
      %v1077 = vor.u32 %v1073, %v1076
      %v1078 = vrot.slane %v1077, 4
      %v1080 = vshll.u32 %v705, 16
      %v1082 = vrot.slane %v1080, 5
      %v1083 = vsel %vm709, %v1078, %v1082
      %v1084 = vshrl.u32 %v705, 16
      %v1086 = vrot.slane %v1084, 4
      %v1087 = vor.u32 %v1086, %v1082
      %v1088 = vrot.slane %v1087, 4
      %v1090 = vshll.u32 %v706, 16
      %v1092 = vrot.slane %v1090, 5
      %v1093 = vsel %vm709, %v1088, %v1092
      %s1094 = scalar_lea.vmem %s1, 32
      %v1095 = vld [vmem:[%s1094] sm:$0xf]
      %v1096 = vld [vmem:[%s1094 + $0x4] sm:$0xf]
      %v1097 = vld [vmem:[%s1094 + $0x8] sm:$0xf]
      %v1098 = vld [vmem:[%s1094 + $0xc] sm:$0xf]
      %v1099 = vld [vmem:[%s1094 + $0x10] sm:$0xf]
      %v1100 = vld [vmem:[%s1094 + $0x14] sm:$0xf]
      %v1101 = vld [vmem:[%s1094 + $0x18] sm:$0xf]
      %v1102 = vld [vmem:[%s1094 + $0x1c] sm:$0xf]
      %v1103 = vunpack.c.l.b16 %v723
      %v1104 = vunpack.c.l.b16 %v733
      %v1105 = vunpack.c.l.b16 %v747
      %v1106 = vunpack.c.l.b16 %v757
      %v1107 = vunpack.c.l.b16 %v771
      %v1108 = vunpack.c.l.b16 %v781
      %v1109 = vunpack.c.l.b16 %v795
      %v1110 = vunpack.c.l.b16 %v805
      %v1111 = vunpack.c.l.b16 %v819
      %v1112 = vunpack.c.l.b16 %v829
      %v1113 = vunpack.c.l.b16 %v843
      %v1114 = vunpack.c.l.b16 %v853
      %v1115 = vunpack.c.l.b16 %v867
      %v1116 = vunpack.c.l.b16 %v877
      %v1117 = vunpack.c.l.b16 %v891
      %v1118 = vunpack.c.l.b16 %v901
      %v1119 = vunpack.c.l.b16 %v915
      %v1120 = vunpack.c.l.b16 %v925
      %v1121 = vunpack.c.l.b16 %v939
      %v1122 = vunpack.c.l.b16 %v949
      %v1123 = vunpack.c.l.b16 %v963
      %v1124 = vunpack.c.l.b16 %v973
      %v1125 = vunpack.c.l.b16 %v987
      %v1126 = vunpack.c.l.b16 %v997
      %v1127 = vunpack.c.l.b16 %v1011
      %v1128 = vunpack.c.l.b16 %v1021
      %v1129 = vunpack.c.l.b16 %v1035
      %v1130 = vunpack.c.l.b16 %v1045
      %v1131 = vunpack.c.l.b16 %v1059
      %v1132 = vunpack.c.l.b16 %v1069
      %v1133 = vunpack.c.l.b16 %v1083
      %v1134 = vunpack.c.l.b16 %v1093
      %v1135 = vpack.c.b16 %v1104, %v1103
      %v1136 = vpack.c.b16 %v1106, %v1105
      %v1137 = vpack.c.b16 %v1108, %v1107
      %v1138 = vpack.c.b16 %v1110, %v1109
      %v1139 = vpack.c.b16 %v1112, %v1111
      %v1140 = vpack.c.b16 %v1114, %v1113
      %v1141 = vpack.c.b16 %v1116, %v1115
      %v1142 = vpack.c.b16 %v1118, %v1117
      %v1143 = vpack.c.b16 %v1120, %v1119
      %v1144 = vpack.c.b16 %v1122, %v1121
      %v1145 = vpack.c.b16 %v1124, %v1123
      %v1146 = vpack.c.b16 %v1126, %v1125
      %v1147 = vpack.c.b16 %v1128, %v1127
      %v1148 = vpack.c.b16 %v1130, %v1129
      %v1149 = vpack.c.b16 %v1132, %v1131
      %v1150 = vpack.c.b16 %v1134, %v1133
      %v1159 = vunpack.c.l.b16 %v1095
      %v1160 = vunpack.c.l.b16 %v1096
      %v1161 = vunpack.c.l.b16 %v1097
      %v1162 = vunpack.c.l.b16 %v1098
      %v1163 = vunpack.c.l.b16 %v1099
      %v1164 = vunpack.c.l.b16 %v1100
      %v1165 = vunpack.c.l.b16 %v1101
      %v1166 = vunpack.c.l.b16 %v1102
      %v1167 = vpack.c.b16 %v1160, %v1159
      %v1168 = vpack.c.b16 %v1162, %v1161
      %v1169 = vpack.c.b16 %v1164, %v1163
      %v1170 = vpack.c.b16 %v1166, %v1165
      %v1176 = vsel %vm417, %v1135, 0
      %v1179 = vsel %vm417, %v1136, 0
      %v1182 = vsel %vm417, %v1137, 0
      %v1185 = vsel %vm417, %v1138, 0
      %v1188 = vsel %vm417, %v1139, 0
      %v1191 = vsel %vm417, %v1140, 0
      %v1194 = vsel %vm417, %v1141, 0
      %v1197 = vsel %vm417, %v1142, 0
      %v1200 = vsel %vm417, %v1143, 0
      %v1203 = vsel %vm417, %v1144, 0
      %v1206 = vsel %vm417, %v1145, 0
      %v1209 = vsel %vm417, %v1146, 0
      %v1212 = vsel %vm417, %v1147, 0
      %v1215 = vsel %vm417, %v1148, 0
      %v1218 = vsel %vm417, %v1149, 0
      %v1221 = vsel %vm417, %v1150, 0
      %1223 = vmatprep.subr.bf16.mxu0 0
      %1224 = vmatpush1.bf16.msra.mxu0 %v1167
      %1225 = vmatprep.subr.bf16.mxu0 0
      %1226 = vmatpush1.bf16.msra.mxu0 %v1168
      %1227 = vmatprep.subr.bf16.mxu0 0
      %1228 = vmatpush1.bf16.msra.mxu0 %v1169
      %1229 = vmatprep.subr.bf16.mxu0 0
      %1230 = vmatpush1.bf16.msra.mxu0 %v1170
      %1231 = vmatprep.subr.bf16.mxu0 0
      %1232 = vmatpush1.bf16.msra.mxu0 0
      %1233 = vmatprep.subr.bf16.mxu0 0
      %1234 = vmatpush1.bf16.msra.mxu0 0
      %1235 = vmatprep.subr.bf16.mxu0 0
      %1236 = vmatpush1.bf16.msra.mxu0 0
      %1237 = vmatprep.subr.bf16.mxu0 0
      %1238 = vmatpush1.bf16.msra.mxu0 0
      %1239 = vmatprep.subr.bf16.mxu0 0
      %1240 = vmatpush1.bf16.msra.mxu0 0
      %1241 = vmatprep.subr.bf16.mxu0 0
      %1242 = vmatpush1.bf16.msra.mxu0 0
      %1243 = vmatprep.subr.bf16.mxu0 0
      %1244 = vmatpush1.bf16.msra.mxu0 0
      %1245 = vmatprep.subr.bf16.mxu0 0
      %1246 = vmatpush1.bf16.msra.mxu0 0
      %1247 = vmatprep.subr.bf16.mxu0 0
      %1248 = vmatpush1.bf16.msra.mxu0 0
      %1249 = vmatprep.subr.bf16.mxu0 0
      %1250 = vmatpush1.bf16.msra.mxu0 0
      %1251 = vmatprep.subr.bf16.mxu0 0
      %1252 = vmatpush1.bf16.msra.mxu0 0
      %1253 = vmatprep.subr.bf16.mxu0 0
      %1254 = vmatpush1.bf16.msra.mxu0 0
      %1255 = vmatprep.mubr.bf16.mxu0 0
      %1256 = vmatmul.mubr.bf16.gmra.mrb[0].mxu0 %v1176
      %v1257 = vpop.f32.mrb[0].mxu0
      %v1258 = vadd.f32 0.0, %v1257
      %v1259 = vpop.f32.mrb[0].mxu0
      %v1260 = vpop.f32.mrb[0].mxu0
      %v1261 = vadd.f32 0.0, %v1260
      %v1262 = vpop.f32.mrb[0].mxu0
      %1263 = vmatprep.mubr.bf16.mxu0 0
      %1264 = vmatmul.mubr.bf16.gmra.mrb[0].mxu0 %v1179
      %v1265 = vpop.f32.mrb[0].mxu0
      %v1266 = vadd.f32 0.0, %v1265
      %v1267 = vpop.f32.mrb[0].mxu0
      %v1268 = vpop.f32.mrb[0].mxu0
      %v1269 = vadd.f32 0.0, %v1268
      %v1270 = vpop.f32.mrb[0].mxu0
      %1271 = vmatprep.mubr.bf16.mxu0 0
      %1272 = vmatmul.mubr.bf16.gmra.mrb[0].mxu0 %v1182
      %v1273 = vpop.f32.mrb[0].mxu0
      %v1274 = vadd.f32 0.0, %v1273
      %v1275 = vpop.f32.mrb[0].mxu0
      %v1276 = vpop.f32.mrb[0].mxu0
      %v1277 = vadd.f32 0.0, %v1276
      %v1278 = vpop.f32.mrb[0].mxu0
      %1279 = vmatprep.mubr.bf16.mxu0 0
      %1280 = vmatmul.mubr.bf16.gmra.mrb[0].mxu0 %v1185
      %v1281 = vpop.f32.mrb[0].mxu0
      %v1282 = vadd.f32 0.0, %v1281
      %v1283 = vpop.f32.mrb[0].mxu0
      %v1284 = vpop.f32.mrb[0].mxu0
      %v1285 = vadd.f32 0.0, %v1284
      %v1286 = vpop.f32.mrb[0].mxu0
      %1287 = vmatprep.mubr.bf16.mxu0 0
      %1288 = vmatmul.mubr.bf16.gmra.mrb[0].mxu0 %v1188
      %v1289 = vpop.f32.mrb[0].mxu0
      %v1290 = vadd.f32 0.0, %v1289
      %v1291 = vpop.f32.mrb[0].mxu0
      %v1292 = vpop.f32.mrb[0].mxu0
      %v1293 = vadd.f32 0.0, %v1292
      %v1294 = vpop.f32.mrb[0].mxu0
      %1295 = vmatprep.mubr.bf16.mxu0 0
      %1296 = vmatmul.mubr.bf16.gmra.mrb[0].mxu0 %v1191
      %v1297 = vpop.f32.mrb[0].mxu0
      %v1298 = vadd.f32 0.0, %v1297
      %v1299 = vpop.f32.mrb[0].mxu0
      %v1300 = vpop.f32.mrb[0].mxu0
      %v1301 = vadd.f32 0.0, %v1300
      %v1302 = vpop.f32.mrb[0].mxu0
      %1303 = vmatprep.mubr.bf16.mxu0 0
      %1304 = vmatmul.mubr.bf16.gmra.mrb[0].mxu0 %v1194
      %v1305 = vpop.f32.mrb[0].mxu0
      %v1306 = vadd.f32 0.0, %v1305
      %v1307 = vpop.f32.mrb[0].mxu0
      %v1308 = vpop.f32.mrb[0].mxu0
      %v1309 = vadd.f32 0.0, %v1308
      %v1310 = vpop.f32.mrb[0].mxu0
      %1311 = vmatprep.mubr.bf16.mxu0 0
      %1312 = vmatmul.mubr.bf16.gmra.mrb[0].mxu0 %v1197
      %v1313 = vpop.f32.mrb[0].mxu0
      %v1314 = vadd.f32 0.0, %v1313
      %v1315 = vpop.f32.mrb[0].mxu0
      %v1316 = vpop.f32.mrb[0].mxu0
      %v1317 = vadd.f32 0.0, %v1316
      %v1318 = vpop.f32.mrb[0].mxu0
      %1319 = vmatprep.mubr.bf16.mxu0 0
      %1320 = vmatmul.mubr.bf16.gmra.mrb[0].mxu0 %v1200
      %v1321 = vpop.f32.mrb[0].mxu0
      %v1322 = vadd.f32 0.0, %v1321
      %v1323 = vpop.f32.mrb[0].mxu0
      %v1324 = vpop.f32.mrb[0].mxu0
      %v1325 = vadd.f32 0.0, %v1324
      %v1326 = vpop.f32.mrb[0].mxu0
      %1327 = vmatprep.mubr.bf16.mxu0 0
      %1328 = vmatmul.mubr.bf16.gmra.mrb[0].mxu0 %v1203
      %v1329 = vpop.f32.mrb[0].mxu0
      %v1330 = vadd.f32 0.0, %v1329
      %v1331 = vpop.f32.mrb[0].mxu0
      %v1332 = vpop.f32.mrb[0].mxu0
      %v1333 = vadd.f32 0.0, %v1332
      %v1334 = vpop.f32.mrb[0].mxu0
      %1335 = vmatprep.mubr.bf16.mxu0 0
      %1336 = vmatmul.mubr.bf16.gmra.mrb[0].mxu0 %v1206
      %v1337 = vpop.f32.mrb[0].mxu0
      %v1338 = vadd.f32 0.0, %v1337
      %v1339 = vpop.f32.mrb[0].mxu0
      %v1340 = vpop.f32.mrb[0].mxu0
      %v1341 = vadd.f32 0.0, %v1340
      %v1342 = vpop.f32.mrb[0].mxu0
      %1343 = vmatprep.mubr.bf16.mxu0 0
      %1344 = vmatmul.mubr.bf16.gmra.mrb[0].mxu0 %v1209
      %v1345 = vpop.f32.mrb[0].mxu0
      %v1346 = vadd.f32 0.0, %v1345
      %v1347 = vpop.f32.mrb[0].mxu0
      %v1348 = vpop.f32.mrb[0].mxu0
      %v1349 = vadd.f32 0.0, %v1348
      %v1350 = vpop.f32.mrb[0].mxu0
      %1351 = vmatprep.mubr.bf16.mxu0 0
      %1352 = vmatmul.mubr.bf16.gmra.mrb[0].mxu0 %v1212
      %v1353 = vpop.f32.mrb[0].mxu0
      %v1354 = vadd.f32 0.0, %v1353
      %v1355 = vpop.f32.mrb[0].mxu0
      %v1356 = vpop.f32.mrb[0].mxu0
      %v1357 = vadd.f32 0.0, %v1356
      %v1358 = vpop.f32.mrb[0].mxu0
      %1359 = vmatprep.mubr.bf16.mxu0 0
      %1360 = vmatmul.mubr.bf16.gmra.mrb[0].mxu0 %v1215
      %v1361 = vpop.f32.mrb[0].mxu0
      %v1362 = vadd.f32 0.0, %v1361
      %v1363 = vpop.f32.mrb[0].mxu0
      %v1364 = vpop.f32.mrb[0].mxu0
      %v1365 = vadd.f32 0.0, %v1364
      %v1366 = vpop.f32.mrb[0].mxu0
      %1367 = vmatprep.mubr.bf16.mxu0 0
      %1368 = vmatmul.mubr.bf16.gmra.mrb[0].mxu0 %v1218
      %v1369 = vpop.f32.mrb[0].mxu0
      %v1370 = vadd.f32 0.0, %v1369
      %v1371 = vpop.f32.mrb[0].mxu0
      %v1372 = vpop.f32.mrb[0].mxu0
      %v1373 = vadd.f32 0.0, %v1372
      %v1374 = vpop.f32.mrb[0].mxu0
      %1375 = vmatprep.mubr.bf16.mxu0 0
      %1376 = vmatmul.mubr.bf16.gmra.mrb[0].mxu0 %v1221
      %v1377 = vpop.f32.mrb[0].mxu0
      %v1378 = vadd.f32 0.0, %v1377
      %v1379 = vpop.f32.mrb[0].mxu0
      %v1380 = vpop.f32.mrb[0].mxu0
      %v1381 = vadd.f32 0.0, %v1380
      %v1382 = vpop.f32.mrb[0].mxu0
      %1383 = vdwg.mxu0
      %v1384 = vld [vmem:[#allocation2] sm:$0xff]
      %v1385 = vld [vmem:[#allocation2 + $0x8] sm:$0xff]
      %v1386 = vld [vmem:[#allocation2 + $0x10] sm:$0xff]
      %v1387 = vld [vmem:[#allocation2 + $0x18] sm:$0xff]
      %v1388 = vld [vmem:[#allocation2 + $0x20] sm:$0xff]
      %v1389 = vld [vmem:[#allocation2 + $0x28] sm:$0xff]
      %v1390 = vld [vmem:[#allocation2 + $0x30] sm:$0xff]
      %v1391 = vld [vmem:[#allocation2 + $0x38] sm:$0xff]
      %v1392 = vld [vmem:[#allocation2 + $0x40] sm:$0xff]
      %v1393 = vld [vmem:[#allocation2 + $0x48] sm:$0xff]
      %v1394 = vld [vmem:[#allocation2 + $0x50] sm:$0xff]
      %v1395 = vld [vmem:[#allocation2 + $0x58] sm:$0xff]
      %v1396 = vld [vmem:[#allocation2 + $0x60] sm:$0xff]
      %v1397 = vld [vmem:[#allocation2 + $0x68] sm:$0xff]
      %v1398 = vld [vmem:[#allocation2 + $0x70] sm:$0xff]
      %v1399 = vld [vmem:[#allocation2 + $0x78] sm:$0xff]
      %v1400 = vld [vmem:[#allocation2 + $0x80] sm:$0xff]
      %v1401 = vld [vmem:[#allocation2 + $0x88] sm:$0xff]
      %v1402 = vld [vmem:[#allocation2 + $0x90] sm:$0xff]
      %v1403 = vld [vmem:[#allocation2 + $0x98] sm:$0xff]
      %v1404 = vld [vmem:[#allocation2 + $0xa0] sm:$0xff]
      %v1405 = vld [vmem:[#allocation2 + $0xa8] sm:$0xff]
      %v1406 = vld [vmem:[#allocation2 + $0xb0] sm:$0xff]
      %v1407 = vld [vmem:[#allocation2 + $0xb8] sm:$0xff]
      %v1408 = vld [vmem:[#allocation2 + $0xc0] sm:$0xff]
      %v1409 = vld [vmem:[#allocation2 + $0xc8] sm:$0xff]
      %v1410 = vld [vmem:[#allocation2 + $0xd0] sm:$0xff]
      %v1411 = vld [vmem:[#allocation2 + $0xd8] sm:$0xff]
      %v1412 = vld [vmem:[#allocation2 + $0xe0] sm:$0xff]
      %v1413 = vld [vmem:[#allocation2 + $0xe8] sm:$0xff]
      %v1414 = vld [vmem:[#allocation2 + $0xf0] sm:$0xff]
      %v1415 = vld [vmem:[#allocation2 + $0xf8] sm:$0xff]
      %v1416 = vadd.f32 %v1384, %v1258
      %v1417 = vadd.f32 %v1385, %v1261
      %v1418 = vadd.f32 %v1386, %v1266
      %v1419 = vadd.f32 %v1387, %v1269
      %v1420 = vadd.f32 %v1388, %v1274
      %v1421 = vadd.f32 %v1389, %v1277
      %v1422 = vadd.f32 %v1390, %v1282
      %v1423 = vadd.f32 %v1391, %v1285
      %v1424 = vadd.f32 %v1392, %v1290
      %v1425 = vadd.f32 %v1393, %v1293
      %v1426 = vadd.f32 %v1394, %v1298
      %v1427 = vadd.f32 %v1395, %v1301
      %v1428 = vadd.f32 %v1396, %v1306
      %v1429 = vadd.f32 %v1397, %v1309
      %v1430 = vadd.f32 %v1398, %v1314
      %v1431 = vadd.f32 %v1399, %v1317
      %v1432 = vadd.f32 %v1400, %v1322
      %v1433 = vadd.f32 %v1401, %v1325
      %v1434 = vadd.f32 %v1402, %v1330
      %v1435 = vadd.f32 %v1403, %v1333
      %v1436 = vadd.f32 %v1404, %v1338
      %v1437 = vadd.f32 %v1405, %v1341
      %v1438 = vadd.f32 %v1406, %v1346
      %v1439 = vadd.f32 %v1407, %v1349
      %v1440 = vadd.f32 %v1408, %v1354
      %v1441 = vadd.f32 %v1409, %v1357
      %v1442 = vadd.f32 %v1410, %v1362
      %v1443 = vadd.f32 %v1411, %v1365
      %v1444 = vadd.f32 %v1412, %v1370
      %v1445 = vadd.f32 %v1413, %v1373
      %v1446 = vadd.f32 %v1414, %v1378
      %v1447 = vadd.f32 %v1415, %v1381
      %1448 = vst [vmem:[#allocation2] sm:$0xff] %v1416
      %1449 = vst [vmem:[#allocation2 + $0x8] sm:$0xff] %v1417
      %1450 = vst [vmem:[#allocation2 + $0x10] sm:$0xff] %v1418
      %1451 = vst [vmem:[#allocation2 + $0x18] sm:$0xff] %v1419
      %1452 = vst [vmem:[#allocation2 + $0x20] sm:$0xff] %v1420
      %1453 = vst [vmem:[#allocation2 + $0x28] sm:$0xff] %v1421
      %1454 = vst [vmem:[#allocation2 + $0x30] sm:$0xff] %v1422
      %1455 = vst [vmem:[#allocation2 + $0x38] sm:$0xff] %v1423
      %1456 = vst [vmem:[#allocation2 + $0x40] sm:$0xff] %v1424
      %1457 = vst [vmem:[#allocation2 + $0x48] sm:$0xff] %v1425
      %1458 = vst [vmem:[#allocation2 + $0x50] sm:$0xff] %v1426
      %1459 = vst [vmem:[#allocation2 + $0x58] sm:$0xff] %v1427
      %1460 = vst [vmem:[#allocation2 + $0x60] sm:$0xff] %v1428
      %1461 = vst [vmem:[#allocation2 + $0x68] sm:$0xff] %v1429
      %1462 = vst [vmem:[#allocation2 + $0x70] sm:$0xff] %v1430
      %1463 = vst [vmem:[#allocation2 + $0x78] sm:$0xff] %v1431
      %1464 = vst [vmem:[#allocation2 + $0x80] sm:$0xff] %v1432
      %1465 = vst [vmem:[#allocation2 + $0x88] sm:$0xff] %v1433
      %1466 = vst [vmem:[#allocation2 + $0x90] sm:$0xff] %v1434
      %1467 = vst [vmem:[#allocation2 + $0x98] sm:$0xff] %v1435
      %1468 = vst [vmem:[#allocation2 + $0xa0] sm:$0xff] %v1436
      %1469 = vst [vmem:[#allocation2 + $0xa8] sm:$0xff] %v1437
      %1470 = vst [vmem:[#allocation2 + $0xb0] sm:$0xff] %v1438
      %1471 = vst [vmem:[#allocation2 + $0xb8] sm:$0xff] %v1439
      %1472 = vst [vmem:[#allocation2 + $0xc0] sm:$0xff] %v1440
      %1473 = vst [vmem:[#allocation2 + $0xc8] sm:$0xff] %v1441
      %1474 = vst [vmem:[#allocation2 + $0xd0] sm:$0xff] %v1442
      %1475 = vst [vmem:[#allocation2 + $0xd8] sm:$0xff] %v1443
      %1476 = vst [vmem:[#allocation2 + $0xe0] sm:$0xff] %v1444
      %1477 = vst [vmem:[#allocation2 + $0xe8] sm:$0xff] %v1445
      %1478 = vst [vmem:[#allocation2 + $0xf0] sm:$0xff] %v1446
      %1479 = vst [vmem:[#allocation2 + $0xf8] sm:$0xff] %v1447
      %v1480 = vld [vmem:[%s272] sm:$0xe]
      %v1481 = vld [vmem:[%s272 + $0x4] sm:$0xf]
      %v1482 = vld [vmem:[%s272 + $0x8] sm:$0x1]
      %v1483 = vld [vmem:[%s272 + $0xc] sm:$0xe]
      %v1484 = vld [vmem:[%s272 + $0x10] sm:$0xf]
      %v1485 = vld [vmem:[%s272 + $0x14] sm:$0x1]
      %v1486 = vld [vmem:[%s272 + $0x18] sm:$0xe]
      %v1487 = vld [vmem:[%s272 + $0x1c] sm:$0xf]
      %v1488 = vld [vmem:[%s272 + $0x20] sm:$0x1]
      %v1489 = vld [vmem:[%s272 + $0x24] sm:$0xe]
      %v1490 = vld [vmem:[%s272 + $0x28] sm:$0xf]
      %v1491 = vld [vmem:[%s272 + $0x2c] sm:$0x1]
      %v1492 = vld [vmem:[%s272 + $0x30] sm:$0xe]
      %v1493 = vld [vmem:[%s272 + $0x34] sm:$0xf]
      %v1494 = vld [vmem:[%s272 + $0x38] sm:$0x1]
      %v1495 = vld [vmem:[%s272 + $0x3c] sm:$0xe]
      %v1496 = vld [vmem:[%s272 + $0x40] sm:$0xf]
      %v1497 = vld [vmem:[%s272 + $0x44] sm:$0x1]
      %v1498 = vld [vmem:[%s272 + $0x48] sm:$0xe]
      %v1499 = vld [vmem:[%s272 + $0x4c] sm:$0xf]
      %v1500 = vld [vmem:[%s272 + $0x50] sm:$0x1]
      %v1501 = vld [vmem:[%s272 + $0x54] sm:$0xe]
      %v1502 = vld [vmem:[%s272 + $0x58] sm:$0xf]
      %v1503 = vld [vmem:[%s272 + $0x5c] sm:$0x1]
      %v1504 = vld [vmem:[%s272 + $0x60] sm:$0xe]
      %v1505 = vld [vmem:[%s272 + $0x64] sm:$0xf]
      %v1506 = vld [vmem:[%s272 + $0x68] sm:$0x1]
      %v1507 = vld [vmem:[%s272 + $0x6c] sm:$0xe]
      %v1508 = vld [vmem:[%s272 + $0x70] sm:$0xf]
      %v1509 = vld [vmem:[%s272 + $0x74] sm:$0x1]
      %v1510 = vld [vmem:[%s272 + $0x78] sm:$0xe]
      %v1511 = vld [vmem:[%s272 + $0x7c] sm:$0xf]
      %v1512 = vld [vmem:[%s272 + $0x80] sm:$0x1]
      %v1513 = vld [vmem:[%s272 + $0x84] sm:$0xe]
      %v1514 = vld [vmem:[%s272 + $0x88] sm:$0xf]
      %v1515 = vld [vmem:[%s272 + $0x8c] sm:$0x1]
      %v1516 = vld [vmem:[%s272 + $0x90] sm:$0xe]
      %v1517 = vld [vmem:[%s272 + $0x94] sm:$0xf]
      %v1518 = vld [vmem:[%s272 + $0x98] sm:$0x1]
      %v1519 = vld [vmem:[%s272 + $0x9c] sm:$0xe]
      %v1520 = vld [vmem:[%s272 + $0xa0] sm:$0xf]
      %v1521 = vld [vmem:[%s272 + $0xa4] sm:$0x1]
      %v1522 = vld [vmem:[%s272 + $0xa8] sm:$0xe]
      %v1523 = vld [vmem:[%s272 + $0xac] sm:$0xf]
      %v1524 = vld [vmem:[%s272 + $0xb0] sm:$0x1]
      %v1525 = vld [vmem:[%s272 + $0xb4] sm:$0xe]
      %v1526 = vld [vmem:[%s272 + $0xb8] sm:$0xf]
      %v1527 = vld [vmem:[%s272 + $0xbc] sm:$0x1]
      %vm1576 = vcmask 1042432
      %vm1577 = vcmask 1046532
      %vm1578 = vmor %vm1576, %vm1577
      %v1579 = vrot.slane %v1480, 5
      %v1580 = vrot.slane %v1579, 4
      %v1581 = vrot.slane %v1481, 5
      %v1582 = vsel %vm1578, %v1580, %v1581
      %v1583 = vrot.slane %v1581, 4
      %v1584 = vrot.slane %v1482, 5
      %v1585 = vsel %vm1578, %v1583, %v1584
      %v1586 = vrot.slane %v1483, 5
      %v1587 = vrot.slane %v1586, 4
      %v1588 = vrot.slane %v1484, 5
      %v1589 = vsel %vm1578, %v1587, %v1588
      %v1590 = vrot.slane %v1588, 4
      %v1591 = vrot.slane %v1485, 5
      %v1592 = vsel %vm1578, %v1590, %v1591
      %v1593 = vrot.slane %v1486, 5
      %v1594 = vrot.slane %v1593, 4
      %v1595 = vrot.slane %v1487, 5
      %v1596 = vsel %vm1578, %v1594, %v1595
      %v1597 = vrot.slane %v1595, 4
      %v1598 = vrot.slane %v1488, 5
      %v1599 = vsel %vm1578, %v1597, %v1598
      %v1600 = vrot.slane %v1489, 5
      %v1601 = vrot.slane %v1600, 4
      %v1602 = vrot.slane %v1490, 5
      %v1603 = vsel %vm1578, %v1601, %v1602
      %v1604 = vrot.slane %v1602, 4
      %v1605 = vrot.slane %v1491, 5
      %v1606 = vsel %vm1578, %v1604, %v1605
      %v1607 = vrot.slane %v1492, 5
      %v1608 = vrot.slane %v1607, 4
      %v1609 = vrot.slane %v1493, 5
      %v1610 = vsel %vm1578, %v1608, %v1609
      %v1611 = vrot.slane %v1609, 4
      %v1612 = vrot.slane %v1494, 5
      %v1613 = vsel %vm1578, %v1611, %v1612
      %v1614 = vrot.slane %v1495, 5
      %v1615 = vrot.slane %v1614, 4
      %v1616 = vrot.slane %v1496, 5
      %v1617 = vsel %vm1578, %v1615, %v1616
      %v1618 = vrot.slane %v1616, 4
      %v1619 = vrot.slane %v1497, 5
      %v1620 = vsel %vm1578, %v1618, %v1619
      %v1621 = vrot.slane %v1498, 5
      %v1622 = vrot.slane %v1621, 4
      %v1623 = vrot.slane %v1499, 5
      %v1624 = vsel %vm1578, %v1622, %v1623
      %v1625 = vrot.slane %v1623, 4
      %v1626 = vrot.slane %v1500, 5
      %v1627 = vsel %vm1578, %v1625, %v1626
      %v1628 = vrot.slane %v1501, 5
      %v1629 = vrot.slane %v1628, 4
      %v1630 = vrot.slane %v1502, 5
      %v1631 = vsel %vm1578, %v1629, %v1630
      %v1632 = vrot.slane %v1630, 4
      %v1633 = vrot.slane %v1503, 5
      %v1634 = vsel %vm1578, %v1632, %v1633
      %v1635 = vrot.slane %v1504, 5
      %v1636 = vrot.slane %v1635, 4
      %v1637 = vrot.slane %v1505, 5
      %v1638 = vsel %vm1578, %v1636, %v1637
      %v1639 = vrot.slane %v1637, 4
      %v1640 = vrot.slane %v1506, 5
      %v1641 = vsel %vm1578, %v1639, %v1640
      %v1642 = vrot.slane %v1507, 5
      %v1643 = vrot.slane %v1642, 4
      %v1644 = vrot.slane %v1508, 5
      %v1645 = vsel %vm1578, %v1643, %v1644
      %v1646 = vrot.slane %v1644, 4
      %v1647 = vrot.slane %v1509, 5
      %v1648 = vsel %vm1578, %v1646, %v1647
      %v1649 = vrot.slane %v1510, 5
      %v1650 = vrot.slane %v1649, 4
      %v1651 = vrot.slane %v1511, 5
      %v1652 = vsel %vm1578, %v1650, %v1651
      %v1653 = vrot.slane %v1651, 4
      %v1654 = vrot.slane %v1512, 5
      %v1655 = vsel %vm1578, %v1653, %v1654
      %v1656 = vrot.slane %v1513, 5
      %v1657 = vrot.slane %v1656, 4
      %v1658 = vrot.slane %v1514, 5
      %v1659 = vsel %vm1578, %v1657, %v1658
      %v1660 = vrot.slane %v1658, 4
      %v1661 = vrot.slane %v1515, 5
      %v1662 = vsel %vm1578, %v1660, %v1661
      %v1663 = vrot.slane %v1516, 5
      %v1664 = vrot.slane %v1663, 4
      %v1665 = vrot.slane %v1517, 5
      %v1666 = vsel %vm1578, %v1664, %v1665
      %v1667 = vrot.slane %v1665, 4
      %v1668 = vrot.slane %v1518, 5
      %v1669 = vsel %vm1578, %v1667, %v1668
      %v1670 = vrot.slane %v1519, 5
      %v1671 = vrot.slane %v1670, 4
      %v1672 = vrot.slane %v1520, 5
      %v1673 = vsel %vm1578, %v1671, %v1672
      %v1674 = vrot.slane %v1672, 4
      %v1675 = vrot.slane %v1521, 5
      %v1676 = vsel %vm1578, %v1674, %v1675
      %v1677 = vrot.slane %v1522, 5
      %v1678 = vrot.slane %v1677, 4
      %v1679 = vrot.slane %v1523, 5
      %v1680 = vsel %vm1578, %v1678, %v1679
      %v1681 = vrot.slane %v1679, 4
      %v1682 = vrot.slane %v1524, 5
      %v1683 = vsel %vm1578, %v1681, %v1682
      %v1684 = vrot.slane %v1525, 5
      %v1685 = vrot.slane %v1684, 4
      %v1686 = vrot.slane %v1526, 5
      %v1687 = vsel %vm1578, %v1685, %v1686
      %v1688 = vrot.slane %v1686, 4
      %v1689 = vrot.slane %v1527, 5
      %v1690 = vsel %vm1578, %v1688, %v1689
      %s1691 = scalar_lea.vmem %s1, 64
      %v1692 = vld [vmem:[%s1691] sm:$0xf]
      %v1693 = vld [vmem:[%s1691 + $0x4] sm:$0xf]
      %v1694 = vld [vmem:[%s1691 + $0x8] sm:$0xf]
      %v1695 = vld [vmem:[%s1691 + $0xc] sm:$0xf]
      %v1696 = vld [vmem:[%s1691 + $0x10] sm:$0xf]
      %v1697 = vld [vmem:[%s1691 + $0x14] sm:$0xf]
      %v1698 = vld [vmem:[%s1691 + $0x18] sm:$0xf]
      %v1699 = vld [vmem:[%s1691 + $0x1c] sm:$0xf]
      %v1700 = vunpack.c.l.b16 %v1582
      %v1701 = vunpack.c.l.b16 %v1585
      %v1702 = vunpack.c.l.b16 %v1589
      %v1703 = vunpack.c.l.b16 %v1592
      %v1704 = vunpack.c.l.b16 %v1596
      %v1705 = vunpack.c.l.b16 %v1599
      %v1706 = vunpack.c.l.b16 %v1603
      %v1707 = vunpack.c.l.b16 %v1606
      %v1708 = vunpack.c.l.b16 %v1610
      %v1709 = vunpack.c.l.b16 %v1613
      %v1710 = vunpack.c.l.b16 %v1617
      %v1711 = vunpack.c.l.b16 %v1620
      %v1712 = vunpack.c.l.b16 %v1624
      %v1713 = vunpack.c.l.b16 %v1627
      %v1714 = vunpack.c.l.b16 %v1631
      %v1715 = vunpack.c.l.b16 %v1634
      %v1716 = vunpack.c.l.b16 %v1638
      %v1717 = vunpack.c.l.b16 %v1641
      %v1718 = vunpack.c.l.b16 %v1645
      %v1719 = vunpack.c.l.b16 %v1648
      %v1720 = vunpack.c.l.b16 %v1652
      %v1721 = vunpack.c.l.b16 %v1655
      %v1722 = vunpack.c.l.b16 %v1659
      %v1723 = vunpack.c.l.b16 %v1662
      %v1724 = vunpack.c.l.b16 %v1666
      %v1725 = vunpack.c.l.b16 %v1669
      %v1726 = vunpack.c.l.b16 %v1673
      %v1727 = vunpack.c.l.b16 %v1676
      %v1728 = vunpack.c.l.b16 %v1680
      %v1729 = vunpack.c.l.b16 %v1683
      %v1730 = vunpack.c.l.b16 %v1687
      %v1731 = vunpack.c.l.b16 %v1690
      %v1732 = vpack.c.b16 %v1701, %v1700
      %v1733 = vpack.c.b16 %v1703, %v1702
      %v1734 = vpack.c.b16 %v1705, %v1704
      %v1735 = vpack.c.b16 %v1707, %v1706
      %v1736 = vpack.c.b16 %v1709, %v1708
      %v1737 = vpack.c.b16 %v1711, %v1710
      %v1738 = vpack.c.b16 %v1713, %v1712
      %v1739 = vpack.c.b16 %v1715, %v1714
      %v1740 = vpack.c.b16 %v1717, %v1716
      %v1741 = vpack.c.b16 %v1719, %v1718
      %v1742 = vpack.c.b16 %v1721, %v1720
      %v1743 = vpack.c.b16 %v1723, %v1722
      %v1744 = vpack.c.b16 %v1725, %v1724
      %v1745 = vpack.c.b16 %v1727, %v1726
      %v1746 = vpack.c.b16 %v1729, %v1728
      %v1747 = vpack.c.b16 %v1731, %v1730
      %v1756 = vunpack.c.l.b16 %v1692
      %v1757 = vunpack.c.l.b16 %v1693
      %v1758 = vunpack.c.l.b16 %v1694
      %v1759 = vunpack.c.l.b16 %v1695
      %v1760 = vunpack.c.l.b16 %v1696
      %v1761 = vunpack.c.l.b16 %v1697
      %v1762 = vunpack.c.l.b16 %v1698
      %v1763 = vunpack.c.l.b16 %v1699
      %v1764 = vpack.c.b16 %v1757, %v1756
      %v1765 = vpack.c.b16 %v1759, %v1758
      %v1766 = vpack.c.b16 %v1761, %v1760
      %v1767 = vpack.c.b16 %v1763, %v1762
      %v1773 = vsel %vm417, %v1732, 0
      %v1776 = vsel %vm417, %v1733, 0
      %v1779 = vsel %vm417, %v1734, 0
      %v1782 = vsel %vm417, %v1735, 0
      %v1785 = vsel %vm417, %v1736, 0
      %v1788 = vsel %vm417, %v1737, 0
      %v1791 = vsel %vm417, %v1738, 0
      %v1794 = vsel %vm417, %v1739, 0
      %v1797 = vsel %vm417, %v1740, 0
      %v1800 = vsel %vm417, %v1741, 0
      %v1803 = vsel %vm417, %v1742, 0
      %v1806 = vsel %vm417, %v1743, 0
      %v1809 = vsel %vm417, %v1744, 0
      %v1812 = vsel %vm417, %v1745, 0
      %v1815 = vsel %vm417, %v1746, 0
      %v1818 = vsel %vm417, %v1747, 0
      %1820 = vmatprep.subr.bf16.mxu0 0
      %1821 = vmatpush1.bf16.msra.mxu0 %v1764
      %1822 = vmatprep.subr.bf16.mxu0 0
      %1823 = vmatpush1.bf16.msra.mxu0 %v1765
      %1824 = vmatprep.subr.bf16.mxu0 0
      %1825 = vmatpush1.bf16.msra.mxu0 %v1766
      %1826 = vmatprep.subr.bf16.mxu0 0
      %1827 = vmatpush1.bf16.msra.mxu0 %v1767
      %1828 = vmatprep.subr.bf16.mxu0 0
      %1829 = vmatpush1.bf16.msra.mxu0 0
      %1830 = vmatprep.subr.bf16.mxu0 0
      %1831 = vmatpush1.bf16.msra.mxu0 0
      %1832 = vmatprep.subr.bf16.mxu0 0
      %1833 = vmatpush1.bf16.msra.mxu0 0
      %1834 = vmatprep.subr.bf16.mxu0 0
      %1835 = vmatpush1.bf16.msra.mxu0 0
      %1836 = vmatprep.subr.bf16.mxu0 0
      %1837 = vmatpush1.bf16.msra.mxu0 0
      %1838 = vmatprep.subr.bf16.mxu0 0
      %1839 = vmatpush1.bf16.msra.mxu0 0
      %1840 = vmatprep.subr.bf16.mxu0 0
      %1841 = vmatpush1.bf16.msra.mxu0 0
      %1842 = vmatprep.subr.bf16.mxu0 0
      %1843 = vmatpush1.bf16.msra.mxu0 0
      %1844 = vmatprep.subr.bf16.mxu0 0
      %1845 = vmatpush1.bf16.msra.mxu0 0
      %1846 = vmatprep.subr.bf16.mxu0 0
      %1847 = vmatpush1.bf16.msra.mxu0 0
      %1848 = vmatprep.subr.bf16.mxu0 0
      %1849 = vmatpush1.bf16.msra.mxu0 0
      %1850 = vmatprep.subr.bf16.mxu0 0
      %1851 = vmatpush1.bf16.msra.mxu0 0
      %1852 = vmatprep.mubr.bf16.mxu0 0
      %1853 = vmatmul.mubr.bf16.gmra.mrb[0].mxu0 %v1773
      %v1854 = vpop.f32.mrb[0].mxu0
      %v1855 = vadd.f32 0.0, %v1854
      %v1856 = vpop.f32.mrb[0].mxu0
      %v1857 = vpop.f32.mrb[0].mxu0
      %v1858 = vadd.f32 0.0, %v1857
      %v1859 = vpop.f32.mrb[0].mxu0
      %1860 = vmatprep.mubr.bf16.mxu0 0
      %1861 = vmatmul.mubr.bf16.gmra.mrb[0].mxu0 %v1776
      %v1862 = vpop.f32.mrb[0].mxu0
      %v1863 = vadd.f32 0.0, %v1862
      %v1864 = vpop.f32.mrb[0].mxu0
      %v1865 = vpop.f32.mrb[0].mxu0
      %v1866 = vadd.f32 0.0, %v1865
      %v1867 = vpop.f32.mrb[0].mxu0
      %1868 = vmatprep.mubr.bf16.mxu0 0
      %1869 = vmatmul.mubr.bf16.gmra.mrb[0].mxu0 %v1779
      %v1870 = vpop.f32.mrb[0].mxu0
      %v1871 = vadd.f32 0.0, %v1870
      %v1872 = vpop.f32.mrb[0].mxu0
      %v1873 = vpop.f32.mrb[0].mxu0
      %v1874 = vadd.f32 0.0, %v1873
      %v1875 = vpop.f32.mrb[0].mxu0
      %1876 = vmatprep.mubr.bf16.mxu0 0
      %1877 = vmatmul.mubr.bf16.gmra.mrb[0].mxu0 %v1782
      %v1878 = vpop.f32.mrb[0].mxu0
      %v1879 = vadd.f32 0.0, %v1878
      %v1880 = vpop.f32.mrb[0].mxu0
      %v1881 = vpop.f32.mrb[0].mxu0
      %v1882 = vadd.f32 0.0, %v1881
      %v1883 = vpop.f32.mrb[0].mxu0
      %1884 = vmatprep.mubr.bf16.mxu0 0
      %1885 = vmatmul.mubr.bf16.gmra.mrb[0].mxu0 %v1785
      %v1886 = vpop.f32.mrb[0].mxu0
      %v1887 = vadd.f32 0.0, %v1886
      %v1888 = vpop.f32.mrb[0].mxu0
      %v1889 = vpop.f32.mrb[0].mxu0
      %v1890 = vadd.f32 0.0, %v1889
      %v1891 = vpop.f32.mrb[0].mxu0
      %1892 = vmatprep.mubr.bf16.mxu0 0
      %1893 = vmatmul.mubr.bf16.gmra.mrb[0].mxu0 %v1788
      %v1894 = vpop.f32.mrb[0].mxu0
      %v1895 = vadd.f32 0.0, %v1894
      %v1896 = vpop.f32.mrb[0].mxu0
      %v1897 = vpop.f32.mrb[0].mxu0
      %v1898 = vadd.f32 0.0, %v1897
      %v1899 = vpop.f32.mrb[0].mxu0
      %1900 = vmatprep.mubr.bf16.mxu0 0
      %1901 = vmatmul.mubr.bf16.gmra.mrb[0].mxu0 %v1791
      %v1902 = vpop.f32.mrb[0].mxu0
      %v1903 = vadd.f32 0.0, %v1902
      %v1904 = vpop.f32.mrb[0].mxu0
      %v1905 = vpop.f32.mrb[0].mxu0
      %v1906 = vadd.f32 0.0, %v1905
      %v1907 = vpop.f32.mrb[0].mxu0
      %1908 = vmatprep.mubr.bf16.mxu0 0
      %1909 = vmatmul.mubr.bf16.gmra.mrb[0].mxu0 %v1794
      %v1910 = vpop.f32.mrb[0].mxu0
      %v1911 = vadd.f32 0.0, %v1910
      %v1912 = vpop.f32.mrb[0].mxu0
      %v1913 = vpop.f32.mrb[0].mxu0
      %v1914 = vadd.f32 0.0, %v1913
      %v1915 = vpop.f32.mrb[0].mxu0
      %1916 = vmatprep.mubr.bf16.mxu0 0
      %1917 = vmatmul.mubr.bf16.gmra.mrb[0].mxu0 %v1797
      %v1918 = vpop.f32.mrb[0].mxu0
      %v1919 = vadd.f32 0.0, %v1918
      %v1920 = vpop.f32.mrb[0].mxu0
      %v1921 = vpop.f32.mrb[0].mxu0
      %v1922 = vadd.f32 0.0, %v1921
      %v1923 = vpop.f32.mrb[0].mxu0
      %1924 = vmatprep.mubr.bf16.mxu0 0
      %1925 = vmatmul.mubr.bf16.gmra.mrb[0].mxu0 %v1800
      %v1926 = vpop.f32.mrb[0].mxu0
      %v1927 = vadd.f32 0.0, %v1926
      %v1928 = vpop.f32.mrb[0].mxu0
      %v1929 = vpop.f32.mrb[0].mxu0
      %v1930 = vadd.f32 0.0, %v1929
      %v1931 = vpop.f32.mrb[0].mxu0
      %1932 = vmatprep.mubr.bf16.mxu0 0
      %1933 = vmatmul.mubr.bf16.gmra.mrb[0].mxu0 %v1803
      %v1934 = vpop.f32.mrb[0].mxu0
      %v1935 = vadd.f32 0.0, %v1934
      %v1936 = vpop.f32.mrb[0].mxu0
      %v1937 = vpop.f32.mrb[0].mxu0
      %v1938 = vadd.f32 0.0, %v1937
      %v1939 = vpop.f32.mrb[0].mxu0
      %1940 = vmatprep.mubr.bf16.mxu0 0
      %1941 = vmatmul.mubr.bf16.gmra.mrb[0].mxu0 %v1806
      %v1942 = vpop.f32.mrb[0].mxu0
      %v1943 = vadd.f32 0.0, %v1942
      %v1944 = vpop.f32.mrb[0].mxu0
      %v1945 = vpop.f32.mrb[0].mxu0
      %v1946 = vadd.f32 0.0, %v1945
      %v1947 = vpop.f32.mrb[0].mxu0
      %1948 = vmatprep.mubr.bf16.mxu0 0
      %1949 = vmatmul.mubr.bf16.gmra.mrb[0].mxu0 %v1809
      %v1950 = vpop.f32.mrb[0].mxu0
      %v1951 = vadd.f32 0.0, %v1950
      %v1952 = vpop.f32.mrb[0].mxu0
      %v1953 = vpop.f32.mrb[0].mxu0
      %v1954 = vadd.f32 0.0, %v1953
      %v1955 = vpop.f32.mrb[0].mxu0
      %1956 = vmatprep.mubr.bf16.mxu0 0
      %1957 = vmatmul.mubr.bf16.gmra.mrb[0].mxu0 %v1812
      %v1958 = vpop.f32.mrb[0].mxu0
      %v1959 = vadd.f32 0.0, %v1958
      %v1960 = vpop.f32.mrb[0].mxu0
      %v1961 = vpop.f32.mrb[0].mxu0
      %v1962 = vadd.f32 0.0, %v1961
      %v1963 = vpop.f32.mrb[0].mxu0
      %1964 = vmatprep.mubr.bf16.mxu0 0
      %1965 = vmatmul.mubr.bf16.gmra.mrb[0].mxu0 %v1815
      %v1966 = vpop.f32.mrb[0].mxu0
      %v1967 = vadd.f32 0.0, %v1966
      %v1968 = vpop.f32.mrb[0].mxu0
      %v1969 = vpop.f32.mrb[0].mxu0
      %v1970 = vadd.f32 0.0, %v1969
      %v1971 = vpop.f32.mrb[0].mxu0
      %1972 = vmatprep.mubr.bf16.mxu0 0
      %1973 = vmatmul.mubr.bf16.gmra.mrb[0].mxu0 %v1818
      %v1974 = vpop.f32.mrb[0].mxu0
      %v1975 = vadd.f32 0.0, %v1974
      %v1976 = vpop.f32.mrb[0].mxu0
      %v1977 = vpop.f32.mrb[0].mxu0
      %v1978 = vadd.f32 0.0, %v1977
      %v1979 = vpop.f32.mrb[0].mxu0
      %1980 = vdwg.mxu0
      %v1981 = vld [vmem:[#allocation2] sm:$0xff]
      %v1982 = vld [vmem:[#allocation2 + $0x8] sm:$0xff]
      %v1983 = vld [vmem:[#allocation2 + $0x10] sm:$0xff]
      %v1984 = vld [vmem:[#allocation2 + $0x18] sm:$0xff]
      %v1985 = vld [vmem:[#allocation2 + $0x20] sm:$0xff]
      %v1986 = vld [vmem:[#allocation2 + $0x28] sm:$0xff]
      %v1987 = vld [vmem:[#allocation2 + $0x30] sm:$0xff]
      %v1988 = vld [vmem:[#allocation2 + $0x38] sm:$0xff]
      %v1989 = vld [vmem:[#allocation2 + $0x40] sm:$0xff]
      %v1990 = vld [vmem:[#allocation2 + $0x48] sm:$0xff]
      %v1991 = vld [vmem:[#allocation2 + $0x50] sm:$0xff]
      %v1992 = vld [vmem:[#allocation2 + $0x58] sm:$0xff]
      %v1993 = vld [vmem:[#allocation2 + $0x60] sm:$0xff]
      %v1994 = vld [vmem:[#allocation2 + $0x68] sm:$0xff]
      %v1995 = vld [vmem:[#allocation2 + $0x70] sm:$0xff]
      %v1996 = vld [vmem:[#allocation2 + $0x78] sm:$0xff]
      %v1997 = vld [vmem:[#allocation2 + $0x80] sm:$0xff]
      %v1998 = vld [vmem:[#allocation2 + $0x88] sm:$0xff]
      %v1999 = vld [vmem:[#allocation2 + $0x90] sm:$0xff]
      %v2000 = vld [vmem:[#allocation2 + $0x98] sm:$0xff]
      %v2001 = vld [vmem:[#allocation2 + $0xa0] sm:$0xff]
      %v2002 = vld [vmem:[#allocation2 + $0xa8] sm:$0xff]
      %v2003 = vld [vmem:[#allocation2 + $0xb0] sm:$0xff]
      %v2004 = vld [vmem:[#allocation2 + $0xb8] sm:$0xff]
      %v2005 = vld [vmem:[#allocation2 + $0xc0] sm:$0xff]
      %v2006 = vld [vmem:[#allocation2 + $0xc8] sm:$0xff]
      %v2007 = vld [vmem:[#allocation2 + $0xd0] sm:$0xff]
      %v2008 = vld [vmem:[#allocation2 + $0xd8] sm:$0xff]
      %v2009 = vld [vmem:[#allocation2 + $0xe0] sm:$0xff]
      %v2010 = vld [vmem:[#allocation2 + $0xe8] sm:$0xff]
      %v2011 = vld [vmem:[#allocation2 + $0xf0] sm:$0xff]
      %v2012 = vld [vmem:[#allocation2 + $0xf8] sm:$0xff]
      %v2013 = vadd.f32 %v1981, %v1855
      %v2014 = vadd.f32 %v1982, %v1858
      %v2015 = vadd.f32 %v1983, %v1863
      %v2016 = vadd.f32 %v1984, %v1866
      %v2017 = vadd.f32 %v1985, %v1871
      %v2018 = vadd.f32 %v1986, %v1874
      %v2019 = vadd.f32 %v1987, %v1879
      %v2020 = vadd.f32 %v1988, %v1882
      %v2021 = vadd.f32 %v1989, %v1887
      %v2022 = vadd.f32 %v1990, %v1890
      %v2023 = vadd.f32 %v1991, %v1895
      %v2024 = vadd.f32 %v1992, %v1898
      %v2025 = vadd.f32 %v1993, %v1903
      %v2026 = vadd.f32 %v1994, %v1906
      %v2027 = vadd.f32 %v1995, %v1911
      %v2028 = vadd.f32 %v1996, %v1914
      %v2029 = vadd.f32 %v1997, %v1919
      %v2030 = vadd.f32 %v1998, %v1922
      %v2031 = vadd.f32 %v1999, %v1927
      %v2032 = vadd.f32 %v2000, %v1930
      %v2033 = vadd.f32 %v2001, %v1935
      %v2034 = vadd.f32 %v2002, %v1938
      %v2035 = vadd.f32 %v2003, %v1943
      %v2036 = vadd.f32 %v2004, %v1946
      %v2037 = vadd.f32 %v2005, %v1951
      %v2038 = vadd.f32 %v2006, %v1954
      %v2039 = vadd.f32 %v2007, %v1959
      %v2040 = vadd.f32 %v2008, %v1962
      %v2041 = vadd.f32 %v2009, %v1967
      %v2042 = vadd.f32 %v2010, %v1970
      %v2043 = vadd.f32 %v2011, %v1975
      %v2044 = vadd.f32 %v2012, %v1978
      %2045 = vst [vmem:[#allocation2] sm:$0xff] %v2013
      %2046 = vst [vmem:[#allocation2 + $0x8] sm:$0xff] %v2014
      %2047 = vst [vmem:[#allocation2 + $0x10] sm:$0xff] %v2015
      %2048 = vst [vmem:[#allocation2 + $0x18] sm:$0xff] %v2016
      %2049 = vst [vmem:[#allocation2 + $0x20] sm:$0xff] %v2017
      %2050 = vst [vmem:[#allocation2 + $0x28] sm:$0xff] %v2018
      %2051 = vst [vmem:[#allocation2 + $0x30] sm:$0xff] %v2019
      %2052 = vst [vmem:[#allocation2 + $0x38] sm:$0xff] %v2020
      %2053 = vst [vmem:[#allocation2 + $0x40] sm:$0xff] %v2021
      %2054 = vst [vmem:[#allocation2 + $0x48] sm:$0xff] %v2022
      %2055 = vst [vmem:[#allocation2 + $0x50] sm:$0xff] %v2023
      %2056 = vst [vmem:[#allocation2 + $0x58] sm:$0xff] %v2024
      %2057 = vst [vmem:[#allocation2 + $0x60] sm:$0xff] %v2025
      %2058 = vst [vmem:[#allocation2 + $0x68] sm:$0xff] %v2026
      %2059 = vst [vmem:[#allocation2 + $0x70] sm:$0xff] %v2027
      %2060 = vst [vmem:[#allocation2 + $0x78] sm:$0xff] %v2028
      %2061 = vst [vmem:[#allocation2 + $0x80] sm:$0xff] %v2029
      %2062 = vst [vmem:[#allocation2 + $0x88] sm:$0xff] %v2030
      %2063 = vst [vmem:[#allocation2 + $0x90] sm:$0xff] %v2031
      %2064 = vst [vmem:[#allocation2 + $0x98] sm:$0xff] %v2032
      %2065 = vst [vmem:[#allocation2 + $0xa0] sm:$0xff] %v2033
      %2066 = vst [vmem:[#allocation2 + $0xa8] sm:$0xff] %v2034
      %2067 = vst [vmem:[#allocation2 + $0xb0] sm:$0xff] %v2035
      %2068 = vst [vmem:[#allocation2 + $0xb8] sm:$0xff] %v2036
      %2069 = vst [vmem:[#allocation2 + $0xc0] sm:$0xff] %v2037
      %2070 = vst [vmem:[#allocation2 + $0xc8] sm:$0xff] %v2038
      %2071 = vst [vmem:[#allocation2 + $0xd0] sm:$0xff] %v2039
      %2072 = vst [vmem:[#allocation2 + $0xd8] sm:$0xff] %v2040
      %2073 = vst [vmem:[#allocation2 + $0xe0] sm:$0xff] %v2041
      %2074 = vst [vmem:[#allocation2 + $0xe8] sm:$0xff] %v2042
      %2075 = vst [vmem:[#allocation2 + $0xf0] sm:$0xff] %v2043
      %2076 = vst [vmem:[#allocation2 + $0xf8] sm:$0xff] %v2044
      %s2077 = sadd.s32 %s269, 1
      %s2078 = smul.u32 %s2077, 3
      %s2079 = smul.addr %s2078, 4
      %s2080 = scalar_lea.vmem %s252, %s2079
      %v2081 = vld [vmem:[%s2080] sm:$0xf]
      %v2082 = vld [vmem:[%s2080 + $0x4] sm:$0xf]
      %v2083 = vld [vmem:[%s2080 + $0xc] sm:$0xf]
      %v2084 = vld [vmem:[%s2080 + $0x10] sm:$0xf]
      %v2085 = vld [vmem:[%s2080 + $0x18] sm:$0xf]
      %v2086 = vld [vmem:[%s2080 + $0x1c] sm:$0xf]
      %v2087 = vld [vmem:[%s2080 + $0x24] sm:$0xf]
      %v2088 = vld [vmem:[%s2080 + $0x28] sm:$0xf]
      %v2089 = vld [vmem:[%s2080 + $0x30] sm:$0xf]
      %v2090 = vld [vmem:[%s2080 + $0x34] sm:$0xf]
      %v2091 = vld [vmem:[%s2080 + $0x3c] sm:$0xf]
      %v2092 = vld [vmem:[%s2080 + $0x40] sm:$0xf]
      %v2093 = vld [vmem:[%s2080 + $0x48] sm:$0xf]
      %v2094 = vld [vmem:[%s2080 + $0x4c] sm:$0xf]
      %v2095 = vld [vmem:[%s2080 + $0x54] sm:$0xf]
      %v2096 = vld [vmem:[%s2080 + $0x58] sm:$0xf]
      %v2097 = vld [vmem:[%s2080 + $0x60] sm:$0xf]
      %v2098 = vld [vmem:[%s2080 + $0x64] sm:$0xf]
      %v2099 = vld [vmem:[%s2080 + $0x6c] sm:$0xf]
      %v2100 = vld [vmem:[%s2080 + $0x70] sm:$0xf]
      %v2101 = vld [vmem:[%s2080 + $0x78] sm:$0xf]
      %v2102 = vld [vmem:[%s2080 + $0x7c] sm:$0xf]
      %v2103 = vld [vmem:[%s2080 + $0x84] sm:$0xf]
      %v2104 = vld [vmem:[%s2080 + $0x88] sm:$0xf]
      %v2105 = vld [vmem:[%s2080 + $0x90] sm:$0xf]
      %v2106 = vld [vmem:[%s2080 + $0x94] sm:$0xf]
      %v2107 = vld [vmem:[%s2080 + $0x9c] sm:$0xf]
      %v2108 = vld [vmem:[%s2080 + $0xa0] sm:$0xf]
      %v2109 = vld [vmem:[%s2080 + $0xa8] sm:$0xf]
      %v2110 = vld [vmem:[%s2080 + $0xac] sm:$0xf]
      %v2111 = vld [vmem:[%s2080 + $0xb4] sm:$0xf]
      %v2112 = vld [vmem:[%s2080 + $0xb8] sm:$0xf]
      %s2113 = scalar_lea.vmem %s1, 96
      %v2114 = vld [vmem:[%s2113] sm:$0xf]
      %v2115 = vld [vmem:[%s2113 + $0x4] sm:$0xf]
      %v2116 = vld [vmem:[%s2113 + $0x8] sm:$0xf]
      %v2117 = vld [vmem:[%s2113 + $0xc] sm:$0xf]
      %v2118 = vld [vmem:[%s2113 + $0x10] sm:$0xf]
      %v2119 = vld [vmem:[%s2113 + $0x14] sm:$0xf]
      %v2120 = vld [vmem:[%s2113 + $0x18] sm:$0xf]
      %v2121 = vld [vmem:[%s2113 + $0x1c] sm:$0xf]
      %v2154 = vunpack.c.l.b16 %v2081
      %v2155 = vunpack.c.l.b16 %v2082
      %v2156 = vunpack.c.l.b16 %v2083
      %v2157 = vunpack.c.l.b16 %v2084
      %v2158 = vunpack.c.l.b16 %v2085
      %v2159 = vunpack.c.l.b16 %v2086
      %v2160 = vunpack.c.l.b16 %v2087
      %v2161 = vunpack.c.l.b16 %v2088
      %v2162 = vunpack.c.l.b16 %v2089
      %v2163 = vunpack.c.l.b16 %v2090
      %v2164 = vunpack.c.l.b16 %v2091
      %v2165 = vunpack.c.l.b16 %v2092
      %v2166 = vunpack.c.l.b16 %v2093
      %v2167 = vunpack.c.l.b16 %v2094
      %v2168 = vunpack.c.l.b16 %v2095
      %v2169 = vunpack.c.l.b16 %v2096
      %v2170 = vunpack.c.l.b16 %v2097
      %v2171 = vunpack.c.l.b16 %v2098
      %v2172 = vunpack.c.l.b16 %v2099
      %v2173 = vunpack.c.l.b16 %v2100
      %v2174 = vunpack.c.l.b16 %v2101
      %v2175 = vunpack.c.l.b16 %v2102
      %v2176 = vunpack.c.l.b16 %v2103
      %v2177 = vunpack.c.l.b16 %v2104
      %v2178 = vunpack.c.l.b16 %v2105
      %v2179 = vunpack.c.l.b16 %v2106
      %v2180 = vunpack.c.l.b16 %v2107
      %v2181 = vunpack.c.l.b16 %v2108
      %v2182 = vunpack.c.l.b16 %v2109
      %v2183 = vunpack.c.l.b16 %v2110
      %v2184 = vunpack.c.l.b16 %v2111
      %v2185 = vunpack.c.l.b16 %v2112
      %v2186 = vpack.c.b16 %v2155, %v2154
      %v2187 = vpack.c.b16 %v2157, %v2156
      %v2188 = vpack.c.b16 %v2159, %v2158
      %v2189 = vpack.c.b16 %v2161, %v2160
      %v2190 = vpack.c.b16 %v2163, %v2162
      %v2191 = vpack.c.b16 %v2165, %v2164
      %v2192 = vpack.c.b16 %v2167, %v2166
      %v2193 = vpack.c.b16 %v2169, %v2168
      %v2194 = vpack.c.b16 %v2171, %v2170
      %v2195 = vpack.c.b16 %v2173, %v2172
      %v2196 = vpack.c.b16 %v2175, %v2174
      %v2197 = vpack.c.b16 %v2177, %v2176
      %v2198 = vpack.c.b16 %v2179, %v2178
      %v2199 = vpack.c.b16 %v2181, %v2180
      %v2200 = vpack.c.b16 %v2183, %v2182
      %v2201 = vpack.c.b16 %v2185, %v2184
      %v2210 = vunpack.c.l.b16 %v2114
      %v2211 = vunpack.c.l.b16 %v2115
      %v2212 = vunpack.c.l.b16 %v2116
      %v2213 = vunpack.c.l.b16 %v2117
      %v2214 = vunpack.c.l.b16 %v2118
      %v2215 = vunpack.c.l.b16 %v2119
      %v2216 = vunpack.c.l.b16 %v2120
      %v2217 = vunpack.c.l.b16 %v2121
      %v2218 = vpack.c.b16 %v2211, %v2210
      %v2219 = vpack.c.b16 %v2213, %v2212
      %v2220 = vpack.c.b16 %v2215, %v2214
      %v2221 = vpack.c.b16 %v2217, %v2216
      %v2227 = vsel %vm417, %v2186, 0
      %v2230 = vsel %vm417, %v2187, 0
      %v2233 = vsel %vm417, %v2188, 0
      %v2236 = vsel %vm417, %v2189, 0
      %v2239 = vsel %vm417, %v2190, 0
      %v2242 = vsel %vm417, %v2191, 0
      %v2245 = vsel %vm417, %v2192, 0
      %v2248 = vsel %vm417, %v2193, 0
      %v2251 = vsel %vm417, %v2194, 0
      %v2254 = vsel %vm417, %v2195, 0
      %v2257 = vsel %vm417, %v2196, 0
      %v2260 = vsel %vm417, %v2197, 0
      %v2263 = vsel %vm417, %v2198, 0
      %v2266 = vsel %vm417, %v2199, 0
      %v2269 = vsel %vm417, %v2200, 0
      %v2272 = vsel %vm417, %v2201, 0
      %2274 = vmatprep.subr.bf16.mxu0 0
      %2275 = vmatpush1.bf16.msra.mxu0 %v2218
      %2276 = vmatprep.subr.bf16.mxu0 0
      %2277 = vmatpush1.bf16.msra.mxu0 %v2219
      %2278 = vmatprep.subr.bf16.mxu0 0
      %2279 = vmatpush1.bf16.msra.mxu0 %v2220
      %2280 = vmatprep.subr.bf16.mxu0 0
      %2281 = vmatpush1.bf16.msra.mxu0 %v2221
      %2282 = vmatprep.subr.bf16.mxu0 0
      %2283 = vmatpush1.bf16.msra.mxu0 0
      %2284 = vmatprep.subr.bf16.mxu0 0
      %2285 = vmatpush1.bf16.msra.mxu0 0
      %2286 = vmatprep.subr.bf16.mxu0 0
      %2287 = vmatpush1.bf16.msra.mxu0 0
      %2288 = vmatprep.subr.bf16.mxu0 0
      %2289 = vmatpush1.bf16.msra.mxu0 0
      %2290 = vmatprep.subr.bf16.mxu0 0
      %2291 = vmatpush1.bf16.msra.mxu0 0
      %2292 = vmatprep.subr.bf16.mxu0 0
      %2293 = vmatpush1.bf16.msra.mxu0 0
      %2294 = vmatprep.subr.bf16.mxu0 0
      %2295 = vmatpush1.bf16.msra.mxu0 0
      %2296 = vmatprep.subr.bf16.mxu0 0
      %2297 = vmatpush1.bf16.msra.mxu0 0
      %2298 = vmatprep.subr.bf16.mxu0 0
      %2299 = vmatpush1.bf16.msra.mxu0 0
      %2300 = vmatprep.subr.bf16.mxu0 0
      %2301 = vmatpush1.bf16.msra.mxu0 0
      %2302 = vmatprep.subr.bf16.mxu0 0
      %2303 = vmatpush1.bf16.msra.mxu0 0
      %2304 = vmatprep.subr.bf16.mxu0 0
      %2305 = vmatpush1.bf16.msra.mxu0 0
      %2306 = vmatprep.mubr.bf16.mxu0 0
      %2307 = vmatmul.mubr.bf16.gmra.mrb[0].mxu0 %v2227
      %v2308 = vpop.f32.mrb[0].mxu0
      %v2309 = vadd.f32 0.0, %v2308
      %v2310 = vpop.f32.mrb[0].mxu0
      %v2311 = vpop.f32.mrb[0].mxu0
      %v2312 = vadd.f32 0.0, %v2311
      %v2313 = vpop.f32.mrb[0].mxu0
      %2314 = vmatprep.mubr.bf16.mxu0 0
      %2315 = vmatmul.mubr.bf16.gmra.mrb[0].mxu0 %v2230
      %v2316 = vpop.f32.mrb[0].mxu0
      %v2317 = vadd.f32 0.0, %v2316
      %v2318 = vpop.f32.mrb[0].mxu0
      %v2319 = vpop.f32.mrb[0].mxu0
      %v2320 = vadd.f32 0.0, %v2319
      %v2321 = vpop.f32.mrb[0].mxu0
      %2322 = vmatprep.mubr.bf16.mxu0 0
      %2323 = vmatmul.mubr.bf16.gmra.mrb[0].mxu0 %v2233
      %v2324 = vpop.f32.mrb[0].mxu0
      %v2325 = vadd.f32 0.0, %v2324
      %v2326 = vpop.f32.mrb[0].mxu0
      %v2327 = vpop.f32.mrb[0].mxu0
      %v2328 = vadd.f32 0.0, %v2327
      %v2329 = vpop.f32.mrb[0].mxu0
      %2330 = vmatprep.mubr.bf16.mxu0 0
      %2331 = vmatmul.mubr.bf16.gmra.mrb[0].mxu0 %v2236
      %v2332 = vpop.f32.mrb[0].mxu0
      %v2333 = vadd.f32 0.0, %v2332
      %v2334 = vpop.f32.mrb[0].mxu0
      %v2335 = vpop.f32.mrb[0].mxu0
      %v2336 = vadd.f32 0.0, %v2335
      %v2337 = vpop.f32.mrb[0].mxu0
      %2338 = vmatprep.mubr.bf16.mxu0 0
      %2339 = vmatmul.mubr.bf16.gmra.mrb[0].mxu0 %v2239
      %v2340 = vpop.f32.mrb[0].mxu0
      %v2341 = vadd.f32 0.0, %v2340
      %v2342 = vpop.f32.mrb[0].mxu0
      %v2343 = vpop.f32.mrb[0].mxu0
      %v2344 = vadd.f32 0.0, %v2343
      %v2345 = vpop.f32.mrb[0].mxu0
      %2346 = vmatprep.mubr.bf16.mxu0 0
      %2347 = vmatmul.mubr.bf16.gmra.mrb[0].mxu0 %v2242
      %v2348 = vpop.f32.mrb[0].mxu0
      %v2349 = vadd.f32 0.0, %v2348
      %v2350 = vpop.f32.mrb[0].mxu0
      %v2351 = vpop.f32.mrb[0].mxu0
      %v2352 = vadd.f32 0.0, %v2351
      %v2353 = vpop.f32.mrb[0].mxu0
      %2354 = vmatprep.mubr.bf16.mxu0 0
      %2355 = vmatmul.mubr.bf16.gmra.mrb[0].mxu0 %v2245
      %v2356 = vpop.f32.mrb[0].mxu0
      %v2357 = vadd.f32 0.0, %v2356
      %v2358 = vpop.f32.mrb[0].mxu0
      %v2359 = vpop.f32.mrb[0].mxu0
      %v2360 = vadd.f32 0.0, %v2359
      %v2361 = vpop.f32.mrb[0].mxu0
      %2362 = vmatprep.mubr.bf16.mxu0 0
      %2363 = vmatmul.mubr.bf16.gmra.mrb[0].mxu0 %v2248
      %v2364 = vpop.f32.mrb[0].mxu0
      %v2365 = vadd.f32 0.0, %v2364
      %v2366 = vpop.f32.mrb[0].mxu0
      %v2367 = vpop.f32.mrb[0].mxu0
      %v2368 = vadd.f32 0.0, %v2367
      %v2369 = vpop.f32.mrb[0].mxu0
      %2370 = vmatprep.mubr.bf16.mxu0 0
      %2371 = vmatmul.mubr.bf16.gmra.mrb[0].mxu0 %v2251
      %v2372 = vpop.f32.mrb[0].mxu0
      %v2373 = vadd.f32 0.0, %v2372
      %v2374 = vpop.f32.mrb[0].mxu0
      %v2375 = vpop.f32.mrb[0].mxu0
      %v2376 = vadd.f32 0.0, %v2375
      %v2377 = vpop.f32.mrb[0].mxu0
      %2378 = vmatprep.mubr.bf16.mxu0 0
      %2379 = vmatmul.mubr.bf16.gmra.mrb[0].mxu0 %v2254
      %v2380 = vpop.f32.mrb[0].mxu0
      %v2381 = vadd.f32 0.0, %v2380
      %v2382 = vpop.f32.mrb[0].mxu0
      %v2383 = vpop.f32.mrb[0].mxu0
      %v2384 = vadd.f32 0.0, %v2383
      %v2385 = vpop.f32.mrb[0].mxu0
      %2386 = vmatprep.mubr.bf16.mxu0 0
      %2387 = vmatmul.mubr.bf16.gmra.mrb[0].mxu0 %v2257
      %v2388 = vpop.f32.mrb[0].mxu0
      %v2389 = vadd.f32 0.0, %v2388
      %v2390 = vpop.f32.mrb[0].mxu0
      %v2391 = vpop.f32.mrb[0].mxu0
      %v2392 = vadd.f32 0.0, %v2391
      %v2393 = vpop.f32.mrb[0].mxu0
      %2394 = vmatprep.mubr.bf16.mxu0 0
      %2395 = vmatmul.mubr.bf16.gmra.mrb[0].mxu0 %v2260
      %v2396 = vpop.f32.mrb[0].mxu0
      %v2397 = vadd.f32 0.0, %v2396
      %v2398 = vpop.f32.mrb[0].mxu0
      %v2399 = vpop.f32.mrb[0].mxu0
      %v2400 = vadd.f32 0.0, %v2399
      %v2401 = vpop.f32.mrb[0].mxu0
      %2402 = vmatprep.mubr.bf16.mxu0 0
      %2403 = vmatmul.mubr.bf16.gmra.mrb[0].mxu0 %v2263
      %v2404 = vpop.f32.mrb[0].mxu0
      %v2405 = vadd.f32 0.0, %v2404
      %v2406 = vpop.f32.mrb[0].mxu0
      %v2407 = vpop.f32.mrb[0].mxu0
      %v2408 = vadd.f32 0.0, %v2407
      %v2409 = vpop.f32.mrb[0].mxu0
      %2410 = vmatprep.mubr.bf16.mxu0 0
      %2411 = vmatmul.mubr.bf16.gmra.mrb[0].mxu0 %v2266
      %v2412 = vpop.f32.mrb[0].mxu0
      %v2413 = vadd.f32 0.0, %v2412
      %v2414 = vpop.f32.mrb[0].mxu0
      %v2415 = vpop.f32.mrb[0].mxu0
      %v2416 = vadd.f32 0.0, %v2415
      %v2417 = vpop.f32.mrb[0].mxu0
      %2418 = vmatprep.mubr.bf16.mxu0 0
      %2419 = vmatmul.mubr.bf16.gmra.mrb[0].mxu0 %v2269
      %v2420 = vpop.f32.mrb[0].mxu0
      %v2421 = vadd.f32 0.0, %v2420
      %v2422 = vpop.f32.mrb[0].mxu0
      %v2423 = vpop.f32.mrb[0].mxu0
      %v2424 = vadd.f32 0.0, %v2423
      %v2425 = vpop.f32.mrb[0].mxu0
      %2426 = vmatprep.mubr.bf16.mxu0 0
      %2427 = vmatmul.mubr.bf16.gmra.mrb[0].mxu0 %v2272
      %v2428 = vpop.f32.mrb[0].mxu0
      %v2429 = vadd.f32 0.0, %v2428
      %v2430 = vpop.f32.mrb[0].mxu0
      %v2431 = vpop.f32.mrb[0].mxu0
      %v2432 = vadd.f32 0.0, %v2431
      %v2433 = vpop.f32.mrb[0].mxu0
      %2434 = vdwg.mxu0
      %v2435 = vld [vmem:[#allocation2] sm:$0xff]
      %v2436 = vld [vmem:[#allocation2 + $0x8] sm:$0xff]
      %v2437 = vld [vmem:[#allocation2 + $0x10] sm:$0xff]
      %v2438 = vld [vmem:[#allocation2 + $0x18] sm:$0xff]
      %v2439 = vld [vmem:[#allocation2 + $0x20] sm:$0xff]
      %v2440 = vld [vmem:[#allocation2 + $0x28] sm:$0xff]
      %v2441 = vld [vmem:[#allocation2 + $0x30] sm:$0xff]
      %v2442 = vld [vmem:[#allocation2 + $0x38] sm:$0xff]
      %v2443 = vld [vmem:[#allocation2 + $0x40] sm:$0xff]
      %v2444 = vld [vmem:[#allocation2 + $0x48] sm:$0xff]
      %v2445 = vld [vmem:[#allocation2 + $0x50] sm:$0xff]
      %v2446 = vld [vmem:[#allocation2 + $0x58] sm:$0xff]
      %v2447 = vld [vmem:[#allocation2 + $0x60] sm:$0xff]
      %v2448 = vld [vmem:[#allocation2 + $0x68] sm:$0xff]
      %v2449 = vld [vmem:[#allocation2 + $0x70] sm:$0xff]
      %v2450 = vld [vmem:[#allocation2 + $0x78] sm:$0xff]
      %v2451 = vld [vmem:[#allocation2 + $0x80] sm:$0xff]
      %v2452 = vld [vmem:[#allocation2 + $0x88] sm:$0xff]
      %v2453 = vld [vmem:[#allocation2 + $0x90] sm:$0xff]
      %v2454 = vld [vmem:[#allocation2 + $0x98] sm:$0xff]
      %v2455 = vld [vmem:[#allocation2 + $0xa0] sm:$0xff]
      %v2456 = vld [vmem:[#allocation2 + $0xa8] sm:$0xff]
      %v2457 = vld [vmem:[#allocation2 + $0xb0] sm:$0xff]
      %v2458 = vld [vmem:[#allocation2 + $0xb8] sm:$0xff]
      %v2459 = vld [vmem:[#allocation2 + $0xc0] sm:$0xff]
      %v2460 = vld [vmem:[#allocation2 + $0xc8] sm:$0xff]
      %v2461 = vld [vmem:[#allocation2 + $0xd0] sm:$0xff]
      %v2462 = vld [vmem:[#allocation2 + $0xd8] sm:$0xff]
      %v2463 = vld [vmem:[#allocation2 + $0xe0] sm:$0xff]
      %v2464 = vld [vmem:[#allocation2 + $0xe8] sm:$0xff]
      %v2465 = vld [vmem:[#allocation2 + $0xf0] sm:$0xff]
      %v2466 = vld [vmem:[#allocation2 + $0xf8] sm:$0xff]
      %v2467 = vadd.f32 %v2435, %v2309
      %v2468 = vadd.f32 %v2436, %v2312
      %v2469 = vadd.f32 %v2437, %v2317
      %v2470 = vadd.f32 %v2438, %v2320
      %v2471 = vadd.f32 %v2439, %v2325
      %v2472 = vadd.f32 %v2440, %v2328
      %v2473 = vadd.f32 %v2441, %v2333
      %v2474 = vadd.f32 %v2442, %v2336
      %v2475 = vadd.f32 %v2443, %v2341
      %v2476 = vadd.f32 %v2444, %v2344
      %v2477 = vadd.f32 %v2445, %v2349
      %v2478 = vadd.f32 %v2446, %v2352
      %v2479 = vadd.f32 %v2447, %v2357
      %v2480 = vadd.f32 %v2448, %v2360
      %v2481 = vadd.f32 %v2449, %v2365
      %v2482 = vadd.f32 %v2450, %v2368
      %v2483 = vadd.f32 %v2451, %v2373
      %v2484 = vadd.f32 %v2452, %v2376
      %v2485 = vadd.f32 %v2453, %v2381
      %v2486 = vadd.f32 %v2454, %v2384
      %v2487 = vadd.f32 %v2455, %v2389
      %v2488 = vadd.f32 %v2456, %v2392
      %v2489 = vadd.f32 %v2457, %v2397
      %v2490 = vadd.f32 %v2458, %v2400
      %v2491 = vadd.f32 %v2459, %v2405
      %v2492 = vadd.f32 %v2460, %v2408
      %v2493 = vadd.f32 %v2461, %v2413
      %v2494 = vadd.f32 %v2462, %v2416
      %v2495 = vadd.f32 %v2463, %v2421
      %v2496 = vadd.f32 %v2464, %v2424
      %v2497 = vadd.f32 %v2465, %v2429
      %v2498 = vadd.f32 %v2466, %v2432
      %2499 = vst [vmem:[#allocation2] sm:$0xff] %v2467
      %2500 = vst [vmem:[#allocation2 + $0x8] sm:$0xff] %v2468
      %2501 = vst [vmem:[#allocation2 + $0x10] sm:$0xff] %v2469
      %2502 = vst [vmem:[#allocation2 + $0x18] sm:$0xff] %v2470
      %2503 = vst [vmem:[#allocation2 + $0x20] sm:$0xff] %v2471
      %2504 = vst [vmem:[#allocation2 + $0x28] sm:$0xff] %v2472
      %2505 = vst [vmem:[#allocation2 + $0x30] sm:$0xff] %v2473
      %2506 = vst [vmem:[#allocation2 + $0x38] sm:$0xff] %v2474
      %2507 = vst [vmem:[#allocation2 + $0x40] sm:$0xff] %v2475
      %2508 = vst [vmem:[#allocation2 + $0x48] sm:$0xff] %v2476
      %2509 = vst [vmem:[#allocation2 + $0x50] sm:$0xff] %v2477
      %2510 = vst [vmem:[#allocation2 + $0x58] sm:$0xff] %v2478
      %2511 = vst [vmem:[#allocation2 + $0x60] sm:$0xff] %v2479
      %2512 = vst [vmem:[#allocation2 + $0x68] sm:$0xff] %v2480
      %2513 = vst [vmem:[#allocation2 + $0x70] sm:$0xff] %v2481
      %2514 = vst [vmem:[#allocation2 + $0x78] sm:$0xff] %v2482
      %2515 = vst [vmem:[#allocation2 + $0x80] sm:$0xff] %v2483
      %2516 = vst [vmem:[#allocation2 + $0x88] sm:$0xff] %v2484
      %2517 = vst [vmem:[#allocation2 + $0x90] sm:$0xff] %v2485
      %2518 = vst [vmem:[#allocation2 + $0x98] sm:$0xff] %v2486
      %2519 = vst [vmem:[#allocation2 + $0xa0] sm:$0xff] %v2487
      %2520 = vst [vmem:[#allocation2 + $0xa8] sm:$0xff] %v2488
      %2521 = vst [vmem:[#allocation2 + $0xb0] sm:$0xff] %v2489
      %2522 = vst [vmem:[#allocation2 + $0xb8] sm:$0xff] %v2490
      %2523 = vst [vmem:[#allocation2 + $0xc0] sm:$0xff] %v2491
      %2524 = vst [vmem:[#allocation2 + $0xc8] sm:$0xff] %v2492
      %2525 = vst [vmem:[#allocation2 + $0xd0] sm:$0xff] %v2493
      %2526 = vst [vmem:[#allocation2 + $0xd8] sm:$0xff] %v2494
      %2527 = vst [vmem:[#allocation2 + $0xe0] sm:$0xff] %v2495
      %2528 = vst [vmem:[#allocation2 + $0xe8] sm:$0xff] %v2496
      %2529 = vst [vmem:[#allocation2 + $0xf0] sm:$0xff] %v2497
      %2530 = vst [vmem:[#allocation2 + $0xf8] sm:$0xff] %v2498
      %v2531 = vld [vmem:[%s2080] sm:$0xf]
      %v2532 = vld [vmem:[%s2080 + $0x4] sm:$0xf]
      %v2533 = vld [vmem:[%s2080 + $0x8] sm:$0x1]
      %v2534 = vld [vmem:[%s2080 + $0xc] sm:$0xf]
      %v2535 = vld [vmem:[%s2080 + $0x10] sm:$0xf]
      %v2536 = vld [vmem:[%s2080 + $0x14] sm:$0x1]
      %v2537 = vld [vmem:[%s2080 + $0x18] sm:$0xf]
      %v2538 = vld [vmem:[%s2080 + $0x1c] sm:$0xf]
      %v2539 = vld [vmem:[%s2080 + $0x20] sm:$0x1]
      %v2540 = vld [vmem:[%s2080 + $0x24] sm:$0xf]
      %v2541 = vld [vmem:[%s2080 + $0x28] sm:$0xf]
      %v2542 = vld [vmem:[%s2080 + $0x2c] sm:$0x1]
      %v2543 = vld [vmem:[%s2080 + $0x30] sm:$0xf]
      %v2544 = vld [vmem:[%s2080 + $0x34] sm:$0xf]
      %v2545 = vld [vmem:[%s2080 + $0x38] sm:$0x1]
      %v2546 = vld [vmem:[%s2080 + $0x3c] sm:$0xf]
      %v2547 = vld [vmem:[%s2080 + $0x40] sm:$0xf]
      %v2548 = vld [vmem:[%s2080 + $0x44] sm:$0x1]
      %v2549 = vld [vmem:[%s2080 + $0x48] sm:$0xf]
      %v2550 = vld [vmem:[%s2080 + $0x4c] sm:$0xf]
      %v2551 = vld [vmem:[%s2080 + $0x50] sm:$0x1]
      %v2552 = vld [vmem:[%s2080 + $0x54] sm:$0xf]
      %v2553 = vld [vmem:[%s2080 + $0x58] sm:$0xf]
      %v2554 = vld [vmem:[%s2080 + $0x5c] sm:$0x1]
      %v2555 = vld [vmem:[%s2080 + $0x60] sm:$0xf]
      %v2556 = vld [vmem:[%s2080 + $0x64] sm:$0xf]
      %v2557 = vld [vmem:[%s2080 + $0x68] sm:$0x1]
      %v2558 = vld [vmem:[%s2080 + $0x6c] sm:$0xf]
      %v2559 = vld [vmem:[%s2080 + $0x70] sm:$0xf]
      %v2560 = vld [vmem:[%s2080 + $0x74] sm:$0x1]
      %v2561 = vld [vmem:[%s2080 + $0x78] sm:$0xf]
      %v2562 = vld [vmem:[%s2080 + $0x7c] sm:$0xf]
      %v2563 = vld [vmem:[%s2080 + $0x80] sm:$0x1]
      %v2564 = vld [vmem:[%s2080 + $0x84] sm:$0xf]
      %v2565 = vld [vmem:[%s2080 + $0x88] sm:$0xf]
      %v2566 = vld [vmem:[%s2080 + $0x8c] sm:$0x1]
      %v2567 = vld [vmem:[%s2080 + $0x90] sm:$0xf]
      %v2568 = vld [vmem:[%s2080 + $0x94] sm:$0xf]
      %v2569 = vld [vmem:[%s2080 + $0x98] sm:$0x1]
      %v2570 = vld [vmem:[%s2080 + $0x9c] sm:$0xf]
      %v2571 = vld [vmem:[%s2080 + $0xa0] sm:$0xf]
      %v2572 = vld [vmem:[%s2080 + $0xa4] sm:$0x1]
      %v2573 = vld [vmem:[%s2080 + $0xa8] sm:$0xf]
      %v2574 = vld [vmem:[%s2080 + $0xac] sm:$0xf]
      %v2575 = vld [vmem:[%s2080 + $0xb0] sm:$0x1]
      %v2576 = vld [vmem:[%s2080 + $0xb4] sm:$0xf]
      %v2577 = vld [vmem:[%s2080 + $0xb8] sm:$0xf]
      %v2578 = vld [vmem:[%s2080 + $0xbc] sm:$0x1]
      %v2580 = vshrl.u32 %v2531, 16
      %v2582 = vrot.slane %v2580, 4
      %v2583 = vshll.u32 %v2531, 16
      %v2585 = vrot.slane %v2583, 5
      %v2586 = vor.u32 %v2582, %v2585
      %v2587 = vrot.slane %v2586, 4
      %v2589 = vshll.u32 %v2532, 16
      %v2591 = vrot.slane %v2589, 5
      %v2592 = vsel %vm709, %v2587, %v2591
      %v2593 = vshrl.u32 %v2532, 16
      %v2595 = vrot.slane %v2593, 4
      %v2596 = vor.u32 %v2595, %v2591
      %v2597 = vrot.slane %v2596, 4
      %v2599 = vshll.u32 %v2533, 16
      %v2601 = vrot.slane %v2599, 5
      %v2602 = vsel %vm709, %v2597, %v2601
      %v2604 = vshrl.u32 %v2534, 16
      %v2606 = vrot.slane %v2604, 4
      %v2607 = vshll.u32 %v2534, 16
      %v2609 = vrot.slane %v2607, 5
      %v2610 = vor.u32 %v2606, %v2609
      %v2611 = vrot.slane %v2610, 4
      %v2613 = vshll.u32 %v2535, 16
      %v2615 = vrot.slane %v2613, 5
      %v2616 = vsel %vm709, %v2611, %v2615
      %v2617 = vshrl.u32 %v2535, 16
      %v2619 = vrot.slane %v2617, 4
      %v2620 = vor.u32 %v2619, %v2615
      %v2621 = vrot.slane %v2620, 4
      %v2623 = vshll.u32 %v2536, 16
      %v2625 = vrot.slane %v2623, 5
      %v2626 = vsel %vm709, %v2621, %v2625
      %v2628 = vshrl.u32 %v2537, 16
      %v2630 = vrot.slane %v2628, 4
      %v2631 = vshll.u32 %v2537, 16
      %v2633 = vrot.slane %v2631, 5
      %v2634 = vor.u32 %v2630, %v2633
      %v2635 = vrot.slane %v2634, 4
      %v2637 = vshll.u32 %v2538, 16
      %v2639 = vrot.slane %v2637, 5
      %v2640 = vsel %vm709, %v2635, %v2639
      %v2641 = vshrl.u32 %v2538, 16
      %v2643 = vrot.slane %v2641, 4
      %v2644 = vor.u32 %v2643, %v2639
      %v2645 = vrot.slane %v2644, 4
      %v2647 = vshll.u32 %v2539, 16
      %v2649 = vrot.slane %v2647, 5
      %v2650 = vsel %vm709, %v2645, %v2649
      %v2652 = vshrl.u32 %v2540, 16
      %v2654 = vrot.slane %v2652, 4
      %v2655 = vshll.u32 %v2540, 16
      %v2657 = vrot.slane %v2655, 5
      %v2658 = vor.u32 %v2654, %v2657
      %v2659 = vrot.slane %v2658, 4
      %v2661 = vshll.u32 %v2541, 16
      %v2663 = vrot.slane %v2661, 5
      %v2664 = vsel %vm709, %v2659, %v2663
      %v2665 = vshrl.u32 %v2541, 16
      %v2667 = vrot.slane %v2665, 4
      %v2668 = vor.u32 %v2667, %v2663
      %v2669 = vrot.slane %v2668, 4
      %v2671 = vshll.u32 %v2542, 16
      %v2673 = vrot.slane %v2671, 5
      %v2674 = vsel %vm709, %v2669, %v2673
      %v2676 = vshrl.u32 %v2543, 16
      %v2678 = vrot.slane %v2676, 4
      %v2679 = vshll.u32 %v2543, 16
      %v2681 = vrot.slane %v2679, 5
      %v2682 = vor.u32 %v2678, %v2681
      %v2683 = vrot.slane %v2682, 4
      %v2685 = vshll.u32 %v2544, 16
      %v2687 = vrot.slane %v2685, 5
      %v2688 = vsel %vm709, %v2683, %v2687
      %v2689 = vshrl.u32 %v2544, 16
      %v2691 = vrot.slane %v2689, 4
      %v2692 = vor.u32 %v2691, %v2687
      %v2693 = vrot.slane %v2692, 4
      %v2695 = vshll.u32 %v2545, 16
      %v2697 = vrot.slane %v2695, 5
      %v2698 = vsel %vm709, %v2693, %v2697
      %v2700 = vshrl.u32 %v2546, 16
      %v2702 = vrot.slane %v2700, 4
      %v2703 = vshll.u32 %v2546, 16
      %v2705 = vrot.slane %v2703, 5
      %v2706 = vor.u32 %v2702, %v2705
      %v2707 = vrot.slane %v2706, 4
      %v2709 = vshll.u32 %v2547, 16
      %v2711 = vrot.slane %v2709, 5
      %v2712 = vsel %vm709, %v2707, %v2711
      %v2713 = vshrl.u32 %v2547, 16
      %v2715 = vrot.slane %v2713, 4
      %v2716 = vor.u32 %v2715, %v2711
      %v2717 = vrot.slane %v2716, 4
      %v2719 = vshll.u32 %v2548, 16
      %v2721 = vrot.slane %v2719, 5
      %v2722 = vsel %vm709, %v2717, %v2721
      %v2724 = vshrl.u32 %v2549, 16
      %v2726 = vrot.slane %v2724, 4
      %v2727 = vshll.u32 %v2549, 16
      %v2729 = vrot.slane %v2727, 5
      %v2730 = vor.u32 %v2726, %v2729
      %v2731 = vrot.slane %v2730, 4
      %v2733 = vshll.u32 %v2550, 16
      %v2735 = vrot.slane %v2733, 5
      %v2736 = vsel %vm709, %v2731, %v2735
      %v2737 = vshrl.u32 %v2550, 16
      %v2739 = vrot.slane %v2737, 4
      %v2740 = vor.u32 %v2739, %v2735
      %v2741 = vrot.slane %v2740, 4
      %v2743 = vshll.u32 %v2551, 16
      %v2745 = vrot.slane %v2743, 5
      %v2746 = vsel %vm709, %v2741, %v2745
      %v2748 = vshrl.u32 %v2552, 16
      %v2750 = vrot.slane %v2748, 4
      %v2751 = vshll.u32 %v2552, 16
      %v2753 = vrot.slane %v2751, 5
      %v2754 = vor.u32 %v2750, %v2753
      %v2755 = vrot.slane %v2754, 4
      %v2757 = vshll.u32 %v2553, 16
      %v2759 = vrot.slane %v2757, 5
      %v2760 = vsel %vm709, %v2755, %v2759
      %v2761 = vshrl.u32 %v2553, 16
      %v2763 = vrot.slane %v2761, 4
      %v2764 = vor.u32 %v2763, %v2759
      %v2765 = vrot.slane %v2764, 4
      %v2767 = vshll.u32 %v2554, 16
      %v2769 = vrot.slane %v2767, 5
      %v2770 = vsel %vm709, %v2765, %v2769
      %v2772 = vshrl.u32 %v2555, 16
      %v2774 = vrot.slane %v2772, 4
      %v2775 = vshll.u32 %v2555, 16
      %v2777 = vrot.slane %v2775, 5
      %v2778 = vor.u32 %v2774, %v2777
      %v2779 = vrot.slane %v2778, 4
      %v2781 = vshll.u32 %v2556, 16
      %v2783 = vrot.slane %v2781, 5
      %v2784 = vsel %vm709, %v2779, %v2783
      %v2785 = vshrl.u32 %v2556, 16
      %v2787 = vrot.slane %v2785, 4
      %v2788 = vor.u32 %v2787, %v2783
      %v2789 = vrot.slane %v2788, 4
      %v2791 = vshll.u32 %v2557, 16
      %v2793 = vrot.slane %v2791, 5
      %v2794 = vsel %vm709, %v2789, %v2793
      %v2796 = vshrl.u32 %v2558, 16
      %v2798 = vrot.slane %v2796, 4
      %v2799 = vshll.u32 %v2558, 16
      %v2801 = vrot.slane %v2799, 5
      %v2802 = vor.u32 %v2798, %v2801
      %v2803 = vrot.slane %v2802, 4
      %v2805 = vshll.u32 %v2559, 16
      %v2807 = vrot.slane %v2805, 5
      %v2808 = vsel %vm709, %v2803, %v2807
      %v2809 = vshrl.u32 %v2559, 16
      %v2811 = vrot.slane %v2809, 4
      %v2812 = vor.u32 %v2811, %v2807
      %v2813 = vrot.slane %v2812, 4
      %v2815 = vshll.u32 %v2560, 16
      %v2817 = vrot.slane %v2815, 5
      %v2818 = vsel %vm709, %v2813, %v2817
      %v2820 = vshrl.u32 %v2561, 16
      %v2822 = vrot.slane %v2820, 4
      %v2823 = vshll.u32 %v2561, 16
      %v2825 = vrot.slane %v2823, 5
      %v2826 = vor.u32 %v2822, %v2825
      %v2827 = vrot.slane %v2826, 4
      %v2829 = vshll.u32 %v2562, 16
      %v2831 = vrot.slane %v2829, 5
      %v2832 = vsel %vm709, %v2827, %v2831
      %v2833 = vshrl.u32 %v2562, 16
      %v2835 = vrot.slane %v2833, 4
      %v2836 = vor.u32 %v2835, %v2831
      %v2837 = vrot.slane %v2836, 4
      %v2839 = vshll.u32 %v2563, 16
      %v2841 = vrot.slane %v2839, 5
      %v2842 = vsel %vm709, %v2837, %v2841
      %v2844 = vshrl.u32 %v2564, 16
      %v2846 = vrot.slane %v2844, 4
      %v2847 = vshll.u32 %v2564, 16
      %v2849 = vrot.slane %v2847, 5
      %v2850 = vor.u32 %v2846, %v2849
      %v2851 = vrot.slane %v2850, 4
      %v2853 = vshll.u32 %v2565, 16
      %v2855 = vrot.slane %v2853, 5
      %v2856 = vsel %vm709, %v2851, %v2855
      %v2857 = vshrl.u32 %v2565, 16
      %v2859 = vrot.slane %v2857, 4
      %v2860 = vor.u32 %v2859, %v2855
      %v2861 = vrot.slane %v2860, 4
      %v2863 = vshll.u32 %v2566, 16
      %v2865 = vrot.slane %v2863, 5
      %v2866 = vsel %vm709, %v2861, %v2865
      %v2868 = vshrl.u32 %v2567, 16
      %v2870 = vrot.slane %v2868, 4
      %v2871 = vshll.u32 %v2567, 16
      %v2873 = vrot.slane %v2871, 5
      %v2874 = vor.u32 %v2870, %v2873
      %v2875 = vrot.slane %v2874, 4
      %v2877 = vshll.u32 %v2568, 16
      %v2879 = vrot.slane %v2877, 5
      %v2880 = vsel %vm709, %v2875, %v2879
      %v2881 = vshrl.u32 %v2568, 16
      %v2883 = vrot.slane %v2881, 4
      %v2884 = vor.u32 %v2883, %v2879
      %v2885 = vrot.slane %v2884, 4
      %v2887 = vshll.u32 %v2569, 16
      %v2889 = vrot.slane %v2887, 5
      %v2890 = vsel %vm709, %v2885, %v2889
      %v2892 = vshrl.u32 %v2570, 16
      %v2894 = vrot.slane %v2892, 4
      %v2895 = vshll.u32 %v2570, 16
      %v2897 = vrot.slane %v2895, 5
      %v2898 = vor.u32 %v2894, %v2897
      %v2899 = vrot.slane %v2898, 4
      %v2901 = vshll.u32 %v2571, 16
      %v2903 = vrot.slane %v2901, 5
      %v2904 = vsel %vm709, %v2899, %v2903
      %v2905 = vshrl.u32 %v2571, 16
      %v2907 = vrot.slane %v2905, 4
      %v2908 = vor.u32 %v2907, %v2903
      %v2909 = vrot.slane %v2908, 4
      %v2911 = vshll.u32 %v2572, 16
      %v2913 = vrot.slane %v2911, 5
      %v2914 = vsel %vm709, %v2909, %v2913
      %v2916 = vshrl.u32 %v2573, 16
      %v2918 = vrot.slane %v2916, 4
      %v2919 = vshll.u32 %v2573, 16
      %v2921 = vrot.slane %v2919, 5
      %v2922 = vor.u32 %v2918, %v2921
      %v2923 = vrot.slane %v2922, 4
      %v2925 = vshll.u32 %v2574, 16
      %v2927 = vrot.slane %v2925, 5
      %v2928 = vsel %vm709, %v2923, %v2927
      %v2929 = vshrl.u32 %v2574, 16
      %v2931 = vrot.slane %v2929, 4
      %v2932 = vor.u32 %v2931, %v2927
      %v2933 = vrot.slane %v2932, 4
      %v2935 = vshll.u32 %v2575, 16
      %v2937 = vrot.slane %v2935, 5
      %v2938 = vsel %vm709, %v2933, %v2937
      %v2940 = vshrl.u32 %v2576, 16
      %v2942 = vrot.slane %v2940, 4
      %v2943 = vshll.u32 %v2576, 16
      %v2945 = vrot.slane %v2943, 5
      %v2946 = vor.u32 %v2942, %v2945
      %v2947 = vrot.slane %v2946, 4
      %v2949 = vshll.u32 %v2577, 16
      %v2951 = vrot.slane %v2949, 5
      %v2952 = vsel %vm709, %v2947, %v2951
      %v2953 = vshrl.u32 %v2577, 16
      %v2955 = vrot.slane %v2953, 4
      %v2956 = vor.u32 %v2955, %v2951
      %v2957 = vrot.slane %v2956, 4
      %v2959 = vshll.u32 %v2578, 16
      %v2961 = vrot.slane %v2959, 5
      %v2962 = vsel %vm709, %v2957, %v2961
      %s2963 = scalar_lea.vmem %s1, 128
      %v2964 = vld [vmem:[%s2963] sm:$0xf]
      %v2965 = vld [vmem:[%s2963 + $0x4] sm:$0xf]
      %v2966 = vld [vmem:[%s2963 + $0x8] sm:$0xf]
      %v2967 = vld [vmem:[%s2963 + $0xc] sm:$0xf]
      %v2968 = vld [vmem:[%s2963 + $0x10] sm:$0xf]
      %v2969 = vld [vmem:[%s2963 + $0x14] sm:$0xf]
      %v2970 = vld [vmem:[%s2963 + $0x18] sm:$0xf]
      %v2971 = vld [vmem:[%s2963 + $0x1c] sm:$0xf]
      %v2972 = vunpack.c.l.b16 %v2592
      %v2973 = vunpack.c.l.b16 %v2602
      %v2974 = vunpack.c.l.b16 %v2616
      %v2975 = vunpack.c.l.b16 %v2626
      %v2976 = vunpack.c.l.b16 %v2640
      %v2977 = vunpack.c.l.b16 %v2650
      %v2978 = vunpack.c.l.b16 %v2664
      %v2979 = vunpack.c.l.b16 %v2674
      %v2980 = vunpack.c.l.b16 %v2688
      %v2981 = vunpack.c.l.b16 %v2698
      %v2982 = vunpack.c.l.b16 %v2712
      %v2983 = vunpack.c.l.b16 %v2722
      %v2984 = vunpack.c.l.b16 %v2736
      %v2985 = vunpack.c.l.b16 %v2746
      %v2986 = vunpack.c.l.b16 %v2760
      %v2987 = vunpack.c.l.b16 %v2770
      %v2988 = vunpack.c.l.b16 %v2784
      %v2989 = vunpack.c.l.b16 %v2794
      %v2990 = vunpack.c.l.b16 %v2808
      %v2991 = vunpack.c.l.b16 %v2818
      %v2992 = vunpack.c.l.b16 %v2832
      %v2993 = vunpack.c.l.b16 %v2842
      %v2994 = vunpack.c.l.b16 %v2856
      %v2995 = vunpack.c.l.b16 %v2866
      %v2996 = vunpack.c.l.b16 %v2880
      %v2997 = vunpack.c.l.b16 %v2890
      %v2998 = vunpack.c.l.b16 %v2904
      %v2999 = vunpack.c.l.b16 %v2914
      %v3000 = vunpack.c.l.b16 %v2928
      %v3001 = vunpack.c.l.b16 %v2938
      %v3002 = vunpack.c.l.b16 %v2952
      %v3003 = vunpack.c.l.b16 %v2962
      %v3004 = vpack.c.b16 %v2973, %v2972
      %v3005 = vpack.c.b16 %v2975, %v2974
      %v3006 = vpack.c.b16 %v2977, %v2976
      %v3007 = vpack.c.b16 %v2979, %v2978
      %v3008 = vpack.c.b16 %v2981, %v2980
      %v3009 = vpack.c.b16 %v2983, %v2982
      %v3010 = vpack.c.b16 %v2985, %v2984
      %v3011 = vpack.c.b16 %v2987, %v2986
      %v3012 = vpack.c.b16 %v2989, %v2988
      %v3013 = vpack.c.b16 %v2991, %v2990
      %v3014 = vpack.c.b16 %v2993, %v2992
      %v3015 = vpack.c.b16 %v2995, %v2994
      %v3016 = vpack.c.b16 %v2997, %v2996
      %v3017 = vpack.c.b16 %v2999, %v2998
      %v3018 = vpack.c.b16 %v3001, %v3000
      %v3019 = vpack.c.b16 %v3003, %v3002
      %v3028 = vunpack.c.l.b16 %v2964
      %v3029 = vunpack.c.l.b16 %v2965
      %v3030 = vunpack.c.l.b16 %v2966
      %v3031 = vunpack.c.l.b16 %v2967
      %v3032 = vunpack.c.l.b16 %v2968
      %v3033 = vunpack.c.l.b16 %v2969
      %v3034 = vunpack.c.l.b16 %v2970
      %v3035 = vunpack.c.l.b16 %v2971
      %v3036 = vpack.c.b16 %v3029, %v3028
      %v3037 = vpack.c.b16 %v3031, %v3030
      %v3038 = vpack.c.b16 %v3033, %v3032
      %v3039 = vpack.c.b16 %v3035, %v3034
      %v3045 = vsel %vm417, %v3004, 0
      %v3048 = vsel %vm417, %v3005, 0
      %v3051 = vsel %vm417, %v3006, 0
      %v3054 = vsel %vm417, %v3007, 0
      %v3057 = vsel %vm417, %v3008, 0
      %v3060 = vsel %vm417, %v3009, 0
      %v3063 = vsel %vm417, %v3010, 0
      %v3066 = vsel %vm417, %v3011, 0
      %v3069 = vsel %vm417, %v3012, 0
      %v3072 = vsel %vm417, %v3013, 0
      %v3075 = vsel %vm417, %v3014, 0
      %v3078 = vsel %vm417, %v3015, 0
      %v3081 = vsel %vm417, %v3016, 0
      %v3084 = vsel %vm417, %v3017, 0
      %v3087 = vsel %vm417, %v3018, 0
      %v3090 = vsel %vm417, %v3019, 0
      %3092 = vmatprep.subr.bf16.mxu0 0
      %3093 = vmatpush1.bf16.msra.mxu0 %v3036
      %3094 = vmatprep.subr.bf16.mxu0 0
      %3095 = vmatpush1.bf16.msra.mxu0 %v3037
      %3096 = vmatprep.subr.bf16.mxu0 0
      %3097 = vmatpush1.bf16.msra.mxu0 %v3038
      %3098 = vmatprep.subr.bf16.mxu0 0
      %3099 = vmatpush1.bf16.msra.mxu0 %v3039
      %3100 = vmatprep.subr.bf16.mxu0 0
      %3101 = vmatpush1.bf16.msra.mxu0 0
      %3102 = vmatprep.subr.bf16.mxu0 0
      %3103 = vmatpush1.bf16.msra.mxu0 0
      %3104 = vmatprep.subr.bf16.mxu0 0
      %3105 = vmatpush1.bf16.msra.mxu0 0
      %3106 = vmatprep.subr.bf16.mxu0 0
      %3107 = vmatpush1.bf16.msra.mxu0 0
      %3108 = vmatprep.subr.bf16.mxu0 0
      %3109 = vmatpush1.bf16.msra.mxu0 0
      %3110 = vmatprep.subr.bf16.mxu0 0
      %3111 = vmatpush1.bf16.msra.mxu0 0
      %3112 = vmatprep.subr.bf16.mxu0 0
      %3113 = vmatpush1.bf16.msra.mxu0 0
      %3114 = vmatprep.subr.bf16.mxu0 0
      %3115 = vmatpush1.bf16.msra.mxu0 0
      %3116 = vmatprep.subr.bf16.mxu0 0
      %3117 = vmatpush1.bf16.msra.mxu0 0
      %3118 = vmatprep.subr.bf16.mxu0 0
      %3119 = vmatpush1.bf16.msra.mxu0 0
      %3120 = vmatprep.subr.bf16.mxu0 0
      %3121 = vmatpush1.bf16.msra.mxu0 0
      %3122 = vmatprep.subr.bf16.mxu0 0
      %3123 = vmatpush1.bf16.msra.mxu0 0
      %3124 = vmatprep.mubr.bf16.mxu0 0
      %3125 = vmatmul.mubr.bf16.gmra.mrb[0].mxu0 %v3045
      %v3126 = vpop.f32.mrb[0].mxu0
      %v3127 = vadd.f32 0.0, %v3126
      %v3128 = vpop.f32.mrb[0].mxu0
      %v3129 = vpop.f32.mrb[0].mxu0
      %v3130 = vadd.f32 0.0, %v3129
      %v3131 = vpop.f32.mrb[0].mxu0
      %3132 = vmatprep.mubr.bf16.mxu0 0
      %3133 = vmatmul.mubr.bf16.gmra.mrb[0].mxu0 %v3048
      %v3134 = vpop.f32.mrb[0].mxu0
      %v3135 = vadd.f32 0.0, %v3134
      %v3136 = vpop.f32.mrb[0].mxu0
      %v3137 = vpop.f32.mrb[0].mxu0
      %v3138 = vadd.f32 0.0, %v3137
      %v3139 = vpop.f32.mrb[0].mxu0
      %3140 = vmatprep.mubr.bf16.mxu0 0
      %3141 = vmatmul.mubr.bf16.gmra.mrb[0].mxu0 %v3051
      %v3142 = vpop.f32.mrb[0].mxu0
      %v3143 = vadd.f32 0.0, %v3142
      %v3144 = vpop.f32.mrb[0].mxu0
      %v3145 = vpop.f32.mrb[0].mxu0
      %v3146 = vadd.f32 0.0, %v3145
      %v3147 = vpop.f32.mrb[0].mxu0
      %3148 = vmatprep.mubr.bf16.mxu0 0
      %3149 = vmatmul.mubr.bf16.gmra.mrb[0].mxu0 %v3054
      %v3150 = vpop.f32.mrb[0].mxu0
      %v3151 = vadd.f32 0.0, %v3150
      %v3152 = vpop.f32.mrb[0].mxu0
      %v3153 = vpop.f32.mrb[0].mxu0
      %v3154 = vadd.f32 0.0, %v3153
      %v3155 = vpop.f32.mrb[0].mxu0
      %3156 = vmatprep.mubr.bf16.mxu0 0
      %3157 = vmatmul.mubr.bf16.gmra.mrb[0].mxu0 %v3057
      %v3158 = vpop.f32.mrb[0].mxu0
      %v3159 = vadd.f32 0.0, %v3158
      %v3160 = vpop.f32.mrb[0].mxu0
      %v3161 = vpop.f32.mrb[0].mxu0
      %v3162 = vadd.f32 0.0, %v3161
      %v3163 = vpop.f32.mrb[0].mxu0
      %3164 = vmatprep.mubr.bf16.mxu0 0
      %3165 = vmatmul.mubr.bf16.gmra.mrb[0].mxu0 %v3060
      %v3166 = vpop.f32.mrb[0].mxu0
      %v3167 = vadd.f32 0.0, %v3166
      %v3168 = vpop.f32.mrb[0].mxu0
      %v3169 = vpop.f32.mrb[0].mxu0
      %v3170 = vadd.f32 0.0, %v3169
      %v3171 = vpop.f32.mrb[0].mxu0
      %3172 = vmatprep.mubr.bf16.mxu0 0
      %3173 = vmatmul.mubr.bf16.gmra.mrb[0].mxu0 %v3063
      %v3174 = vpop.f32.mrb[0].mxu0
      %v3175 = vadd.f32 0.0, %v3174
      %v3176 = vpop.f32.mrb[0].mxu0
      %v3177 = vpop.f32.mrb[0].mxu0
      %v3178 = vadd.f32 0.0, %v3177
      %v3179 = vpop.f32.mrb[0].mxu0
      %3180 = vmatprep.mubr.bf16.mxu0 0
      %3181 = vmatmul.mubr.bf16.gmra.mrb[0].mxu0 %v3066
      %v3182 = vpop.f32.mrb[0].mxu0
      %v3183 = vadd.f32 0.0, %v3182
      %v3184 = vpop.f32.mrb[0].mxu0
      %v3185 = vpop.f32.mrb[0].mxu0
      %v3186 = vadd.f32 0.0, %v3185
      %v3187 = vpop.f32.mrb[0].mxu0
      %3188 = vmatprep.mubr.bf16.mxu0 0
      %3189 = vmatmul.mubr.bf16.gmra.mrb[0].mxu0 %v3069
      %v3190 = vpop.f32.mrb[0].mxu0
      %v3191 = vadd.f32 0.0, %v3190
      %v3192 = vpop.f32.mrb[0].mxu0
      %v3193 = vpop.f32.mrb[0].mxu0
      %v3194 = vadd.f32 0.0, %v3193
      %v3195 = vpop.f32.mrb[0].mxu0
      %3196 = vmatprep.mubr.bf16.mxu0 0
      %3197 = vmatmul.mubr.bf16.gmra.mrb[0].mxu0 %v3072
      %v3198 = vpop.f32.mrb[0].mxu0
      %v3199 = vadd.f32 0.0, %v3198
      %v3200 = vpop.f32.mrb[0].mxu0
      %v3201 = vpop.f32.mrb[0].mxu0
      %v3202 = vadd.f32 0.0, %v3201
      %v3203 = vpop.f32.mrb[0].mxu0
      %3204 = vmatprep.mubr.bf16.mxu0 0
      %3205 = vmatmul.mubr.bf16.gmra.mrb[0].mxu0 %v3075
      %v3206 = vpop.f32.mrb[0].mxu0
      %v3207 = vadd.f32 0.0, %v3206
      %v3208 = vpop.f32.mrb[0].mxu0
      %v3209 = vpop.f32.mrb[0].mxu0
      %v3210 = vadd.f32 0.0, %v3209
      %v3211 = vpop.f32.mrb[0].mxu0
      %3212 = vmatprep.mubr.bf16.mxu0 0
      %3213 = vmatmul.mubr.bf16.gmra.mrb[0].mxu0 %v3078
      %v3214 = vpop.f32.mrb[0].mxu0
      %v3215 = vadd.f32 0.0, %v3214
      %v3216 = vpop.f32.mrb[0].mxu0
      %v3217 = vpop.f32.mrb[0].mxu0
      %v3218 = vadd.f32 0.0, %v3217
      %v3219 = vpop.f32.mrb[0].mxu0
      %3220 = vmatprep.mubr.bf16.mxu0 0
      %3221 = vmatmul.mubr.bf16.gmra.mrb[0].mxu0 %v3081
      %v3222 = vpop.f32.mrb[0].mxu0
      %v3223 = vadd.f32 0.0, %v3222
      %v3224 = vpop.f32.mrb[0].mxu0
      %v3225 = vpop.f32.mrb[0].mxu0
      %v3226 = vadd.f32 0.0, %v3225
      %v3227 = vpop.f32.mrb[0].mxu0
      %3228 = vmatprep.mubr.bf16.mxu0 0
      %3229 = vmatmul.mubr.bf16.gmra.mrb[0].mxu0 %v3084
      %v3230 = vpop.f32.mrb[0].mxu0
      %v3231 = vadd.f32 0.0, %v3230
      %v3232 = vpop.f32.mrb[0].mxu0
      %v3233 = vpop.f32.mrb[0].mxu0
      %v3234 = vadd.f32 0.0, %v3233
      %v3235 = vpop.f32.mrb[0].mxu0
      %3236 = vmatprep.mubr.bf16.mxu0 0
      %3237 = vmatmul.mubr.bf16.gmra.mrb[0].mxu0 %v3087
      %v3238 = vpop.f32.mrb[0].mxu0
      %v3239 = vadd.f32 0.0, %v3238
      %v3240 = vpop.f32.mrb[0].mxu0
      %v3241 = vpop.f32.mrb[0].mxu0
      %v3242 = vadd.f32 0.0, %v3241
      %v3243 = vpop.f32.mrb[0].mxu0
      %3244 = vmatprep.mubr.bf16.mxu0 0
      %3245 = vmatmul.mubr.bf16.gmra.mrb[0].mxu0 %v3090
      %v3246 = vpop.f32.mrb[0].mxu0
      %v3247 = vadd.f32 0.0, %v3246
      %v3248 = vpop.f32.mrb[0].mxu0
      %v3249 = vpop.f32.mrb[0].mxu0
      %v3250 = vadd.f32 0.0, %v3249
      %v3251 = vpop.f32.mrb[0].mxu0
      %3252 = vdwg.mxu0
      %v3253 = vld [vmem:[#allocation2] sm:$0xff]
      %v3254 = vld [vmem:[#allocation2 + $0x8] sm:$0xff]
      %v3255 = vld [vmem:[#allocation2 + $0x10] sm:$0xff]
      %v3256 = vld [vmem:[#allocation2 + $0x18] sm:$0xff]
      %v3257 = vld [vmem:[#allocation2 + $0x20] sm:$0xff]
      %v3258 = vld [vmem:[#allocation2 + $0x28] sm:$0xff]
      %v3259 = vld [vmem:[#allocation2 + $0x30] sm:$0xff]
      %v3260 = vld [vmem:[#allocation2 + $0x38] sm:$0xff]
      %v3261 = vld [vmem:[#allocation2 + $0x40] sm:$0xff]
      %v3262 = vld [vmem:[#allocation2 + $0x48] sm:$0xff]
      %v3263 = vld [vmem:[#allocation2 + $0x50] sm:$0xff]
      %v3264 = vld [vmem:[#allocation2 + $0x58] sm:$0xff]
      %v3265 = vld [vmem:[#allocation2 + $0x60] sm:$0xff]
      %v3266 = vld [vmem:[#allocation2 + $0x68] sm:$0xff]
      %v3267 = vld [vmem:[#allocation2 + $0x70] sm:$0xff]
      %v3268 = vld [vmem:[#allocation2 + $0x78] sm:$0xff]
      %v3269 = vld [vmem:[#allocation2 + $0x80] sm:$0xff]
      %v3270 = vld [vmem:[#allocation2 + $0x88] sm:$0xff]
      %v3271 = vld [vmem:[#allocation2 + $0x90] sm:$0xff]
      %v3272 = vld [vmem:[#allocation2 + $0x98] sm:$0xff]
      %v3273 = vld [vmem:[#allocation2 + $0xa0] sm:$0xff]
      %v3274 = vld [vmem:[#allocation2 + $0xa8] sm:$0xff]
      %v3275 = vld [vmem:[#allocation2 + $0xb0] sm:$0xff]
      %v3276 = vld [vmem:[#allocation2 + $0xb8] sm:$0xff]
      %v3277 = vld [vmem:[#allocation2 + $0xc0] sm:$0xff]
      %v3278 = vld [vmem:[#allocation2 + $0xc8] sm:$0xff]
      %v3279 = vld [vmem:[#allocation2 + $0xd0] sm:$0xff]
      %v3280 = vld [vmem:[#allocation2 + $0xd8] sm:$0xff]
      %v3281 = vld [vmem:[#allocation2 + $0xe0] sm:$0xff]
      %v3282 = vld [vmem:[#allocation2 + $0xe8] sm:$0xff]
      %v3283 = vld [vmem:[#allocation2 + $0xf0] sm:$0xff]
      %v3284 = vld [vmem:[#allocation2 + $0xf8] sm:$0xff]
      %v3285 = vadd.f32 %v3253, %v3127
      %v3286 = vadd.f32 %v3254, %v3130
      %v3287 = vadd.f32 %v3255, %v3135
      %v3288 = vadd.f32 %v3256, %v3138
      %v3289 = vadd.f32 %v3257, %v3143
      %v3290 = vadd.f32 %v3258, %v3146
      %v3291 = vadd.f32 %v3259, %v3151
      %v3292 = vadd.f32 %v3260, %v3154
      %v3293 = vadd.f32 %v3261, %v3159
      %v3294 = vadd.f32 %v3262, %v3162
      %v3295 = vadd.f32 %v3263, %v3167
      %v3296 = vadd.f32 %v3264, %v3170
      %v3297 = vadd.f32 %v3265, %v3175
      %v3298 = vadd.f32 %v3266, %v3178
      %v3299 = vadd.f32 %v3267, %v3183
      %v3300 = vadd.f32 %v3268, %v3186
      %v3301 = vadd.f32 %v3269, %v3191
      %v3302 = vadd.f32 %v3270, %v3194
      %v3303 = vadd.f32 %v3271, %v3199
      %v3304 = vadd.f32 %v3272, %v3202
      %v3305 = vadd.f32 %v3273, %v3207
      %v3306 = vadd.f32 %v3274, %v3210
      %v3307 = vadd.f32 %v3275, %v3215
      %v3308 = vadd.f32 %v3276, %v3218
      %v3309 = vadd.f32 %v3277, %v3223
      %v3310 = vadd.f32 %v3278, %v3226
      %v3311 = vadd.f32 %v3279, %v3231
      %v3312 = vadd.f32 %v3280, %v3234
      %v3313 = vadd.f32 %v3281, %v3239
      %v3314 = vadd.f32 %v3282, %v3242
      %v3315 = vadd.f32 %v3283, %v3247
      %v3316 = vadd.f32 %v3284, %v3250
      %3317 = vst [vmem:[#allocation2] sm:$0xff] %v3285
      %3318 = vst [vmem:[#allocation2 + $0x8] sm:$0xff] %v3286
      %3319 = vst [vmem:[#allocation2 + $0x10] sm:$0xff] %v3287
      %3320 = vst [vmem:[#allocation2 + $0x18] sm:$0xff] %v3288
      %3321 = vst [vmem:[#allocation2 + $0x20] sm:$0xff] %v3289
      %3322 = vst [vmem:[#allocation2 + $0x28] sm:$0xff] %v3290
      %3323 = vst [vmem:[#allocation2 + $0x30] sm:$0xff] %v3291
      %3324 = vst [vmem:[#allocation2 + $0x38] sm:$0xff] %v3292
      %3325 = vst [vmem:[#allocation2 + $0x40] sm:$0xff] %v3293
      %3326 = vst [vmem:[#allocation2 + $0x48] sm:$0xff] %v3294
      %3327 = vst [vmem:[#allocation2 + $0x50] sm:$0xff] %v3295
      %3328 = vst [vmem:[#allocation2 + $0x58] sm:$0xff] %v3296
      %3329 = vst [vmem:[#allocation2 + $0x60] sm:$0xff] %v3297
      %3330 = vst [vmem:[#allocation2 + $0x68] sm:$0xff] %v3298
      %3331 = vst [vmem:[#allocation2 + $0x70] sm:$0xff] %v3299
      %3332 = vst [vmem:[#allocation2 + $0x78] sm:$0xff] %v3300
      %3333 = vst [vmem:[#allocation2 + $0x80] sm:$0xff] %v3301
      %3334 = vst [vmem:[#allocation2 + $0x88] sm:$0xff] %v3302
      %3335 = vst [vmem:[#allocation2 + $0x90] sm:$0xff] %v3303
      %3336 = vst [vmem:[#allocation2 + $0x98] sm:$0xff] %v3304
      %3337 = vst [vmem:[#allocation2 + $0xa0] sm:$0xff] %v3305
      %3338 = vst [vmem:[#allocation2 + $0xa8] sm:$0xff] %v3306
      %3339 = vst [vmem:[#allocation2 + $0xb0] sm:$0xff] %v3307
      %3340 = vst [vmem:[#allocation2 + $0xb8] sm:$0xff] %v3308
      %3341 = vst [vmem:[#allocation2 + $0xc0] sm:$0xff] %v3309
      %3342 = vst [vmem:[#allocation2 + $0xc8] sm:$0xff] %v3310
      %3343 = vst [vmem:[#allocation2 + $0xd0] sm:$0xff] %v3311
      %3344 = vst [vmem:[#allocation2 + $0xd8] sm:$0xff] %v3312
      %3345 = vst [vmem:[#allocation2 + $0xe0] sm:$0xff] %v3313
      %3346 = vst [vmem:[#allocation2 + $0xe8] sm:$0xff] %v3314
      %3347 = vst [vmem:[#allocation2 + $0xf0] sm:$0xff] %v3315
      %3348 = vst [vmem:[#allocation2 + $0xf8] sm:$0xff] %v3316
      %v3349 = vld [vmem:[%s2080] sm:$0xe]
      %v3350 = vld [vmem:[%s2080 + $0x4] sm:$0xf]
      %v3351 = vld [vmem:[%s2080 + $0x8] sm:$0x1]
      %v3352 = vld [vmem:[%s2080 + $0xc] sm:$0xe]
      %v3353 = vld [vmem:[%s2080 + $0x10] sm:$0xf]
      %v3354 = vld [vmem:[%s2080 + $0x14] sm:$0x1]
      %v3355 = vld [vmem:[%s2080 + $0x18] sm:$0xe]
      %v3356 = vld [vmem:[%s2080 + $0x1c] sm:$0xf]
      %v3357 = vld [vmem:[%s2080 + $0x20] sm:$0x1]
      %v3358 = vld [vmem:[%s2080 + $0x24] sm:$0xe]
      %v3359 = vld [vmem:[%s2080 + $0x28] sm:$0xf]
      %v3360 = vld [vmem:[%s2080 + $0x2c] sm:$0x1]
      %v3361 = vld [vmem:[%s2080 + $0x30] sm:$0xe]
      %v3362 = vld [vmem:[%s2080 + $0x34] sm:$0xf]
      %v3363 = vld [vmem:[%s2080 + $0x38] sm:$0x1]
      %v3364 = vld [vmem:[%s2080 + $0x3c] sm:$0xe]
      %v3365 = vld [vmem:[%s2080 + $0x40] sm:$0xf]
      %v3366 = vld [vmem:[%s2080 + $0x44] sm:$0x1]
      %v3367 = vld [vmem:[%s2080 + $0x48] sm:$0xe]
      %v3368 = vld [vmem:[%s2080 + $0x4c] sm:$0xf]
      %v3369 = vld [vmem:[%s2080 + $0x50] sm:$0x1]
      %v3370 = vld [vmem:[%s2080 + $0x54] sm:$0xe]
      %v3371 = vld [vmem:[%s2080 + $0x58] sm:$0xf]
      %v3372 = vld [vmem:[%s2080 + $0x5c] sm:$0x1]
      %v3373 = vld [vmem:[%s2080 + $0x60] sm:$0xe]
      %v3374 = vld [vmem:[%s2080 + $0x64] sm:$0xf]
      %v3375 = vld [vmem:[%s2080 + $0x68] sm:$0x1]
      %v3376 = vld [vmem:[%s2080 + $0x6c] sm:$0xe]
      %v3377 = vld [vmem:[%s2080 + $0x70] sm:$0xf]
      %v3378 = vld [vmem:[%s2080 + $0x74] sm:$0x1]
      %v3379 = vld [vmem:[%s2080 + $0x78] sm:$0xe]
      %v3380 = vld [vmem:[%s2080 + $0x7c] sm:$0xf]
      %v3381 = vld [vmem:[%s2080 + $0x80] sm:$0x1]
      %v3382 = vld [vmem:[%s2080 + $0x84] sm:$0xe]
      %v3383 = vld [vmem:[%s2080 + $0x88] sm:$0xf]
      %v3384 = vld [vmem:[%s2080 + $0x8c] sm:$0x1]
      %v3385 = vld [vmem:[%s2080 + $0x90] sm:$0xe]
      %v3386 = vld [vmem:[%s2080 + $0x94] sm:$0xf]
      %v3387 = vld [vmem:[%s2080 + $0x98] sm:$0x1]
      %v3388 = vld [vmem:[%s2080 + $0x9c] sm:$0xe]
      %v3389 = vld [vmem:[%s2080 + $0xa0] sm:$0xf]
      %v3390 = vld [vmem:[%s2080 + $0xa4] sm:$0x1]
      %v3391 = vld [vmem:[%s2080 + $0xa8] sm:$0xe]
      %v3392 = vld [vmem:[%s2080 + $0xac] sm:$0xf]
      %v3393 = vld [vmem:[%s2080 + $0xb0] sm:$0x1]
      %v3394 = vld [vmem:[%s2080 + $0xb4] sm:$0xe]
      %v3395 = vld [vmem:[%s2080 + $0xb8] sm:$0xf]
      %v3396 = vld [vmem:[%s2080 + $0xbc] sm:$0x1]
      %v3445 = vrot.slane %v3349, 5
      %v3446 = vrot.slane %v3445, 4
      %v3447 = vrot.slane %v3350, 5
      %v3448 = vsel %vm1578, %v3446, %v3447
      %v3449 = vrot.slane %v3447, 4
      %v3450 = vrot.slane %v3351, 5
      %v3451 = vsel %vm1578, %v3449, %v3450
      %v3452 = vrot.slane %v3352, 5
      %v3453 = vrot.slane %v3452, 4
      %v3454 = vrot.slane %v3353, 5
      %v3455 = vsel %vm1578, %v3453, %v3454
      %v3456 = vrot.slane %v3454, 4
      %v3457 = vrot.slane %v3354, 5
      %v3458 = vsel %vm1578, %v3456, %v3457
      %v3459 = vrot.slane %v3355, 5
      %v3460 = vrot.slane %v3459, 4
      %v3461 = vrot.slane %v3356, 5
      %v3462 = vsel %vm1578, %v3460, %v3461
      %v3463 = vrot.slane %v3461, 4
      %v3464 = vrot.slane %v3357, 5
      %v3465 = vsel %vm1578, %v3463, %v3464
      %v3466 = vrot.slane %v3358, 5
      %v3467 = vrot.slane %v3466, 4
      %v3468 = vrot.slane %v3359, 5
      %v3469 = vsel %vm1578, %v3467, %v3468
      %v3470 = vrot.slane %v3468, 4
      %v3471 = vrot.slane %v3360, 5
      %v3472 = vsel %vm1578, %v3470, %v3471
      %v3473 = vrot.slane %v3361, 5
      %v3474 = vrot.slane %v3473, 4
      %v3475 = vrot.slane %v3362, 5
      %v3476 = vsel %vm1578, %v3474, %v3475
      %v3477 = vrot.slane %v3475, 4
      %v3478 = vrot.slane %v3363, 5
      %v3479 = vsel %vm1578, %v3477, %v3478
      %v3480 = vrot.slane %v3364, 5
      %v3481 = vrot.slane %v3480, 4
      %v3482 = vrot.slane %v3365, 5
      %v3483 = vsel %vm1578, %v3481, %v3482
      %v3484 = vrot.slane %v3482, 4
      %v3485 = vrot.slane %v3366, 5
      %v3486 = vsel %vm1578, %v3484, %v3485
      %v3487 = vrot.slane %v3367, 5
      %v3488 = vrot.slane %v3487, 4
      %v3489 = vrot.slane %v3368, 5
      %v3490 = vsel %vm1578, %v3488, %v3489
      %v3491 = vrot.slane %v3489, 4
      %v3492 = vrot.slane %v3369, 5
      %v3493 = vsel %vm1578, %v3491, %v3492
      %v3494 = vrot.slane %v3370, 5
      %v3495 = vrot.slane %v3494, 4
      %v3496 = vrot.slane %v3371, 5
      %v3497 = vsel %vm1578, %v3495, %v3496
      %v3498 = vrot.slane %v3496, 4
      %v3499 = vrot.slane %v3372, 5
      %v3500 = vsel %vm1578, %v3498, %v3499
      %v3501 = vrot.slane %v3373, 5
      %v3502 = vrot.slane %v3501, 4
      %v3503 = vrot.slane %v3374, 5
      %v3504 = vsel %vm1578, %v3502, %v3503
      %v3505 = vrot.slane %v3503, 4
      %v3506 = vrot.slane %v3375, 5
      %v3507 = vsel %vm1578, %v3505, %v3506
      %v3508 = vrot.slane %v3376, 5
      %v3509 = vrot.slane %v3508, 4
      %v3510 = vrot.slane %v3377, 5
      %v3511 = vsel %vm1578, %v3509, %v3510
      %v3512 = vrot.slane %v3510, 4
      %v3513 = vrot.slane %v3378, 5
      %v3514 = vsel %vm1578, %v3512, %v3513
      %v3515 = vrot.slane %v3379, 5
      %v3516 = vrot.slane %v3515, 4
      %v3517 = vrot.slane %v3380, 5
      %v3518 = vsel %vm1578, %v3516, %v3517
      %v3519 = vrot.slane %v3517, 4
      %v3520 = vrot.slane %v3381, 5
      %v3521 = vsel %vm1578, %v3519, %v3520
      %v3522 = vrot.slane %v3382, 5
      %v3523 = vrot.slane %v3522, 4
      %v3524 = vrot.slane %v3383, 5
      %v3525 = vsel %vm1578, %v3523, %v3524
      %v3526 = vrot.slane %v3524, 4
      %v3527 = vrot.slane %v3384, 5
      %v3528 = vsel %vm1578, %v3526, %v3527
      %v3529 = vrot.slane %v3385, 5
      %v3530 = vrot.slane %v3529, 4
      %v3531 = vrot.slane %v3386, 5
      %v3532 = vsel %vm1578, %v3530, %v3531
      %v3533 = vrot.slane %v3531, 4
      %v3534 = vrot.slane %v3387, 5
      %v3535 = vsel %vm1578, %v3533, %v3534
      %v3536 = vrot.slane %v3388, 5
      %v3537 = vrot.slane %v3536, 4
      %v3538 = vrot.slane %v3389, 5
      %v3539 = vsel %vm1578, %v3537, %v3538
      %v3540 = vrot.slane %v3538, 4
      %v3541 = vrot.slane %v3390, 5
      %v3542 = vsel %vm1578, %v3540, %v3541
      %v3543 = vrot.slane %v3391, 5
      %v3544 = vrot.slane %v3543, 4
      %v3545 = vrot.slane %v3392, 5
      %v3546 = vsel %vm1578, %v3544, %v3545
      %v3547 = vrot.slane %v3545, 4
      %v3548 = vrot.slane %v3393, 5
      %v3549 = vsel %vm1578, %v3547, %v3548
      %v3550 = vrot.slane %v3394, 5
      %v3551 = vrot.slane %v3550, 4
      %v3552 = vrot.slane %v3395, 5
      %v3553 = vsel %vm1578, %v3551, %v3552
      %v3554 = vrot.slane %v3552, 4
      %v3555 = vrot.slane %v3396, 5
      %v3556 = vsel %vm1578, %v3554, %v3555
      %s3557 = scalar_lea.vmem %s1, 160
      %v3558 = vld [vmem:[%s3557] sm:$0xf]
      %v3559 = vld [vmem:[%s3557 + $0x4] sm:$0xf]
      %v3560 = vld [vmem:[%s3557 + $0x8] sm:$0xf]
      %v3561 = vld [vmem:[%s3557 + $0xc] sm:$0xf]
      %v3562 = vld [vmem:[%s3557 + $0x10] sm:$0xf]
      %v3563 = vld [vmem:[%s3557 + $0x14] sm:$0xf]
      %v3564 = vld [vmem:[%s3557 + $0x18] sm:$0xf]
      %v3565 = vld [vmem:[%s3557 + $0x1c] sm:$0xf]
      %v3566 = vunpack.c.l.b16 %v3448
      %v3567 = vunpack.c.l.b16 %v3451
      %v3568 = vunpack.c.l.b16 %v3455
      %v3569 = vunpack.c.l.b16 %v3458
      %v3570 = vunpack.c.l.b16 %v3462
      %v3571 = vunpack.c.l.b16 %v3465
      %v3572 = vunpack.c.l.b16 %v3469
      %v3573 = vunpack.c.l.b16 %v3472
      %v3574 = vunpack.c.l.b16 %v3476
      %v3575 = vunpack.c.l.b16 %v3479
      %v3576 = vunpack.c.l.b16 %v3483
      %v3577 = vunpack.c.l.b16 %v3486
      %v3578 = vunpack.c.l.b16 %v3490
      %v3579 = vunpack.c.l.b16 %v3493
      %v3580 = vunpack.c.l.b16 %v3497
      %v3581 = vunpack.c.l.b16 %v3500
      %v3582 = vunpack.c.l.b16 %v3504
      %v3583 = vunpack.c.l.b16 %v3507
      %v3584 = vunpack.c.l.b16 %v3511
      %v3585 = vunpack.c.l.b16 %v3514
      %v3586 = vunpack.c.l.b16 %v3518
      %v3587 = vunpack.c.l.b16 %v3521
      %v3588 = vunpack.c.l.b16 %v3525
      %v3589 = vunpack.c.l.b16 %v3528
      %v3590 = vunpack.c.l.b16 %v3532
      %v3591 = vunpack.c.l.b16 %v3535
      %v3592 = vunpack.c.l.b16 %v3539
      %v3593 = vunpack.c.l.b16 %v3542
      %v3594 = vunpack.c.l.b16 %v3546
      %v3595 = vunpack.c.l.b16 %v3549
      %v3596 = vunpack.c.l.b16 %v3553
      %v3597 = vunpack.c.l.b16 %v3556
      %v3598 = vpack.c.b16 %v3567, %v3566
      %v3599 = vpack.c.b16 %v3569, %v3568
      %v3600 = vpack.c.b16 %v3571, %v3570
      %v3601 = vpack.c.b16 %v3573, %v3572
      %v3602 = vpack.c.b16 %v3575, %v3574
      %v3603 = vpack.c.b16 %v3577, %v3576
      %v3604 = vpack.c.b16 %v3579, %v3578
      %v3605 = vpack.c.b16 %v3581, %v3580
      %v3606 = vpack.c.b16 %v3583, %v3582
      %v3607 = vpack.c.b16 %v3585, %v3584
      %v3608 = vpack.c.b16 %v3587, %v3586
      %v3609 = vpack.c.b16 %v3589, %v3588
      %v3610 = vpack.c.b16 %v3591, %v3590
      %v3611 = vpack.c.b16 %v3593, %v3592
      %v3612 = vpack.c.b16 %v3595, %v3594
      %v3613 = vpack.c.b16 %v3597, %v3596
      %v3622 = vunpack.c.l.b16 %v3558
      %v3623 = vunpack.c.l.b16 %v3559
      %v3624 = vunpack.c.l.b16 %v3560
      %v3625 = vunpack.c.l.b16 %v3561
      %v3626 = vunpack.c.l.b16 %v3562
      %v3627 = vunpack.c.l.b16 %v3563
      %v3628 = vunpack.c.l.b16 %v3564
      %v3629 = vunpack.c.l.b16 %v3565
      %v3630 = vpack.c.b16 %v3623, %v3622
      %v3631 = vpack.c.b16 %v3625, %v3624
      %v3632 = vpack.c.b16 %v3627, %v3626
      %v3633 = vpack.c.b16 %v3629, %v3628
      %v3639 = vsel %vm417, %v3598, 0
      %v3642 = vsel %vm417, %v3599, 0
      %v3645 = vsel %vm417, %v3600, 0
      %v3648 = vsel %vm417, %v3601, 0
      %v3651 = vsel %vm417, %v3602, 0
      %v3654 = vsel %vm417, %v3603, 0
      %v3657 = vsel %vm417, %v3604, 0
      %v3660 = vsel %vm417, %v3605, 0
      %v3663 = vsel %vm417, %v3606, 0
      %v3666 = vsel %vm417, %v3607, 0
      %v3669 = vsel %vm417, %v3608, 0
      %v3672 = vsel %vm417, %v3609, 0
      %v3675 = vsel %vm417, %v3610, 0
      %v3678 = vsel %vm417, %v3611, 0
      %v3681 = vsel %vm417, %v3612, 0
      %v3684 = vsel %vm417, %v3613, 0
      %3686 = vmatprep.subr.bf16.mxu0 0
      %3687 = vmatpush1.bf16.msra.mxu0 %v3630
      %3688 = vmatprep.subr.bf16.mxu0 0
      %3689 = vmatpush1.bf16.msra.mxu0 %v3631
      %3690 = vmatprep.subr.bf16.mxu0 0
      %3691 = vmatpush1.bf16.msra.mxu0 %v3632
      %3692 = vmatprep.subr.bf16.mxu0 0
      %3693 = vmatpush1.bf16.msra.mxu0 %v3633
      %3694 = vmatprep.subr.bf16.mxu0 0
      %3695 = vmatpush1.bf16.msra.mxu0 0
      %3696 = vmatprep.subr.bf16.mxu0 0
      %3697 = vmatpush1.bf16.msra.mxu0 0
      %3698 = vmatprep.subr.bf16.mxu0 0
      %3699 = vmatpush1.bf16.msra.mxu0 0
      %3700 = vmatprep.subr.bf16.mxu0 0
      %3701 = vmatpush1.bf16.msra.mxu0 0
      %3702 = vmatprep.subr.bf16.mxu0 0
      %3703 = vmatpush1.bf16.msra.mxu0 0
      %3704 = vmatprep.subr.bf16.mxu0 0
      %3705 = vmatpush1.bf16.msra.mxu0 0
      %3706 = vmatprep.subr.bf16.mxu0 0
      %3707 = vmatpush1.bf16.msra.mxu0 0
      %3708 = vmatprep.subr.bf16.mxu0 0
      %3709 = vmatpush1.bf16.msra.mxu0 0
      %3710 = vmatprep.subr.bf16.mxu0 0
      %3711 = vmatpush1.bf16.msra.mxu0 0
      %3712 = vmatprep.subr.bf16.mxu0 0
      %3713 = vmatpush1.bf16.msra.mxu0 0
      %3714 = vmatprep.subr.bf16.mxu0 0
      %3715 = vmatpush1.bf16.msra.mxu0 0
      %3716 = vmatprep.subr.bf16.mxu0 0
      %3717 = vmatpush1.bf16.msra.mxu0 0
      %3718 = vmatprep.mubr.bf16.mxu0 0
      %3719 = vmatmul.mubr.bf16.gmra.mrb[0].mxu0 %v3639
      %v3720 = vpop.f32.mrb[0].mxu0
      %v3721 = vadd.f32 0.0, %v3720
      %v3722 = vpop.f32.mrb[0].mxu0
      %v3723 = vpop.f32.mrb[0].mxu0
      %v3724 = vadd.f32 0.0, %v3723
      %v3725 = vpop.f32.mrb[0].mxu0
      %3726 = vmatprep.mubr.bf16.mxu0 0
      %3727 = vmatmul.mubr.bf16.gmra.mrb[0].mxu0 %v3642
      %v3728 = vpop.f32.mrb[0].mxu0
      %v3729 = vadd.f32 0.0, %v3728
      %v3730 = vpop.f32.mrb[0].mxu0
      %v3731 = vpop.f32.mrb[0].mxu0
      %v3732 = vadd.f32 0.0, %v3731
      %v3733 = vpop.f32.mrb[0].mxu0
      %3734 = vmatprep.mubr.bf16.mxu0 0
      %3735 = vmatmul.mubr.bf16.gmra.mrb[0].mxu0 %v3645
      %v3736 = vpop.f32.mrb[0].mxu0
      %v3737 = vadd.f32 0.0, %v3736
      %v3738 = vpop.f32.mrb[0].mxu0
      %v3739 = vpop.f32.mrb[0].mxu0
      %v3740 = vadd.f32 0.0, %v3739
      %v3741 = vpop.f32.mrb[0].mxu0
      %3742 = vmatprep.mubr.bf16.mxu0 0
      %3743 = vmatmul.mubr.bf16.gmra.mrb[0].mxu0 %v3648
      %v3744 = vpop.f32.mrb[0].mxu0
      %v3745 = vadd.f32 0.0, %v3744
      %v3746 = vpop.f32.mrb[0].mxu0
      %v3747 = vpop.f32.mrb[0].mxu0
      %v3748 = vadd.f32 0.0, %v3747
      %v3749 = vpop.f32.mrb[0].mxu0
      %3750 = vmatprep.mubr.bf16.mxu0 0
      %3751 = vmatmul.mubr.bf16.gmra.mrb[0].mxu0 %v3651
      %v3752 = vpop.f32.mrb[0].mxu0
      %v3753 = vadd.f32 0.0, %v3752
      %v3754 = vpop.f32.mrb[0].mxu0
      %v3755 = vpop.f32.mrb[0].mxu0
      %v3756 = vadd.f32 0.0, %v3755
      %v3757 = vpop.f32.mrb[0].mxu0
      %3758 = vmatprep.mubr.bf16.mxu0 0
      %3759 = vmatmul.mubr.bf16.gmra.mrb[0].mxu0 %v3654
      %v3760 = vpop.f32.mrb[0].mxu0
      %v3761 = vadd.f32 0.0, %v3760
      %v3762 = vpop.f32.mrb[0].mxu0
      %v3763 = vpop.f32.mrb[0].mxu0
      %v3764 = vadd.f32 0.0, %v3763
      %v3765 = vpop.f32.mrb[0].mxu0
      %3766 = vmatprep.mubr.bf16.mxu0 0
      %3767 = vmatmul.mubr.bf16.gmra.mrb[0].mxu0 %v3657
      %v3768 = vpop.f32.mrb[0].mxu0
      %v3769 = vadd.f32 0.0, %v3768
      %v3770 = vpop.f32.mrb[0].mxu0
      %v3771 = vpop.f32.mrb[0].mxu0
      %v3772 = vadd.f32 0.0, %v3771
      %v3773 = vpop.f32.mrb[0].mxu0
      %3774 = vmatprep.mubr.bf16.mxu0 0
      %3775 = vmatmul.mubr.bf16.gmra.mrb[0].mxu0 %v3660
      %v3776 = vpop.f32.mrb[0].mxu0
      %v3777 = vadd.f32 0.0, %v3776
      %v3778 = vpop.f32.mrb[0].mxu0
      %v3779 = vpop.f32.mrb[0].mxu0
      %v3780 = vadd.f32 0.0, %v3779
      %v3781 = vpop.f32.mrb[0].mxu0
      %3782 = vmatprep.mubr.bf16.mxu0 0
      %3783 = vmatmul.mubr.bf16.gmra.mrb[0].mxu0 %v3663
      %v3784 = vpop.f32.mrb[0].mxu0
      %v3785 = vadd.f32 0.0, %v3784
      %v3786 = vpop.f32.mrb[0].mxu0
      %v3787 = vpop.f32.mrb[0].mxu0
      %v3788 = vadd.f32 0.0, %v3787
      %v3789 = vpop.f32.mrb[0].mxu0
      %3790 = vmatprep.mubr.bf16.mxu0 0
      %3791 = vmatmul.mubr.bf16.gmra.mrb[0].mxu0 %v3666
      %v3792 = vpop.f32.mrb[0].mxu0
      %v3793 = vadd.f32 0.0, %v3792
      %v3794 = vpop.f32.mrb[0].mxu0
      %v3795 = vpop.f32.mrb[0].mxu0
      %v3796 = vadd.f32 0.0, %v3795
      %v3797 = vpop.f32.mrb[0].mxu0
      %3798 = vmatprep.mubr.bf16.mxu0 0
      %3799 = vmatmul.mubr.bf16.gmra.mrb[0].mxu0 %v3669
      %v3800 = vpop.f32.mrb[0].mxu0
      %v3801 = vadd.f32 0.0, %v3800
      %v3802 = vpop.f32.mrb[0].mxu0
      %v3803 = vpop.f32.mrb[0].mxu0
      %v3804 = vadd.f32 0.0, %v3803
      %v3805 = vpop.f32.mrb[0].mxu0
      %3806 = vmatprep.mubr.bf16.mxu0 0
      %3807 = vmatmul.mubr.bf16.gmra.mrb[0].mxu0 %v3672
      %v3808 = vpop.f32.mrb[0].mxu0
      %v3809 = vadd.f32 0.0, %v3808
      %v3810 = vpop.f32.mrb[0].mxu0
      %v3811 = vpop.f32.mrb[0].mxu0
      %v3812 = vadd.f32 0.0, %v3811
      %v3813 = vpop.f32.mrb[0].mxu0
      %3814 = vmatprep.mubr.bf16.mxu0 0
      %3815 = vmatmul.mubr.bf16.gmra.mrb[0].mxu0 %v3675
      %v3816 = vpop.f32.mrb[0].mxu0
      %v3817 = vadd.f32 0.0, %v3816
      %v3818 = vpop.f32.mrb[0].mxu0
      %v3819 = vpop.f32.mrb[0].mxu0
      %v3820 = vadd.f32 0.0, %v3819
      %v3821 = vpop.f32.mrb[0].mxu0
      %3822 = vmatprep.mubr.bf16.mxu0 0
      %3823 = vmatmul.mubr.bf16.gmra.mrb[0].mxu0 %v3678
      %v3824 = vpop.f32.mrb[0].mxu0
      %v3825 = vadd.f32 0.0, %v3824
      %v3826 = vpop.f32.mrb[0].mxu0
      %v3827 = vpop.f32.mrb[0].mxu0
      %v3828 = vadd.f32 0.0, %v3827
      %v3829 = vpop.f32.mrb[0].mxu0
      %3830 = vmatprep.mubr.bf16.mxu0 0
      %3831 = vmatmul.mubr.bf16.gmra.mrb[0].mxu0 %v3681
      %v3832 = vpop.f32.mrb[0].mxu0
      %v3833 = vadd.f32 0.0, %v3832
      %v3834 = vpop.f32.mrb[0].mxu0
      %v3835 = vpop.f32.mrb[0].mxu0
      %v3836 = vadd.f32 0.0, %v3835
      %v3837 = vpop.f32.mrb[0].mxu0
      %3838 = vmatprep.mubr.bf16.mxu0 0
      %3839 = vmatmul.mubr.bf16.gmra.mrb[0].mxu0 %v3684
      %v3840 = vpop.f32.mrb[0].mxu0
      %v3841 = vadd.f32 0.0, %v3840
      %v3842 = vpop.f32.mrb[0].mxu0
      %v3843 = vpop.f32.mrb[0].mxu0
      %v3844 = vadd.f32 0.0, %v3843
      %v3845 = vpop.f32.mrb[0].mxu0
      %3846 = vdwg.mxu0
      %v3847 = vld [vmem:[#allocation2] sm:$0xff]
      %v3848 = vld [vmem:[#allocation2 + $0x8] sm:$0xff]
      %v3849 = vld [vmem:[#allocation2 + $0x10] sm:$0xff]
      %v3850 = vld [vmem:[#allocation2 + $0x18] sm:$0xff]
      %v3851 = vld [vmem:[#allocation2 + $0x20] sm:$0xff]
      %v3852 = vld [vmem:[#allocation2 + $0x28] sm:$0xff]
      %v3853 = vld [vmem:[#allocation2 + $0x30] sm:$0xff]
      %v3854 = vld [vmem:[#allocation2 + $0x38] sm:$0xff]
      %v3855 = vld [vmem:[#allocation2 + $0x40] sm:$0xff]
      %v3856 = vld [vmem:[#allocation2 + $0x48] sm:$0xff]
      %v3857 = vld [vmem:[#allocation2 + $0x50] sm:$0xff]
      %v3858 = vld [vmem:[#allocation2 + $0x58] sm:$0xff]
      %v3859 = vld [vmem:[#allocation2 + $0x60] sm:$0xff]
      %v3860 = vld [vmem:[#allocation2 + $0x68] sm:$0xff]
      %v3861 = vld [vmem:[#allocation2 + $0x70] sm:$0xff]
      %v3862 = vld [vmem:[#allocation2 + $0x78] sm:$0xff]
      %v3863 = vld [vmem:[#allocation2 + $0x80] sm:$0xff]
      %v3864 = vld [vmem:[#allocation2 + $0x88] sm:$0xff]
      %v3865 = vld [vmem:[#allocation2 + $0x90] sm:$0xff]
      %v3866 = vld [vmem:[#allocation2 + $0x98] sm:$0xff]
      %v3867 = vld [vmem:[#allocation2 + $0xa0] sm:$0xff]
      %v3868 = vld [vmem:[#allocation2 + $0xa8] sm:$0xff]
      %v3869 = vld [vmem:[#allocation2 + $0xb0] sm:$0xff]
      %v3870 = vld [vmem:[#allocation2 + $0xb8] sm:$0xff]
      %v3871 = vld [vmem:[#allocation2 + $0xc0] sm:$0xff]
      %v3872 = vld [vmem:[#allocation2 + $0xc8] sm:$0xff]
      %v3873 = vld [vmem:[#allocation2 + $0xd0] sm:$0xff]
      %v3874 = vld [vmem:[#allocation2 + $0xd8] sm:$0xff]
      %v3875 = vld [vmem:[#allocation2 + $0xe0] sm:$0xff]
      %v3876 = vld [vmem:[#allocation2 + $0xe8] sm:$0xff]
      %v3877 = vld [vmem:[#allocation2 + $0xf0] sm:$0xff]
      %v3878 = vld [vmem:[#allocation2 + $0xf8] sm:$0xff]
      %v3879 = vadd.f32 %v3847, %v3721
      %v3880 = vadd.f32 %v3848, %v3724
      %v3881 = vadd.f32 %v3849, %v3729
      %v3882 = vadd.f32 %v3850, %v3732
      %v3883 = vadd.f32 %v3851, %v3737
      %v3884 = vadd.f32 %v3852, %v3740
      %v3885 = vadd.f32 %v3853, %v3745
      %v3886 = vadd.f32 %v3854, %v3748
      %v3887 = vadd.f32 %v3855, %v3753
      %v3888 = vadd.f32 %v3856, %v3756
      %v3889 = vadd.f32 %v3857, %v3761
      %v3890 = vadd.f32 %v3858, %v3764
      %v3891 = vadd.f32 %v3859, %v3769
      %v3892 = vadd.f32 %v3860, %v3772
      %v3893 = vadd.f32 %v3861, %v3777
      %v3894 = vadd.f32 %v3862, %v3780
      %v3895 = vadd.f32 %v3863, %v3785
      %v3896 = vadd.f32 %v3864, %v3788
      %v3897 = vadd.f32 %v3865, %v3793
      %v3898 = vadd.f32 %v3866, %v3796
      %v3899 = vadd.f32 %v3867, %v3801
      %v3900 = vadd.f32 %v3868, %v3804
      %v3901 = vadd.f32 %v3869, %v3809
      %v3902 = vadd.f32 %v3870, %v3812
      %v3903 = vadd.f32 %v3871, %v3817
      %v3904 = vadd.f32 %v3872, %v3820
      %v3905 = vadd.f32 %v3873, %v3825
      %v3906 = vadd.f32 %v3874, %v3828
      %v3907 = vadd.f32 %v3875, %v3833
      %v3908 = vadd.f32 %v3876, %v3836
      %v3909 = vadd.f32 %v3877, %v3841
      %v3910 = vadd.f32 %v3878, %v3844
      %3911 = vst [vmem:[#allocation2] sm:$0xff] %v3879
      %3912 = vst [vmem:[#allocation2 + $0x8] sm:$0xff] %v3880
      %3913 = vst [vmem:[#allocation2 + $0x10] sm:$0xff] %v3881
      %3914 = vst [vmem:[#allocation2 + $0x18] sm:$0xff] %v3882
      %3915 = vst [vmem:[#allocation2 + $0x20] sm:$0xff] %v3883
      %3916 = vst [vmem:[#allocation2 + $0x28] sm:$0xff] %v3884
      %3917 = vst [vmem:[#allocation2 + $0x30] sm:$0xff] %v3885
      %3918 = vst [vmem:[#allocation2 + $0x38] sm:$0xff] %v3886
      %3919 = vst [vmem:[#allocation2 + $0x40] sm:$0xff] %v3887
      %3920 = vst [vmem:[#allocation2 + $0x48] sm:$0xff] %v3888
      %3921 = vst [vmem:[#allocation2 + $0x50] sm:$0xff] %v3889
      %3922 = vst [vmem:[#allocation2 + $0x58] sm:$0xff] %v3890
      %3923 = vst [vmem:[#allocation2 + $0x60] sm:$0xff] %v3891
      %3924 = vst [vmem:[#allocation2 + $0x68] sm:$0xff] %v3892
      %3925 = vst [vmem:[#allocation2 + $0x70] sm:$0xff] %v3893
      %3926 = vst [vmem:[#allocation2 + $0x78] sm:$0xff] %v3894
      %3927 = vst [vmem:[#allocation2 + $0x80] sm:$0xff] %v3895
      %3928 = vst [vmem:[#allocation2 + $0x88] sm:$0xff] %v3896
      %3929 = vst [vmem:[#allocation2 + $0x90] sm:$0xff] %v3897
      %3930 = vst [vmem:[#allocation2 + $0x98] sm:$0xff] %v3898
      %3931 = vst [vmem:[#allocation2 + $0xa0] sm:$0xff] %v3899
      %3932 = vst [vmem:[#allocation2 + $0xa8] sm:$0xff] %v3900
      %3933 = vst [vmem:[#allocation2 + $0xb0] sm:$0xff] %v3901
      %3934 = vst [vmem:[#allocation2 + $0xb8] sm:$0xff] %v3902
      %3935 = vst [vmem:[#allocation2 + $0xc0] sm:$0xff] %v3903
      %3936 = vst [vmem:[#allocation2 + $0xc8] sm:$0xff] %v3904
      %3937 = vst [vmem:[#allocation2 + $0xd0] sm:$0xff] %v3905
      %3938 = vst [vmem:[#allocation2 + $0xd8] sm:$0xff] %v3906
      %3939 = vst [vmem:[#allocation2 + $0xe0] sm:$0xff] %v3907
      %3940 = vst [vmem:[#allocation2 + $0xe8] sm:$0xff] %v3908
      %3941 = vst [vmem:[#allocation2 + $0xf0] sm:$0xff] %v3909
      %3942 = vst [vmem:[#allocation2 + $0xf8] sm:$0xff] %v3910
      %s3943 = sadd.s32 %s269, 2
      %s3944 = smul.u32 %s3943, 3
      %s3945 = smul.addr %s3944, 4
      %s3946 = scalar_lea.vmem %s252, %s3945
      %v3947 = vld [vmem:[%s3946] sm:$0xf]
      %v3948 = vld [vmem:[%s3946 + $0x4] sm:$0xf]
      %v3949 = vld [vmem:[%s3946 + $0xc] sm:$0xf]
      %v3950 = vld [vmem:[%s3946 + $0x10] sm:$0xf]
      %v3951 = vld [vmem:[%s3946 + $0x18] sm:$0xf]
      %v3952 = vld [vmem:[%s3946 + $0x1c] sm:$0xf]
      %v3953 = vld [vmem:[%s3946 + $0x24] sm:$0xf]
      %v3954 = vld [vmem:[%s3946 + $0x28] sm:$0xf]
      %v3955 = vld [vmem:[%s3946 + $0x30] sm:$0xf]
      %v3956 = vld [vmem:[%s3946 + $0x34] sm:$0xf]
      %v3957 = vld [vmem:[%s3946 + $0x3c] sm:$0xf]
      %v3958 = vld [vmem:[%s3946 + $0x40] sm:$0xf]
      %v3959 = vld [vmem:[%s3946 + $0x48] sm:$0xf]
      %v3960 = vld [vmem:[%s3946 + $0x4c] sm:$0xf]
      %v3961 = vld [vmem:[%s3946 + $0x54] sm:$0xf]
      %v3962 = vld [vmem:[%s3946 + $0x58] sm:$0xf]
      %v3963 = vld [vmem:[%s3946 + $0x60] sm:$0xf]
      %v3964 = vld [vmem:[%s3946 + $0x64] sm:$0xf]
      %v3965 = vld [vmem:[%s3946 + $0x6c] sm:$0xf]
      %v3966 = vld [vmem:[%s3946 + $0x70] sm:$0xf]
      %v3967 = vld [vmem:[%s3946 + $0x78] sm:$0xf]
      %v3968 = vld [vmem:[%s3946 + $0x7c] sm:$0xf]
      %v3969 = vld [vmem:[%s3946 + $0x84] sm:$0xf]
      %v3970 = vld [vmem:[%s3946 + $0x88] sm:$0xf]
      %v3971 = vld [vmem:[%s3946 + $0x90] sm:$0xf]
      %v3972 = vld [vmem:[%s3946 + $0x94] sm:$0xf]
      %v3973 = vld [vmem:[%s3946 + $0x9c] sm:$0xf]
      %v3974 = vld [vmem:[%s3946 + $0xa0] sm:$0xf]
      %v3975 = vld [vmem:[%s3946 + $0xa8] sm:$0xf]
      %v3976 = vld [vmem:[%s3946 + $0xac] sm:$0xf]
      %v3977 = vld [vmem:[%s3946 + $0xb4] sm:$0xf]
      %v3978 = vld [vmem:[%s3946 + $0xb8] sm:$0xf]
      %s3979 = scalar_lea.vmem %s1, 192
      %v3980 = vld [vmem:[%s3979] sm:$0xf]
      %v3981 = vld [vmem:[%s3979 + $0x4] sm:$0xf]
      %v3982 = vld [vmem:[%s3979 + $0x8] sm:$0xf]
      %v3983 = vld [vmem:[%s3979 + $0xc] sm:$0xf]
      %v3984 = vld [vmem:[%s3979 + $0x10] sm:$0xf]
      %v3985 = vld [vmem:[%s3979 + $0x14] sm:$0xf]
      %v3986 = vld [vmem:[%s3979 + $0x18] sm:$0xf]
      %v3987 = vld [vmem:[%s3979 + $0x1c] sm:$0xf]
      %v4020 = vunpack.c.l.b16 %v3947
      %v4021 = vunpack.c.l.b16 %v3948
      %v4022 = vunpack.c.l.b16 %v3949
      %v4023 = vunpack.c.l.b16 %v3950
      %v4024 = vunpack.c.l.b16 %v3951
      %v4025 = vunpack.c.l.b16 %v3952
      %v4026 = vunpack.c.l.b16 %v3953
      %v4027 = vunpack.c.l.b16 %v3954
      %v4028 = vunpack.c.l.b16 %v3955
      %v4029 = vunpack.c.l.b16 %v3956
      %v4030 = vunpack.c.l.b16 %v3957
      %v4031 = vunpack.c.l.b16 %v3958
      %v4032 = vunpack.c.l.b16 %v3959
      %v4033 = vunpack.c.l.b16 %v3960
      %v4034 = vunpack.c.l.b16 %v3961
      %v4035 = vunpack.c.l.b16 %v3962
      %v4036 = vunpack.c.l.b16 %v3963
      %v4037 = vunpack.c.l.b16 %v3964
      %v4038 = vunpack.c.l.b16 %v3965
      %v4039 = vunpack.c.l.b16 %v3966
      %v4040 = vunpack.c.l.b16 %v3967
      %v4041 = vunpack.c.l.b16 %v3968
      %v4042 = vunpack.c.l.b16 %v3969
      %v4043 = vunpack.c.l.b16 %v3970
      %v4044 = vunpack.c.l.b16 %v3971
      %v4045 = vunpack.c.l.b16 %v3972
      %v4046 = vunpack.c.l.b16 %v3973
      %v4047 = vunpack.c.l.b16 %v3974
      %v4048 = vunpack.c.l.b16 %v3975
      %v4049 = vunpack.c.l.b16 %v3976
      %v4050 = vunpack.c.l.b16 %v3977
      %v4051 = vunpack.c.l.b16 %v3978
      %v4052 = vpack.c.b16 %v4021, %v4020
      %v4053 = vpack.c.b16 %v4023, %v4022
      %v4054 = vpack.c.b16 %v4025, %v4024
      %v4055 = vpack.c.b16 %v4027, %v4026
      %v4056 = vpack.c.b16 %v4029, %v4028
      %v4057 = vpack.c.b16 %v4031, %v4030
      %v4058 = vpack.c.b16 %v4033, %v4032
      %v4059 = vpack.c.b16 %v4035, %v4034
      %v4060 = vpack.c.b16 %v4037, %v4036
      %v4061 = vpack.c.b16 %v4039, %v4038
      %v4062 = vpack.c.b16 %v4041, %v4040
      %v4063 = vpack.c.b16 %v4043, %v4042
      %v4064 = vpack.c.b16 %v4045, %v4044
      %v4065 = vpack.c.b16 %v4047, %v4046
      %v4066 = vpack.c.b16 %v4049, %v4048
      %v4067 = vpack.c.b16 %v4051, %v4050
      %v4076 = vunpack.c.l.b16 %v3980
      %v4077 = vunpack.c.l.b16 %v3981
      %v4078 = vunpack.c.l.b16 %v3982
      %v4079 = vunpack.c.l.b16 %v3983
      %v4080 = vunpack.c.l.b16 %v3984
      %v4081 = vunpack.c.l.b16 %v3985
      %v4082 = vunpack.c.l.b16 %v3986
      %v4083 = vunpack.c.l.b16 %v3987
      %v4084 = vpack.c.b16 %v4077, %v4076
      %v4085 = vpack.c.b16 %v4079, %v4078
      %v4086 = vpack.c.b16 %v4081, %v4080
      %v4087 = vpack.c.b16 %v4083, %v4082
      %v4093 = vsel %vm417, %v4052, 0
      %v4096 = vsel %vm417, %v4053, 0
      %v4099 = vsel %vm417, %v4054, 0
      %v4102 = vsel %vm417, %v4055, 0
      %v4105 = vsel %vm417, %v4056, 0
      %v4108 = vsel %vm417, %v4057, 0
      %v4111 = vsel %vm417, %v4058, 0
      %v4114 = vsel %vm417, %v4059, 0
      %v4117 = vsel %vm417, %v4060, 0
      %v4120 = vsel %vm417, %v4061, 0
      %v4123 = vsel %vm417, %v4062, 0
      %v4126 = vsel %vm417, %v4063, 0
      %v4129 = vsel %vm417, %v4064, 0
      %v4132 = vsel %vm417, %v4065, 0
      %v4135 = vsel %vm417, %v4066, 0
      %v4138 = vsel %vm417, %v4067, 0
      %4140 = vmatprep.subr.bf16.mxu0 0
      %4141 = vmatpush1.bf16.msra.mxu0 %v4084
      %4142 = vmatprep.subr.bf16.mxu0 0
      %4143 = vmatpush1.bf16.msra.mxu0 %v4085
      %4144 = vmatprep.subr.bf16.mxu0 0
      %4145 = vmatpush1.bf16.msra.mxu0 %v4086
      %4146 = vmatprep.subr.bf16.mxu0 0
      %4147 = vmatpush1.bf16.msra.mxu0 %v4087
      %4148 = vmatprep.subr.bf16.mxu0 0
      %4149 = vmatpush1.bf16.msra.mxu0 0
      %4150 = vmatprep.subr.bf16.mxu0 0
      %4151 = vmatpush1.bf16.msra.mxu0 0
      %4152 = vmatprep.subr.bf16.mxu0 0
      %4153 = vmatpush1.bf16.msra.mxu0 0
      %4154 = vmatprep.subr.bf16.mxu0 0
      %4155 = vmatpush1.bf16.msra.mxu0 0
      %4156 = vmatprep.subr.bf16.mxu0 0
      %4157 = vmatpush1.bf16.msra.mxu0 0
      %4158 = vmatprep.subr.bf16.mxu0 0
      %4159 = vmatpush1.bf16.msra.mxu0 0
      %4160 = vmatprep.subr.bf16.mxu0 0
      %4161 = vmatpush1.bf16.msra.mxu0 0
      %4162 = vmatprep.subr.bf16.mxu0 0
      %4163 = vmatpush1.bf16.msra.mxu0 0
      %4164 = vmatprep.subr.bf16.mxu0 0
      %4165 = vmatpush1.bf16.msra.mxu0 0
      %4166 = vmatprep.subr.bf16.mxu0 0
      %4167 = vmatpush1.bf16.msra.mxu0 0
      %4168 = vmatprep.subr.bf16.mxu0 0
      %4169 = vmatpush1.bf16.msra.mxu0 0
      %4170 = vmatprep.subr.bf16.mxu0 0
      %4171 = vmatpush1.bf16.msra.mxu0 0
      %4172 = vmatprep.mubr.bf16.mxu0 0
      %4173 = vmatmul.mubr.bf16.gmra.mrb[0].mxu0 %v4093
      %v4174 = vpop.f32.mrb[0].mxu0
      %v4175 = vadd.f32 0.0, %v4174
      %v4176 = vpop.f32.mrb[0].mxu0
      %v4177 = vpop.f32.mrb[0].mxu0
      %v4178 = vadd.f32 0.0, %v4177
      %v4179 = vpop.f32.mrb[0].mxu0
      %4180 = vmatprep.mubr.bf16.mxu0 0
      %4181 = vmatmul.mubr.bf16.gmra.mrb[0].mxu0 %v4096
      %v4182 = vpop.f32.mrb[0].mxu0
      %v4183 = vadd.f32 0.0, %v4182
      %v4184 = vpop.f32.mrb[0].mxu0
      %v4185 = vpop.f32.mrb[0].mxu0
      %v4186 = vadd.f32 0.0, %v4185
      %v4187 = vpop.f32.mrb[0].mxu0
      %4188 = vmatprep.mubr.bf16.mxu0 0
      %4189 = vmatmul.mubr.bf16.gmra.mrb[0].mxu0 %v4099
      %v4190 = vpop.f32.mrb[0].mxu0
      %v4191 = vadd.f32 0.0, %v4190
      %v4192 = vpop.f32.mrb[0].mxu0
      %v4193 = vpop.f32.mrb[0].mxu0
      %v4194 = vadd.f32 0.0, %v4193
      %v4195 = vpop.f32.mrb[0].mxu0
      %4196 = vmatprep.mubr.bf16.mxu0 0
      %4197 = vmatmul.mubr.bf16.gmra.mrb[0].mxu0 %v4102
      %v4198 = vpop.f32.mrb[0].mxu0
      %v4199 = vadd.f32 0.0, %v4198
      %v4200 = vpop.f32.mrb[0].mxu0
      %v4201 = vpop.f32.mrb[0].mxu0
      %v4202 = vadd.f32 0.0, %v4201
      %v4203 = vpop.f32.mrb[0].mxu0
      %4204 = vmatprep.mubr.bf16.mxu0 0
      %4205 = vmatmul.mubr.bf16.gmra.mrb[0].mxu0 %v4105
      %v4206 = vpop.f32.mrb[0].mxu0
      %v4207 = vadd.f32 0.0, %v4206
      %v4208 = vpop.f32.mrb[0].mxu0
      %v4209 = vpop.f32.mrb[0].mxu0
      %v4210 = vadd.f32 0.0, %v4209
      %v4211 = vpop.f32.mrb[0].mxu0
      %4212 = vmatprep.mubr.bf16.mxu0 0
      %4213 = vmatmul.mubr.bf16.gmra.mrb[0].mxu0 %v4108
      %v4214 = vpop.f32.mrb[0].mxu0
      %v4215 = vadd.f32 0.0, %v4214
      %v4216 = vpop.f32.mrb[0].mxu0
      %v4217 = vpop.f32.mrb[0].mxu0
      %v4218 = vadd.f32 0.0, %v4217
      %v4219 = vpop.f32.mrb[0].mxu0
      %4220 = vmatprep.mubr.bf16.mxu0 0
      %4221 = vmatmul.mubr.bf16.gmra.mrb[0].mxu0 %v4111
      %v4222 = vpop.f32.mrb[0].mxu0
      %v4223 = vadd.f32 0.0, %v4222
      %v4224 = vpop.f32.mrb[0].mxu0
      %v4225 = vpop.f32.mrb[0].mxu0
      %v4226 = vadd.f32 0.0, %v4225
      %v4227 = vpop.f32.mrb[0].mxu0
      %4228 = vmatprep.mubr.bf16.mxu0 0
      %4229 = vmatmul.mubr.bf16.gmra.mrb[0].mxu0 %v4114
      %v4230 = vpop.f32.mrb[0].mxu0
      %v4231 = vadd.f32 0.0, %v4230
      %v4232 = vpop.f32.mrb[0].mxu0
      %v4233 = vpop.f32.mrb[0].mxu0
      %v4234 = vadd.f32 0.0, %v4233
      %v4235 = vpop.f32.mrb[0].mxu0
      %4236 = vmatprep.mubr.bf16.mxu0 0
      %4237 = vmatmul.mubr.bf16.gmra.mrb[0].mxu0 %v4117
      %v4238 = vpop.f32.mrb[0].mxu0
      %v4239 = vadd.f32 0.0, %v4238
      %v4240 = vpop.f32.mrb[0].mxu0
      %v4241 = vpop.f32.mrb[0].mxu0
      %v4242 = vadd.f32 0.0, %v4241
      %v4243 = vpop.f32.mrb[0].mxu0
      %4244 = vmatprep.mubr.bf16.mxu0 0
      %4245 = vmatmul.mubr.bf16.gmra.mrb[0].mxu0 %v4120
      %v4246 = vpop.f32.mrb[0].mxu0
      %v4247 = vadd.f32 0.0, %v4246
      %v4248 = vpop.f32.mrb[0].mxu0
      %v4249 = vpop.f32.mrb[0].mxu0
      %v4250 = vadd.f32 0.0, %v4249
      %v4251 = vpop.f32.mrb[0].mxu0
      %4252 = vmatprep.mubr.bf16.mxu0 0
      %4253 = vmatmul.mubr.bf16.gmra.mrb[0].mxu0 %v4123
      %v4254 = vpop.f32.mrb[0].mxu0
      %v4255 = vadd.f32 0.0, %v4254
      %v4256 = vpop.f32.mrb[0].mxu0
      %v4257 = vpop.f32.mrb[0].mxu0
      %v4258 = vadd.f32 0.0, %v4257
      %v4259 = vpop.f32.mrb[0].mxu0
      %4260 = vmatprep.mubr.bf16.mxu0 0
      %4261 = vmatmul.mubr.bf16.gmra.mrb[0].mxu0 %v4126
      %v4262 = vpop.f32.mrb[0].mxu0
      %v4263 = vadd.f32 0.0, %v4262
      %v4264 = vpop.f32.mrb[0].mxu0
      %v4265 = vpop.f32.mrb[0].mxu0
      %v4266 = vadd.f32 0.0, %v4265
      %v4267 = vpop.f32.mrb[0].mxu0
      %4268 = vmatprep.mubr.bf16.mxu0 0
      %4269 = vmatmul.mubr.bf16.gmra.mrb[0].mxu0 %v4129
      %v4270 = vpop.f32.mrb[0].mxu0
      %v4271 = vadd.f32 0.0, %v4270
      %v4272 = vpop.f32.mrb[0].mxu0
      %v4273 = vpop.f32.mrb[0].mxu0
      %v4274 = vadd.f32 0.0, %v4273
      %v4275 = vpop.f32.mrb[0].mxu0
      %4276 = vmatprep.mubr.bf16.mxu0 0
      %4277 = vmatmul.mubr.bf16.gmra.mrb[0].mxu0 %v4132
      %v4278 = vpop.f32.mrb[0].mxu0
      %v4279 = vadd.f32 0.0, %v4278
      %v4280 = vpop.f32.mrb[0].mxu0
      %v4281 = vpop.f32.mrb[0].mxu0
      %v4282 = vadd.f32 0.0, %v4281
      %v4283 = vpop.f32.mrb[0].mxu0
      %4284 = vmatprep.mubr.bf16.mxu0 0
      %4285 = vmatmul.mubr.bf16.gmra.mrb[0].mxu0 %v4135
      %v4286 = vpop.f32.mrb[0].mxu0
      %v4287 = vadd.f32 0.0, %v4286
      %v4288 = vpop.f32.mrb[0].mxu0
      %v4289 = vpop.f32.mrb[0].mxu0
      %v4290 = vadd.f32 0.0, %v4289
      %v4291 = vpop.f32.mrb[0].mxu0
      %4292 = vmatprep.mubr.bf16.mxu0 0
      %4293 = vmatmul.mubr.bf16.gmra.mrb[0].mxu0 %v4138
      %v4294 = vpop.f32.mrb[0].mxu0
      %v4295 = vadd.f32 0.0, %v4294
      %v4296 = vpop.f32.mrb[0].mxu0
      %v4297 = vpop.f32.mrb[0].mxu0
      %v4298 = vadd.f32 0.0, %v4297
      %v4299 = vpop.f32.mrb[0].mxu0
      %4300 = vdwg.mxu0
      %v4301 = vld [vmem:[#allocation2] sm:$0xff]
      %v4302 = vld [vmem:[#allocation2 + $0x8] sm:$0xff]
      %v4303 = vld [vmem:[#allocation2 + $0x10] sm:$0xff]
      %v4304 = vld [vmem:[#allocation2 + $0x18] sm:$0xff]
      %v4305 = vld [vmem:[#allocation2 + $0x20] sm:$0xff]
      %v4306 = vld [vmem:[#allocation2 + $0x28] sm:$0xff]
      %v4307 = vld [vmem:[#allocation2 + $0x30] sm:$0xff]
      %v4308 = vld [vmem:[#allocation2 + $0x38] sm:$0xff]
      %v4309 = vld [vmem:[#allocation2 + $0x40] sm:$0xff]
      %v4310 = vld [vmem:[#allocation2 + $0x48] sm:$0xff]
      %v4311 = vld [vmem:[#allocation2 + $0x50] sm:$0xff]
      %v4312 = vld [vmem:[#allocation2 + $0x58] sm:$0xff]
      %v4313 = vld [vmem:[#allocation2 + $0x60] sm:$0xff]
      %v4314 = vld [vmem:[#allocation2 + $0x68] sm:$0xff]
      %v4315 = vld [vmem:[#allocation2 + $0x70] sm:$0xff]
      %v4316 = vld [vmem:[#allocation2 + $0x78] sm:$0xff]
      %v4317 = vld [vmem:[#allocation2 + $0x80] sm:$0xff]
      %v4318 = vld [vmem:[#allocation2 + $0x88] sm:$0xff]
      %v4319 = vld [vmem:[#allocation2 + $0x90] sm:$0xff]
      %v4320 = vld [vmem:[#allocation2 + $0x98] sm:$0xff]
      %v4321 = vld [vmem:[#allocation2 + $0xa0] sm:$0xff]
      %v4322 = vld [vmem:[#allocation2 + $0xa8] sm:$0xff]
      %v4323 = vld [vmem:[#allocation2 + $0xb0] sm:$0xff]
      %v4324 = vld [vmem:[#allocation2 + $0xb8] sm:$0xff]
      %v4325 = vld [vmem:[#allocation2 + $0xc0] sm:$0xff]
      %v4326 = vld [vmem:[#allocation2 + $0xc8] sm:$0xff]
      %v4327 = vld [vmem:[#allocation2 + $0xd0] sm:$0xff]
      %v4328 = vld [vmem:[#allocation2 + $0xd8] sm:$0xff]
      %v4329 = vld [vmem:[#allocation2 + $0xe0] sm:$0xff]
      %v4330 = vld [vmem:[#allocation2 + $0xe8] sm:$0xff]
      %v4331 = vld [vmem:[#allocation2 + $0xf0] sm:$0xff]
      %v4332 = vld [vmem:[#allocation2 + $0xf8] sm:$0xff]
      %v4333 = vadd.f32 %v4301, %v4175
      %v4334 = vadd.f32 %v4302, %v4178
      %v4335 = vadd.f32 %v4303, %v4183
      %v4336 = vadd.f32 %v4304, %v4186
      %v4337 = vadd.f32 %v4305, %v4191
      %v4338 = vadd.f32 %v4306, %v4194
      %v4339 = vadd.f32 %v4307, %v4199
      %v4340 = vadd.f32 %v4308, %v4202
      %v4341 = vadd.f32 %v4309, %v4207
      %v4342 = vadd.f32 %v4310, %v4210
      %v4343 = vadd.f32 %v4311, %v4215
      %v4344 = vadd.f32 %v4312, %v4218
      %v4345 = vadd.f32 %v4313, %v4223
      %v4346 = vadd.f32 %v4314, %v4226
      %v4347 = vadd.f32 %v4315, %v4231
      %v4348 = vadd.f32 %v4316, %v4234
      %v4349 = vadd.f32 %v4317, %v4239
      %v4350 = vadd.f32 %v4318, %v4242
      %v4351 = vadd.f32 %v4319, %v4247
      %v4352 = vadd.f32 %v4320, %v4250
      %v4353 = vadd.f32 %v4321, %v4255
      %v4354 = vadd.f32 %v4322, %v4258
      %v4355 = vadd.f32 %v4323, %v4263
      %v4356 = vadd.f32 %v4324, %v4266
      %v4357 = vadd.f32 %v4325, %v4271
      %v4358 = vadd.f32 %v4326, %v4274
      %v4359 = vadd.f32 %v4327, %v4279
      %v4360 = vadd.f32 %v4328, %v4282
      %v4361 = vadd.f32 %v4329, %v4287
      %v4362 = vadd.f32 %v4330, %v4290
      %v4363 = vadd.f32 %v4331, %v4295
      %v4364 = vadd.f32 %v4332, %v4298
      %4365 = vst [vmem:[#allocation2] sm:$0xff] %v4333
      %4366 = vst [vmem:[#allocation2 + $0x8] sm:$0xff] %v4334
      %4367 = vst [vmem:[#allocation2 + $0x10] sm:$0xff] %v4335
      %4368 = vst [vmem:[#allocation2 + $0x18] sm:$0xff] %v4336
      %4369 = vst [vmem:[#allocation2 + $0x20] sm:$0xff] %v4337
      %4370 = vst [vmem:[#allocation2 + $0x28] sm:$0xff] %v4338
      %4371 = vst [vmem:[#allocation2 + $0x30] sm:$0xff] %v4339
      %4372 = vst [vmem:[#allocation2 + $0x38] sm:$0xff] %v4340
      %4373 = vst [vmem:[#allocation2 + $0x40] sm:$0xff] %v4341
      %4374 = vst [vmem:[#allocation2 + $0x48] sm:$0xff] %v4342
      %4375 = vst [vmem:[#allocation2 + $0x50] sm:$0xff] %v4343
      %4376 = vst [vmem:[#allocation2 + $0x58] sm:$0xff] %v4344
      %4377 = vst [vmem:[#allocation2 + $0x60] sm:$0xff] %v4345
      %4378 = vst [vmem:[#allocation2 + $0x68] sm:$0xff] %v4346
      %4379 = vst [vmem:[#allocation2 + $0x70] sm:$0xff] %v4347
      %4380 = vst [vmem:[#allocation2 + $0x78] sm:$0xff] %v4348
      %4381 = vst [vmem:[#allocation2 + $0x80] sm:$0xff] %v4349
      %4382 = vst [vmem:[#allocation2 + $0x88] sm:$0xff] %v4350
      %4383 = vst [vmem:[#allocation2 + $0x90] sm:$0xff] %v4351
      %4384 = vst [vmem:[#allocation2 + $0x98] sm:$0xff] %v4352
      %4385 = vst [vmem:[#allocation2 + $0xa0] sm:$0xff] %v4353
      %4386 = vst [vmem:[#allocation2 + $0xa8] sm:$0xff] %v4354
      %4387 = vst [vmem:[#allocation2 + $0xb0] sm:$0xff] %v4355
      %4388 = vst [vmem:[#allocation2 + $0xb8] sm:$0xff] %v4356
      %4389 = vst [vmem:[#allocation2 + $0xc0] sm:$0xff] %v4357
      %4390 = vst [vmem:[#allocation2 + $0xc8] sm:$0xff] %v4358
      %4391 = vst [vmem:[#allocation2 + $0xd0] sm:$0xff] %v4359
      %4392 = vst [vmem:[#allocation2 + $0xd8] sm:$0xff] %v4360
      %4393 = vst [vmem:[#allocation2 + $0xe0] sm:$0xff] %v4361
      %4394 = vst [vmem:[#allocation2 + $0xe8] sm:$0xff] %v4362
      %4395 = vst [vmem:[#allocation2 + $0xf0] sm:$0xff] %v4363
      %4396 = vst [vmem:[#allocation2 + $0xf8] sm:$0xff] %v4364
      %v4397 = vld [vmem:[%s3946] sm:$0xf]
      %v4398 = vld [vmem:[%s3946 + $0x4] sm:$0xf]
      %v4399 = vld [vmem:[%s3946 + $0x8] sm:$0x1]
      %v4400 = vld [vmem:[%s3946 + $0xc] sm:$0xf]
      %v4401 = vld [vmem:[%s3946 + $0x10] sm:$0xf]
      %v4402 = vld [vmem:[%s3946 + $0x14] sm:$0x1]
      %v4403 = vld [vmem:[%s3946 + $0x18] sm:$0xf]
      %v4404 = vld [vmem:[%s3946 + $0x1c] sm:$0xf]
      %v4405 = vld [vmem:[%s3946 + $0x20] sm:$0x1]
      %v4406 = vld [vmem:[%s3946 + $0x24] sm:$0xf]
      %v4407 = vld [vmem:[%s3946 + $0x28] sm:$0xf]
      %v4408 = vld [vmem:[%s3946 + $0x2c] sm:$0x1]
      %v4409 = vld [vmem:[%s3946 + $0x30] sm:$0xf]
      %v4410 = vld [vmem:[%s3946 + $0x34] sm:$0xf]
      %v4411 = vld [vmem:[%s3946 + $0x38] sm:$0x1]
      %v4412 = vld [vmem:[%s3946 + $0x3c] sm:$0xf]
      %v4413 = vld [vmem:[%s3946 + $0x40] sm:$0xf]
      %v4414 = vld [vmem:[%s3946 + $0x44] sm:$0x1]
      %v4415 = vld [vmem:[%s3946 + $0x48] sm:$0xf]
      %v4416 = vld [vmem:[%s3946 + $0x4c] sm:$0xf]
      %v4417 = vld [vmem:[%s3946 + $0x50] sm:$0x1]
      %v4418 = vld [vmem:[%s3946 + $0x54] sm:$0xf]
      %v4419 = vld [vmem:[%s3946 + $0x58] sm:$0xf]
      %v4420 = vld [vmem:[%s3946 + $0x5c] sm:$0x1]
      %v4421 = vld [vmem:[%s3946 + $0x60] sm:$0xf]
      %v4422 = vld [vmem:[%s3946 + $0x64] sm:$0xf]
      %v4423 = vld [vmem:[%s3946 + $0x68] sm:$0x1]
      %v4424 = vld [vmem:[%s3946 + $0x6c] sm:$0xf]
      %v4425 = vld [vmem:[%s3946 + $0x70] sm:$0xf]
      %v4426 = vld [vmem:[%s3946 + $0x74] sm:$0x1]
      %v4427 = vld [vmem:[%s3946 + $0x78] sm:$0xf]
      %v4428 = vld [vmem:[%s3946 + $0x7c] sm:$0xf]
      %v4429 = vld [vmem:[%s3946 + $0x80] sm:$0x1]
      %v4430 = vld [vmem:[%s3946 + $0x84] sm:$0xf]
      %v4431 = vld [vmem:[%s3946 + $0x88] sm:$0xf]
      %v4432 = vld [vmem:[%s3946 + $0x8c] sm:$0x1]
      %v4433 = vld [vmem:[%s3946 + $0x90] sm:$0xf]
      %v4434 = vld [vmem:[%s3946 + $0x94] sm:$0xf]
      %v4435 = vld [vmem:[%s3946 + $0x98] sm:$0x1]
      %v4436 = vld [vmem:[%s3946 + $0x9c] sm:$0xf]
      %v4437 = vld [vmem:[%s3946 + $0xa0] sm:$0xf]
      %v4438 = vld [vmem:[%s3946 + $0xa4] sm:$0x1]
      %v4439 = vld [vmem:[%s3946 + $0xa8] sm:$0xf]
      %v4440 = vld [vmem:[%s3946 + $0xac] sm:$0xf]
      %v4441 = vld [vmem:[%s3946 + $0xb0] sm:$0x1]
      %v4442 = vld [vmem:[%s3946 + $0xb4] sm:$0xf]
      %v4443 = vld [vmem:[%s3946 + $0xb8] sm:$0xf]
      %v4444 = vld [vmem:[%s3946 + $0xbc] sm:$0x1]
      %v4446 = vshrl.u32 %v4397, 16
      %v4448 = vrot.slane %v4446, 4
      %v4449 = vshll.u32 %v4397, 16
      %v4451 = vrot.slane %v4449, 5
      %v4452 = vor.u32 %v4448, %v4451
      %v4453 = vrot.slane %v4452, 4
      %v4455 = vshll.u32 %v4398, 16
      %v4457 = vrot.slane %v4455, 5
      %v4458 = vsel %vm709, %v4453, %v4457
      %v4459 = vshrl.u32 %v4398, 16
      %v4461 = vrot.slane %v4459, 4
      %v4462 = vor.u32 %v4461, %v4457
      %v4463 = vrot.slane %v4462, 4
      %v4465 = vshll.u32 %v4399, 16
      %v4467 = vrot.slane %v4465, 5
      %v4468 = vsel %vm709, %v4463, %v4467
      %v4470 = vshrl.u32 %v4400, 16
      %v4472 = vrot.slane %v4470, 4
      %v4473 = vshll.u32 %v4400, 16
      %v4475 = vrot.slane %v4473, 5
      %v4476 = vor.u32 %v4472, %v4475
      %v4477 = vrot.slane %v4476, 4
      %v4479 = vshll.u32 %v4401, 16
      %v4481 = vrot.slane %v4479, 5
      %v4482 = vsel %vm709, %v4477, %v4481
      %v4483 = vshrl.u32 %v4401, 16
      %v4485 = vrot.slane %v4483, 4
      %v4486 = vor.u32 %v4485, %v4481
      %v4487 = vrot.slane %v4486, 4
      %v4489 = vshll.u32 %v4402, 16
      %v4491 = vrot.slane %v4489, 5
      %v4492 = vsel %vm709, %v4487, %v4491
      %v4494 = vshrl.u32 %v4403, 16
      %v4496 = vrot.slane %v4494, 4
      %v4497 = vshll.u32 %v4403, 16
      %v4499 = vrot.slane %v4497, 5
      %v4500 = vor.u32 %v4496, %v4499
      %v4501 = vrot.slane %v4500, 4
      %v4503 = vshll.u32 %v4404, 16
      %v4505 = vrot.slane %v4503, 5
      %v4506 = vsel %vm709, %v4501, %v4505
      %v4507 = vshrl.u32 %v4404, 16
      %v4509 = vrot.slane %v4507, 4
      %v4510 = vor.u32 %v4509, %v4505
      %v4511 = vrot.slane %v4510, 4
      %v4513 = vshll.u32 %v4405, 16
      %v4515 = vrot.slane %v4513, 5
      %v4516 = vsel %vm709, %v4511, %v4515
      %v4518 = vshrl.u32 %v4406, 16
      %v4520 = vrot.slane %v4518, 4
      %v4521 = vshll.u32 %v4406, 16
      %v4523 = vrot.slane %v4521, 5
      %v4524 = vor.u32 %v4520, %v4523
      %v4525 = vrot.slane %v4524, 4
      %v4527 = vshll.u32 %v4407, 16
      %v4529 = vrot.slane %v4527, 5
      %v4530 = vsel %vm709, %v4525, %v4529
      %v4531 = vshrl.u32 %v4407, 16
      %v4533 = vrot.slane %v4531, 4
      %v4534 = vor.u32 %v4533, %v4529
      %v4535 = vrot.slane %v4534, 4
      %v4537 = vshll.u32 %v4408, 16
      %v4539 = vrot.slane %v4537, 5
      %v4540 = vsel %vm709, %v4535, %v4539
      %v4542 = vshrl.u32 %v4409, 16
      %v4544 = vrot.slane %v4542, 4
      %v4545 = vshll.u32 %v4409, 16
      %v4547 = vrot.slane %v4545, 5
      %v4548 = vor.u32 %v4544, %v4547
      %v4549 = vrot.slane %v4548, 4
      %v4551 = vshll.u32 %v4410, 16
      %v4553 = vrot.slane %v4551, 5
      %v4554 = vsel %vm709, %v4549, %v4553
      %v4555 = vshrl.u32 %v4410, 16
      %v4557 = vrot.slane %v4555, 4
      %v4558 = vor.u32 %v4557, %v4553
      %v4559 = vrot.slane %v4558, 4
      %v4561 = vshll.u32 %v4411, 16
      %v4563 = vrot.slane %v4561, 5
      %v4564 = vsel %vm709, %v4559, %v4563
      %v4566 = vshrl.u32 %v4412, 16
      %v4568 = vrot.slane %v4566, 4
      %v4569 = vshll.u32 %v4412, 16
      %v4571 = vrot.slane %v4569, 5
      %v4572 = vor.u32 %v4568, %v4571
      %v4573 = vrot.slane %v4572, 4
      %v4575 = vshll.u32 %v4413, 16
      %v4577 = vrot.slane %v4575, 5
      %v4578 = vsel %vm709, %v4573, %v4577
      %v4579 = vshrl.u32 %v4413, 16
      %v4581 = vrot.slane %v4579, 4
      %v4582 = vor.u32 %v4581, %v4577
      %v4583 = vrot.slane %v4582, 4
      %v4585 = vshll.u32 %v4414, 16
      %v4587 = vrot.slane %v4585, 5
      %v4588 = vsel %vm709, %v4583, %v4587
      %v4590 = vshrl.u32 %v4415, 16
      %v4592 = vrot.slane %v4590, 4
      %v4593 = vshll.u32 %v4415, 16
      %v4595 = vrot.slane %v4593, 5
      %v4596 = vor.u32 %v4592, %v4595
      %v4597 = vrot.slane %v4596, 4
      %v4599 = vshll.u32 %v4416, 16
      %v4601 = vrot.slane %v4599, 5
      %v4602 = vsel %vm709, %v4597, %v4601
      %v4603 = vshrl.u32 %v4416, 16
      %v4605 = vrot.slane %v4603, 4
      %v4606 = vor.u32 %v4605, %v4601
      %v4607 = vrot.slane %v4606, 4
      %v4609 = vshll.u32 %v4417, 16
      %v4611 = vrot.slane %v4609, 5
      %v4612 = vsel %vm709, %v4607, %v4611
      %v4614 = vshrl.u32 %v4418, 16
      %v4616 = vrot.slane %v4614, 4
      %v4617 = vshll.u32 %v4418, 16
      %v4619 = vrot.slane %v4617, 5
      %v4620 = vor.u32 %v4616, %v4619
      %v4621 = vrot.slane %v4620, 4
      %v4623 = vshll.u32 %v4419, 16
      %v4625 = vrot.slane %v4623, 5
      %v4626 = vsel %vm709, %v4621, %v4625
      %v4627 = vshrl.u32 %v4419, 16
      %v4629 = vrot.slane %v4627, 4
      %v4630 = vor.u32 %v4629, %v4625
      %v4631 = vrot.slane %v4630, 4
      %v4633 = vshll.u32 %v4420, 16
      %v4635 = vrot.slane %v4633, 5
      %v4636 = vsel %vm709, %v4631, %v4635
      %v4638 = vshrl.u32 %v4421, 16
      %v4640 = vrot.slane %v4638, 4
      %v4641 = vshll.u32 %v4421, 16
      %v4643 = vrot.slane %v4641, 5
      %v4644 = vor.u32 %v4640, %v4643
      %v4645 = vrot.slane %v4644, 4
      %v4647 = vshll.u32 %v4422, 16
      %v4649 = vrot.slane %v4647, 5
      %v4650 = vsel %vm709, %v4645, %v4649
      %v4651 = vshrl.u32 %v4422, 16
      %v4653 = vrot.slane %v4651, 4
      %v4654 = vor.u32 %v4653, %v4649
      %v4655 = vrot.slane %v4654, 4
      %v4657 = vshll.u32 %v4423, 16
      %v4659 = vrot.slane %v4657, 5
      %v4660 = vsel %vm709, %v4655, %v4659
      %v4662 = vshrl.u32 %v4424, 16
      %v4664 = vrot.slane %v4662, 4
      %v4665 = vshll.u32 %v4424, 16
      %v4667 = vrot.slane %v4665, 5
      %v4668 = vor.u32 %v4664, %v4667
      %v4669 = vrot.slane %v4668, 4
      %v4671 = vshll.u32 %v4425, 16
      %v4673 = vrot.slane %v4671, 5
      %v4674 = vsel %vm709, %v4669, %v4673
      %v4675 = vshrl.u32 %v4425, 16
      %v4677 = vrot.slane %v4675, 4
      %v4678 = vor.u32 %v4677, %v4673
      %v4679 = vrot.slane %v4678, 4
      %v4681 = vshll.u32 %v4426, 16
      %v4683 = vrot.slane %v4681, 5
      %v4684 = vsel %vm709, %v4679, %v4683
      %v4686 = vshrl.u32 %v4427, 16
      %v4688 = vrot.slane %v4686, 4
      %v4689 = vshll.u32 %v4427, 16
      %v4691 = vrot.slane %v4689, 5
      %v4692 = vor.u32 %v4688, %v4691
      %v4693 = vrot.slane %v4692, 4
      %v4695 = vshll.u32 %v4428, 16
      %v4697 = vrot.slane %v4695, 5
      %v4698 = vsel %vm709, %v4693, %v4697
      %v4699 = vshrl.u32 %v4428, 16
      %v4701 = vrot.slane %v4699, 4
      %v4702 = vor.u32 %v4701, %v4697
      %v4703 = vrot.slane %v4702, 4
      %v4705 = vshll.u32 %v4429, 16
      %v4707 = vrot.slane %v4705, 5
      %v4708 = vsel %vm709, %v4703, %v4707
      %v4710 = vshrl.u32 %v4430, 16
      %v4712 = vrot.slane %v4710, 4
      %v4713 = vshll.u32 %v4430, 16
      %v4715 = vrot.slane %v4713, 5
      %v4716 = vor.u32 %v4712, %v4715
      %v4717 = vrot.slane %v4716, 4
      %v4719 = vshll.u32 %v4431, 16
      %v4721 = vrot.slane %v4719, 5
      %v4722 = vsel %vm709, %v4717, %v4721
      %v4723 = vshrl.u32 %v4431, 16
      %v4725 = vrot.slane %v4723, 4
      %v4726 = vor.u32 %v4725, %v4721
      %v4727 = vrot.slane %v4726, 4
      %v4729 = vshll.u32 %v4432, 16
      %v4731 = vrot.slane %v4729, 5
      %v4732 = vsel %vm709, %v4727, %v4731
      %v4734 = vshrl.u32 %v4433, 16
      %v4736 = vrot.slane %v4734, 4
      %v4737 = vshll.u32 %v4433, 16
      %v4739 = vrot.slane %v4737, 5
      %v4740 = vor.u32 %v4736, %v4739
      %v4741 = vrot.slane %v4740, 4
      %v4743 = vshll.u32 %v4434, 16
      %v4745 = vrot.slane %v4743, 5
      %v4746 = vsel %vm709, %v4741, %v4745
      %v4747 = vshrl.u32 %v4434, 16
      %v4749 = vrot.slane %v4747, 4
      %v4750 = vor.u32 %v4749, %v4745
      %v4751 = vrot.slane %v4750, 4
      %v4753 = vshll.u32 %v4435, 16
      %v4755 = vrot.slane %v4753, 5
      %v4756 = vsel %vm709, %v4751, %v4755
      %v4758 = vshrl.u32 %v4436, 16
      %v4760 = vrot.slane %v4758, 4
      %v4761 = vshll.u32 %v4436, 16
      %v4763 = vrot.slane %v4761, 5
      %v4764 = vor.u32 %v4760, %v4763
      %v4765 = vrot.slane %v4764, 4
      %v4767 = vshll.u32 %v4437, 16
      %v4769 = vrot.slane %v4767, 5
      %v4770 = vsel %vm709, %v4765, %v4769
      %v4771 = vshrl.u32 %v4437, 16
      %v4773 = vrot.slane %v4771, 4
      %v4774 = vor.u32 %v4773, %v4769
      %v4775 = vrot.slane %v4774, 4
      %v4777 = vshll.u32 %v4438, 16
      %v4779 = vrot.slane %v4777, 5
      %v4780 = vsel %vm709, %v4775, %v4779
      %v4782 = vshrl.u32 %v4439, 16
      %v4784 = vrot.slane %v4782, 4
      %v4785 = vshll.u32 %v4439, 16
      %v4787 = vrot.slane %v4785, 5
      %v4788 = vor.u32 %v4784, %v4787
      %v4789 = vrot.slane %v4788, 4
      %v4791 = vshll.u32 %v4440, 16
      %v4793 = vrot.slane %v4791, 5
      %v4794 = vsel %vm709, %v4789, %v4793
      %v4795 = vshrl.u32 %v4440, 16
      %v4797 = vrot.slane %v4795, 4
      %v4798 = vor.u32 %v4797, %v4793
      %v4799 = vrot.slane %v4798, 4
      %v4801 = vshll.u32 %v4441, 16
      %v4803 = vrot.slane %v4801, 5
      %v4804 = vsel %vm709, %v4799, %v4803
      %v4806 = vshrl.u32 %v4442, 16
      %v4808 = vrot.slane %v4806, 4
      %v4809 = vshll.u32 %v4442, 16
      %v4811 = vrot.slane %v4809, 5
      %v4812 = vor.u32 %v4808, %v4811
      %v4813 = vrot.slane %v4812, 4
      %v4815 = vshll.u32 %v4443, 16
      %v4817 = vrot.slane %v4815, 5
      %v4818 = vsel %vm709, %v4813, %v4817
      %v4819 = vshrl.u32 %v4443, 16
      %v4821 = vrot.slane %v4819, 4
      %v4822 = vor.u32 %v4821, %v4817
      %v4823 = vrot.slane %v4822, 4
      %v4825 = vshll.u32 %v4444, 16
      %v4827 = vrot.slane %v4825, 5
      %v4828 = vsel %vm709, %v4823, %v4827
      %s4829 = scalar_lea.vmem %s1, 224
      %v4830 = vld [vmem:[%s4829] sm:$0xf]
      %v4831 = vld [vmem:[%s4829 + $0x4] sm:$0xf]
      %v4832 = vld [vmem:[%s4829 + $0x8] sm:$0xf]
      %v4833 = vld [vmem:[%s4829 + $0xc] sm:$0xf]
      %v4834 = vld [vmem:[%s4829 + $0x10] sm:$0xf]
      %v4835 = vld [vmem:[%s4829 + $0x14] sm:$0xf]
      %v4836 = vld [vmem:[%s4829 + $0x18] sm:$0xf]
      %v4837 = vld [vmem:[%s4829 + $0x1c] sm:$0xf]
      %v4838 = vunpack.c.l.b16 %v4458
      %v4839 = vunpack.c.l.b16 %v4468
      %v4840 = vunpack.c.l.b16 %v4482
      %v4841 = vunpack.c.l.b16 %v4492
      %v4842 = vunpack.c.l.b16 %v4506
      %v4843 = vunpack.c.l.b16 %v4516
      %v4844 = vunpack.c.l.b16 %v4530
      %v4845 = vunpack.c.l.b16 %v4540
      %v4846 = vunpack.c.l.b16 %v4554
      %v4847 = vunpack.c.l.b16 %v4564
      %v4848 = vunpack.c.l.b16 %v4578
      %v4849 = vunpack.c.l.b16 %v4588
      %v4850 = vunpack.c.l.b16 %v4602
      %v4851 = vunpack.c.l.b16 %v4612
      %v4852 = vunpack.c.l.b16 %v4626
      %v4853 = vunpack.c.l.b16 %v4636
      %v4854 = vunpack.c.l.b16 %v4650
      %v4855 = vunpack.c.l.b16 %v4660
      %v4856 = vunpack.c.l.b16 %v4674
      %v4857 = vunpack.c.l.b16 %v4684
      %v4858 = vunpack.c.l.b16 %v4698
      %v4859 = vunpack.c.l.b16 %v4708
      %v4860 = vunpack.c.l.b16 %v4722
      %v4861 = vunpack.c.l.b16 %v4732
      %v4862 = vunpack.c.l.b16 %v4746
      %v4863 = vunpack.c.l.b16 %v4756
      %v4864 = vunpack.c.l.b16 %v4770
      %v4865 = vunpack.c.l.b16 %v4780
      %v4866 = vunpack.c.l.b16 %v4794
      %v4867 = vunpack.c.l.b16 %v4804
      %v4868 = vunpack.c.l.b16 %v4818
      %v4869 = vunpack.c.l.b16 %v4828
      %v4870 = vpack.c.b16 %v4839, %v4838
      %v4871 = vpack.c.b16 %v4841, %v4840
      %v4872 = vpack.c.b16 %v4843, %v4842
      %v4873 = vpack.c.b16 %v4845, %v4844
      %v4874 = vpack.c.b16 %v4847, %v4846
      %v4875 = vpack.c.b16 %v4849, %v4848
      %v4876 = vpack.c.b16 %v4851, %v4850
      %v4877 = vpack.c.b16 %v4853, %v4852
      %v4878 = vpack.c.b16 %v4855, %v4854
      %v4879 = vpack.c.b16 %v4857, %v4856
      %v4880 = vpack.c.b16 %v4859, %v4858
      %v4881 = vpack.c.b16 %v4861, %v4860
      %v4882 = vpack.c.b16 %v4863, %v4862
      %v4883 = vpack.c.b16 %v4865, %v4864
      %v4884 = vpack.c.b16 %v4867, %v4866
      %v4885 = vpack.c.b16 %v4869, %v4868
      %v4894 = vunpack.c.l.b16 %v4830
      %v4895 = vunpack.c.l.b16 %v4831
      %v4896 = vunpack.c.l.b16 %v4832
      %v4897 = vunpack.c.l.b16 %v4833
      %v4898 = vunpack.c.l.b16 %v4834
      %v4899 = vunpack.c.l.b16 %v4835
      %v4900 = vunpack.c.l.b16 %v4836
      %v4901 = vunpack.c.l.b16 %v4837
      %v4902 = vpack.c.b16 %v4895, %v4894
      %v4903 = vpack.c.b16 %v4897, %v4896
      %v4904 = vpack.c.b16 %v4899, %v4898
      %v4905 = vpack.c.b16 %v4901, %v4900
      %v4911 = vsel %vm417, %v4870, 0
      %v4914 = vsel %vm417, %v4871, 0
      %v4917 = vsel %vm417, %v4872, 0
      %v4920 = vsel %vm417, %v4873, 0
      %v4923 = vsel %vm417, %v4874, 0
      %v4926 = vsel %vm417, %v4875, 0
      %v4929 = vsel %vm417, %v4876, 0
      %v4932 = vsel %vm417, %v4877, 0
      %v4935 = vsel %vm417, %v4878, 0
      %v4938 = vsel %vm417, %v4879, 0
      %v4941 = vsel %vm417, %v4880, 0
      %v4944 = vsel %vm417, %v4881, 0
      %v4947 = vsel %vm417, %v4882, 0
      %v4950 = vsel %vm417, %v4883, 0
      %v4953 = vsel %vm417, %v4884, 0
      %v4956 = vsel %vm417, %v4885, 0
      %4958 = vmatprep.subr.bf16.mxu0 0
      %4959 = vmatpush1.bf16.msra.mxu0 %v4902
      %4960 = vmatprep.subr.bf16.mxu0 0
      %4961 = vmatpush1.bf16.msra.mxu0 %v4903
      %4962 = vmatprep.subr.bf16.mxu0 0
      %4963 = vmatpush1.bf16.msra.mxu0 %v4904
      %4964 = vmatprep.subr.bf16.mxu0 0
      %4965 = vmatpush1.bf16.msra.mxu0 %v4905
      %4966 = vmatprep.subr.bf16.mxu0 0
      %4967 = vmatpush1.bf16.msra.mxu0 0
      %4968 = vmatprep.subr.bf16.mxu0 0
      %4969 = vmatpush1.bf16.msra.mxu0 0
      %4970 = vmatprep.subr.bf16.mxu0 0
      %4971 = vmatpush1.bf16.msra.mxu0 0
      %4972 = vmatprep.subr.bf16.mxu0 0
      %4973 = vmatpush1.bf16.msra.mxu0 0
      %4974 = vmatprep.subr.bf16.mxu0 0
      %4975 = vmatpush1.bf16.msra.mxu0 0
      %4976 = vmatprep.subr.bf16.mxu0 0
      %4977 = vmatpush1.bf16.msra.mxu0 0
      %4978 = vmatprep.subr.bf16.mxu0 0
      %4979 = vmatpush1.bf16.msra.mxu0 0
      %4980 = vmatprep.subr.bf16.mxu0 0
      %4981 = vmatpush1.bf16.msra.mxu0 0
      %4982 = vmatprep.subr.bf16.mxu0 0
      %4983 = vmatpush1.bf16.msra.mxu0 0
      %4984 = vmatprep.subr.bf16.mxu0 0
      %4985 = vmatpush1.bf16.msra.mxu0 0
      %4986 = vmatprep.subr.bf16.mxu0 0
      %4987 = vmatpush1.bf16.msra.mxu0 0
      %4988 = vmatprep.subr.bf16.mxu0 0
      %4989 = vmatpush1.bf16.msra.mxu0 0
      %4990 = vmatprep.mubr.bf16.mxu0 0
      %4991 = vmatmul.mubr.bf16.gmra.mrb[0].mxu0 %v4911
      %v4992 = vpop.f32.mrb[0].mxu0
      %v4993 = vadd.f32 0.0, %v4992
      %v4994 = vpop.f32.mrb[0].mxu0
      %v4995 = vpop.f32.mrb[0].mxu0
      %v4996 = vadd.f32 0.0, %v4995
      %v4997 = vpop.f32.mrb[0].mxu0
      %4998 = vmatprep.mubr.bf16.mxu0 0
      %4999 = vmatmul.mubr.bf16.gmra.mrb[0].mxu0 %v4914
      %v5000 = vpop.f32.mrb[0].mxu0
      %v5001 = vadd.f32 0.0, %v5000
      %v5002 = vpop.f32.mrb[0].mxu0
      %v5003 = vpop.f32.mrb[0].mxu0
      %v5004 = vadd.f32 0.0, %v5003
      %v5005 = vpop.f32.mrb[0].mxu0
      %5006 = vmatprep.mubr.bf16.mxu0 0
      %5007 = vmatmul.mubr.bf16.gmra.mrb[0].mxu0 %v4917
      %v5008 = vpop.f32.mrb[0].mxu0
      %v5009 = vadd.f32 0.0, %v5008
      %v5010 = vpop.f32.mrb[0].mxu0
      %v5011 = vpop.f32.mrb[0].mxu0
      %v5012 = vadd.f32 0.0, %v5011
      %v5013 = vpop.f32.mrb[0].mxu0
      %5014 = vmatprep.mubr.bf16.mxu0 0
      %5015 = vmatmul.mubr.bf16.gmra.mrb[0].mxu0 %v4920
      %v5016 = vpop.f32.mrb[0].mxu0
      %v5017 = vadd.f32 0.0, %v5016
      %v5018 = vpop.f32.mrb[0].mxu0
      %v5019 = vpop.f32.mrb[0].mxu0
      %v5020 = vadd.f32 0.0, %v5019
      %v5021 = vpop.f32.mrb[0].mxu0
      %5022 = vmatprep.mubr.bf16.mxu0 0
      %5023 = vmatmul.mubr.bf16.gmra.mrb[0].mxu0 %v4923
      %v5024 = vpop.f32.mrb[0].mxu0
      %v5025 = vadd.f32 0.0, %v5024
      %v5026 = vpop.f32.mrb[0].mxu0
      %v5027 = vpop.f32.mrb[0].mxu0
      %v5028 = vadd.f32 0.0, %v5027
      %v5029 = vpop.f32.mrb[0].mxu0
      %5030 = vmatprep.mubr.bf16.mxu0 0
      %5031 = vmatmul.mubr.bf16.gmra.mrb[0].mxu0 %v4926
      %v5032 = vpop.f32.mrb[0].mxu0
      %v5033 = vadd.f32 0.0, %v5032
      %v5034 = vpop.f32.mrb[0].mxu0
      %v5035 = vpop.f32.mrb[0].mxu0
      %v5036 = vadd.f32 0.0, %v5035
      %v5037 = vpop.f32.mrb[0].mxu0
      %5038 = vmatprep.mubr.bf16.mxu0 0
      %5039 = vmatmul.mubr.bf16.gmra.mrb[0].mxu0 %v4929
      %v5040 = vpop.f32.mrb[0].mxu0
      %v5041 = vadd.f32 0.0, %v5040
      %v5042 = vpop.f32.mrb[0].mxu0
      %v5043 = vpop.f32.mrb[0].mxu0
      %v5044 = vadd.f32 0.0, %v5043
      %v5045 = vpop.f32.mrb[0].mxu0
      %5046 = vmatprep.mubr.bf16.mxu0 0
      %5047 = vmatmul.mubr.bf16.gmra.mrb[0].mxu0 %v4932
      %v5048 = vpop.f32.mrb[0].mxu0
      %v5049 = vadd.f32 0.0, %v5048
      %v5050 = vpop.f32.mrb[0].mxu0
      %v5051 = vpop.f32.mrb[0].mxu0
      %v5052 = vadd.f32 0.0, %v5051
      %v5053 = vpop.f32.mrb[0].mxu0
      %5054 = vmatprep.mubr.bf16.mxu0 0
      %5055 = vmatmul.mubr.bf16.gmra.mrb[0].mxu0 %v4935
      %v5056 = vpop.f32.mrb[0].mxu0
      %v5057 = vadd.f32 0.0, %v5056
      %v5058 = vpop.f32.mrb[0].mxu0
      %v5059 = vpop.f32.mrb[0].mxu0
      %v5060 = vadd.f32 0.0, %v5059
      %v5061 = vpop.f32.mrb[0].mxu0
      %5062 = vmatprep.mubr.bf16.mxu0 0
      %5063 = vmatmul.mubr.bf16.gmra.mrb[0].mxu0 %v4938
      %v5064 = vpop.f32.mrb[0].mxu0
      %v5065 = vadd.f32 0.0, %v5064
      %v5066 = vpop.f32.mrb[0].mxu0
      %v5067 = vpop.f32.mrb[0].mxu0
      %v5068 = vadd.f32 0.0, %v5067
      %v5069 = vpop.f32.mrb[0].mxu0
      %5070 = vmatprep.mubr.bf16.mxu0 0
      %5071 = vmatmul.mubr.bf16.gmra.mrb[0].mxu0 %v4941
      %v5072 = vpop.f32.mrb[0].mxu0
      %v5073 = vadd.f32 0.0, %v5072
      %v5074 = vpop.f32.mrb[0].mxu0
      %v5075 = vpop.f32.mrb[0].mxu0
      %v5076 = vadd.f32 0.0, %v5075
      %v5077 = vpop.f32.mrb[0].mxu0
      %5078 = vmatprep.mubr.bf16.mxu0 0
      %5079 = vmatmul.mubr.bf16.gmra.mrb[0].mxu0 %v4944
      %v5080 = vpop.f32.mrb[0].mxu0
      %v5081 = vadd.f32 0.0, %v5080
      %v5082 = vpop.f32.mrb[0].mxu0
      %v5083 = vpop.f32.mrb[0].mxu0
      %v5084 = vadd.f32 0.0, %v5083
      %v5085 = vpop.f32.mrb[0].mxu0
      %5086 = vmatprep.mubr.bf16.mxu0 0
      %5087 = vmatmul.mubr.bf16.gmra.mrb[0].mxu0 %v4947
      %v5088 = vpop.f32.mrb[0].mxu0
      %v5089 = vadd.f32 0.0, %v5088
      %v5090 = vpop.f32.mrb[0].mxu0
      %v5091 = vpop.f32.mrb[0].mxu0
      %v5092 = vadd.f32 0.0, %v5091
      %v5093 = vpop.f32.mrb[0].mxu0
      %5094 = vmatprep.mubr.bf16.mxu0 0
      %5095 = vmatmul.mubr.bf16.gmra.mrb[0].mxu0 %v4950
      %v5096 = vpop.f32.mrb[0].mxu0
      %v5097 = vadd.f32 0.0, %v5096
      %v5098 = vpop.f32.mrb[0].mxu0
      %v5099 = vpop.f32.mrb[0].mxu0
      %v5100 = vadd.f32 0.0, %v5099
      %v5101 = vpop.f32.mrb[0].mxu0
      %5102 = vmatprep.mubr.bf16.mxu0 0
      %5103 = vmatmul.mubr.bf16.gmra.mrb[0].mxu0 %v4953
      %v5104 = vpop.f32.mrb[0].mxu0
      %v5105 = vadd.f32 0.0, %v5104
      %v5106 = vpop.f32.mrb[0].mxu0
      %v5107 = vpop.f32.mrb[0].mxu0
      %v5108 = vadd.f32 0.0, %v5107
      %v5109 = vpop.f32.mrb[0].mxu0
      %5110 = vmatprep.mubr.bf16.mxu0 0
      %5111 = vmatmul.mubr.bf16.gmra.mrb[0].mxu0 %v4956
      %v5112 = vpop.f32.mrb[0].mxu0
      %v5113 = vadd.f32 0.0, %v5112
      %v5114 = vpop.f32.mrb[0].mxu0
      %v5115 = vpop.f32.mrb[0].mxu0
      %v5116 = vadd.f32 0.0, %v5115
      %v5117 = vpop.f32.mrb[0].mxu0
      %5118 = vdwg.mxu0
      %v5119 = vld [vmem:[#allocation2] sm:$0xff]
      %v5120 = vld [vmem:[#allocation2 + $0x8] sm:$0xff]
      %v5121 = vld [vmem:[#allocation2 + $0x10] sm:$0xff]
      %v5122 = vld [vmem:[#allocation2 + $0x18] sm:$0xff]
      %v5123 = vld [vmem:[#allocation2 + $0x20] sm:$0xff]
      %v5124 = vld [vmem:[#allocation2 + $0x28] sm:$0xff]
      %v5125 = vld [vmem:[#allocation2 + $0x30] sm:$0xff]
      %v5126 = vld [vmem:[#allocation2 + $0x38] sm:$0xff]
      %v5127 = vld [vmem:[#allocation2 + $0x40] sm:$0xff]
      %v5128 = vld [vmem:[#allocation2 + $0x48] sm:$0xff]
      %v5129 = vld [vmem:[#allocation2 + $0x50] sm:$0xff]
      %v5130 = vld [vmem:[#allocation2 + $0x58] sm:$0xff]
      %v5131 = vld [vmem:[#allocation2 + $0x60] sm:$0xff]
      %v5132 = vld [vmem:[#allocation2 + $0x68] sm:$0xff]
      %v5133 = vld [vmem:[#allocation2 + $0x70] sm:$0xff]
      %v5134 = vld [vmem:[#allocation2 + $0x78] sm:$0xff]
      %v5135 = vld [vmem:[#allocation2 + $0x80] sm:$0xff]
      %v5136 = vld [vmem:[#allocation2 + $0x88] sm:$0xff]
      %v5137 = vld [vmem:[#allocation2 + $0x90] sm:$0xff]
      %v5138 = vld [vmem:[#allocation2 + $0x98] sm:$0xff]
      %v5139 = vld [vmem:[#allocation2 + $0xa0] sm:$0xff]
      %v5140 = vld [vmem:[#allocation2 + $0xa8] sm:$0xff]
      %v5141 = vld [vmem:[#allocation2 + $0xb0] sm:$0xff]
      %v5142 = vld [vmem:[#allocation2 + $0xb8] sm:$0xff]
      %v5143 = vld [vmem:[#allocation2 + $0xc0] sm:$0xff]
      %v5144 = vld [vmem:[#allocation2 + $0xc8] sm:$0xff]
      %v5145 = vld [vmem:[#allocation2 + $0xd0] sm:$0xff]
      %v5146 = vld [vmem:[#allocation2 + $0xd8] sm:$0xff]
      %v5147 = vld [vmem:[#allocation2 + $0xe0] sm:$0xff]
      %v5148 = vld [vmem:[#allocation2 + $0xe8] sm:$0xff]
      %v5149 = vld [vmem:[#allocation2 + $0xf0] sm:$0xff]
      %v5150 = vld [vmem:[#allocation2 + $0xf8] sm:$0xff]
      %v5151 = vadd.f32 %v5119, %v4993
      %v5152 = vadd.f32 %v5120, %v4996
      %v5153 = vadd.f32 %v5121, %v5001
      %v5154 = vadd.f32 %v5122, %v5004
      %v5155 = vadd.f32 %v5123, %v5009
      %v5156 = vadd.f32 %v5124, %v5012
      %v5157 = vadd.f32 %v5125, %v5017
      %v5158 = vadd.f32 %v5126, %v5020
      %v5159 = vadd.f32 %v5127, %v5025
      %v5160 = vadd.f32 %v5128, %v5028
      %v5161 = vadd.f32 %v5129, %v5033
      %v5162 = vadd.f32 %v5130, %v5036
      %v5163 = vadd.f32 %v5131, %v5041
      %v5164 = vadd.f32 %v5132, %v5044
      %v5165 = vadd.f32 %v5133, %v5049
      %v5166 = vadd.f32 %v5134, %v5052
      %v5167 = vadd.f32 %v5135, %v5057
      %v5168 = vadd.f32 %v5136, %v5060
      %v5169 = vadd.f32 %v5137, %v5065
      %v5170 = vadd.f32 %v5138, %v5068
      %v5171 = vadd.f32 %v5139, %v5073
      %v5172 = vadd.f32 %v5140, %v5076
      %v5173 = vadd.f32 %v5141, %v5081
      %v5174 = vadd.f32 %v5142, %v5084
      %v5175 = vadd.f32 %v5143, %v5089
      %v5176 = vadd.f32 %v5144, %v5092
      %v5177 = vadd.f32 %v5145, %v5097
      %v5178 = vadd.f32 %v5146, %v5100
      %v5179 = vadd.f32 %v5147, %v5105
      %v5180 = vadd.f32 %v5148, %v5108
      %v5181 = vadd.f32 %v5149, %v5113
      %v5182 = vadd.f32 %v5150, %v5116
      %5183 = vst [vmem:[#allocation2] sm:$0xff] %v5151
      %5184 = vst [vmem:[#allocation2 + $0x8] sm:$0xff] %v5152
      %5185 = vst [vmem:[#allocation2 + $0x10] sm:$0xff] %v5153
      %5186 = vst [vmem:[#allocation2 + $0x18] sm:$0xff] %v5154
      %5187 = vst [vmem:[#allocation2 + $0x20] sm:$0xff] %v5155
      %5188 = vst [vmem:[#allocation2 + $0x28] sm:$0xff] %v5156
      %5189 = vst [vmem:[#allocation2 + $0x30] sm:$0xff] %v5157
      %5190 = vst [vmem:[#allocation2 + $0x38] sm:$0xff] %v5158
      %5191 = vst [vmem:[#allocation2 + $0x40] sm:$0xff] %v5159
      %5192 = vst [vmem:[#allocation2 + $0x48] sm:$0xff] %v5160
      %5193 = vst [vmem:[#allocation2 + $0x50] sm:$0xff] %v5161
      %5194 = vst [vmem:[#allocation2 + $0x58] sm:$0xff] %v5162
      %5195 = vst [vmem:[#allocation2 + $0x60] sm:$0xff] %v5163
      %5196 = vst [vmem:[#allocation2 + $0x68] sm:$0xff] %v5164
      %5197 = vst [vmem:[#allocation2 + $0x70] sm:$0xff] %v5165
      %5198 = vst [vmem:[#allocation2 + $0x78] sm:$0xff] %v5166
      %5199 = vst [vmem:[#allocation2 + $0x80] sm:$0xff] %v5167
      %5200 = vst [vmem:[#allocation2 + $0x88] sm:$0xff] %v5168
      %5201 = vst [vmem:[#allocation2 + $0x90] sm:$0xff] %v5169
      %5202 = vst [vmem:[#allocation2 + $0x98] sm:$0xff] %v5170
      %5203 = vst [vmem:[#allocation2 + $0xa0] sm:$0xff] %v5171
      %5204 = vst [vmem:[#allocation2 + $0xa8] sm:$0xff] %v5172
      %5205 = vst [vmem:[#allocation2 + $0xb0] sm:$0xff] %v5173
      %5206 = vst [vmem:[#allocation2 + $0xb8] sm:$0xff] %v5174
      %5207 = vst [vmem:[#allocation2 + $0xc0] sm:$0xff] %v5175
      %5208 = vst [vmem:[#allocation2 + $0xc8] sm:$0xff] %v5176
      %5209 = vst [vmem:[#allocation2 + $0xd0] sm:$0xff] %v5177
      %5210 = vst [vmem:[#allocation2 + $0xd8] sm:$0xff] %v5178
      %5211 = vst [vmem:[#allocation2 + $0xe0] sm:$0xff] %v5179
      %5212 = vst [vmem:[#allocation2 + $0xe8] sm:$0xff] %v5180
      %5213 = vst [vmem:[#allocation2 + $0xf0] sm:$0xff] %v5181
      %5214 = vst [vmem:[#allocation2 + $0xf8] sm:$0xff] %v5182
      %v5215 = vld [vmem:[%s3946] sm:$0xe]
      %v5216 = vld [vmem:[%s3946 + $0x4] sm:$0xf]
      %v5217 = vld [vmem:[%s3946 + $0x8] sm:$0x1]
      %v5218 = vld [vmem:[%s3946 + $0xc] sm:$0xe]
      %v5219 = vld [vmem:[%s3946 + $0x10] sm:$0xf]
      %v5220 = vld [vmem:[%s3946 + $0x14] sm:$0x1]
      %v5221 = vld [vmem:[%s3946 + $0x18] sm:$0xe]
      %v5222 = vld [vmem:[%s3946 + $0x1c] sm:$0xf]
      %v5223 = vld [vmem:[%s3946 + $0x20] sm:$0x1]
      %v5224 = vld [vmem:[%s3946 + $0x24] sm:$0xe]
      %v5225 = vld [vmem:[%s3946 + $0x28] sm:$0xf]
      %v5226 = vld [vmem:[%s3946 + $0x2c] sm:$0x1]
      %v5227 = vld [vmem:[%s3946 + $0x30] sm:$0xe]
      %v5228 = vld [vmem:[%s3946 + $0x34] sm:$0xf]
      %v5229 = vld [vmem:[%s3946 + $0x38] sm:$0x1]
      %v5230 = vld [vmem:[%s3946 + $0x3c] sm:$0xe]
      %v5231 = vld [vmem:[%s3946 + $0x40] sm:$0xf]
      %v5232 = vld [vmem:[%s3946 + $0x44] sm:$0x1]
      %v5233 = vld [vmem:[%s3946 + $0x48] sm:$0xe]
      %v5234 = vld [vmem:[%s3946 + $0x4c] sm:$0xf]
      %v5235 = vld [vmem:[%s3946 + $0x50] sm:$0x1]
      %v5236 = vld [vmem:[%s3946 + $0x54] sm:$0xe]
      %v5237 = vld [vmem:[%s3946 + $0x58] sm:$0xf]
      %v5238 = vld [vmem:[%s3946 + $0x5c] sm:$0x1]
      %v5239 = vld [vmem:[%s3946 + $0x60] sm:$0xe]
      %v5240 = vld [vmem:[%s3946 + $0x64] sm:$0xf]
      %v5241 = vld [vmem:[%s3946 + $0x68] sm:$0x1]
      %v5242 = vld [vmem:[%s3946 + $0x6c] sm:$0xe]
      %v5243 = vld [vmem:[%s3946 + $0x70] sm:$0xf]
      %v5244 = vld [vmem:[%s3946 + $0x74] sm:$0x1]
      %v5245 = vld [vmem:[%s3946 + $0x78] sm:$0xe]
      %v5246 = vld [vmem:[%s3946 + $0x7c] sm:$0xf]
      %v5247 = vld [vmem:[%s3946 + $0x80] sm:$0x1]
      %v5248 = vld [vmem:[%s3946 + $0x84] sm:$0xe]
      %v5249 = vld [vmem:[%s3946 + $0x88] sm:$0xf]
      %v5250 = vld [vmem:[%s3946 + $0x8c] sm:$0x1]
      %v5251 = vld [vmem:[%s3946 + $0x90] sm:$0xe]
      %v5252 = vld [vmem:[%s3946 + $0x94] sm:$0xf]
      %v5253 = vld [vmem:[%s3946 + $0x98] sm:$0x1]
      %v5254 = vld [vmem:[%s3946 + $0x9c] sm:$0xe]
      %v5255 = vld [vmem:[%s3946 + $0xa0] sm:$0xf]
      %v5256 = vld [vmem:[%s3946 + $0xa4] sm:$0x1]
      %v5257 = vld [vmem:[%s3946 + $0xa8] sm:$0xe]
      %v5258 = vld [vmem:[%s3946 + $0xac] sm:$0xf]
      %v5259 = vld [vmem:[%s3946 + $0xb0] sm:$0x1]
      %v5260 = vld [vmem:[%s3946 + $0xb4] sm:$0xe]
      %v5261 = vld [vmem:[%s3946 + $0xb8] sm:$0xf]
      %v5262 = vld [vmem:[%s3946 + $0xbc] sm:$0x1]
      %v5311 = vrot.slane %v5215, 5
      %v5312 = vrot.slane %v5311, 4
      %v5313 = vrot.slane %v5216, 5
      %v5314 = vsel %vm1578, %v5312, %v5313
      %v5315 = vrot.slane %v5313, 4
      %v5316 = vrot.slane %v5217, 5
      %v5317 = vsel %vm1578, %v5315, %v5316
      %v5318 = vrot.slane %v5218, 5
      %v5319 = vrot.slane %v5318, 4
      %v5320 = vrot.slane %v5219, 5
      %v5321 = vsel %vm1578, %v5319, %v5320
      %v5322 = vrot.slane %v5320, 4
      %v5323 = vrot.slane %v5220, 5
      %v5324 = vsel %vm1578, %v5322, %v5323
      %v5325 = vrot.slane %v5221, 5
      %v5326 = vrot.slane %v5325, 4
      %v5327 = vrot.slane %v5222, 5
      %v5328 = vsel %vm1578, %v5326, %v5327
      %v5329 = vrot.slane %v5327, 4
      %v5330 = vrot.slane %v5223, 5
      %v5331 = vsel %vm1578, %v5329, %v5330
      %v5332 = vrot.slane %v5224, 5
      %v5333 = vrot.slane %v5332, 4
      %v5334 = vrot.slane %v5225, 5
      %v5335 = vsel %vm1578, %v5333, %v5334
      %v5336 = vrot.slane %v5334, 4
      %v5337 = vrot.slane %v5226, 5
      %v5338 = vsel %vm1578, %v5336, %v5337
      %v5339 = vrot.slane %v5227, 5
      %v5340 = vrot.slane %v5339, 4
      %v5341 = vrot.slane %v5228, 5
      %v5342 = vsel %vm1578, %v5340, %v5341
      %v5343 = vrot.slane %v5341, 4
      %v5344 = vrot.slane %v5229, 5
      %v5345 = vsel %vm1578, %v5343, %v5344
      %v5346 = vrot.slane %v5230, 5
      %v5347 = vrot.slane %v5346, 4
      %v5348 = vrot.slane %v5231, 5
      %v5349 = vsel %vm1578, %v5347, %v5348
      %v5350 = vrot.slane %v5348, 4
      %v5351 = vrot.slane %v5232, 5
      %v5352 = vsel %vm1578, %v5350, %v5351
      %v5353 = vrot.slane %v5233, 5
      %v5354 = vrot.slane %v5353, 4
      %v5355 = vrot.slane %v5234, 5
      %v5356 = vsel %vm1578, %v5354, %v5355
      %v5357 = vrot.slane %v5355, 4
      %v5358 = vrot.slane %v5235, 5
      %v5359 = vsel %vm1578, %v5357, %v5358
      %v5360 = vrot.slane %v5236, 5
      %v5361 = vrot.slane %v5360, 4
      %v5362 = vrot.slane %v5237, 5
      %v5363 = vsel %vm1578, %v5361, %v5362
      %v5364 = vrot.slane %v5362, 4
      %v5365 = vrot.slane %v5238, 5
      %v5366 = vsel %vm1578, %v5364, %v5365
      %v5367 = vrot.slane %v5239, 5
      %v5368 = vrot.slane %v5367, 4
      %v5369 = vrot.slane %v5240, 5
      %v5370 = vsel %vm1578, %v5368, %v5369
      %v5371 = vrot.slane %v5369, 4
      %v5372 = vrot.slane %v5241, 5
      %v5373 = vsel %vm1578, %v5371, %v5372
      %v5374 = vrot.slane %v5242, 5
      %v5375 = vrot.slane %v5374, 4
      %v5376 = vrot.slane %v5243, 5
      %v5377 = vsel %vm1578, %v5375, %v5376
      %v5378 = vrot.slane %v5376, 4
      %v5379 = vrot.slane %v5244, 5
      %v5380 = vsel %vm1578, %v5378, %v5379
      %v5381 = vrot.slane %v5245, 5
      %v5382 = vrot.slane %v5381, 4
      %v5383 = vrot.slane %v5246, 5
      %v5384 = vsel %vm1578, %v5382, %v5383
      %v5385 = vrot.slane %v5383, 4
      %v5386 = vrot.slane %v5247, 5
      %v5387 = vsel %vm1578, %v5385, %v5386
      %v5388 = vrot.slane %v5248, 5
      %v5389 = vrot.slane %v5388, 4
      %v5390 = vrot.slane %v5249, 5
      %v5391 = vsel %vm1578, %v5389, %v5390
      %v5392 = vrot.slane %v5390, 4
      %v5393 = vrot.slane %v5250, 5
      %v5394 = vsel %vm1578, %v5392, %v5393
      %v5395 = vrot.slane %v5251, 5
      %v5396 = vrot.slane %v5395, 4
      %v5397 = vrot.slane %v5252, 5
      %v5398 = vsel %vm1578, %v5396, %v5397
      %v5399 = vrot.slane %v5397, 4
      %v5400 = vrot.slane %v5253, 5
      %v5401 = vsel %vm1578, %v5399, %v5400
      %v5402 = vrot.slane %v5254, 5
      %v5403 = vrot.slane %v5402, 4
      %v5404 = vrot.slane %v5255, 5
      %v5405 = vsel %vm1578, %v5403, %v5404
      %v5406 = vrot.slane %v5404, 4
      %v5407 = vrot.slane %v5256, 5
      %v5408 = vsel %vm1578, %v5406, %v5407
      %v5409 = vrot.slane %v5257, 5
      %v5410 = vrot.slane %v5409, 4
      %v5411 = vrot.slane %v5258, 5
      %v5412 = vsel %vm1578, %v5410, %v5411
      %v5413 = vrot.slane %v5411, 4
      %v5414 = vrot.slane %v5259, 5
      %v5415 = vsel %vm1578, %v5413, %v5414
      %v5416 = vrot.slane %v5260, 5
      %v5417 = vrot.slane %v5416, 4
      %v5418 = vrot.slane %v5261, 5
      %v5419 = vsel %vm1578, %v5417, %v5418
      %v5420 = vrot.slane %v5418, 4
      %v5421 = vrot.slane %v5262, 5
      %v5422 = vsel %vm1578, %v5420, %v5421
      %s5423 = scalar_lea.vmem %s1, 256
      %v5424 = vld [vmem:[%s5423] sm:$0xf]
      %v5425 = vld [vmem:[%s5423 + $0x4] sm:$0xf]
      %v5426 = vld [vmem:[%s5423 + $0x8] sm:$0xf]
      %v5427 = vld [vmem:[%s5423 + $0xc] sm:$0xf]
      %v5428 = vld [vmem:[%s5423 + $0x10] sm:$0xf]
      %v5429 = vld [vmem:[%s5423 + $0x14] sm:$0xf]
      %v5430 = vld [vmem:[%s5423 + $0x18] sm:$0xf]
      %v5431 = vld [vmem:[%s5423 + $0x1c] sm:$0xf]
      %v5432 = vunpack.c.l.b16 %v5314
      %v5433 = vunpack.c.l.b16 %v5317
      %v5434 = vunpack.c.l.b16 %v5321
      %v5435 = vunpack.c.l.b16 %v5324
      %v5436 = vunpack.c.l.b16 %v5328
      %v5437 = vunpack.c.l.b16 %v5331
      %v5438 = vunpack.c.l.b16 %v5335
      %v5439 = vunpack.c.l.b16 %v5338
      %v5440 = vunpack.c.l.b16 %v5342
      %v5441 = vunpack.c.l.b16 %v5345
      %v5442 = vunpack.c.l.b16 %v5349
      %v5443 = vunpack.c.l.b16 %v5352
      %v5444 = vunpack.c.l.b16 %v5356
      %v5445 = vunpack.c.l.b16 %v5359
      %v5446 = vunpack.c.l.b16 %v5363
      %v5447 = vunpack.c.l.b16 %v5366
      %v5448 = vunpack.c.l.b16 %v5370
      %v5449 = vunpack.c.l.b16 %v5373
      %v5450 = vunpack.c.l.b16 %v5377
      %v5451 = vunpack.c.l.b16 %v5380
      %v5452 = vunpack.c.l.b16 %v5384
      %v5453 = vunpack.c.l.b16 %v5387
      %v5454 = vunpack.c.l.b16 %v5391
      %v5455 = vunpack.c.l.b16 %v5394
      %v5456 = vunpack.c.l.b16 %v5398
      %v5457 = vunpack.c.l.b16 %v5401
      %v5458 = vunpack.c.l.b16 %v5405
      %v5459 = vunpack.c.l.b16 %v5408
      %v5460 = vunpack.c.l.b16 %v5412
      %v5461 = vunpack.c.l.b16 %v5415
      %v5462 = vunpack.c.l.b16 %v5419
      %v5463 = vunpack.c.l.b16 %v5422
      %v5464 = vpack.c.b16 %v5433, %v5432
      %v5465 = vpack.c.b16 %v5435, %v5434
      %v5466 = vpack.c.b16 %v5437, %v5436
      %v5467 = vpack.c.b16 %v5439, %v5438
      %v5468 = vpack.c.b16 %v5441, %v5440
      %v5469 = vpack.c.b16 %v5443, %v5442
      %v5470 = vpack.c.b16 %v5445, %v5444
      %v5471 = vpack.c.b16 %v5447, %v5446
      %v5472 = vpack.c.b16 %v5449, %v5448
      %v5473 = vpack.c.b16 %v5451, %v5450
      %v5474 = vpack.c.b16 %v5453, %v5452
      %v5475 = vpack.c.b16 %v5455, %v5454
      %v5476 = vpack.c.b16 %v5457, %v5456
      %v5477 = vpack.c.b16 %v5459, %v5458
      %v5478 = vpack.c.b16 %v5461, %v5460
      %v5479 = vpack.c.b16 %v5463, %v5462
      %v5488 = vunpack.c.l.b16 %v5424
      %v5489 = vunpack.c.l.b16 %v5425
      %v5490 = vunpack.c.l.b16 %v5426
      %v5491 = vunpack.c.l.b16 %v5427
      %v5492 = vunpack.c.l.b16 %v5428
      %v5493 = vunpack.c.l.b16 %v5429
      %v5494 = vunpack.c.l.b16 %v5430
      %v5495 = vunpack.c.l.b16 %v5431
      %v5496 = vpack.c.b16 %v5489, %v5488
      %v5497 = vpack.c.b16 %v5491, %v5490
      %v5498 = vpack.c.b16 %v5493, %v5492
      %v5499 = vpack.c.b16 %v5495, %v5494
      %v5505 = vsel %vm417, %v5464, 0
      %v5508 = vsel %vm417, %v5465, 0
      %v5511 = vsel %vm417, %v5466, 0
      %v5514 = vsel %vm417, %v5467, 0
      %v5517 = vsel %vm417, %v5468, 0
      %v5520 = vsel %vm417, %v5469, 0
      %v5523 = vsel %vm417, %v5470, 0
      %v5526 = vsel %vm417, %v5471, 0
      %v5529 = vsel %vm417, %v5472, 0
      %v5532 = vsel %vm417, %v5473, 0
      %v5535 = vsel %vm417, %v5474, 0
      %v5538 = vsel %vm417, %v5475, 0
      %v5541 = vsel %vm417, %v5476, 0
      %v5544 = vsel %vm417, %v5477, 0
      %v5547 = vsel %vm417, %v5478, 0
      %v5550 = vsel %vm417, %v5479, 0
      %5552 = vmatprep.subr.bf16.mxu0 0
      %5553 = vmatpush1.bf16.msra.mxu0 %v5496
      %5554 = vmatprep.subr.bf16.mxu0 0
      %5555 = vmatpush1.bf16.msra.mxu0 %v5497
      %5556 = vmatprep.subr.bf16.mxu0 0
      %5557 = vmatpush1.bf16.msra.mxu0 %v5498
      %5558 = vmatprep.subr.bf16.mxu0 0
      %5559 = vmatpush1.bf16.msra.mxu0 %v5499
      %5560 = vmatprep.subr.bf16.mxu0 0
      %5561 = vmatpush1.bf16.msra.mxu0 0
      %5562 = vmatprep.subr.bf16.mxu0 0
      %5563 = vmatpush1.bf16.msra.mxu0 0
      %5564 = vmatprep.subr.bf16.mxu0 0
      %5565 = vmatpush1.bf16.msra.mxu0 0
      %5566 = vmatprep.subr.bf16.mxu0 0
      %5567 = vmatpush1.bf16.msra.mxu0 0
      %5568 = vmatprep.subr.bf16.mxu0 0
      %5569 = vmatpush1.bf16.msra.mxu0 0
      %5570 = vmatprep.subr.bf16.mxu0 0
      %5571 = vmatpush1.bf16.msra.mxu0 0
      %5572 = vmatprep.subr.bf16.mxu0 0
      %5573 = vmatpush1.bf16.msra.mxu0 0
      %5574 = vmatprep.subr.bf16.mxu0 0
      %5575 = vmatpush1.bf16.msra.mxu0 0
      %5576 = vmatprep.subr.bf16.mxu0 0
      %5577 = vmatpush1.bf16.msra.mxu0 0
      %5578 = vmatprep.subr.bf16.mxu0 0
      %5579 = vmatpush1.bf16.msra.mxu0 0
      %5580 = vmatprep.subr.bf16.mxu0 0
      %5581 = vmatpush1.bf16.msra.mxu0 0
      %5582 = vmatprep.subr.bf16.mxu0 0
      %5583 = vmatpush1.bf16.msra.mxu0 0
      %5584 = vmatprep.mubr.bf16.mxu0 0
      %5585 = vmatmul.mubr.bf16.gmra.mrb[0].mxu0 %v5505
      %v5586 = vpop.f32.mrb[0].mxu0
      %v5587 = vadd.f32 0.0, %v5586
      %v5588 = vpop.f32.mrb[0].mxu0
      %v5589 = vpop.f32.mrb[0].mxu0
      %v5590 = vadd.f32 0.0, %v5589
      %v5591 = vpop.f32.mrb[0].mxu0
      %5592 = vmatprep.mubr.bf16.mxu0 0
      %5593 = vmatmul.mubr.bf16.gmra.mrb[0].mxu0 %v5508
      %v5594 = vpop.f32.mrb[0].mxu0
      %v5595 = vadd.f32 0.0, %v5594
      %v5596 = vpop.f32.mrb[0].mxu0
      %v5597 = vpop.f32.mrb[0].mxu0
      %v5598 = vadd.f32 0.0, %v5597
      %v5599 = vpop.f32.mrb[0].mxu0
      %5600 = vmatprep.mubr.bf16.mxu0 0
      %5601 = vmatmul.mubr.bf16.gmra.mrb[0].mxu0 %v5511
      %v5602 = vpop.f32.mrb[0].mxu0
      %v5603 = vadd.f32 0.0, %v5602
      %v5604 = vpop.f32.mrb[0].mxu0
      %v5605 = vpop.f32.mrb[0].mxu0
      %v5606 = vadd.f32 0.0, %v5605
      %v5607 = vpop.f32.mrb[0].mxu0
      %5608 = vmatprep.mubr.bf16.mxu0 0
      %5609 = vmatmul.mubr.bf16.gmra.mrb[0].mxu0 %v5514
      %v5610 = vpop.f32.mrb[0].mxu0
      %v5611 = vadd.f32 0.0, %v5610
      %v5612 = vpop.f32.mrb[0].mxu0
      %v5613 = vpop.f32.mrb[0].mxu0
      %v5614 = vadd.f32 0.0, %v5613
      %v5615 = vpop.f32.mrb[0].mxu0
      %5616 = vmatprep.mubr.bf16.mxu0 0
      %5617 = vmatmul.mubr.bf16.gmra.mrb[0].mxu0 %v5517
      %v5618 = vpop.f32.mrb[0].mxu0
      %v5619 = vadd.f32 0.0, %v5618
      %v5620 = vpop.f32.mrb[0].mxu0
      %v5621 = vpop.f32.mrb[0].mxu0
      %v5622 = vadd.f32 0.0, %v5621
      %v5623 = vpop.f32.mrb[0].mxu0
      %5624 = vmatprep.mubr.bf16.mxu0 0
      %5625 = vmatmul.mubr.bf16.gmra.mrb[0].mxu0 %v5520
      %v5626 = vpop.f32.mrb[0].mxu0
      %v5627 = vadd.f32 0.0, %v5626
      %v5628 = vpop.f32.mrb[0].mxu0
      %v5629 = vpop.f32.mrb[0].mxu0
      %v5630 = vadd.f32 0.0, %v5629
      %v5631 = vpop.f32.mrb[0].mxu0
      %5632 = vmatprep.mubr.bf16.mxu0 0
      %5633 = vmatmul.mubr.bf16.gmra.mrb[0].mxu0 %v5523
      %v5634 = vpop.f32.mrb[0].mxu0
      %v5635 = vadd.f32 0.0, %v5634
      %v5636 = vpop.f32.mrb[0].mxu0
      %v5637 = vpop.f32.mrb[0].mxu0
      %v5638 = vadd.f32 0.0, %v5637
      %v5639 = vpop.f32.mrb[0].mxu0
      %5640 = vmatprep.mubr.bf16.mxu0 0
      %5641 = vmatmul.mubr.bf16.gmra.mrb[0].mxu0 %v5526
      %v5642 = vpop.f32.mrb[0].mxu0
      %v5643 = vadd.f32 0.0, %v5642
      %v5644 = vpop.f32.mrb[0].mxu0
      %v5645 = vpop.f32.mrb[0].mxu0
      %v5646 = vadd.f32 0.0, %v5645
      %v5647 = vpop.f32.mrb[0].mxu0
      %5648 = vmatprep.mubr.bf16.mxu0 0
      %5649 = vmatmul.mubr.bf16.gmra.mrb[0].mxu0 %v5529
      %v5650 = vpop.f32.mrb[0].mxu0
      %v5651 = vadd.f32 0.0, %v5650
      %v5652 = vpop.f32.mrb[0].mxu0
      %v5653 = vpop.f32.mrb[0].mxu0
      %v5654 = vadd.f32 0.0, %v5653
      %v5655 = vpop.f32.mrb[0].mxu0
      %5656 = vmatprep.mubr.bf16.mxu0 0
      %5657 = vmatmul.mubr.bf16.gmra.mrb[0].mxu0 %v5532
      %v5658 = vpop.f32.mrb[0].mxu0
      %v5659 = vadd.f32 0.0, %v5658
      %v5660 = vpop.f32.mrb[0].mxu0
      %v5661 = vpop.f32.mrb[0].mxu0
      %v5662 = vadd.f32 0.0, %v5661
      %v5663 = vpop.f32.mrb[0].mxu0
      %5664 = vmatprep.mubr.bf16.mxu0 0
      %5665 = vmatmul.mubr.bf16.gmra.mrb[0].mxu0 %v5535
      %v5666 = vpop.f32.mrb[0].mxu0
      %v5667 = vadd.f32 0.0, %v5666
      %v5668 = vpop.f32.mrb[0].mxu0
      %v5669 = vpop.f32.mrb[0].mxu0
      %v5670 = vadd.f32 0.0, %v5669
      %v5671 = vpop.f32.mrb[0].mxu0
      %5672 = vmatprep.mubr.bf16.mxu0 0
      %5673 = vmatmul.mubr.bf16.gmra.mrb[0].mxu0 %v5538
      %v5674 = vpop.f32.mrb[0].mxu0
      %v5675 = vadd.f32 0.0, %v5674
      %v5676 = vpop.f32.mrb[0].mxu0
      %v5677 = vpop.f32.mrb[0].mxu0
      %v5678 = vadd.f32 0.0, %v5677
      %v5679 = vpop.f32.mrb[0].mxu0
      %5680 = vmatprep.mubr.bf16.mxu0 0
      %5681 = vmatmul.mubr.bf16.gmra.mrb[0].mxu0 %v5541
      %v5682 = vpop.f32.mrb[0].mxu0
      %v5683 = vadd.f32 0.0, %v5682
      %v5684 = vpop.f32.mrb[0].mxu0
      %v5685 = vpop.f32.mrb[0].mxu0
      %v5686 = vadd.f32 0.0, %v5685
      %v5687 = vpop.f32.mrb[0].mxu0
      %5688 = vmatprep.mubr.bf16.mxu0 0
      %5689 = vmatmul.mubr.bf16.gmra.mrb[0].mxu0 %v5544
      %v5690 = vpop.f32.mrb[0].mxu0
      %v5691 = vadd.f32 0.0, %v5690
      %v5692 = vpop.f32.mrb[0].mxu0
      %v5693 = vpop.f32.mrb[0].mxu0
      %v5694 = vadd.f32 0.0, %v5693
      %v5695 = vpop.f32.mrb[0].mxu0
      %5696 = vmatprep.mubr.bf16.mxu0 0
      %5697 = vmatmul.mubr.bf16.gmra.mrb[0].mxu0 %v5547
      %v5698 = vpop.f32.mrb[0].mxu0
      %v5699 = vadd.f32 0.0, %v5698
      %v5700 = vpop.f32.mrb[0].mxu0
      %v5701 = vpop.f32.mrb[0].mxu0
      %v5702 = vadd.f32 0.0, %v5701
      %v5703 = vpop.f32.mrb[0].mxu0
      %5704 = vmatprep.mubr.bf16.mxu0 0
      %5705 = vmatmul.mubr.bf16.gmra.mrb[0].mxu0 %v5550
      %v5706 = vpop.f32.mrb[0].mxu0
      %v5707 = vadd.f32 0.0, %v5706
      %v5708 = vpop.f32.mrb[0].mxu0
      %v5709 = vpop.f32.mrb[0].mxu0
      %v5710 = vadd.f32 0.0, %v5709
      %v5711 = vpop.f32.mrb[0].mxu0
      %5712 = vdwg.mxu0
      %v5713 = vld [vmem:[#allocation2] sm:$0xff]
      %v5714 = vld [vmem:[#allocation2 + $0x8] sm:$0xff]
      %v5715 = vld [vmem:[#allocation2 + $0x10] sm:$0xff]
      %v5716 = vld [vmem:[#allocation2 + $0x18] sm:$0xff]
      %v5717 = vld [vmem:[#allocation2 + $0x20] sm:$0xff]
      %v5718 = vld [vmem:[#allocation2 + $0x28] sm:$0xff]
      %v5719 = vld [vmem:[#allocation2 + $0x30] sm:$0xff]
      %v5720 = vld [vmem:[#allocation2 + $0x38] sm:$0xff]
      %v5721 = vld [vmem:[#allocation2 + $0x40] sm:$0xff]
      %v5722 = vld [vmem:[#allocation2 + $0x48] sm:$0xff]
      %v5723 = vld [vmem:[#allocation2 + $0x50] sm:$0xff]
      %v5724 = vld [vmem:[#allocation2 + $0x58] sm:$0xff]
      %v5725 = vld [vmem:[#allocation2 + $0x60] sm:$0xff]
      %v5726 = vld [vmem:[#allocation2 + $0x68] sm:$0xff]
      %v5727 = vld [vmem:[#allocation2 + $0x70] sm:$0xff]
      %v5728 = vld [vmem:[#allocation2 + $0x78] sm:$0xff]
      %v5729 = vld [vmem:[#allocation2 + $0x80] sm:$0xff]
      %v5730 = vld [vmem:[#allocation2 + $0x88] sm:$0xff]
      %v5731 = vld [vmem:[#allocation2 + $0x90] sm:$0xff]
      %v5732 = vld [vmem:[#allocation2 + $0x98] sm:$0xff]
      %v5733 = vld [vmem:[#allocation2 + $0xa0] sm:$0xff]
      %v5734 = vld [vmem:[#allocation2 + $0xa8] sm:$0xff]
      %v5735 = vld [vmem:[#allocation2 + $0xb0] sm:$0xff]
      %v5736 = vld [vmem:[#allocation2 + $0xb8] sm:$0xff]
      %v5737 = vld [vmem:[#allocation2 + $0xc0] sm:$0xff]
      %v5738 = vld [vmem:[#allocation2 + $0xc8] sm:$0xff]
      %v5739 = vld [vmem:[#allocation2 + $0xd0] sm:$0xff]
      %v5740 = vld [vmem:[#allocation2 + $0xd8] sm:$0xff]
      %v5741 = vld [vmem:[#allocation2 + $0xe0] sm:$0xff]
      %v5742 = vld [vmem:[#allocation2 + $0xe8] sm:$0xff]
      %v5743 = vld [vmem:[#allocation2 + $0xf0] sm:$0xff]
      %v5744 = vld [vmem:[#allocation2 + $0xf8] sm:$0xff]
      %v5745 = vadd.f32 %v5713, %v5587
      %v5746 = vadd.f32 %v5714, %v5590
      %v5747 = vadd.f32 %v5715, %v5595
      %v5748 = vadd.f32 %v5716, %v5598
      %v5749 = vadd.f32 %v5717, %v5603
      %v5750 = vadd.f32 %v5718, %v5606
      %v5751 = vadd.f32 %v5719, %v5611
      %v5752 = vadd.f32 %v5720, %v5614
      %v5753 = vadd.f32 %v5721, %v5619
      %v5754 = vadd.f32 %v5722, %v5622
      %v5755 = vadd.f32 %v5723, %v5627
      %v5756 = vadd.f32 %v5724, %v5630
      %v5757 = vadd.f32 %v5725, %v5635
      %v5758 = vadd.f32 %v5726, %v5638
      %v5759 = vadd.f32 %v5727, %v5643
      %v5760 = vadd.f32 %v5728, %v5646
      %v5761 = vadd.f32 %v5729, %v5651
      %v5762 = vadd.f32 %v5730, %v5654
      %v5763 = vadd.f32 %v5731, %v5659
      %v5764 = vadd.f32 %v5732, %v5662
      %v5765 = vadd.f32 %v5733, %v5667
      %v5766 = vadd.f32 %v5734, %v5670
      %v5767 = vadd.f32 %v5735, %v5675
      %v5768 = vadd.f32 %v5736, %v5678
      %v5769 = vadd.f32 %v5737, %v5683
      %v5770 = vadd.f32 %v5738, %v5686
      %v5771 = vadd.f32 %v5739, %v5691
      %v5772 = vadd.f32 %v5740, %v5694
      %v5773 = vadd.f32 %v5741, %v5699
      %v5774 = vadd.f32 %v5742, %v5702
      %v5775 = vadd.f32 %v5743, %v5707
      %v5776 = vadd.f32 %v5744, %v5710
      %5777 = vst [vmem:[#allocation2] sm:$0xff] %v5745
      %5778 = vst [vmem:[#allocation2 + $0x8] sm:$0xff] %v5746
      %5779 = vst [vmem:[#allocation2 + $0x10] sm:$0xff] %v5747
      %5780 = vst [vmem:[#allocation2 + $0x18] sm:$0xff] %v5748
      %5781 = vst [vmem:[#allocation2 + $0x20] sm:$0xff] %v5749
      %5782 = vst [vmem:[#allocation2 + $0x28] sm:$0xff] %v5750
      %5783 = vst [vmem:[#allocation2 + $0x30] sm:$0xff] %v5751
      %5784 = vst [vmem:[#allocation2 + $0x38] sm:$0xff] %v5752
      %5785 = vst [vmem:[#allocation2 + $0x40] sm:$0xff] %v5753
      %5786 = vst [vmem:[#allocation2 + $0x48] sm:$0xff] %v5754
      %5787 = vst [vmem:[#allocation2 + $0x50] sm:$0xff] %v5755
      %5788 = vst [vmem:[#allocation2 + $0x58] sm:$0xff] %v5756
      %5789 = vst [vmem:[#allocation2 + $0x60] sm:$0xff] %v5757
      %5790 = vst [vmem:[#allocation2 + $0x68] sm:$0xff] %v5758
      %5791 = vst [vmem:[#allocation2 + $0x70] sm:$0xff] %v5759
      %5792 = vst [vmem:[#allocation2 + $0x78] sm:$0xff] %v5760
      %5793 = vst [vmem:[#allocation2 + $0x80] sm:$0xff] %v5761
      %5794 = vst [vmem:[#allocation2 + $0x88] sm:$0xff] %v5762
      %5795 = vst [vmem:[#allocation2 + $0x90] sm:$0xff] %v5763
      %5796 = vst [vmem:[#allocation2 + $0x98] sm:$0xff] %v5764
      %5797 = vst [vmem:[#allocation2 + $0xa0] sm:$0xff] %v5765
      %5798 = vst [vmem:[#allocation2 + $0xa8] sm:$0xff] %v5766
      %5799 = vst [vmem:[#allocation2 + $0xb0] sm:$0xff] %v5767
      %5800 = vst [vmem:[#allocation2 + $0xb8] sm:$0xff] %v5768
      %5801 = vst [vmem:[#allocation2 + $0xc0] sm:$0xff] %v5769
      %5802 = vst [vmem:[#allocation2 + $0xc8] sm:$0xff] %v5770
      %5803 = vst [vmem:[#allocation2 + $0xd0] sm:$0xff] %v5771
      %5804 = vst [vmem:[#allocation2 + $0xd8] sm:$0xff] %v5772
      %5805 = vst [vmem:[#allocation2 + $0xe0] sm:$0xff] %v5773
      %5806 = vst [vmem:[#allocation2 + $0xe8] sm:$0xff] %v5774
      %5807 = vst [vmem:[#allocation2 + $0xf0] sm:$0xff] %v5775
      %5808 = vst [vmem:[#allocation2 + $0xf8] sm:$0xff] %v5776
      %v5809 = vld [vmem:[#allocation2] sm:$0xff]
      %v5810 = vld [vmem:[#allocation2 + $0x8] sm:$0xff]
      %v5811 = vld [vmem:[#allocation2 + $0x10] sm:$0xff]
      %v5812 = vld [vmem:[#allocation2 + $0x18] sm:$0xff]
      %v5813 = vld [vmem:[#allocation2 + $0x20] sm:$0xff]
      %v5814 = vld [vmem:[#allocation2 + $0x28] sm:$0xff]
      %v5815 = vld [vmem:[#allocation2 + $0x30] sm:$0xff]
      %v5816 = vld [vmem:[#allocation2 + $0x38] sm:$0xff]
      %v5817 = vld [vmem:[#allocation2 + $0x40] sm:$0xff]
      %v5818 = vld [vmem:[#allocation2 + $0x48] sm:$0xff]
      %v5819 = vld [vmem:[#allocation2 + $0x50] sm:$0xff]
      %v5820 = vld [vmem:[#allocation2 + $0x58] sm:$0xff]
      %v5821 = vld [vmem:[#allocation2 + $0x60] sm:$0xff]
      %v5822 = vld [vmem:[#allocation2 + $0x68] sm:$0xff]
      %v5823 = vld [vmem:[#allocation2 + $0x70] sm:$0xff]
      %v5824 = vld [vmem:[#allocation2 + $0x78] sm:$0xff]
      %v5825 = vld [vmem:[#allocation2 + $0x80] sm:$0xff]
      %v5826 = vld [vmem:[#allocation2 + $0x88] sm:$0xff]
      %v5827 = vld [vmem:[#allocation2 + $0x90] sm:$0xff]
      %v5828 = vld [vmem:[#allocation2 + $0x98] sm:$0xff]
      %v5829 = vld [vmem:[#allocation2 + $0xa0] sm:$0xff]
      %v5830 = vld [vmem:[#allocation2 + $0xa8] sm:$0xff]
      %v5831 = vld [vmem:[#allocation2 + $0xb0] sm:$0xff]
      %v5832 = vld [vmem:[#allocation2 + $0xb8] sm:$0xff]
      %v5833 = vld [vmem:[#allocation2 + $0xc0] sm:$0xff]
      %v5834 = vld [vmem:[#allocation2 + $0xc8] sm:$0xff]
      %v5835 = vld [vmem:[#allocation2 + $0xd0] sm:$0xff]
      %v5836 = vld [vmem:[#allocation2 + $0xd8] sm:$0xff]
      %v5837 = vld [vmem:[#allocation2 + $0xe0] sm:$0xff]
      %v5838 = vld [vmem:[#allocation2 + $0xe8] sm:$0xff]
      %v5839 = vld [vmem:[#allocation2 + $0xf0] sm:$0xff]
      %v5840 = vld [vmem:[#allocation2 + $0xf8] sm:$0xff]
      %v5841 = vld [vmem:[%s2] sm:$0x1]
      %v5843 = vlaneseq
      %v5844 = vshrl.u32 %v5843, 7
      %v5845 = vsub.s32 0, %v5844
      %v5846 = vrot.slane %v5841, %v5845
      %v5848 = vadd.f32 %v5809, %v5846
      %v5849 = vadd.f32 %v5810, %v5846
      %v5850 = vadd.f32 %v5811, %v5846
      %v5851 = vadd.f32 %v5812, %v5846
      %v5852 = vadd.f32 %v5813, %v5846
      %v5853 = vadd.f32 %v5814, %v5846
      %v5854 = vadd.f32 %v5815, %v5846
      %v5855 = vadd.f32 %v5816, %v5846
      %v5856 = vadd.f32 %v5817, %v5846
      %v5857 = vadd.f32 %v5818, %v5846
      %v5858 = vadd.f32 %v5819, %v5846
      %v5859 = vadd.f32 %v5820, %v5846
      %v5860 = vadd.f32 %v5821, %v5846
      %v5861 = vadd.f32 %v5822, %v5846
      %v5862 = vadd.f32 %v5823, %v5846
      %v5863 = vadd.f32 %v5824, %v5846
      %v5864 = vadd.f32 %v5825, %v5846
      %v5865 = vadd.f32 %v5826, %v5846
      %v5866 = vadd.f32 %v5827, %v5846
      %v5867 = vadd.f32 %v5828, %v5846
      %v5868 = vadd.f32 %v5829, %v5846
      %v5869 = vadd.f32 %v5830, %v5846
      %v5870 = vadd.f32 %v5831, %v5846
      %v5871 = vadd.f32 %v5832, %v5846
      %v5872 = vadd.f32 %v5833, %v5846
      %v5873 = vadd.f32 %v5834, %v5846
      %v5874 = vadd.f32 %v5835, %v5846
      %v5875 = vadd.f32 %v5836, %v5846
      %v5876 = vadd.f32 %v5837, %v5846
      %v5877 = vadd.f32 %v5838, %v5846
      %v5878 = vadd.f32 %v5839, %v5846
      %v5879 = vadd.f32 %v5840, %v5846
      %v5880 = vmax.f32 %v5848, 0.0
      %v5881 = vmax.f32 %v5849, 0.0
      %v5882 = vmax.f32 %v5850, 0.0
      %v5883 = vmax.f32 %v5851, 0.0
      %v5884 = vmax.f32 %v5852, 0.0
      %v5885 = vmax.f32 %v5853, 0.0
      %v5886 = vmax.f32 %v5854, 0.0
      %v5887 = vmax.f32 %v5855, 0.0
      %v5888 = vmax.f32 %v5856, 0.0
      %v5889 = vmax.f32 %v5857, 0.0
      %v5890 = vmax.f32 %v5858, 0.0
      %v5891 = vmax.f32 %v5859, 0.0
      %v5892 = vmax.f32 %v5860, 0.0
      %v5893 = vmax.f32 %v5861, 0.0
      %v5894 = vmax.f32 %v5862, 0.0
      %v5895 = vmax.f32 %v5863, 0.0
      %v5896 = vmax.f32 %v5864, 0.0
      %v5897 = vmax.f32 %v5865, 0.0
      %v5898 = vmax.f32 %v5866, 0.0
      %v5899 = vmax.f32 %v5867, 0.0
      %v5900 = vmax.f32 %v5868, 0.0
      %v5901 = vmax.f32 %v5869, 0.0
      %v5902 = vmax.f32 %v5870, 0.0
      %v5903 = vmax.f32 %v5871, 0.0
      %v5904 = vmax.f32 %v5872, 0.0
      %v5905 = vmax.f32 %v5873, 0.0
      %v5906 = vmax.f32 %v5874, 0.0
      %v5907 = vmax.f32 %v5875, 0.0
      %v5908 = vmax.f32 %v5876, 0.0
      %v5909 = vmax.f32 %v5877, 0.0
      %v5910 = vmax.f32 %v5878, 0.0
      %v5911 = vmax.f32 %v5879, 0.0
      %v5912 = vpack.c.bf16 %v5881, %v5880
      %v5913 = vpack.c.bf16 %v5883, %v5882
      %v5914 = vpack.c.bf16 %v5885, %v5884
      %v5915 = vpack.c.bf16 %v5887, %v5886
      %v5916 = vpack.c.bf16 %v5889, %v5888
      %v5917 = vpack.c.bf16 %v5891, %v5890
      %v5918 = vpack.c.bf16 %v5893, %v5892
      %v5919 = vpack.c.bf16 %v5895, %v5894
      %v5920 = vpack.c.bf16 %v5897, %v5896
      %v5921 = vpack.c.bf16 %v5899, %v5898
      %v5922 = vpack.c.bf16 %v5901, %v5900
      %v5923 = vpack.c.bf16 %v5903, %v5902
      %v5924 = vpack.c.bf16 %v5905, %v5904
      %v5925 = vpack.c.bf16 %v5907, %v5906
      %v5926 = vpack.c.bf16 %v5909, %v5908
      %v5927 = vpack.c.bf16 %v5911, %v5910
      %v5928 = vld [vmem:[%s257] sm:$0xf]
      %v5929 = vld [vmem:[%s257 + $0x4] sm:$0xf]
      %v5930 = vld [vmem:[%s257 + $0x8] sm:$0xf]
      %v5931 = vld [vmem:[%s257 + $0xc] sm:$0xf]
      %v5932 = vld [vmem:[%s257 + $0x10] sm:$0xf]
      %v5933 = vld [vmem:[%s257 + $0x14] sm:$0xf]
      %v5934 = vld [vmem:[%s257 + $0x18] sm:$0xf]
      %v5935 = vld [vmem:[%s257 + $0x1c] sm:$0xf]
      %v5936 = vld [vmem:[%s257 + $0x20] sm:$0xf]
      %v5937 = vld [vmem:[%s257 + $0x24] sm:$0xf]
      %v5938 = vld [vmem:[%s257 + $0x28] sm:$0xf]
      %v5939 = vld [vmem:[%s257 + $0x2c] sm:$0xf]
      %v5940 = vld [vmem:[%s257 + $0x30] sm:$0xf]
      %v5941 = vld [vmem:[%s257 + $0x34] sm:$0xf]
      %v5942 = vld [vmem:[%s257 + $0x38] sm:$0xf]
      %v5943 = vld [vmem:[%s257 + $0x3c] sm:$0xf]
      %v5944 = vld [vmem:[%s4] sm:$0x1]
      %v5946 = vlaneseq
      %v5947 = vshrl.u32 %v5946, 7
      %v5948 = vsub.s32 0, %v5947
      %v5949 = vrot.slane %v5944, %v5948
      %v5967 = vunpack.c.l.b16 %v5928
      %v5968 = vunpack.c.l.b16 %v5929
      %v5969 = vunpack.c.l.b16 %v5930
      %v5970 = vunpack.c.l.b16 %v5931
      %v5971 = vunpack.c.l.b16 %v5932
      %v5972 = vunpack.c.l.b16 %v5933
      %v5973 = vunpack.c.l.b16 %v5934
      %v5974 = vunpack.c.l.b16 %v5935
      %v5975 = vunpack.c.l.b16 %v5936
      %v5976 = vunpack.c.l.b16 %v5937
      %v5977 = vunpack.c.l.b16 %v5938
      %v5978 = vunpack.c.l.b16 %v5939
      %v5979 = vunpack.c.l.b16 %v5940
      %v5980 = vunpack.c.l.b16 %v5941
      %v5981 = vunpack.c.l.b16 %v5942
      %v5982 = vunpack.c.l.b16 %v5943
      %v5983 = vpack.c.b16 %v5968, %v5967
      %v5984 = vpack.c.b16 %v5970, %v5969
      %v5985 = vpack.c.b16 %v5972, %v5971
      %v5986 = vpack.c.b16 %v5974, %v5973
      %v5987 = vpack.c.b16 %v5976, %v5975
      %v5988 = vpack.c.b16 %v5978, %v5977
      %v5989 = vpack.c.b16 %v5980, %v5979
      %v5990 = vpack.c.b16 %v5982, %v5981
      %5999 = vmatprep.subr.bf16.mxu0 0
      %6000 = vmatpush1.bf16.msra.mxu0 %v5983
      %6001 = vmatprep.subr.bf16.mxu0 0
      %6002 = vmatpush1.bf16.msra.mxu0 %v5984
      %6003 = vmatprep.subr.bf16.mxu0 0
      %6004 = vmatpush1.bf16.msra.mxu0 %v5985
      %6005 = vmatprep.subr.bf16.mxu0 0
      %6006 = vmatpush1.bf16.msra.mxu0 %v5986
      %6007 = vmatprep.subr.bf16.mxu0 0
      %6008 = vmatpush1.bf16.msra.mxu0 %v5987
      %6009 = vmatprep.subr.bf16.mxu0 0
      %6010 = vmatpush1.bf16.msra.mxu0 %v5988
      %6011 = vmatprep.subr.bf16.mxu0 0
      %6012 = vmatpush1.bf16.msra.mxu0 %v5989
      %6013 = vmatprep.subr.bf16.mxu0 0
      %6014 = vmatpush1.bf16.msra.mxu0 %v5990
      %6015 = vmatprep.subr.bf16.mxu0 0
      %6016 = vmatpush1.bf16.msra.mxu0 0
      %6017 = vmatprep.subr.bf16.mxu0 0
      %6018 = vmatpush1.bf16.msra.mxu0 0
      %6019 = vmatprep.subr.bf16.mxu0 0
      %6020 = vmatpush1.bf16.msra.mxu0 0
      %6021 = vmatprep.subr.bf16.mxu0 0
      %6022 = vmatpush1.bf16.msra.mxu0 0
      %6023 = vmatprep.subr.bf16.mxu0 0
      %6024 = vmatpush1.bf16.msra.mxu0 0
      %6025 = vmatprep.subr.bf16.mxu0 0
      %6026 = vmatpush1.bf16.msra.mxu0 0
      %6027 = vmatprep.subr.bf16.mxu0 0
      %6028 = vmatpush1.bf16.msra.mxu0 0
      %6029 = vmatprep.subr.bf16.mxu0 0
      %6030 = vmatpush1.bf16.msra.mxu0 0
      %6031 = vmatprep.mubr.bf16.mxu0 0
      %6032 = vmatmul.mubr.bf16.gmra.mrb[0].mxu0 %v5912
      %v6033 = vpop.f32.mrb[0].mxu0
      %v6034 = vadd.f32 %v5949, %v6033
      %v6035 = vpop.f32.mrb[0].mxu0
      %v6036 = vpop.f32.mrb[0].mxu0
      %v6037 = vadd.f32 %v5949, %v6036
      %v6038 = vpop.f32.mrb[0].mxu0
      %6039 = vmatprep.mubr.bf16.mxu0 0
      %6040 = vmatmul.mubr.bf16.gmra.mrb[0].mxu0 %v5913
      %v6041 = vpop.f32.mrb[0].mxu0
      %v6042 = vadd.f32 %v5949, %v6041
      %v6043 = vpop.f32.mrb[0].mxu0
      %v6044 = vpop.f32.mrb[0].mxu0
      %v6045 = vadd.f32 %v5949, %v6044
      %v6046 = vpop.f32.mrb[0].mxu0
      %6047 = vmatprep.mubr.bf16.mxu0 0
      %6048 = vmatmul.mubr.bf16.gmra.mrb[0].mxu0 %v5914
      %v6049 = vpop.f32.mrb[0].mxu0
      %v6050 = vadd.f32 %v5949, %v6049
      %v6051 = vpop.f32.mrb[0].mxu0
      %v6052 = vpop.f32.mrb[0].mxu0
      %v6053 = vadd.f32 %v5949, %v6052
      %v6054 = vpop.f32.mrb[0].mxu0
      %6055 = vmatprep.mubr.bf16.mxu0 0
      %6056 = vmatmul.mubr.bf16.gmra.mrb[0].mxu0 %v5915
      %v6057 = vpop.f32.mrb[0].mxu0
      %v6058 = vadd.f32 %v5949, %v6057
      %v6059 = vpop.f32.mrb[0].mxu0
      %v6060 = vpop.f32.mrb[0].mxu0
      %v6061 = vadd.f32 %v5949, %v6060
      %v6062 = vpop.f32.mrb[0].mxu0
      %6063 = vmatprep.mubr.bf16.mxu0 0
      %6064 = vmatmul.mubr.bf16.gmra.mrb[0].mxu0 %v5916
      %v6065 = vpop.f32.mrb[0].mxu0
      %v6066 = vadd.f32 %v5949, %v6065
      %v6067 = vpop.f32.mrb[0].mxu0
      %v6068 = vpop.f32.mrb[0].mxu0
      %v6069 = vadd.f32 %v5949, %v6068
      %v6070 = vpop.f32.mrb[0].mxu0
      %6071 = vmatprep.mubr.bf16.mxu0 0
      %6072 = vmatmul.mubr.bf16.gmra.mrb[0].mxu0 %v5917
      %v6073 = vpop.f32.mrb[0].mxu0
      %v6074 = vadd.f32 %v5949, %v6073
      %v6075 = vpop.f32.mrb[0].mxu0
      %v6076 = vpop.f32.mrb[0].mxu0
      %v6077 = vadd.f32 %v5949, %v6076
      %v6078 = vpop.f32.mrb[0].mxu0
      %6079 = vmatprep.mubr.bf16.mxu0 0
      %6080 = vmatmul.mubr.bf16.gmra.mrb[0].mxu0 %v5918
      %v6081 = vpop.f32.mrb[0].mxu0
      %v6082 = vadd.f32 %v5949, %v6081
      %v6083 = vpop.f32.mrb[0].mxu0
      %v6084 = vpop.f32.mrb[0].mxu0
      %v6085 = vadd.f32 %v5949, %v6084
      %v6086 = vpop.f32.mrb[0].mxu0
      %6087 = vmatprep.mubr.bf16.mxu0 0
      %6088 = vmatmul.mubr.bf16.gmra.mrb[0].mxu0 %v5919
      %v6089 = vpop.f32.mrb[0].mxu0
      %v6090 = vadd.f32 %v5949, %v6089
      %v6091 = vpop.f32.mrb[0].mxu0
      %v6092 = vpop.f32.mrb[0].mxu0
      %v6093 = vadd.f32 %v5949, %v6092
      %v6094 = vpop.f32.mrb[0].mxu0
      %6095 = vmatprep.mubr.bf16.mxu0 0
      %6096 = vmatmul.mubr.bf16.gmra.mrb[0].mxu0 %v5920
      %v6097 = vpop.f32.mrb[0].mxu0
      %v6098 = vadd.f32 %v5949, %v6097
      %v6099 = vpop.f32.mrb[0].mxu0
      %v6100 = vpop.f32.mrb[0].mxu0
      %v6101 = vadd.f32 %v5949, %v6100
      %v6102 = vpop.f32.mrb[0].mxu0
      %6103 = vmatprep.mubr.bf16.mxu0 0
      %6104 = vmatmul.mubr.bf16.gmra.mrb[0].mxu0 %v5921
      %v6105 = vpop.f32.mrb[0].mxu0
      %v6106 = vadd.f32 %v5949, %v6105
      %v6107 = vpop.f32.mrb[0].mxu0
      %v6108 = vpop.f32.mrb[0].mxu0
      %v6109 = vadd.f32 %v5949, %v6108
      %v6110 = vpop.f32.mrb[0].mxu0
      %6111 = vmatprep.mubr.bf16.mxu0 0
      %6112 = vmatmul.mubr.bf16.gmra.mrb[0].mxu0 %v5922
      %v6113 = vpop.f32.mrb[0].mxu0
      %v6114 = vadd.f32 %v5949, %v6113
      %v6115 = vpop.f32.mrb[0].mxu0
      %v6116 = vpop.f32.mrb[0].mxu0
      %v6117 = vadd.f32 %v5949, %v6116
      %v6118 = vpop.f32.mrb[0].mxu0
      %6119 = vmatprep.mubr.bf16.mxu0 0
      %6120 = vmatmul.mubr.bf16.gmra.mrb[0].mxu0 %v5923
      %v6121 = vpop.f32.mrb[0].mxu0
      %v6122 = vadd.f32 %v5949, %v6121
      %v6123 = vpop.f32.mrb[0].mxu0
      %v6124 = vpop.f32.mrb[0].mxu0
      %v6125 = vadd.f32 %v5949, %v6124
      %v6126 = vpop.f32.mrb[0].mxu0
      %6127 = vmatprep.mubr.bf16.mxu0 0
      %6128 = vmatmul.mubr.bf16.gmra.mrb[0].mxu0 %v5924
      %v6129 = vpop.f32.mrb[0].mxu0
      %v6130 = vadd.f32 %v5949, %v6129
      %v6131 = vpop.f32.mrb[0].mxu0
      %v6132 = vpop.f32.mrb[0].mxu0
      %v6133 = vadd.f32 %v5949, %v6132
      %v6134 = vpop.f32.mrb[0].mxu0
      %6135 = vmatprep.mubr.bf16.mxu0 0
      %6136 = vmatmul.mubr.bf16.gmra.mrb[0].mxu0 %v5925
      %v6137 = vpop.f32.mrb[0].mxu0
      %v6138 = vadd.f32 %v5949, %v6137
      %v6139 = vpop.f32.mrb[0].mxu0
      %v6140 = vpop.f32.mrb[0].mxu0
      %v6141 = vadd.f32 %v5949, %v6140
      %v6142 = vpop.f32.mrb[0].mxu0
      %6143 = vmatprep.mubr.bf16.mxu0 0
      %6144 = vmatmul.mubr.bf16.gmra.mrb[0].mxu0 %v5926
      %v6145 = vpop.f32.mrb[0].mxu0
      %v6146 = vadd.f32 %v5949, %v6145
      %v6147 = vpop.f32.mrb[0].mxu0
      %v6148 = vpop.f32.mrb[0].mxu0
      %v6149 = vadd.f32 %v5949, %v6148
      %v6150 = vpop.f32.mrb[0].mxu0
      %6151 = vmatprep.mubr.bf16.mxu0 0
      %6152 = vmatmul.mubr.bf16.gmra.mrb[0].mxu0 %v5927
      %v6153 = vpop.f32.mrb[0].mxu0
      %v6154 = vadd.f32 %v5949, %v6153
      %v6155 = vpop.f32.mrb[0].mxu0
      %v6156 = vpop.f32.mrb[0].mxu0
      %v6157 = vadd.f32 %v5949, %v6156
      %v6158 = vpop.f32.mrb[0].mxu0
      %6159 = vdwg.mxu0
      %6160 = vxpose.xlu0.b32.start [1/16] %v6034, 128
      %6161 = vxpose.xlu0.b32.cont [2/16] %v6037, 128
      %6162 = vxpose.xlu0.b32.cont [3/16] %v6042, 128
      %6163 = vxpose.xlu0.b32.cont [4/16] %v6045, 128
      %6164 = vxpose.xlu0.b32.cont [5/16] %v6050, 128
      %6165 = vxpose.xlu0.b32.cont [6/16] %v6053, 128
      %6166 = vxpose.xlu0.b32.cont [7/16] %v6058, 128
      %6167 = vxpose.xlu0.b32.cont [8/16] %v6061, 128
      %6168 = vxpose.xlu0.b32.cont [9/16] %v6066, 128
      %6169 = vxpose.xlu0.b32.cont [10/16] %v6069, 128
      %6170 = vxpose.xlu0.b32.cont [11/16] %v6074, 128
      %6171 = vxpose.xlu0.b32.cont [12/16] %v6077, 128
      %6172 = vxpose.xlu0.b32.cont [13/16] %v6082, 128
      %6173 = vxpose.xlu0.b32.cont [14/16] %v6085, 128
      %6174 = vxpose.xlu0.b32.cont [15/16] %v6090, 128
      %6175 = vxpose.xlu0.b32.end [16/16] %v6093, 128
      %v6176 = vpop.trf.xlu0
      %v6177 = vpop.trf.xlu0
      %v6178 = vpop.trf.xlu0
      %v6179 = vpop.trf.xlu0
      %v6180 = vpop.trf.xlu0
      %v6181 = vpop.trf.xlu0
      %v6182 = vpop.trf.xlu0
      %v6183 = vpop.trf.xlu0
      %v6184 = vpop.trf.xlu0
      %v6185 = vpop.trf.xlu0
      %v6186 = vpop.trf.xlu0
      %v6187 = vpop.trf.xlu0
      %v6188 = vpop.trf.xlu0
      %v6189 = vpop.trf.xlu0
      %v6190 = vpop.trf.xlu0
      %v6191 = vpop.trf.xlu0
      %6192 = vxpose.xlu0.b32.start [1/16] %v6098, 128
      %6193 = vxpose.xlu0.b32.cont [2/16] %v6101, 128
      %6194 = vxpose.xlu0.b32.cont [3/16] %v6106, 128
      %6195 = vxpose.xlu0.b32.cont [4/16] %v6109, 128
      %6196 = vxpose.xlu0.b32.cont [5/16] %v6114, 128
      %6197 = vxpose.xlu0.b32.cont [6/16] %v6117, 128
      %6198 = vxpose.xlu0.b32.cont [7/16] %v6122, 128
      %6199 = vxpose.xlu0.b32.cont [8/16] %v6125, 128
      %6200 = vxpose.xlu0.b32.cont [9/16] %v6130, 128
      %6201 = vxpose.xlu0.b32.cont [10/16] %v6133, 128
      %6202 = vxpose.xlu0.b32.cont [11/16] %v6138, 128
      %6203 = vxpose.xlu0.b32.cont [12/16] %v6141, 128
      %6204 = vxpose.xlu0.b32.cont [13/16] %v6146, 128
      %6205 = vxpose.xlu0.b32.cont [14/16] %v6149, 128
      %6206 = vxpose.xlu0.b32.cont [15/16] %v6154, 128
      %6207 = vxpose.xlu0.b32.end [16/16] %v6157, 128
      %v6208 = vpop.trf.xlu0
      %v6209 = vpop.trf.xlu0
      %v6210 = vpop.trf.xlu0
      %v6211 = vpop.trf.xlu0
      %v6212 = vpop.trf.xlu0
      %v6213 = vpop.trf.xlu0
      %v6214 = vpop.trf.xlu0
      %v6215 = vpop.trf.xlu0
      %v6216 = vpop.trf.xlu0
      %v6217 = vpop.trf.xlu0
      %v6218 = vpop.trf.xlu0
      %v6219 = vpop.trf.xlu0
      %v6220 = vpop.trf.xlu0
      %v6221 = vpop.trf.xlu0
      %v6222 = vpop.trf.xlu0
      %v6223 = vpop.trf.xlu0
      %6224 = vst [vmem:[%s266] sm:$0xff] %v6176
      %6225 = vst [vmem:[%s266 + $0x8] sm:$0xff] %v6208
      %6226 = vst [vmem:[%s266 + $0x10] sm:$0xff] %v6177
      %6227 = vst [vmem:[%s266 + $0x18] sm:$0xff] %v6209
      %6228 = vst [vmem:[%s266 + $0x20] sm:$0xff] %v6178
      %6229 = vst [vmem:[%s266 + $0x28] sm:$0xff] %v6210
      %6230 = vst [vmem:[%s266 + $0x30] sm:$0xff] %v6179
      %6231 = vst [vmem:[%s266 + $0x38] sm:$0xff] %v6211
      %6232 = vst [vmem:[%s266 + $0x40] sm:$0xff] %v6180
      %6233 = vst [vmem:[%s266 + $0x48] sm:$0xff] %v6212
      %6234 = vst [vmem:[%s266 + $0x50] sm:$0xff] %v6181
      %6235 = vst [vmem:[%s266 + $0x58] sm:$0xff] %v6213
      %6236 = vst [vmem:[%s266 + $0x60] sm:$0xff] %v6182
      %6237 = vst [vmem:[%s266 + $0x68] sm:$0xff] %v6214
      %6238 = vst [vmem:[%s266 + $0x70] sm:$0xff] %v6183
      %6239 = vst [vmem:[%s266 + $0x78] sm:$0xff] %v6215
      %6240 = vst [vmem:[%s266 + $0x80] sm:$0xff] %v6184
      %6241 = vst [vmem:[%s266 + $0x88] sm:$0xff] %v6216
      %6242 = vst [vmem:[%s266 + $0x90] sm:$0xff] %v6185
      %6243 = vst [vmem:[%s266 + $0x98] sm:$0xff] %v6217
      %6244 = vst [vmem:[%s266 + $0xa0] sm:$0xff] %v6186
      %6245 = vst [vmem:[%s266 + $0xa8] sm:$0xff] %v6218
      %6246 = vst [vmem:[%s266 + $0xb0] sm:$0xff] %v6187
      %6247 = vst [vmem:[%s266 + $0xb8] sm:$0xff] %v6219
      %6248 = vst [vmem:[%s266 + $0xc0] sm:$0xff] %v6188
      %6249 = vst [vmem:[%s266 + $0xc8] sm:$0xff] %v6220
      %6250 = vst [vmem:[%s266 + $0xd0] sm:$0xff] %v6189
      %6251 = vst [vmem:[%s266 + $0xd8] sm:$0xff] %v6221
      %6252 = vst [vmem:[%s266 + $0xe0] sm:$0xff] %v6190
      %6253 = vst [vmem:[%s266 + $0xe8] sm:$0xff] %v6222
      %6254 = vst [vmem:[%s266 + $0xf0] sm:$0xff] %v6191
      %6255 = vst [vmem:[%s266 + $0xf8] sm:$0xff] %v6223
      %s6256 = smul.u32 2, %s21
      %p6257 = scmp.lt.s32.totalorder %s20, 1
      %s6258 = scalar_select %p6257, %s20, 1
      %p6259 = scmp.lt.s32.totalorder %s6256, 1
      %s6260 = scalar_select %p6259, %s6256, 1
      %s6261 = smul.addr %s6258, 32
      %s6262 = sadd.s32 %s6260, %s6261
      %s6263 = smul.addr %s6262, 8
      %s6264 = scalar_lea.vmem %s5, %s6263
      // Predicated region
      $region41: #{danet_head_forward.3} parent=39 // pred_check
        %p6265 = pneg %p163
      $region42: #{danet_head_forward.3} parent=39 // pred_check_branch
        %6267 = sbr.rel (%p6265) target = $region44
      $region43: #{danet_head_forward.3} parent=39 // pred_region
        %s6268 = smul.u32 2, %s21
      $region44: #{danet_head_forward.3} parent=39 // pred_fallthru
        _
    $region40: #{danet_head_forward.3} parent=5 // pred_fallthru
      _
    %p6269 = scmp.le.s32.totalorder 2, %s11
    // Predicated region
    $region45: #{danet_head_forward.3} parent=5 // pred_check
      %p6270 = pneg %p6269
    $region46: #{danet_head_forward.3} parent=5 // pred_check_branch
      %6272 = sbr.rel (%p6270) target = $region48
    $region47: #{danet_head_forward.3} parent=5 // pred_region
      %s6273 = ssub.s32 %s11, 2
      // Predicated region
      $region49: #{danet_head_forward.3} parent=47 // pred_check
        %p6274 = pneg %p169
      $region50: #{danet_head_forward.3} parent=47 // pred_check_branch
        %6276 = sbr.rel (%p6274) target = $region52
      $region51: #{danet_head_forward.3} parent=47 // pred_region
        %s6277 = smul.u32 2, %s23
        %p6278 = scmp.lt.s32.totalorder %s22, 1
        %s6279 = scalar_select %p6278, %s22, 1
        %p6280 = scmp.lt.s32.totalorder %s6277, 1
        %s6281 = scalar_select %p6280, %s6277, 1
        %s6282 = smul.addr %s6279, 32
        %s6283 = sadd.s32 %s6281, %s6282
        %s6284 = smul.addr %s6283, 8
        %s6285 = scalar_lea.vmem %s5, %s6284
      $region52: #{danet_head_forward.3} parent=47 // pred_fallthru
        _
    $region48: #{danet_head_forward.3} parent=5 // pred_fallthru
      _
  $region6: #{danet_head_forward.3} parent=0 // loop_footer
    %s15 = sadd.s32 1, %s11
  $region7: #{danet_head_forward.3} parent=0 // loop_footer_branch
    %10 = sbr.rel target = $region3
  $region8: #{danet_head_forward.3} parent=0 // loop_exit
    _

</llo_original>
